<compile_context>
chip_gen: v7x
topology: tpu7x:2x2x1
jax: 0.10.0
libtpu: 0.0.40
codegen_flags: <defaults>
</compile_context>

<pallas_src>
import functools

import jax
import jax.numpy as jnp
from jax.experimental import pallas as pl
from jax.experimental.pallas import tpu as pltpu

_VMEM = pl.BlockSpec(memory_space=pltpu.MemorySpace.VMEM)
_BN_EPS = 1e-5


# ----------------------------------------------------------------------------
# Pallas kernels
# ----------------------------------------------------------------------------
def _conv_relu_bn_pool_kernel(c_ref, w_ref, b_ref, g_ref, beta_ref, o_ref, *,
                              cout, inv_m):
    """Encoder block: Conv(3x3,p=1) -> ReLU -> BN(train) -> MaxPool(2x2).

    c_ref : [R, 16*Cin]  4x4-patch im2col, one row per *pooled* output position
    w_ref : [16*Cin, 4*Cout]  combined conv matrix, lane blocks = pool phases
    b_ref : [1, 4*Cout]  bias tiled over the 4 phases
    One matmul yields all four pre-pool phases lane-packed; pooling is a max
    over the 4 lane blocks and BN statistics combine the same blocks.
    """
    a = jnp.dot(c_ref[...], w_ref[...], preferred_element_type=jnp.float32)
    a = jnp.maximum(a + b_ref[...], 0.0)                     # bias + ReLU (f32)
    blk = lambda v, p: v[:, p * cout:(p + 1) * cout]
    # BN training stats over all N*H*W conv outputs (biased variance).
    # TODO(synk): single-pass E[x^2]-E[x]^2 (clamped); use two-pass stats if
    #             bit-level parity with torch is ever required.
    s4 = jnp.sum(a, axis=0, keepdims=True)
    ss4 = jnp.sum(a * a, axis=0, keepdims=True)
    s = blk(s4, 0) + blk(s4, 1) + blk(s4, 2) + blk(s4, 3)
    ss = blk(ss4, 0) + blk(ss4, 1) + blk(ss4, 2) + blk(ss4, 3)
    mean = s * inv_m
    var = jnp.maximum(ss * inv_m - mean * mean, 0.0)
    scale = jax.lax.rsqrt(var + _BN_EPS) * g_ref[...]
    shift = beta_ref[...] - mean * scale
    # MaxPool over the 4 phases.  BN is a per-channel affine map, so
    # max(scale*x+shift) = scale*max(x)+shift for scale>=0 and
    # scale*min(x)+shift otherwise -> one scale/shift on the pooled slab.
    pmax = jnp.maximum(jnp.maximum(blk(a, 0), blk(a, 1)),
                       jnp.maximum(blk(a, 2), blk(a, 3)))
    pmin = jnp.minimum(jnp.minimum(blk(a, 0), blk(a, 1)),
                       jnp.minimum(blk(a, 2), blk(a, 3)))
    pooled = jnp.where(scale >= 0.0, pmax, pmin) * scale + shift
    o_ref[...] = pooled.astype(o_ref.dtype)


def _fc_fc_kernel(x_ref, w1_ref, b1_ref, w2_ref, b2_ref, o_ref):
    """Flatten -> Linear -> ReLU -> Linear -> ReLU fused (encoder fc + decoder fc)."""
    h = jnp.dot(x_ref[...], w1_ref[...], preferred_element_type=jnp.float32)
    h = jnp.maximum(h + b1_ref[...], 0.0)
    h = jnp.dot(h.astype(w2_ref.dtype), w2_ref[...],
                preferred_element_type=jnp.float32)
    h = jnp.maximum(h + b2_ref[...], 0.0)
    o_ref[...] = h.astype(o_ref.dtype)


def _deconv_relu_bn_kernel(c_ref, w_ref, b_ref, g_ref, beta_ref, vmask_ref,
                           o_ref, *, cout, inv_m):
    """ConvTranspose(3x3,s=2,p=1,out_pad=(1,0)) -> ReLU -> BN(train).

    One matmul of the 2x2-patch im2col against the combined phase weight gives
    all four sub-pixel phases lane-packed in o_ref [R, 4*Cout] (lane-dense
    store); the host interleaves them with a reshape/transpose.
    """
    a = jnp.dot(c_ref[...], w_ref[...], preferred_element_type=jnp.float32)
    a = jnp.maximum(a + b_ref[...], 0.0)
    blk = lambda v, p: v[:, p * cout:(p + 1) * cout]
    # BN stats: EE/OE phases (blocks 0,2) use every row; EO/OO (blocks 1,3)
    # exclude rows whose odd output column (2W-1) falls outside the map.
    valid = vmask_ref[...]                                   # [R, 1] in {0,1}
    a2 = a * a
    s4 = jnp.sum(a, axis=0, keepdims=True)
    ss4 = jnp.sum(a2, axis=0, keepdims=True)
    sv4 = jnp.sum(a * valid, axis=0, keepdims=True)
    ssv4 = jnp.sum(a2 * valid, axis=0, keepdims=True)
    s = blk(s4, 0) + blk(sv4, 1) + blk(s4, 2) + blk(sv4, 3)
    ss = blk(ss4, 0) + blk(ssv4, 1) + blk(ss4, 2) + blk(ssv4, 3)
    mean = s * inv_m
    var = jnp.maximum(ss * inv_m - mean * mean, 0.0)
    scale = jax.lax.rsqrt(var + _BN_EPS) * g_ref[...]
    shift = beta_ref[...] - mean * scale
    scale4 = jnp.concatenate([scale, scale, scale, scale], axis=-1)
    shift4 = jnp.concatenate([shift, shift, shift, shift], axis=-1)
    o_ref[...] = (a * scale4 + shift4).astype(o_ref.dtype)


def _deconv_sigmoid_kernel(c_ref, w_ref, b_ref, o_ref):
    """ConvTranspose(3x3,s=2,p=1,out_pad=(1,0)) -> Sigmoid, lane-packed phases."""
    a = jnp.dot(c_ref[...], w_ref[...], preferred_element_type=jnp.float32)
    a = a + b_ref[...]
    o_ref[...] = (0.5 * (jnp.tanh(0.5 * a) + 1.0)).astype(o_ref.dtype)


# ----------------------------------------------------------------------------
# Kernel wrappers
# ----------------------------------------------------------------------------
def conv_relu_bn_pool(cols, w, b4, gamma, beta, *, cout, out_dtype=jnp.bfloat16):
    rows = cols.shape[0]
    kernel = functools.partial(_conv_relu_bn_pool_kernel, cout=cout,
                               inv_m=1.0 / (4.0 * rows))
    return pl.pallas_call(
        kernel,
        out_shape=jax.ShapeDtypeStruct((rows, cout), out_dtype),
        in_specs=[_VMEM] * 5,
        out_specs=_VMEM,
    )(cols, w, b4, gamma, beta)


def fc_fc(x, w1, b1, w2, b2, *, out_dtype=jnp.bfloat16):
    return pl.pallas_call(
        _fc_fc_kernel,
        out_shape=jax.ShapeDtypeStruct((x.shape[0], w2.shape[1]), out_dtype),
        in_specs=[_VMEM] * 5,
        out_specs=_VMEM,
    )(x, w1, b1, w2, b2)


def deconv_relu_bn(cols, w, b4, gamma, beta, vmask, *, cout, n_valid,
                   out_dtype=jnp.bfloat16):
    rows = cols.shape[0]
    kernel = functools.partial(_deconv_relu_bn_kernel, cout=cout,
                               inv_m=1.0 / float(n_valid))
    return pl.pallas_call(
        kernel,
        out_shape=jax.ShapeDtypeStruct((rows, 4 * cout), out_dtype),
        in_specs=[_VMEM] * 6,
        out_specs=_VMEM,
    )(cols, w, b4, gamma, beta, vmask)


def deconv_sigmoid(cols, w, b4, *, cout, out_dtype=jnp.float32):
    rows = cols.shape[0]
    return pl.pallas_call(
        _deconv_sigmoid_kernel,
        out_shape=jax.ShapeDtypeStruct((rows, 4 * cout), out_dtype),
        in_specs=[_VMEM] * 3,
        out_specs=_VMEM,
    )(cols, w, b4)


# ----------------------------------------------------------------------------
# Host-side glue (pure data movement, XLA)
# ----------------------------------------------------------------------------
def conv_pool_patches(x):
    """x: [N,H,W,C] (H,W even).  4x4-patch im2col: one row per *pooled* output
    position (n, oh, ow); the 16 taps of its 4x4 receptive field packed along
    lanes -> [N*H/2*W/2, 16*C]."""
    n, h, w, c = x.shape
    xp = jnp.pad(x, ((0, 0), (1, 1), (1, 1), (0, 0)))
    h2, w2 = h // 2, w // 2
    taps = [xp[:, di:di + 2 * h2:2, dj:dj + 2 * w2:2, :]
            for di in range(4) for dj in range(4)]
    cols = jnp.concatenate(taps, axis=-1).reshape(n * h2 * w2, 16 * c)
    return cols, (n, h2, w2)


def deconv_patches(x):
    """x: [N,H,W,C].  2x2-patch im2col (taps x[h,w], x[h,w+1], x[h+1,w],
    x[h+1,w+1]; bottom/right zero-padded), one row per input pixel."""
    n, h, w, c = x.shape
    xp = jnp.pad(x, ((0, 0), (0, 1), (0, 1), (0, 0)))
    cols = jnp.concatenate([xp[:, :h, :w, :], xp[:, :h, 1:, :],
                            xp[:, 1:, :w, :], xp[:, 1:, 1:, :]],
                           axis=-1).reshape(n * h * w, 4 * c)
    return cols, (n, h, w)


def interleave_phases(packed, n, h, w, cout):
    """[N*H*W, 4*Cout] lane-packed phases (EE,EO,OE,OO) -> [N, 2H, 2W-1, Cout]
    via reshape/transpose + slice (no zeros + scatter)."""
    y = packed.reshape(n, h, w, 2, 2, cout)
    y = jnp.transpose(y, (0, 1, 3, 2, 4, 5)).reshape(n, 2 * h, 2 * w, cout)
    return y[:, :, :2 * w - 1, :]


# ----------------------------------------------------------------------------
# Parameters (PyTorch layouts) + one-time re-layout into kernel-ready form
# ----------------------------------------------------------------------------
def init_params(key, encoding_dim, max_length):
    mh = max_length // 4
    fc_dim = 64 * mh * 15
    ks = jax.random.split(key, 8)

    def nrm(k, shape, scale=0.05):
        return (scale * jax.random.normal(k, shape)).astype(jnp.float32)

    return {
        "conv1_w": nrm(ks[0], (32, 62, 3, 3)),          # Conv2d (Cout,Cin,kh,kw)
        "conv1_b": jnp.zeros((32,), jnp.float32),
        "bn1_g": jnp.ones((32,), jnp.float32),
        "bn1_b": jnp.zeros((32,), jnp.float32),
        "conv2_w": nrm(ks[1], (64, 32, 3, 3)),
        "conv2_b": jnp.zeros((64,), jnp.float32),
        "bn2_g": jnp.ones((64,), jnp.float32),
        "bn2_b": jnp.zeros((64,), jnp.float32),
        "fc1_w": nrm(ks[2], (encoding_dim, fc_dim), 0.02),   # Linear (out, in)
        "fc1_b": nrm(ks[3], (encoding_dim,), 0.02),
        "fc2_w": nrm(ks[4], (fc_dim, encoding_dim), 0.02),
        "fc2_b": jnp.zeros((fc_dim,), jnp.float32),
        "dct1_w": nrm(ks[5], (64, 32, 3, 3)),           # ConvT (Cin,Cout,kh,kw)
        "dct1_b": jnp.zeros((32,), jnp.float32),
        "bn3_g": jnp.ones((32,), jnp.float32),
        "bn3_b": jnp.zeros((32,), jnp.float32),
        "dct2_w": nrm(ks[6], (32, 62, 3, 3)),
        "dct2_b": jnp.zeros((62,), jnp.float32),
    }


def _conv_pool_weight(w, cin_pad=None):
    """Conv2d weight (Cout,Cin,3,3) -> combined bf16 [16*Cin, 4*Cout]: row block
    = 4x4-patch tap (di,dj), column block = pool phase (pi,pj); entry is
    W[:, :, di-pi, dj-pj] when that tap lies inside the phase's 3x3 window."""
    cout, cin = w.shape[0], w.shape[1]
    if cin_pad is not None and cin_pad > cin:
        w = jnp.pad(w, ((0, 0), (0, cin_pad - cin), (0, 0), (0, 0)))
        cin = cin_pad
    wt = jnp.transpose(w, (1, 2, 3, 0))                     # (Cin, ki, kj, Cout)
    zero = jnp.zeros((cin, cout), w.dtype)
    rows = []
    for di in range(4):
        for dj in range(4):
            blocks = []
            for pi in range(2):
                for pj in range(2):
                    ki, kj = di - pi, dj - pj
                    blocks.append(wt[:, ki, kj, :]
                                  if 0 <= ki <= 2 and 0 <= kj <= 2 else zero)
            rows.append(jnp.concatenate(blocks, axis=1))
    return jnp.concatenate(rows, axis=0).astype(jnp.bfloat16)


def _deconv_weight(w, cout_pad=None):
    """ConvTranspose2d weight (Cin,Cout,3,3) -> combined bf16 [4*Cin, 4*Cout]:
    row block = 2x2 input tap, column block = sub-pixel phase (EE,EO,OE,OO)."""
    if cout_pad is not None and cout_pad > w.shape[1]:
        w = jnp.pad(w, ((0, 0), (0, cout_pad - w.shape[1]), (0, 0), (0, 0)))
    cin, cout = w.shape[0], w.shape[1]
    t = lambda ki, kj: w[:, :, ki, kj]
    z = jnp.zeros((cin, cout), w.dtype)
    rows = [jnp.concatenate([t(1, 1), t(1, 2), t(2, 1), t(2, 2)], axis=1),  # x[h, w]
            jnp.concatenate([z,       t(1, 0), z,       t(2, 0)], axis=1),  # x[h, w+1]
            jnp.concatenate([z,       z,       t(0, 1), t(0, 2)], axis=1),  # x[h+1, w]
            jnp.concatenate([z,       z,       z,       t(0, 0)], axis=1)]  # x[h+1, w+1]
    return jnp.concatenate(rows, axis=0).astype(jnp.bfloat16)


def prepare_params(p, encoding_dim, max_length):
    """One-time weight re-layout (hoisted out of forward)."""
    mh = max_length // 4
    fc_dim = 64 * mh * 15
    row = lambda v: v.reshape(1, -1).astype(jnp.float32)
    tile4 = lambda v: jnp.tile(v.reshape(1, -1).astype(jnp.float32), (1, 4))
    # fc weights with the NCHW<->NHWC flatten permutation baked in.
    w1 = jnp.transpose(p["fc1_w"].reshape(encoding_dim, 64, mh, 15),
                       (2, 3, 1, 0)).reshape(fc_dim, encoding_dim)
    w2 = jnp.transpose(p["fc2_w"].reshape(64, mh, 15, encoding_dim),
                       (3, 1, 2, 0)).reshape(encoding_dim, fc_dim)
    b2 = jnp.transpose(p["fc2_b"].reshape(64, mh, 15), (1, 2, 0)).reshape(1, fc_dim)
    return {
        "conv1_w": _conv_pool_weight(p["conv1_w"], cin_pad=64),
        "conv1_b": tile4(p["conv1_b"]),
        "bn1_g": row(p["bn1_g"]), "bn1_b": row(p["bn1_b"]),
        "conv2_w": _conv_pool_weight(p["conv2_w"]),
        "conv2_b": tile4(p["conv2_b"]),
        "bn2_g": row(p["bn2_g"]), "bn2_b": row(p["bn2_b"]),
        "fc1_w": w1.astype(jnp.bfloat16), "fc1_b": row(p["fc1_b"]),
        "fc2_w": w2.astype(jnp.bfloat16), "fc2_b": b2.astype(jnp.float32),
        "dct1_w": _deconv_weight(p["dct1_w"]),
        "dct1_b": tile4(p["dct1_b"]),
        "bn3_g": row(p["bn3_g"]), "bn3_b": row(p["bn3_b"]),
        "dct2_w": _deconv_weight(p["dct2_w"], cout_pad=64),   # Cout 62 -> 64
        "dct2_b": tile4(jnp.pad(p["dct2_b"], (0, 2))),
    }


# ----------------------------------------------------------------------------
# Forward pass (matches AdaptiveAutoencoder.forward)
# ----------------------------------------------------------------------------
def forward(x_nchw, kp):
    n = x_nchw.shape[0]
    fc_dim = kp["fc2_b"].shape[1]
    mh = fc_dim // (64 * 15)

    # NCHW -> NHWC, pad Cin 62 -> 64 (pad lanes have zero conv weights), bf16.
    x = jnp.transpose(x_nchw, (0, 2, 3, 1)).astype(jnp.bfloat16)
    x = jnp.pad(x, ((0, 0), (0, 0), (0, 0), (0, 2)))

    # Encoder block 1: Conv(64->32)+ReLU+BN+MaxPool  (one kernel, one matmul)
    cols, (n_, h2, w2) = conv_pool_patches(x)
    y = conv_relu_bn_pool(cols, kp["conv1_w"], kp["conv1_b"],
                          kp["bn1_g"], kp["bn1_b"], cout=32)
    y = y.reshape(n_, h2, w2, 32)

    # Encoder block 2: Conv(32->64)+ReLU+BN+MaxPool  (one kernel, one matmul)
    cols, (n_, h2, w2) = conv_pool_patches(y)
    y = conv_relu_bn_pool(cols, kp["conv2_w"], kp["conv2_b"],
                          kp["bn2_g"], kp["bn2_b"], cout=64)
    # Rows are (n, h, w) with channels last; fc weights are pre-permuted for
    # this order so a plain reshape *is* the PyTorch Flatten.
    feat = y.reshape(n, h2 * w2 * 64)

    # Flatten -> Linear -> ReLU -> Linear -> ReLU  (one kernel)
    dec = fc_fc(feat, kp["fc1_w"], kp["fc1_b"], kp["fc2_w"], kp["fc2_b"])
    y = dec.reshape(n, mh, 15, 64)                       # NHWC Unflatten

    # ConvTranspose(64->32)+ReLU+BN  (one kernel, lane-packed phase output)
    cols, (n_, hin, win) = deconv_patches(y)
    w_idx = jax.lax.broadcasted_iota(jnp.int32, (n_ * hin * win, 1), 0) % win
    vmask = (w_idx != win - 1).astype(jnp.float32)       # excludes dropped col
    packed = deconv_relu_bn(cols, kp["dct1_w"], kp["dct1_b"],
                            kp["bn3_g"], kp["bn3_b"], vmask, cout=32,
                            n_valid=n_ * 2 * hin * (2 * win - 1))
    y = interleave_phases(packed, n_, hin, win, 32)

    # ConvTranspose(32->62, padded to 64)+Sigmoid  (one kernel, lane-packed)
    cols, (n_, hin, win) = deconv_patches(y)
    packed = deconv_sigmoid(cols, kp["dct2_w"], kp["dct2_b"], cout=64)
    y = interleave_phases(packed, n_, hin, win, 64)
    # Keep the padded 64 channels through the interleave and layout change;
    # slice 64 -> 62 only on the final contiguous NCHW channel dim.
    y = jnp.transpose(y, (0, 3, 1, 2))                   # NHWC -> NCHW
    return y[:, :62]


# ----------------------------------------------------------------------------
if __name__ == "__main__":
    encoding_dim = 32
    max_length = 8            # input height; width must be 60 (60 // 4 == 15)
    batch = 2

    key = jax.random.PRNGKey(0)
    k_in, k_par = jax.random.split(key)
    x = jax.random.uniform(k_in, (batch, 62, max_length, 60), dtype=jnp.float32)
    params = prepare_params(init_params(k_par, encoding_dim, max_length),
                            encoding_dim, max_length)

    out = jax.jit(forward)(x, params)
    out = jax.block_until_ready(out)

    # H: 8 -> pool 4 -> pool 2 -> deconv 4 -> 8 ; W: 60 -> 30 -> 15 -> 29 -> 57
    assert out.shape == (batch, 62, max_length, 57), out.shape
    assert bool(jnp.all(jnp.isfinite(out)))
    assert bool(jnp.all((out >= 0.0) & (out <= 1.0)))    # sigmoid output range
    print("KERNEL_OK")
</pallas_src>

<mosaic_0001>
module attributes {stable_mosaic.version = 11 : i64} {
  func.func @_conv_relu_bn_pool_kernel(%arg0: memref<240x1024xbf16, #tpu.memory_space<vmem>>, %arg1: memref<1024x128xbf16, #tpu.memory_space<vmem>>, %arg2: memref<1x128xf32, #tpu.memory_space<vmem>>, %arg3: memref<1x32xf32, #tpu.memory_space<vmem>>, %arg4: memref<1x32xf32, #tpu.memory_space<vmem>>, %arg5: memref<240x32xbf16, #tpu.memory_space<vmem>>) attributes {dimension_semantics = [], scalar_prefetch = 0 : i64, scratch_operands = 0 : i64, tpu.core_type = #tpu.core_type<tc>} {
    %c0 = arith.constant 0 : index
    %c0_0 = arith.constant 0 : index
    %0 = vector.load %arg0[%c0, %c0_0] : memref<240x1024xbf16, #tpu.memory_space<vmem>>, vector<240x1024xbf16>
    %c0_1 = arith.constant 0 : index
    %c0_2 = arith.constant 0 : index
    %1 = vector.load %arg1[%c0_1, %c0_2] : memref<1024x128xbf16, #tpu.memory_space<vmem>>, vector<1024x128xbf16>
    %cst = arith.constant dense<0.000000e+00> : vector<240x128xf32>
    %2 = tpu.matmul %0, %1, %cst {dimension_numbers = #tpu.dot_dimension_numbers<[1], [0], [0], [1], [0, 0, 1, 1], [], []>} : vector<240x1024xbf16>, vector<1024x128xbf16>, vector<240x128xf32> -> vector<240x128xf32>
    %c0_3 = arith.constant 0 : index
    %c0_4 = arith.constant 0 : index
    %3 = vector.load %arg2[%c0_3, %c0_4] : memref<1x128xf32, #tpu.memory_space<vmem>>, vector<1x128xf32>
    %4 = vector.broadcast %3 : vector<1x128xf32> to vector<240x128xf32>
    %5 = arith.addf %2, %4 : vector<240x128xf32>
    %cst_5 = arith.constant 0.000000e+00 : f32
    %6 = vector.broadcast %cst_5 : f32 to vector<240x128xf32>
    %7 = arith.maximumf %5, %6 : vector<240x128xf32>
    %cst_6 = arith.constant dense<0.000000e+00> : vector<128xf32>
    %8 = vector.multi_reduction <add>, %7, %cst_6 [0] : vector<240x128xf32> to vector<128xf32>
    %9 = vector.shape_cast %8 : vector<128xf32> to vector<1x128xf32>
    %10 = arith.mulf %7, %7 : vector<240x128xf32>
    %cst_7 = arith.constant dense<0.000000e+00> : vector<128xf32>
    %11 = vector.multi_reduction <add>, %10, %cst_7 [0] : vector<240x128xf32> to vector<128xf32>
    %12 = vector.shape_cast %11 : vector<128xf32> to vector<1x128xf32>
    %13 = vector.extract_strided_slice %9 {offsets = [0, 0], sizes = [1, 32], strides = [1, 1]} : vector<1x128xf32> to vector<1x32xf32>
    %14 = vector.extract_strided_slice %9 {offsets = [0, 32], sizes = [1, 32], strides = [1, 1]} : vector<1x128xf32> to vector<1x32xf32>
    %15 = arith.addf %13, %14 : vector<1x32xf32>
    %16 = vector.extract_strided_slice %9 {offsets = [0, 64], sizes = [1, 32], strides = [1, 1]} : vector<1x128xf32> to vector<1x32xf32>
    %17 = arith.addf %15, %16 : vector<1x32xf32>
    %18 = vector.extract_strided_slice %9 {offsets = [0, 96], sizes = [1, 32], strides = [1, 1]} : vector<1x128xf32> to vector<1x32xf32>
    %19 = arith.addf %17, %18 : vector<1x32xf32>
    %20 = vector.extract_strided_slice %12 {offsets = [0, 0], sizes = [1, 32], strides = [1, 1]} : vector<1x128xf32> to vector<1x32xf32>
    %21 = vector.extract_strided_slice %12 {offsets = [0, 32], sizes = [1, 32], strides = [1, 1]} : vector<1x128xf32> to vector<1x32xf32>
    %22 = arith.addf %20, %21 : vector<1x32xf32>
    %23 = vector.extract_strided_slice %12 {offsets = [0, 64], sizes = [1, 32], strides = [1, 1]} : vector<1x128xf32> to vector<1x32xf32>
    %24 = arith.addf %22, %23 : vector<1x32xf32>
    %25 = vector.extract_strided_slice %12 {offsets = [0, 96], sizes = [1, 32], strides = [1, 1]} : vector<1x128xf32> to vector<1x32xf32>
    %26 = arith.addf %24, %25 : vector<1x32xf32>
    %cst_8 = arith.constant 0.00104166672 : f32
    %27 = vector.broadcast %cst_8 : f32 to vector<1x32xf32>
    %28 = arith.mulf %19, %27 : vector<1x32xf32>
    %cst_9 = arith.constant 0.00104166672 : f32
    %29 = vector.broadcast %cst_9 : f32 to vector<1x32xf32>
    %30 = arith.mulf %26, %29 : vector<1x32xf32>
    %31 = arith.mulf %28, %28 : vector<1x32xf32>
    %32 = arith.subf %30, %31 : vector<1x32xf32>
    %cst_10 = arith.constant 0.000000e+00 : f32
    %33 = vector.broadcast %cst_10 : f32 to vector<1x32xf32>
    %34 = arith.maximumf %32, %33 : vector<1x32xf32>
    %cst_11 = arith.constant 9.99999974E-6 : f32
    %35 = vector.broadcast %cst_11 : f32 to vector<1x32xf32>
    %36 = arith.addf %34, %35 : vector<1x32xf32>
    %37 = math.rsqrt %36 : vector<1x32xf32>
    %c0_12 = arith.constant 0 : index
    %c0_13 = arith.constant 0 : index
    %38 = vector.load %arg3[%c0_12, %c0_13] : memref<1x32xf32, #tpu.memory_space<vmem>>, vector<1x32xf32>
    %39 = arith.mulf %37, %38 : vector<1x32xf32>
    %c0_14 = arith.constant 0 : index
    %c0_15 = arith.constant 0 : index
    %40 = vector.load %arg4[%c0_14, %c0_15] : memref<1x32xf32, #tpu.memory_space<vmem>>, vector<1x32xf32>
    %41 = arith.mulf %28, %39 : vector<1x32xf32>
    %42 = arith.subf %40, %41 : vector<1x32xf32>
    %43 = vector.extract_strided_slice %7 {offsets = [0, 0], sizes = [240, 32], strides = [1, 1]} : vector<240x128xf32> to vector<240x32xf32>
    %44 = vector.extract_strided_slice %7 {offsets = [0, 32], sizes = [240, 32], strides = [1, 1]} : vector<240x128xf32> to vector<240x32xf32>
    %45 = arith.maximumf %43, %44 : vector<240x32xf32>
    %46 = vector.extract_strided_slice %7 {offsets = [0, 64], sizes = [240, 32], strides = [1, 1]} : vector<240x128xf32> to vector<240x32xf32>
    %47 = vector.extract_strided_slice %7 {offsets = [0, 96], sizes = [240, 32], strides = [1, 1]} : vector<240x128xf32> to vector<240x32xf32>
    %48 = arith.maximumf %46, %47 : vector<240x32xf32>
    %49 = arith.maximumf %45, %48 : vector<240x32xf32>
    %50 = vector.extract_strided_slice %7 {offsets = [0, 0], sizes = [240, 32], strides = [1, 1]} : vector<240x128xf32> to vector<240x32xf32>
    %51 = vector.extract_strided_slice %7 {offsets = [0, 32], sizes = [240, 32], strides = [1, 1]} : vector<240x128xf32> to vector<240x32xf32>
    %52 = arith.minimumf %50, %51 : vector<240x32xf32>
    %53 = vector.extract_strided_slice %7 {offsets = [0, 64], sizes = [240, 32], strides = [1, 1]} : vector<240x128xf32> to vector<240x32xf32>
    %54 = vector.extract_strided_slice %7 {offsets = [0, 96], sizes = [240, 32], strides = [1, 1]} : vector<240x128xf32> to vector<240x32xf32>
    %55 = arith.minimumf %53, %54 : vector<240x32xf32>
    %56 = arith.minimumf %52, %55 : vector<240x32xf32>
    %cst_16 = arith.constant 0.000000e+00 : f32
    %57 = vector.broadcast %cst_16 : f32 to vector<1x32xf32>
    %58 = arith.cmpf oge, %39, %57 : vector<1x32xf32>
    %59 = vector.shape_cast %58 : vector<1x32xi1> to vector<1x32xi1>
    %60 = vector.broadcast %59 : vector<1x32xi1> to vector<240x32xi1>
    %61 = arith.select %60, %49, %56 : vector<240x32xi1>, vector<240x32xf32>
    %62 = vector.broadcast %39 : vector<1x32xf32> to vector<240x32xf32>
    %63 = arith.mulf %61, %62 : vector<240x32xf32>
    %64 = vector.broadcast %42 : vector<1x32xf32> to vector<240x32xf32>
    %65 = arith.addf %63, %64 : vector<240x32xf32>
    %66 = arith.truncf %65 : vector<240x32xf32> to vector<240x32xbf16>
    %c0_17 = arith.constant 0 : index
    %c0_18 = arith.constant 0 : index
    %67 = vector.load %arg5[%c0_17, %c0_18] : memref<240x32xbf16, #tpu.memory_space<vmem>>, vector<240x32xbf16>
    tpu.vector_store %arg5[%c0_17, %c0_18], %66 {strides = array<i32>} : memref<240x32xbf16, #tpu.memory_space<vmem>>, vector<240x32xbf16>,
    return
  }
}

module attributes {stable_mosaic.version = 11 : i64} {
  func.func @_conv_relu_bn_pool_kernel(%arg0: memref<60x512xbf16, #tpu.memory_space<vmem>>, %arg1: memref<512x256xbf16, #tpu.memory_space<vmem>>, %arg2: memref<1x256xf32, #tpu.memory_space<vmem>>, %arg3: memref<1x64xf32, #tpu.memory_space<vmem>>, %arg4: memref<1x64xf32, #tpu.memory_space<vmem>>, %arg5: memref<60x64xbf16, #tpu.memory_space<vmem>>) attributes {dimension_semantics = [], scalar_prefetch = 0 : i64, scratch_operands = 0 : i64, tpu.core_type = #tpu.core_type<tc>} {
    %c0 = arith.constant 0 : index
    %c0_0 = arith.constant 0 : index
    %0 = vector.load %arg0[%c0, %c0_0] : memref<60x512xbf16, #tpu.memory_space<vmem>>, vector<60x512xbf16>
    %c0_1 = arith.constant 0 : index
    %c0_2 = arith.constant 0 : index
    %1 = vector.load %arg1[%c0_1, %c0_2] : memref<512x256xbf16, #tpu.memory_space<vmem>>, vector<512x256xbf16>
    %cst = arith.constant dense<0.000000e+00> : vector<60x256xf32>
    %2 = tpu.matmul %0, %1, %cst {dimension_numbers = #tpu.dot_dimension_numbers<[1], [0], [0], [1], [0, 0, 1, 1], [], []>} : vector<60x512xbf16>, vector<512x256xbf16>, vector<60x256xf32> -> vector<60x256xf32>
    %c0_3 = arith.constant 0 : index
    %c0_4 = arith.constant 0 : index
    %3 = vector.load %arg2[%c0_3, %c0_4] : memref<1x256xf32, #tpu.memory_space<vmem>>, vector<1x256xf32>
    %4 = vector.broadcast %3 : vector<1x256xf32> to vector<60x256xf32>
    %5 = arith.addf %2, %4 : vector<60x256xf32>
    %cst_5 = arith.constant 0.000000e+00 : f32
    %6 = vector.broadcast %cst_5 : f32 to vector<60x256xf32>
    %7 = arith.maximumf %5, %6 : vector<60x256xf32>
    %cst_6 = arith.constant dense<0.000000e+00> : vector<256xf32>
    %8 = vector.multi_reduction <add>, %7, %cst_6 [0] : vector<60x256xf32> to vector<256xf32>
    %9 = vector.shape_cast %8 : vector<256xf32> to vector<1x256xf32>
    %10 = arith.mulf %7, %7 : vector<60x256xf32>
    %cst_7 = arith.constant dense<0.000000e+00> : vector<256xf32>
    %11 = vector.multi_reduction <add>, %10, %cst_7 [0] : vector<60x256xf32> to vector<256xf32>
    %12 = vector.shape_cast %11 : vector<256xf32> to vector<1x256xf32>
    %13 = vector.extract_strided_slice %9 {offsets = [0, 0], sizes = [1, 64], strides = [1, 1]} : vector<1x256xf32> to vector<1x64xf32>
    %14 = vector.extract_strided_slice %9 {offsets = [0, 64], sizes = [1, 64], strides = [1, 1]} : vector<1x256xf32> to vector<1x64xf32>
    %15 = arith.addf %13, %14 : vector<1x64xf32>
    %16 = vector.extract_strided_slice %9 {offsets = [0, 128], sizes = [1, 64], strides = [1, 1]} : vector<1x256xf32> to vector<1x64xf32>
    %17 = arith.addf %15, %16 : vector<1x64xf32>
    %18 = vector.extract_strided_slice %9 {offsets = [0, 192], sizes = [1, 64], strides = [1, 1]} : vector<1x256xf32> to vector<1x64xf32>
    %19 = arith.addf %17, %18 : vector<1x64xf32>
    %20 = vector.extract_strided_slice %12 {offsets = [0, 0], sizes = [1, 64], strides = [1, 1]} : vector<1x256xf32> to vector<1x64xf32>
    %21 = vector.extract_strided_slice %12 {offsets = [0, 64], sizes = [1, 64], strides = [1, 1]} : vector<1x256xf32> to vector<1x64xf32>
    %22 = arith.addf %20, %21 : vector<1x64xf32>
    %23 = vector.extract_strided_slice %12 {offsets = [0, 128], sizes = [1, 64], strides = [1, 1]} : vector<1x256xf32> to vector<1x64xf32>
    %24 = arith.addf %22, %23 : vector<1x64xf32>
    %25 = vector.extract_strided_slice %12 {offsets = [0, 192], sizes = [1, 64], strides = [1, 1]} : vector<1x256xf32> to vector<1x64xf32>
    %26 = arith.addf %24, %25 : vector<1x64xf32>
    %cst_8 = arith.constant 0.00416666688 : f32
    %27 = vector.broadcast %cst_8 : f32 to vector<1x64xf32>
    %28 = arith.mulf %19, %27 : vector<1x64xf32>
    %cst_9 = arith.constant 0.00416666688 : f32
    %29 = vector.broadcast %cst_9 : f32 to vector<1x64xf32>
    %30 = arith.mulf %26, %29 : vector<1x64xf32>
    %31 = arith.mulf %28, %28 : vector<1x64xf32>
    %32 = arith.subf %30, %31 : vector<1x64xf32>
    %cst_10 = arith.constant 0.000000e+00 : f32
    %33 = vector.broadcast %cst_10 : f32 to vector<1x64xf32>
    %34 = arith.maximumf %32, %33 : vector<1x64xf32>
    %cst_11 = arith.constant 9.99999974E-6 : f32
    %35 = vector.broadcast %cst_11 : f32 to vector<1x64xf32>
    %36 = arith.addf %34, %35 : vector<1x64xf32>
    %37 = math.rsqrt %36 : vector<1x64xf32>
    %c0_12 = arith.constant 0 : index
    %c0_13 = arith.constant 0 : index
    %38 = vector.load %arg3[%c0_12, %c0_13] : memref<1x64xf32, #tpu.memory_space<vmem>>, vector<1x64xf32>
    %39 = arith.mulf %37, %38 : vector<1x64xf32>
    %c0_14 = arith.constant 0 : index
    %c0_15 = arith.constant 0 : index
    %40 = vector.load %arg4[%c0_14, %c0_15] : memref<1x64xf32, #tpu.memory_space<vmem>>, vector<1x64xf32>
    %41 = arith.mulf %28, %39 : vector<1x64xf32>
    %42 = arith.subf %40, %41 : vector<1x64xf32>
    %43 = vector.extract_strided_slice %7 {offsets = [0, 0], sizes = [60, 64], strides = [1, 1]} : vector<60x256xf32> to vector<60x64xf32>
    %44 = vector.extract_strided_slice %7 {offsets = [0, 64], sizes = [60, 64], strides = [1, 1]} : vector<60x256xf32> to vector<60x64xf32>
    %45 = arith.maximumf %43, %44 : vector<60x64xf32>
    %46 = vector.extract_strided_slice %7 {offsets = [0, 128], sizes = [60, 64], strides = [1, 1]} : vector<60x256xf32> to vector<60x64xf32>
    %47 = vector.extract_strided_slice %7 {offsets = [0, 192], sizes = [60, 64], strides = [1, 1]} : vector<60x256xf32> to vector<60x64xf32>
    %48 = arith.maximumf %46, %47 : vector<60x64xf32>
    %49 = arith.maximumf %45, %48 : vector<60x64xf32>
    %50 = vector.extract_strided_slice %7 {offsets = [0, 0], sizes = [60, 64], strides = [1, 1]} : vector<60x256xf32> to vector<60x64xf32>
    %51 = vector.extract_strided_slice %7 {offsets = [0, 64], sizes = [60, 64], strides = [1, 1]} : vector<60x256xf32> to vector<60x64xf32>
    %52 = arith.minimumf %50, %51 : vector<60x64xf32>
    %53 = vector.extract_strided_slice %7 {offsets = [0, 128], sizes = [60, 64], strides = [1, 1]} : vector<60x256xf32> to vector<60x64xf32>
    %54 = vector.extract_strided_slice %7 {offsets = [0, 192], sizes = [60, 64], strides = [1, 1]} : vector<60x256xf32> to vector<60x64xf32>
    %55 = arith.minimumf %53, %54 : vector<60x64xf32>
    %56 = arith.minimumf %52, %55 : vector<60x64xf32>
    %cst_16 = arith.constant 0.000000e+00 : f32
    %57 = vector.broadcast %cst_16 : f32 to vector<1x64xf32>
    %58 = arith.cmpf oge, %39, %57 : vector<1x64xf32>
    %59 = vector.shape_cast %58 : vector<1x64xi1> to vector<1x64xi1>
    %60 = vector.broadcast %59 : vector<1x64xi1> to vector<60x64xi1>
    %61 = arith.select %60, %49, %56 : vector<60x64xi1>, vector<60x64xf32>
    %62 = vector.broadcast %39 : vector<1x64xf32> to vector<60x64xf32>
    %63 = arith.mulf %61, %62 : vector<60x64xf32>
    %64 = vector.broadcast %42 : vector<1x64xf32> to vector<60x64xf32>
    %65 = arith.addf %63, %64 : vector<60x64xf32>
    %66 = arith.truncf %65 : vector<60x64xf32> to vector<60x64xbf16>
    %c0_17 = arith.constant 0 : index
    %c0_18 = arith.constant 0 : index
    %67 = vector.load %arg5[%c0_17, %c0_18] : memref<60x64xbf16, #tpu.memory_space<vmem>>, vector<60x64xbf16>
    tpu.vector_store %arg5[%c0_17, %c0_18], %66 {strides = array<i32>} : memref<60x64xbf16, #tpu.memory_space<vmem>>, vector<60x64xbf16>,
    return
  }
}

module attributes {stable_mosaic.version = 11 : i64} {
  func.func @_fc_fc_kernel(%arg0: memref<2x1920xbf16, #tpu.memory_space<vmem>>, %arg1: memref<1920x32xbf16, #tpu.memory_space<vmem>>, %arg2: memref<1x32xf32, #tpu.memory_space<vmem>>, %arg3: memref<32x1920xbf16, #tpu.memory_space<vmem>>, %arg4: memref<1x1920xf32, #tpu.memory_space<vmem>>, %arg5: memref<2x1920xbf16, #tpu.memory_space<vmem>>) attributes {dimension_semantics = [], scalar_prefetch = 0 : i64, scratch_operands = 0 : i64, tpu.core_type = #tpu.core_type<tc>} {
    %c0 = arith.constant 0 : index
    %c0_0 = arith.constant 0 : index
    %0 = vector.load %arg0[%c0, %c0_0] : memref<2x1920xbf16, #tpu.memory_space<vmem>>, vector<2x1920xbf16>
    %c0_1 = arith.constant 0 : index
    %c0_2 = arith.constant 0 : index
    %1 = vector.load %arg1[%c0_1, %c0_2] : memref<1920x32xbf16, #tpu.memory_space<vmem>>, vector<1920x32xbf16>
    %cst = arith.constant dense<0.000000e+00> : vector<2x32xf32>
    %2 = tpu.matmul %0, %1, %cst {dimension_numbers = #tpu.dot_dimension_numbers<[1], [0], [0], [1], [0, 0, 1, 1], [], []>} : vector<2x1920xbf16>, vector<1920x32xbf16>, vector<2x32xf32> -> vector<2x32xf32>
    %c0_3 = arith.constant 0 : index
    %c0_4 = arith.constant 0 : index
    %3 = vector.load %arg2[%c0_3, %c0_4] : memref<1x32xf32, #tpu.memory_space<vmem>>, vector<1x32xf32>
    %4 = vector.broadcast %3 : vector<1x32xf32> to vector<2x32xf32>
    %5 = arith.addf %2, %4 : vector<2x32xf32>
    %cst_5 = arith.constant 0.000000e+00 : f32
    %6 = vector.broadcast %cst_5 : f32 to vector<2x32xf32>
    %7 = arith.maximumf %5, %6 : vector<2x32xf32>
    %8 = arith.truncf %7 : vector<2x32xf32> to vector<2x32xbf16>
    %c0_6 = arith.constant 0 : index
    %c0_7 = arith.constant 0 : index
    %9 = vector.load %arg3[%c0_6, %c0_7] : memref<32x1920xbf16, #tpu.memory_space<vmem>>, vector<32x1920xbf16>
    %cst_8 = arith.constant dense<0.000000e+00> : vector<2x1920xf32>
    %10 = tpu.matmul %8, %9, %cst_8 {dimension_numbers = #tpu.dot_dimension_numbers<[1], [0], [0], [1], [0, 0, 1, 1], [], []>} : vector<2x32xbf16>, vector<32x1920xbf16>, vector<2x1920xf32> -> vector<2x1920xf32>
    %c0_9 = arith.constant 0 : index
    %c0_10 = arith.constant 0 : index
    %11 = vector.load %arg4[%c0_9, %c0_10] : memref<1x1920xf32, #tpu.memory_space<vmem>>, vector<1x1920xf32>
    %12 = vector.broadcast %11 : vector<1x1920xf32> to vector<2x1920xf32>
    %13 = arith.addf %10, %12 : vector<2x1920xf32>
    %cst_11 = arith.constant 0.000000e+00 : f32
    %14 = vector.broadcast %cst_11 : f32 to vector<2x1920xf32>
    %15 = arith.maximumf %13, %14 : vector<2x1920xf32>
    %16 = arith.truncf %15 : vector<2x1920xf32> to vector<2x1920xbf16>
    %c0_12 = arith.constant 0 : index
    %c0_13 = arith.constant 0 : index
    %17 = vector.load %arg5[%c0_12, %c0_13] : memref<2x1920xbf16, #tpu.memory_space<vmem>>, vector<2x1920xbf16>
    tpu.vector_store %arg5[%c0_12, %c0_13], %16 {strides = array<i32>} : memref<2x1920xbf16, #tpu.memory_space<vmem>>, vector<2x1920xbf16>,
    return
  }
}

module attributes {stable_mosaic.version = 11 : i64} {
  func.func @_deconv_relu_bn_kernel(%arg0: memref<60x256xbf16, #tpu.memory_space<vmem>>, %arg1: memref<256x128xbf16, #tpu.memory_space<vmem>>, %arg2: memref<1x128xf32, #tpu.memory_space<vmem>>, %arg3: memref<1x32xf32, #tpu.memory_space<vmem>>, %arg4: memref<1x32xf32, #tpu.memory_space<vmem>>, %arg5: memref<60x1xf32, #tpu.memory_space<vmem>>, %arg6: memref<60x128xbf16, #tpu.memory_space<vmem>>) attributes {dimension_semantics = [], scalar_prefetch = 0 : i64, scratch_operands = 0 : i64, tpu.core_type = #tpu.core_type<tc>} {
    %c0 = arith.constant 0 : index
    %c0_0 = arith.constant 0 : index
    %0 = vector.load %arg0[%c0, %c0_0] : memref<60x256xbf16, #tpu.memory_space<vmem>>, vector<60x256xbf16>
    %c0_1 = arith.constant 0 : index
    %c0_2 = arith.constant 0 : index
    %1 = vector.load %arg1[%c0_1, %c0_2] : memref<256x128xbf16, #tpu.memory_space<vmem>>, vector<256x128xbf16>
    %cst = arith.constant dense<0.000000e+00> : vector<60x128xf32>
    %2 = tpu.matmul %0, %1, %cst {dimension_numbers = #tpu.dot_dimension_numbers<[1], [0], [0], [1], [0, 0, 1, 1], [], []>} : vector<60x256xbf16>, vector<256x128xbf16>, vector<60x128xf32> -> vector<60x128xf32>
    %c0_3 = arith.constant 0 : index
    %c0_4 = arith.constant 0 : index
    %3 = vector.load %arg2[%c0_3, %c0_4] : memref<1x128xf32, #tpu.memory_space<vmem>>, vector<1x128xf32>
    %4 = vector.broadcast %3 : vector<1x128xf32> to vector<60x128xf32>
    %5 = arith.addf %2, %4 : vector<60x128xf32>
    %cst_5 = arith.constant 0.000000e+00 : f32
    %6 = vector.broadcast %cst_5 : f32 to vector<60x128xf32>
    %7 = arith.maximumf %5, %6 : vector<60x128xf32>
    %c0_6 = arith.constant 0 : index
    %c0_7 = arith.constant 0 : index
    %8 = vector.load %arg5[%c0_6, %c0_7] : memref<60x1xf32, #tpu.memory_space<vmem>>, vector<60x1xf32>
    %9 = arith.mulf %7, %7 : vector<60x128xf32>
    %cst_8 = arith.constant dense<0.000000e+00> : vector<128xf32>
    %10 = vector.multi_reduction <add>, %7, %cst_8 [0] : vector<60x128xf32> to vector<128xf32>
    %11 = vector.shape_cast %10 : vector<128xf32> to vector<1x128xf32>
    %cst_9 = arith.constant dense<0.000000e+00> : vector<128xf32>
    %12 = vector.multi_reduction <add>, %9, %cst_9 [0] : vector<60x128xf32> to vector<128xf32>
    %13 = vector.shape_cast %12 : vector<128xf32> to vector<1x128xf32>
    %14 = vector.broadcast %8 : vector<60x1xf32> to vector<60x128xf32>
    %15 = arith.mulf %7, %14 : vector<60x128xf32>
    %cst_10 = arith.constant dense<0.000000e+00> : vector<128xf32>
    %16 = vector.multi_reduction <add>, %15, %cst_10 [0] : vector<60x128xf32> to vector<128xf32>
    %17 = vector.shape_cast %16 : vector<128xf32> to vector<1x128xf32>
    %18 = vector.broadcast %8 : vector<60x1xf32> to vector<60x128xf32>
    %19 = arith.mulf %9, %18 : vector<60x128xf32>
    %cst_11 = arith.constant dense<0.000000e+00> : vector<128xf32>
    %20 = vector.multi_reduction <add>, %19, %cst_11 [0] : vector<60x128xf32> to vector<128xf32>
    %21 = vector.shape_cast %20 : vector<128xf32> to vector<1x128xf32>
    %22 = vector.extract_strided_slice %11 {offsets = [0, 0], sizes = [1, 32], strides = [1, 1]} : vector<1x128xf32> to vector<1x32xf32>
    %23 = vector.extract_strided_slice %17 {offsets = [0, 32], sizes = [1, 32], strides = [1, 1]} : vector<1x128xf32> to vector<1x32xf32>
    %24 = arith.addf %22, %23 : vector<1x32xf32>
    %25 = vector.extract_strided_slice %11 {offsets = [0, 64], sizes = [1, 32], strides = [1, 1]} : vector<1x128xf32> to vector<1x32xf32>
    %26 = arith.addf %24, %25 : vector<1x32xf32>
    %27 = vector.extract_strided_slice %17 {offsets = [0, 96], sizes = [1, 32], strides = [1, 1]} : vector<1x128xf32> to vector<1x32xf32>
    %28 = arith.addf %26, %27 : vector<1x32xf32>
    %29 = vector.extract_strided_slice %13 {offsets = [0, 0], sizes = [1, 32], strides = [1, 1]} : vector<1x128xf32> to vector<1x32xf32>
    %30 = vector.extract_strided_slice %21 {offsets = [0, 32], sizes = [1, 32], strides = [1, 1]} : vector<1x128xf32> to vector<1x32xf32>
    %31 = arith.addf %29, %30 : vector<1x32xf32>
    %32 = vector.extract_strided_slice %13 {offsets = [0, 64], sizes = [1, 32], strides = [1, 1]} : vector<1x128xf32> to vector<1x32xf32>
    %33 = arith.addf %31, %32 : vector<1x32xf32>
    %34 = vector.extract_strided_slice %21 {offsets = [0, 96], sizes = [1, 32], strides = [1, 1]} : vector<1x128xf32> to vector<1x32xf32>
    %35 = arith.addf %33, %34 : vector<1x32xf32>
    %cst_12 = arith.constant 0.00431034481 : f32
    %36 = vector.broadcast %cst_12 : f32 to vector<1x32xf32>
    %37 = arith.mulf %28, %36 : vector<1x32xf32>
    %cst_13 = arith.constant 0.00431034481 : f32
    %38 = vector.broadcast %cst_13 : f32 to vector<1x32xf32>
    %39 = arith.mulf %35, %38 : vector<1x32xf32>
    %40 = arith.mulf %37, %37 : vector<1x32xf32>
    %41 = arith.subf %39, %40 : vector<1x32xf32>
    %cst_14 = arith.constant 0.000000e+00 : f32
    %42 = vector.broadcast %cst_14 : f32 to vector<1x32xf32>
    %43 = arith.maximumf %41, %42 : vector<1x32xf32>
    %cst_15 = arith.constant 9.99999974E-6 : f32
    %44 = vector.broadcast %cst_15 : f32 to vector<1x32xf32>
    %45 = arith.addf %43, %44 : vector<1x32xf32>
    %46 = math.rsqrt %45 : vector<1x32xf32>
    %c0_16 = arith.constant 0 : index
    %c0_17 = arith.constant 0 : index
    %47 = vector.load %arg3[%c0_16, %c0_17] : memref<1x32xf32, #tpu.memory_space<vmem>>, vector<1x32xf32>
    %48 = arith.mulf %46, %47 : vector<1x32xf32>
    %c0_18 = arith.constant 0 : index
    %c0_19 = arith.constant 0 : index
    %49 = vector.load %arg4[%c0_18, %c0_19] : memref<1x32xf32, #tpu.memory_space<vmem>>, vector<1x32xf32>
    %50 = arith.mulf %37, %48 : vector<1x32xf32>
    %51 = arith.subf %49, %50 : vector<1x32xf32>
    %52 = tpu.concatenate %48, %48, %48, %48 in 1 : vector<1x32xf32>, vector<1x32xf32>, vector<1x32xf32>, vector<1x32xf32> -> vector<1x128xf32>
    %53 = tpu.concatenate %51, %51, %51, %51 in 1 : vector<1x32xf32>, vector<1x32xf32>, vector<1x32xf32>, vector<1x32xf32> -> vector<1x128xf32>
    %54 = vector.broadcast %52 : vector<1x128xf32> to vector<60x128xf32>
    %55 = arith.mulf %7, %54 : vector<60x128xf32>
    %56 = vector.broadcast %53 : vector<1x128xf32> to vector<60x128xf32>
    %57 = arith.addf %55, %56 : vector<60x128xf32>
    %58 = arith.truncf %57 : vector<60x128xf32> to vector<60x128xbf16>
    %c0_20 = arith.constant 0 : index
    %c0_21 = arith.constant 0 : index
    %59 = vector.load %arg6[%c0_20, %c0_21] : memref<60x128xbf16, #tpu.memory_space<vmem>>, vector<60x128xbf16>
    tpu.vector_store %arg6[%c0_20, %c0_21], %58 {strides = array<i32>} : memref<60x128xbf16, #tpu.memory_space<vmem>>, vector<60x128xbf16>,
    return
  }
}

module attributes {stable_mosaic.version = 11 : i64} {
  func.func @_deconv_sigmoid_kernel(%arg0: memref<232x128xbf16, #tpu.memory_space<vmem>>, %arg1: memref<128x256xbf16, #tpu.memory_space<vmem>>, %arg2: memref<1x256xf32, #tpu.memory_space<vmem>>, %arg3: memref<232x256xf32, #tpu.memory_space<vmem>>) attributes {dimension_semantics = [], scalar_prefetch = 0 : i64, scratch_operands = 0 : i64, tpu.core_type = #tpu.core_type<tc>} {
    %c0 = arith.constant 0 : index
    %c0_0 = arith.constant 0 : index
    %0 = vector.load %arg0[%c0, %c0_0] : memref<232x128xbf16, #tpu.memory_space<vmem>>, vector<232x128xbf16>
    %c0_1 = arith.constant 0 : index
    %c0_2 = arith.constant 0 : index
    %1 = vector.load %arg1[%c0_1, %c0_2] : memref<128x256xbf16, #tpu.memory_space<vmem>>, vector<128x256xbf16>
    %cst = arith.constant dense<0.000000e+00> : vector<232x256xf32>
    %2 = tpu.matmul %0, %1, %cst {dimension_numbers = #tpu.dot_dimension_numbers<[1], [0], [0], [1], [0, 0, 1, 1], [], []>} : vector<232x128xbf16>, vector<128x256xbf16>, vector<232x256xf32> -> vector<232x256xf32>
    %c0_3 = arith.constant 0 : index
    %c0_4 = arith.constant 0 : index
    %3 = vector.load %arg2[%c0_3, %c0_4] : memref<1x256xf32, #tpu.memory_space<vmem>>, vector<1x256xf32>
    %4 = vector.broadcast %3 : vector<1x256xf32> to vector<232x256xf32>
    %5 = arith.addf %2, %4 : vector<232x256xf32>
    %cst_5 = arith.constant 5.000000e-01 : f32
    %6 = vector.broadcast %cst_5 : f32 to vector<232x256xf32>
    %7 = arith.mulf %6, %5 : vector<232x256xf32>
    %8 = math.tanh %7 : vector<232x256xf32>
    %cst_6 = arith.constant 1.000000e+00 : f32
    %9 = vector.broadcast %cst_6 : f32 to vector<232x256xf32>
    %10 = arith.addf %8, %9 : vector<232x256xf32>
    %cst_7 = arith.constant 5.000000e-01 : f32
    %11 = vector.broadcast %cst_7 : f32 to vector<232x256xf32>
    %12 = arith.mulf %11, %10 : vector<232x256xf32>
    %c0_8 = arith.constant 0 : index
    %c0_9 = arith.constant 0 : index
    %13 = vector.load %arg3[%c0_8, %c0_9] : memref<232x256xf32, #tpu.memory_space<vmem>>, vector<232x256xf32>
    tpu.vector_store %arg3[%c0_8, %c0_9], %12 {strides = array<i32>} : memref<232x256xf32, #tpu.memory_space<vmem>>, vector<232x256xf32>,
    return
  }
}

</mosaic_0001>

<llo_original>
// kernel: forward.5
$region0: #{forward.5}
  #allocation0 [shape = 'u32[]', space=smem, size = 0x4, offset = 0x4, fixed_abs, tag = 'smem constant byte address 0x4 - core index']
  #allocation1 [shape = 'u32[144,128]{1,0:T(1,128)}', space=vmem, size = 0x12000, scoped, tag = 'internal scratch']
  %s0 = inlined_call_operand.vmem [shape: bf16[240,1024], index: 0, kind: input, shape index: {}]
  %s1 = inlined_call_operand.vmem [shape: bf16[1024,128], index: 1, kind: input, shape index: {}]
  %s2 = inlined_call_operand.vmem [shape: f32[1,128], index: 2, kind: input, shape index: {}]
  %s3 = inlined_call_operand.vmem [shape: f32[1,32], index: 3, kind: input, shape index: {}]
  %s4 = inlined_call_operand.vmem [shape: f32[1,32], index: 4, kind: input, shape index: {}]
  %s5 = inlined_call_operand.vmem [shape: bf16[240,32], index: 5, kind: output, shape index: {}]
  %s6 = sld [smem:[#allocation0]]
  $region30: #{forward.5} parent=0
    _
  %s8 = ssub.s32 1, %s6
  %s9 = scalar_select 0, %s8, %s6
  // Predicated region
  $region2: #{forward.5} parent=0 // pred_check
    _
  $region3: #{forward.5} parent=0 // pred_check_branch
    %11 = sbr.rel (0) target = $region5
  $region4: #{forward.5} parent=0 // pred_region
    _
  $region5: #{forward.5} parent=0 // pred_fallthru
    _
  // Predicated region
  $region6: #{forward.5} parent=0 // pred_check
    _
  $region7: #{forward.5} parent=0 // pred_check_branch
    %13 = sbr.rel (0) target = $region9
  $region8: #{forward.5} parent=0 // pred_region
    _
  $region9: #{forward.5} parent=0 // pred_fallthru
    _
  // Predicated region
  $region10: #{forward.5} parent=0 // pred_check
    _
  $region11: #{forward.5} parent=0 // pred_check_branch
    %15 = sbr.rel (0) target = $region13
  $region12: #{forward.5} parent=0 // pred_region
    _
  $region13: #{forward.5} parent=0 // pred_fallthru
    _
  // Predicated region
  $region14: #{forward.5} parent=0 // pred_check
    _
  $region15: #{forward.5} parent=0 // pred_check_branch
    %17 = sbr.rel (0) target = $region17
  $region16: #{forward.5} parent=0 // pred_region
    _
  $region17: #{forward.5} parent=0 // pred_fallthru
    _
  // Predicated region
  $region18: #{forward.5} parent=0 // pred_check
    _
  $region19: #{forward.5} parent=0 // pred_check_branch
    %19 = sbr.rel (0) target = $region21
  $region20: #{forward.5} parent=0 // pred_region
    _
  $region21: #{forward.5} parent=0 // pred_fallthru
    _
  %v21 = vld [vmem:[%s0] sm:$0xff]
  %v22 = vld [vmem:[%s0 + $0x8] sm:$0xff]
  %v23 = vld [vmem:[%s0 + $0x10] sm:$0xff]
  %v24 = vld [vmem:[%s0 + $0x18] sm:$0xff]
  %v25 = vld [vmem:[%s0 + $0x20] sm:$0xff]
  %v26 = vld [vmem:[%s0 + $0x28] sm:$0xff]
  %v27 = vld [vmem:[%s0 + $0x30] sm:$0xff]
  %v28 = vld [vmem:[%s0 + $0x38] sm:$0xff]
  %v29 = vld [vmem:[%s0 + $0x40] sm:$0xff]
  %v30 = vld [vmem:[%s0 + $0x48] sm:$0xff]
  %v31 = vld [vmem:[%s0 + $0x50] sm:$0xff]
  %v32 = vld [vmem:[%s0 + $0x58] sm:$0xff]
  %v33 = vld [vmem:[%s0 + $0x60] sm:$0xff]
  %v34 = vld [vmem:[%s0 + $0x68] sm:$0xff]
  %v35 = vld [vmem:[%s0 + $0x70] sm:$0xff]
  %v36 = vld [vmem:[%s0 + $0x78] sm:$0xff]
  %v37 = vld [vmem:[%s0 + $0x80] sm:$0xff]
  %v38 = vld [vmem:[%s0 + $0x88] sm:$0xff]
  %v39 = vld [vmem:[%s0 + $0x90] sm:$0xff]
  %v40 = vld [vmem:[%s0 + $0x98] sm:$0xff]
  %v41 = vld [vmem:[%s0 + $0xa0] sm:$0xff]
  %v42 = vld [vmem:[%s0 + $0xa8] sm:$0xff]
  %v43 = vld [vmem:[%s0 + $0xb0] sm:$0xff]
  %v44 = vld [vmem:[%s0 + $0xb8] sm:$0xff]
  %v45 = vld [vmem:[%s0 + $0xc0] sm:$0xff]
  %v46 = vld [vmem:[%s0 + $0xc8] sm:$0xff]
  %v47 = vld [vmem:[%s0 + $0xd0] sm:$0xff]
  %v48 = vld [vmem:[%s0 + $0xd8] sm:$0xff]
  %v49 = vld [vmem:[%s0 + $0xe0] sm:$0xff]
  %v50 = vld [vmem:[%s0 + $0xe8] sm:$0xff]
  %v51 = vld [vmem:[%s0 + $0xf0] sm:$0xff]
  %v52 = vld [vmem:[%s0 + $0xf8] sm:$0xff]
  %v53 = vld [vmem:[%s0 + $0x100] sm:$0xff]
  %v54 = vld [vmem:[%s0 + $0x108] sm:$0xff]
  %v55 = vld [vmem:[%s0 + $0x110] sm:$0xff]
  %v56 = vld [vmem:[%s0 + $0x118] sm:$0xff]
  %v57 = vld [vmem:[%s0 + $0x120] sm:$0xff]
  %v58 = vld [vmem:[%s0 + $0x128] sm:$0xff]
  %v59 = vld [vmem:[%s0 + $0x130] sm:$0xff]
  %v60 = vld [vmem:[%s0 + $0x138] sm:$0xff]
  %v61 = vld [vmem:[%s0 + $0x140] sm:$0xff]
  %v62 = vld [vmem:[%s0 + $0x148] sm:$0xff]
  %v63 = vld [vmem:[%s0 + $0x150] sm:$0xff]
  %v64 = vld [vmem:[%s0 + $0x158] sm:$0xff]
  %v65 = vld [vmem:[%s0 + $0x160] sm:$0xff]
  %v66 = vld [vmem:[%s0 + $0x168] sm:$0xff]
  %v67 = vld [vmem:[%s0 + $0x170] sm:$0xff]
  %v68 = vld [vmem:[%s0 + $0x178] sm:$0xff]
  %v69 = vld [vmem:[%s0 + $0x180] sm:$0xff]
  %v70 = vld [vmem:[%s0 + $0x188] sm:$0xff]
  %v71 = vld [vmem:[%s0 + $0x190] sm:$0xff]
  %v72 = vld [vmem:[%s0 + $0x198] sm:$0xff]
  %v73 = vld [vmem:[%s0 + $0x1a0] sm:$0xff]
  %v74 = vld [vmem:[%s0 + $0x1a8] sm:$0xff]
  %v75 = vld [vmem:[%s0 + $0x1b0] sm:$0xff]
  %v76 = vld [vmem:[%s0 + $0x1b8] sm:$0xff]
  %v77 = vld [vmem:[%s0 + $0x1c0] sm:$0xff]
  %v78 = vld [vmem:[%s0 + $0x1c8] sm:$0xff]
  %v79 = vld [vmem:[%s0 + $0x1d0] sm:$0xff]
  %v80 = vld [vmem:[%s0 + $0x1d8] sm:$0xff]
  %v81 = vld [vmem:[%s0 + $0x1e0] sm:$0xff]
  %v82 = vld [vmem:[%s0 + $0x1e8] sm:$0xff]
  %v83 = vld [vmem:[%s0 + $0x1f0] sm:$0xff]
  %v84 = vld [vmem:[%s0 + $0x1f8] sm:$0xff]
  %v85 = vld [vmem:[%s0 + $0x200] sm:$0xff]
  %v86 = vld [vmem:[%s0 + $0x208] sm:$0xff]
  %v87 = vld [vmem:[%s0 + $0x210] sm:$0xff]
  %v88 = vld [vmem:[%s0 + $0x218] sm:$0xff]
  %v89 = vld [vmem:[%s0 + $0x220] sm:$0xff]
  %v90 = vld [vmem:[%s0 + $0x228] sm:$0xff]
  %v91 = vld [vmem:[%s0 + $0x230] sm:$0xff]
  %v92 = vld [vmem:[%s0 + $0x238] sm:$0xff]
  %v93 = vld [vmem:[%s0 + $0x240] sm:$0xff]
  %v94 = vld [vmem:[%s0 + $0x248] sm:$0xff]
  %v95 = vld [vmem:[%s0 + $0x250] sm:$0xff]
  %v96 = vld [vmem:[%s0 + $0x258] sm:$0xff]
  %v97 = vld [vmem:[%s0 + $0x260] sm:$0xff]
  %v98 = vld [vmem:[%s0 + $0x268] sm:$0xff]
  %v99 = vld [vmem:[%s0 + $0x270] sm:$0xff]
  %v100 = vld [vmem:[%s0 + $0x278] sm:$0xff]
  %v101 = vld [vmem:[%s0 + $0x280] sm:$0xff]
  %v102 = vld [vmem:[%s0 + $0x288] sm:$0xff]
  %v103 = vld [vmem:[%s0 + $0x290] sm:$0xff]
  %v104 = vld [vmem:[%s0 + $0x298] sm:$0xff]
  %v105 = vld [vmem:[%s0 + $0x2a0] sm:$0xff]
  %v106 = vld [vmem:[%s0 + $0x2a8] sm:$0xff]
  %v107 = vld [vmem:[%s0 + $0x2b0] sm:$0xff]
  %v108 = vld [vmem:[%s0 + $0x2b8] sm:$0xff]
  %v109 = vld [vmem:[%s0 + $0x2c0] sm:$0xff]
  %v110 = vld [vmem:[%s0 + $0x2c8] sm:$0xff]
  %v111 = vld [vmem:[%s0 + $0x2d0] sm:$0xff]
  %v112 = vld [vmem:[%s0 + $0x2d8] sm:$0xff]
  %v113 = vld [vmem:[%s0 + $0x2e0] sm:$0xff]
  %v114 = vld [vmem:[%s0 + $0x2e8] sm:$0xff]
  %v115 = vld [vmem:[%s0 + $0x2f0] sm:$0xff]
  %v116 = vld [vmem:[%s0 + $0x2f8] sm:$0xff]
  %v117 = vld [vmem:[%s0 + $0x300] sm:$0xff]
  %v118 = vld [vmem:[%s0 + $0x308] sm:$0xff]
  %v119 = vld [vmem:[%s0 + $0x310] sm:$0xff]
  %v120 = vld [vmem:[%s0 + $0x318] sm:$0xff]
  %v121 = vld [vmem:[%s0 + $0x320] sm:$0xff]
  %v122 = vld [vmem:[%s0 + $0x328] sm:$0xff]
  %v123 = vld [vmem:[%s0 + $0x330] sm:$0xff]
  %v124 = vld [vmem:[%s0 + $0x338] sm:$0xff]
  %v125 = vld [vmem:[%s0 + $0x340] sm:$0xff]
  %v126 = vld [vmem:[%s0 + $0x348] sm:$0xff]
  %v127 = vld [vmem:[%s0 + $0x350] sm:$0xff]
  %v128 = vld [vmem:[%s0 + $0x358] sm:$0xff]
  %v129 = vld [vmem:[%s0 + $0x360] sm:$0xff]
  %v130 = vld [vmem:[%s0 + $0x368] sm:$0xff]
  %v131 = vld [vmem:[%s0 + $0x370] sm:$0xff]
  %v132 = vld [vmem:[%s0 + $0x378] sm:$0xff]
  %v133 = vld [vmem:[%s0 + $0x380] sm:$0xff]
  %v134 = vld [vmem:[%s0 + $0x388] sm:$0xff]
  %v135 = vld [vmem:[%s0 + $0x390] sm:$0xff]
  %v136 = vld [vmem:[%s0 + $0x398] sm:$0xff]
  %v137 = vld [vmem:[%s0 + $0x3a0] sm:$0xff]
  %v138 = vld [vmem:[%s0 + $0x3a8] sm:$0xff]
  %v139 = vld [vmem:[%s0 + $0x3b0] sm:$0xff]
  %v140 = vld [vmem:[%s0 + $0x3b8] sm:$0xff]
  %v141 = vld [vmem:[%s1] sm:$0xf]
  %v142 = vld [vmem:[%s1 + $0x4] sm:$0xf]
  %v143 = vld [vmem:[%s1 + $0x8] sm:$0xf]
  %v144 = vld [vmem:[%s1 + $0xc] sm:$0xf]
  %v145 = vld [vmem:[%s1 + $0x10] sm:$0xf]
  %v146 = vld [vmem:[%s1 + $0x14] sm:$0xf]
  %v147 = vld [vmem:[%s1 + $0x18] sm:$0xf]
  %v148 = vld [vmem:[%s1 + $0x1c] sm:$0xf]
  %v149 = vld [vmem:[%s1 + $0x20] sm:$0xf]
  %v150 = vld [vmem:[%s1 + $0x24] sm:$0xf]
  %v151 = vld [vmem:[%s1 + $0x28] sm:$0xf]
  %v152 = vld [vmem:[%s1 + $0x2c] sm:$0xf]
  %v153 = vld [vmem:[%s1 + $0x30] sm:$0xf]
  %v154 = vld [vmem:[%s1 + $0x34] sm:$0xf]
  %v155 = vld [vmem:[%s1 + $0x38] sm:$0xf]
  %v156 = vld [vmem:[%s1 + $0x3c] sm:$0xf]
  %v157 = vld [vmem:[%s1 + $0x40] sm:$0xf]
  %v158 = vld [vmem:[%s1 + $0x44] sm:$0xf]
  %v159 = vld [vmem:[%s1 + $0x48] sm:$0xf]
  %v160 = vld [vmem:[%s1 + $0x4c] sm:$0xf]
  %v161 = vld [vmem:[%s1 + $0x50] sm:$0xf]
  %v162 = vld [vmem:[%s1 + $0x54] sm:$0xf]
  %v163 = vld [vmem:[%s1 + $0x58] sm:$0xf]
  %v164 = vld [vmem:[%s1 + $0x5c] sm:$0xf]
  %v165 = vld [vmem:[%s1 + $0x60] sm:$0xf]
  %v166 = vld [vmem:[%s1 + $0x64] sm:$0xf]
  %v167 = vld [vmem:[%s1 + $0x68] sm:$0xf]
  %v168 = vld [vmem:[%s1 + $0x6c] sm:$0xf]
  %v169 = vld [vmem:[%s1 + $0x70] sm:$0xf]
  %v170 = vld [vmem:[%s1 + $0x74] sm:$0xf]
  %v171 = vld [vmem:[%s1 + $0x78] sm:$0xf]
  %v172 = vld [vmem:[%s1 + $0x7c] sm:$0xf]
  %v173 = vld [vmem:[%s1 + $0x80] sm:$0xf]
  %v174 = vld [vmem:[%s1 + $0x84] sm:$0xf]
  %v175 = vld [vmem:[%s1 + $0x88] sm:$0xf]
  %v176 = vld [vmem:[%s1 + $0x8c] sm:$0xf]
  %v177 = vld [vmem:[%s1 + $0x90] sm:$0xf]
  %v178 = vld [vmem:[%s1 + $0x94] sm:$0xf]
  %v179 = vld [vmem:[%s1 + $0x98] sm:$0xf]
  %v180 = vld [vmem:[%s1 + $0x9c] sm:$0xf]
  %v181 = vld [vmem:[%s1 + $0xa0] sm:$0xf]
  %v182 = vld [vmem:[%s1 + $0xa4] sm:$0xf]
  %v183 = vld [vmem:[%s1 + $0xa8] sm:$0xf]
  %v184 = vld [vmem:[%s1 + $0xac] sm:$0xf]
  %v185 = vld [vmem:[%s1 + $0xb0] sm:$0xf]
  %v186 = vld [vmem:[%s1 + $0xb4] sm:$0xf]
  %v187 = vld [vmem:[%s1 + $0xb8] sm:$0xf]
  %v188 = vld [vmem:[%s1 + $0xbc] sm:$0xf]
  %v189 = vld [vmem:[%s1 + $0xc0] sm:$0xf]
  %v190 = vld [vmem:[%s1 + $0xc4] sm:$0xf]
  %v191 = vld [vmem:[%s1 + $0xc8] sm:$0xf]
  %v192 = vld [vmem:[%s1 + $0xcc] sm:$0xf]
  %v193 = vld [vmem:[%s1 + $0xd0] sm:$0xf]
  %v194 = vld [vmem:[%s1 + $0xd4] sm:$0xf]
  %v195 = vld [vmem:[%s1 + $0xd8] sm:$0xf]
  %v196 = vld [vmem:[%s1 + $0xdc] sm:$0xf]
  %v197 = vld [vmem:[%s1 + $0xe0] sm:$0xf]
  %v198 = vld [vmem:[%s1 + $0xe4] sm:$0xf]
  %v199 = vld [vmem:[%s1 + $0xe8] sm:$0xf]
  %v200 = vld [vmem:[%s1 + $0xec] sm:$0xf]
  %v201 = vld [vmem:[%s1 + $0xf0] sm:$0xf]
  %v202 = vld [vmem:[%s1 + $0xf4] sm:$0xf]
  %v203 = vld [vmem:[%s1 + $0xf8] sm:$0xf]
  %v204 = vld [vmem:[%s1 + $0xfc] sm:$0xf]
  %v205 = vld [vmem:[%s1 + $0x100] sm:$0xf]
  %v206 = vld [vmem:[%s1 + $0x104] sm:$0xf]
  %v207 = vld [vmem:[%s1 + $0x108] sm:$0xf]
  %v208 = vld [vmem:[%s1 + $0x10c] sm:$0xf]
  %v209 = vld [vmem:[%s1 + $0x110] sm:$0xf]
  %v210 = vld [vmem:[%s1 + $0x114] sm:$0xf]
  %v211 = vld [vmem:[%s1 + $0x118] sm:$0xf]
  %v212 = vld [vmem:[%s1 + $0x11c] sm:$0xf]
  %v213 = vld [vmem:[%s1 + $0x120] sm:$0xf]
  %v214 = vld [vmem:[%s1 + $0x124] sm:$0xf]
  %v215 = vld [vmem:[%s1 + $0x128] sm:$0xf]
  %v216 = vld [vmem:[%s1 + $0x12c] sm:$0xf]
  %v217 = vld [vmem:[%s1 + $0x130] sm:$0xf]
  %v218 = vld [vmem:[%s1 + $0x134] sm:$0xf]
  %v219 = vld [vmem:[%s1 + $0x138] sm:$0xf]
  %v220 = vld [vmem:[%s1 + $0x13c] sm:$0xf]
  %v221 = vld [vmem:[%s1 + $0x140] sm:$0xf]
  %v222 = vld [vmem:[%s1 + $0x144] sm:$0xf]
  %v223 = vld [vmem:[%s1 + $0x148] sm:$0xf]
  %v224 = vld [vmem:[%s1 + $0x14c] sm:$0xf]
  %v225 = vld [vmem:[%s1 + $0x150] sm:$0xf]
  %v226 = vld [vmem:[%s1 + $0x154] sm:$0xf]
  %v227 = vld [vmem:[%s1 + $0x158] sm:$0xf]
  %v228 = vld [vmem:[%s1 + $0x15c] sm:$0xf]
  %v229 = vld [vmem:[%s1 + $0x160] sm:$0xf]
  %v230 = vld [vmem:[%s1 + $0x164] sm:$0xf]
  %v231 = vld [vmem:[%s1 + $0x168] sm:$0xf]
  %v232 = vld [vmem:[%s1 + $0x16c] sm:$0xf]
  %v233 = vld [vmem:[%s1 + $0x170] sm:$0xf]
  %v234 = vld [vmem:[%s1 + $0x174] sm:$0xf]
  %v235 = vld [vmem:[%s1 + $0x178] sm:$0xf]
  %v236 = vld [vmem:[%s1 + $0x17c] sm:$0xf]
  %v237 = vld [vmem:[%s1 + $0x180] sm:$0xf]
  %v238 = vld [vmem:[%s1 + $0x184] sm:$0xf]
  %v239 = vld [vmem:[%s1 + $0x188] sm:$0xf]
  %v240 = vld [vmem:[%s1 + $0x18c] sm:$0xf]
  %v241 = vld [vmem:[%s1 + $0x190] sm:$0xf]
  %v242 = vld [vmem:[%s1 + $0x194] sm:$0xf]
  %v243 = vld [vmem:[%s1 + $0x198] sm:$0xf]
  %v244 = vld [vmem:[%s1 + $0x19c] sm:$0xf]
  %v245 = vld [vmem:[%s1 + $0x1a0] sm:$0xf]
  %v246 = vld [vmem:[%s1 + $0x1a4] sm:$0xf]
  %v247 = vld [vmem:[%s1 + $0x1a8] sm:$0xf]
  %v248 = vld [vmem:[%s1 + $0x1ac] sm:$0xf]
  %v249 = vld [vmem:[%s1 + $0x1b0] sm:$0xf]
  %v250 = vld [vmem:[%s1 + $0x1b4] sm:$0xf]
  %v251 = vld [vmem:[%s1 + $0x1b8] sm:$0xf]
  %v252 = vld [vmem:[%s1 + $0x1bc] sm:$0xf]
  %v253 = vld [vmem:[%s1 + $0x1c0] sm:$0xf]
  %v254 = vld [vmem:[%s1 + $0x1c4] sm:$0xf]
  %v255 = vld [vmem:[%s1 + $0x1c8] sm:$0xf]
  %v256 = vld [vmem:[%s1 + $0x1cc] sm:$0xf]
  %v257 = vld [vmem:[%s1 + $0x1d0] sm:$0xf]
  %v258 = vld [vmem:[%s1 + $0x1d4] sm:$0xf]
  %v259 = vld [vmem:[%s1 + $0x1d8] sm:$0xf]
  %v260 = vld [vmem:[%s1 + $0x1dc] sm:$0xf]
  %v261 = vld [vmem:[%s1 + $0x1e0] sm:$0xf]
  %v262 = vld [vmem:[%s1 + $0x1e4] sm:$0xf]
  %v263 = vld [vmem:[%s1 + $0x1e8] sm:$0xf]
  %v264 = vld [vmem:[%s1 + $0x1ec] sm:$0xf]
  %v265 = vld [vmem:[%s1 + $0x1f0] sm:$0xf]
  %v266 = vld [vmem:[%s1 + $0x1f4] sm:$0xf]
  %v267 = vld [vmem:[%s1 + $0x1f8] sm:$0xf]
  %v268 = vld [vmem:[%s1 + $0x1fc] sm:$0xf]
  %v269 = vld [vmem:[%s2] sm:$0x1]
  %v271 = vlaneseq
  %v272 = vshrl.u32 %v271, 7
  %v273 = vsub.s32 0, %v272
  %v274 = vrot.slane %v269, %v273
  %v396 = vunpack.c.l.b16 %v21
  %v397 = vunpack.c.h.b16 %v21
  %v398 = vunpack.c.l.b16 %v22
  %v399 = vunpack.c.h.b16 %v22
  %v400 = vunpack.c.l.b16 %v23
  %v401 = vunpack.c.h.b16 %v23
  %v402 = vunpack.c.l.b16 %v24
  %v403 = vunpack.c.h.b16 %v24
  %v404 = vunpack.c.l.b16 %v25
  %v405 = vunpack.c.h.b16 %v25
  %v406 = vunpack.c.l.b16 %v26
  %v407 = vunpack.c.h.b16 %v26
  %v408 = vunpack.c.l.b16 %v27
  %v409 = vunpack.c.h.b16 %v27
  %v410 = vunpack.c.l.b16 %v28
  %v411 = vunpack.c.h.b16 %v28
  %v412 = vunpack.c.l.b16 %v29
  %v413 = vunpack.c.h.b16 %v29
  %v414 = vunpack.c.l.b16 %v30
  %v415 = vunpack.c.h.b16 %v30
  %v416 = vunpack.c.l.b16 %v31
  %v417 = vunpack.c.h.b16 %v31
  %v418 = vunpack.c.l.b16 %v32
  %v419 = vunpack.c.h.b16 %v32
  %v420 = vunpack.c.l.b16 %v33
  %v421 = vunpack.c.h.b16 %v33
  %v422 = vunpack.c.l.b16 %v34
  %v423 = vunpack.c.h.b16 %v34
  %v424 = vunpack.c.l.b16 %v35
  %v425 = vunpack.c.h.b16 %v35
  %v426 = vunpack.c.l.b16 %v36
  %v427 = vunpack.c.h.b16 %v36
  %v428 = vunpack.c.l.b16 %v37
  %v429 = vunpack.c.h.b16 %v37
  %v430 = vunpack.c.l.b16 %v38
  %v431 = vunpack.c.h.b16 %v38
  %v432 = vunpack.c.l.b16 %v39
  %v433 = vunpack.c.h.b16 %v39
  %v434 = vunpack.c.l.b16 %v40
  %v435 = vunpack.c.h.b16 %v40
  %v436 = vunpack.c.l.b16 %v41
  %v437 = vunpack.c.h.b16 %v41
  %v438 = vunpack.c.l.b16 %v42
  %v439 = vunpack.c.h.b16 %v42
  %v440 = vunpack.c.l.b16 %v43
  %v441 = vunpack.c.h.b16 %v43
  %v442 = vunpack.c.l.b16 %v44
  %v443 = vunpack.c.h.b16 %v44
  %v444 = vunpack.c.l.b16 %v45
  %v445 = vunpack.c.h.b16 %v45
  %v446 = vunpack.c.l.b16 %v46
  %v447 = vunpack.c.h.b16 %v46
  %v448 = vunpack.c.l.b16 %v47
  %v449 = vunpack.c.h.b16 %v47
  %v450 = vunpack.c.l.b16 %v48
  %v451 = vunpack.c.h.b16 %v48
  %v452 = vunpack.c.l.b16 %v49
  %v453 = vunpack.c.h.b16 %v49
  %v454 = vunpack.c.l.b16 %v50
  %v455 = vunpack.c.h.b16 %v50
  %v456 = vunpack.c.l.b16 %v51
  %v457 = vunpack.c.h.b16 %v51
  %v458 = vunpack.c.l.b16 %v52
  %v459 = vunpack.c.h.b16 %v52
  %v460 = vunpack.c.l.b16 %v53
  %v461 = vunpack.c.h.b16 %v53
  %v462 = vunpack.c.l.b16 %v54
  %v463 = vunpack.c.h.b16 %v54
  %v464 = vunpack.c.l.b16 %v55
  %v465 = vunpack.c.h.b16 %v55
  %v466 = vunpack.c.l.b16 %v56
  %v467 = vunpack.c.h.b16 %v56
  %v468 = vunpack.c.l.b16 %v57
  %v469 = vunpack.c.h.b16 %v57
  %v470 = vunpack.c.l.b16 %v58
  %v471 = vunpack.c.h.b16 %v58
  %v472 = vunpack.c.l.b16 %v59
  %v473 = vunpack.c.h.b16 %v59
  %v474 = vunpack.c.l.b16 %v60
  %v475 = vunpack.c.h.b16 %v60
  %v476 = vunpack.c.l.b16 %v61
  %v477 = vunpack.c.h.b16 %v61
  %v478 = vunpack.c.l.b16 %v62
  %v479 = vunpack.c.h.b16 %v62
  %v480 = vunpack.c.l.b16 %v63
  %v481 = vunpack.c.h.b16 %v63
  %v482 = vunpack.c.l.b16 %v64
  %v483 = vunpack.c.h.b16 %v64
  %v484 = vunpack.c.l.b16 %v65
  %v485 = vunpack.c.h.b16 %v65
  %v486 = vunpack.c.l.b16 %v66
  %v487 = vunpack.c.h.b16 %v66
  %v488 = vunpack.c.l.b16 %v67
  %v489 = vunpack.c.h.b16 %v67
  %v490 = vunpack.c.l.b16 %v68
  %v491 = vunpack.c.h.b16 %v68
  %v492 = vunpack.c.l.b16 %v69
  %v493 = vunpack.c.h.b16 %v69
  %v494 = vunpack.c.l.b16 %v70
  %v495 = vunpack.c.h.b16 %v70
  %v496 = vunpack.c.l.b16 %v71
  %v497 = vunpack.c.h.b16 %v71
  %v498 = vunpack.c.l.b16 %v72
  %v499 = vunpack.c.h.b16 %v72
  %v500 = vunpack.c.l.b16 %v73
  %v501 = vunpack.c.h.b16 %v73
  %v502 = vunpack.c.l.b16 %v74
  %v503 = vunpack.c.h.b16 %v74
  %v504 = vunpack.c.l.b16 %v75
  %v505 = vunpack.c.h.b16 %v75
  %v506 = vunpack.c.l.b16 %v76
  %v507 = vunpack.c.h.b16 %v76
  %v508 = vunpack.c.l.b16 %v77
  %v509 = vunpack.c.h.b16 %v77
  %v510 = vunpack.c.l.b16 %v78
  %v511 = vunpack.c.h.b16 %v78
  %v512 = vunpack.c.l.b16 %v79
  %v513 = vunpack.c.h.b16 %v79
  %v514 = vunpack.c.l.b16 %v80
  %v515 = vunpack.c.h.b16 %v80
  %v516 = vunpack.c.l.b16 %v81
  %v517 = vunpack.c.h.b16 %v81
  %v518 = vunpack.c.l.b16 %v82
  %v519 = vunpack.c.h.b16 %v82
  %v520 = vunpack.c.l.b16 %v83
  %v521 = vunpack.c.h.b16 %v83
  %v522 = vunpack.c.l.b16 %v84
  %v523 = vunpack.c.h.b16 %v84
  %v524 = vunpack.c.l.b16 %v85
  %v525 = vunpack.c.h.b16 %v85
  %v526 = vunpack.c.l.b16 %v86
  %v527 = vunpack.c.h.b16 %v86
  %v528 = vunpack.c.l.b16 %v87
  %v529 = vunpack.c.h.b16 %v87
  %v530 = vunpack.c.l.b16 %v88
  %v531 = vunpack.c.h.b16 %v88
  %v532 = vunpack.c.l.b16 %v89
  %v533 = vunpack.c.h.b16 %v89
  %v534 = vunpack.c.l.b16 %v90
  %v535 = vunpack.c.h.b16 %v90
  %v536 = vunpack.c.l.b16 %v91
  %v537 = vunpack.c.h.b16 %v91
  %v538 = vunpack.c.l.b16 %v92
  %v539 = vunpack.c.h.b16 %v92
  %v540 = vunpack.c.l.b16 %v93
  %v541 = vunpack.c.h.b16 %v93
  %v542 = vunpack.c.l.b16 %v94
  %v543 = vunpack.c.h.b16 %v94
  %v544 = vunpack.c.l.b16 %v95
  %v545 = vunpack.c.h.b16 %v95
  %v546 = vunpack.c.l.b16 %v96
  %v547 = vunpack.c.h.b16 %v96
  %v548 = vunpack.c.l.b16 %v97
  %v549 = vunpack.c.h.b16 %v97
  %v550 = vunpack.c.l.b16 %v98
  %v551 = vunpack.c.h.b16 %v98
  %v552 = vunpack.c.l.b16 %v99
  %v553 = vunpack.c.h.b16 %v99
  %v554 = vunpack.c.l.b16 %v100
  %v555 = vunpack.c.h.b16 %v100
  %v556 = vunpack.c.l.b16 %v101
  %v557 = vunpack.c.h.b16 %v101
  %v558 = vunpack.c.l.b16 %v102
  %v559 = vunpack.c.h.b16 %v102
  %v560 = vunpack.c.l.b16 %v103
  %v561 = vunpack.c.h.b16 %v103
  %v562 = vunpack.c.l.b16 %v104
  %v563 = vunpack.c.h.b16 %v104
  %v564 = vunpack.c.l.b16 %v105
  %v565 = vunpack.c.h.b16 %v105
  %v566 = vunpack.c.l.b16 %v106
  %v567 = vunpack.c.h.b16 %v106
  %v568 = vunpack.c.l.b16 %v107
  %v569 = vunpack.c.h.b16 %v107
  %v570 = vunpack.c.l.b16 %v108
  %v571 = vunpack.c.h.b16 %v108
  %v572 = vunpack.c.l.b16 %v109
  %v573 = vunpack.c.h.b16 %v109
  %v574 = vunpack.c.l.b16 %v110
  %v575 = vunpack.c.h.b16 %v110
  %v576 = vunpack.c.l.b16 %v111
  %v577 = vunpack.c.h.b16 %v111
  %v578 = vunpack.c.l.b16 %v112
  %v579 = vunpack.c.h.b16 %v112
  %v580 = vunpack.c.l.b16 %v113
  %v581 = vunpack.c.h.b16 %v113
  %v582 = vunpack.c.l.b16 %v114
  %v583 = vunpack.c.h.b16 %v114
  %v584 = vunpack.c.l.b16 %v115
  %v585 = vunpack.c.h.b16 %v115
  %v586 = vunpack.c.l.b16 %v116
  %v587 = vunpack.c.h.b16 %v116
  %v588 = vunpack.c.l.b16 %v117
  %v589 = vunpack.c.h.b16 %v117
  %v590 = vunpack.c.l.b16 %v118
  %v591 = vunpack.c.h.b16 %v118
  %v592 = vunpack.c.l.b16 %v119
  %v593 = vunpack.c.h.b16 %v119
  %v594 = vunpack.c.l.b16 %v120
  %v595 = vunpack.c.h.b16 %v120
  %v596 = vunpack.c.l.b16 %v121
  %v597 = vunpack.c.h.b16 %v121
  %v598 = vunpack.c.l.b16 %v122
  %v599 = vunpack.c.h.b16 %v122
  %v600 = vunpack.c.l.b16 %v123
  %v601 = vunpack.c.h.b16 %v123
  %v602 = vunpack.c.l.b16 %v124
  %v603 = vunpack.c.h.b16 %v124
  %v604 = vunpack.c.l.b16 %v125
  %v605 = vunpack.c.h.b16 %v125
  %v606 = vunpack.c.l.b16 %v126
  %v607 = vunpack.c.h.b16 %v126
  %v608 = vunpack.c.l.b16 %v127
  %v609 = vunpack.c.h.b16 %v127
  %v610 = vunpack.c.l.b16 %v128
  %v611 = vunpack.c.h.b16 %v128
  %v612 = vunpack.c.l.b16 %v129
  %v613 = vunpack.c.h.b16 %v129
  %v614 = vunpack.c.l.b16 %v130
  %v615 = vunpack.c.h.b16 %v130
  %v616 = vunpack.c.l.b16 %v131
  %v617 = vunpack.c.h.b16 %v131
  %v618 = vunpack.c.l.b16 %v132
  %v619 = vunpack.c.h.b16 %v132
  %v620 = vunpack.c.l.b16 %v133
  %v621 = vunpack.c.h.b16 %v133
  %v622 = vunpack.c.l.b16 %v134
  %v623 = vunpack.c.h.b16 %v134
  %v624 = vunpack.c.l.b16 %v135
  %v625 = vunpack.c.h.b16 %v135
  %v626 = vunpack.c.l.b16 %v136
  %v627 = vunpack.c.h.b16 %v136
  %v628 = vunpack.c.l.b16 %v137
  %v629 = vunpack.c.h.b16 %v137
  %v630 = vunpack.c.l.b16 %v138
  %v631 = vunpack.c.h.b16 %v138
  %v632 = vunpack.c.l.b16 %v139
  %v633 = vunpack.c.h.b16 %v139
  %v634 = vunpack.c.l.b16 %v140
  %v635 = vunpack.c.h.b16 %v140
  %v636 = vpack.c.b16 %v404, %v396
  %v637 = vpack.c.b16 %v405, %v397
  %v638 = vpack.c.b16 %v406, %v398
  %v639 = vpack.c.b16 %v407, %v399
  %v640 = vpack.c.b16 %v408, %v400
  %v641 = vpack.c.b16 %v409, %v401
  %v642 = vpack.c.b16 %v410, %v402
  %v643 = vpack.c.b16 %v411, %v403
  %v644 = vpack.c.b16 %v420, %v412
  %v645 = vpack.c.b16 %v421, %v413
  %v646 = vpack.c.b16 %v422, %v414
  %v647 = vpack.c.b16 %v423, %v415
  %v648 = vpack.c.b16 %v424, %v416
  %v649 = vpack.c.b16 %v425, %v417
  %v650 = vpack.c.b16 %v426, %v418
  %v651 = vpack.c.b16 %v427, %v419
  %v652 = vpack.c.b16 %v436, %v428
  %v653 = vpack.c.b16 %v437, %v429
  %v654 = vpack.c.b16 %v438, %v430
  %v655 = vpack.c.b16 %v439, %v431
  %v656 = vpack.c.b16 %v440, %v432
  %v657 = vpack.c.b16 %v441, %v433
  %v658 = vpack.c.b16 %v442, %v434
  %v659 = vpack.c.b16 %v443, %v435
  %v660 = vpack.c.b16 %v452, %v444
  %v661 = vpack.c.b16 %v453, %v445
  %v662 = vpack.c.b16 %v454, %v446
  %v663 = vpack.c.b16 %v455, %v447
  %v664 = vpack.c.b16 %v456, %v448
  %v665 = vpack.c.b16 %v457, %v449
  %v666 = vpack.c.b16 %v458, %v450
  %v667 = vpack.c.b16 %v459, %v451
  %v668 = vpack.c.b16 %v468, %v460
  %v669 = vpack.c.b16 %v469, %v461
  %v670 = vpack.c.b16 %v470, %v462
  %v671 = vpack.c.b16 %v471, %v463
  %v672 = vpack.c.b16 %v472, %v464
  %v673 = vpack.c.b16 %v473, %v465
  %v674 = vpack.c.b16 %v474, %v466
  %v675 = vpack.c.b16 %v475, %v467
  %v676 = vpack.c.b16 %v484, %v476
  %v677 = vpack.c.b16 %v485, %v477
  %v678 = vpack.c.b16 %v486, %v478
  %v679 = vpack.c.b16 %v487, %v479
  %v680 = vpack.c.b16 %v488, %v480
  %v681 = vpack.c.b16 %v489, %v481
  %v682 = vpack.c.b16 %v490, %v482
  %v683 = vpack.c.b16 %v491, %v483
  %v684 = vpack.c.b16 %v500, %v492
  %v685 = vpack.c.b16 %v501, %v493
  %v686 = vpack.c.b16 %v502, %v494
  %v687 = vpack.c.b16 %v503, %v495
  %v688 = vpack.c.b16 %v504, %v496
  %v689 = vpack.c.b16 %v505, %v497
  %v690 = vpack.c.b16 %v506, %v498
  %v691 = vpack.c.b16 %v507, %v499
  %v692 = vpack.c.b16 %v516, %v508
  %v693 = vpack.c.b16 %v517, %v509
  %v694 = vpack.c.b16 %v518, %v510
  %v695 = vpack.c.b16 %v519, %v511
  %v696 = vpack.c.b16 %v520, %v512
  %v697 = vpack.c.b16 %v521, %v513
  %v698 = vpack.c.b16 %v522, %v514
  %v699 = vpack.c.b16 %v523, %v515
  %v700 = vpack.c.b16 %v532, %v524
  %v701 = vpack.c.b16 %v533, %v525
  %v702 = vpack.c.b16 %v534, %v526
  %v703 = vpack.c.b16 %v535, %v527
  %v704 = vpack.c.b16 %v536, %v528
  %v705 = vpack.c.b16 %v537, %v529
  %v706 = vpack.c.b16 %v538, %v530
  %v707 = vpack.c.b16 %v539, %v531
  %v708 = vpack.c.b16 %v548, %v540
  %v709 = vpack.c.b16 %v549, %v541
  %v710 = vpack.c.b16 %v550, %v542
  %v711 = vpack.c.b16 %v551, %v543
  %v712 = vpack.c.b16 %v552, %v544
  %v713 = vpack.c.b16 %v553, %v545
  %v714 = vpack.c.b16 %v554, %v546
  %v715 = vpack.c.b16 %v555, %v547
  %v716 = vpack.c.b16 %v564, %v556
  %v717 = vpack.c.b16 %v565, %v557
  %v718 = vpack.c.b16 %v566, %v558
  %v719 = vpack.c.b16 %v567, %v559
  %v720 = vpack.c.b16 %v568, %v560
  %v721 = vpack.c.b16 %v569, %v561
  %v722 = vpack.c.b16 %v570, %v562
  %v723 = vpack.c.b16 %v571, %v563
  %v724 = vpack.c.b16 %v580, %v572
  %v725 = vpack.c.b16 %v581, %v573
  %v726 = vpack.c.b16 %v582, %v574
  %v727 = vpack.c.b16 %v583, %v575
  %v728 = vpack.c.b16 %v584, %v576
  %v729 = vpack.c.b16 %v585, %v577
  %v730 = vpack.c.b16 %v586, %v578
  %v731 = vpack.c.b16 %v587, %v579
  %v732 = vpack.c.b16 %v596, %v588
  %v733 = vpack.c.b16 %v597, %v589
  %v734 = vpack.c.b16 %v598, %v590
  %v735 = vpack.c.b16 %v599, %v591
  %v736 = vpack.c.b16 %v600, %v592
  %v737 = vpack.c.b16 %v601, %v593
  %v738 = vpack.c.b16 %v602, %v594
  %v739 = vpack.c.b16 %v603, %v595
  %v740 = vpack.c.b16 %v612, %v604
  %v741 = vpack.c.b16 %v613, %v605
  %v742 = vpack.c.b16 %v614, %v606
  %v743 = vpack.c.b16 %v615, %v607
  %v744 = vpack.c.b16 %v616, %v608
  %v745 = vpack.c.b16 %v617, %v609
  %v746 = vpack.c.b16 %v618, %v610
  %v747 = vpack.c.b16 %v619, %v611
  %v748 = vpack.c.b16 %v628, %v620
  %v749 = vpack.c.b16 %v629, %v621
  %v750 = vpack.c.b16 %v630, %v622
  %v751 = vpack.c.b16 %v631, %v623
  %v752 = vpack.c.b16 %v632, %v624
  %v753 = vpack.c.b16 %v633, %v625
  %v754 = vpack.c.b16 %v634, %v626
  %v755 = vpack.c.b16 %v635, %v627
  %v1004 = vunpack.c.l.b16 %v141
  %v1005 = vunpack.c.l.b16 %v142
  %v1006 = vunpack.c.l.b16 %v143
  %v1007 = vunpack.c.l.b16 %v144
  %v1008 = vunpack.c.l.b16 %v145
  %v1009 = vunpack.c.l.b16 %v146
  %v1010 = vunpack.c.l.b16 %v147
  %v1011 = vunpack.c.l.b16 %v148
  %v1012 = vunpack.c.l.b16 %v149
  %v1013 = vunpack.c.l.b16 %v150
  %v1014 = vunpack.c.l.b16 %v151
  %v1015 = vunpack.c.l.b16 %v152
  %v1016 = vunpack.c.l.b16 %v153
  %v1017 = vunpack.c.l.b16 %v154
  %v1018 = vunpack.c.l.b16 %v155
  %v1019 = vunpack.c.l.b16 %v156
  %v1020 = vunpack.c.l.b16 %v157
  %v1021 = vunpack.c.l.b16 %v158
  %v1022 = vunpack.c.l.b16 %v159
  %v1023 = vunpack.c.l.b16 %v160
  %v1024 = vunpack.c.l.b16 %v161
  %v1025 = vunpack.c.l.b16 %v162
  %v1026 = vunpack.c.l.b16 %v163
  %v1027 = vunpack.c.l.b16 %v164
  %v1028 = vunpack.c.l.b16 %v165
  %v1029 = vunpack.c.l.b16 %v166
  %v1030 = vunpack.c.l.b16 %v167
  %v1031 = vunpack.c.l.b16 %v168
  %v1032 = vunpack.c.l.b16 %v169
  %v1033 = vunpack.c.l.b16 %v170
  %v1034 = vunpack.c.l.b16 %v171
  %v1035 = vunpack.c.l.b16 %v172
  %v1036 = vunpack.c.l.b16 %v173
  %v1037 = vunpack.c.l.b16 %v174
  %v1038 = vunpack.c.l.b16 %v175
  %v1039 = vunpack.c.l.b16 %v176
  %v1040 = vunpack.c.l.b16 %v177
  %v1041 = vunpack.c.l.b16 %v178
  %v1042 = vunpack.c.l.b16 %v179
  %v1043 = vunpack.c.l.b16 %v180
  %v1044 = vunpack.c.l.b16 %v181
  %v1045 = vunpack.c.l.b16 %v182
  %v1046 = vunpack.c.l.b16 %v183
  %v1047 = vunpack.c.l.b16 %v184
  %v1048 = vunpack.c.l.b16 %v185
  %v1049 = vunpack.c.l.b16 %v186
  %v1050 = vunpack.c.l.b16 %v187
  %v1051 = vunpack.c.l.b16 %v188
  %v1052 = vunpack.c.l.b16 %v189
  %v1053 = vunpack.c.l.b16 %v190
  %v1054 = vunpack.c.l.b16 %v191
  %v1055 = vunpack.c.l.b16 %v192
  %v1056 = vunpack.c.l.b16 %v193
  %v1057 = vunpack.c.l.b16 %v194
  %v1058 = vunpack.c.l.b16 %v195
  %v1059 = vunpack.c.l.b16 %v196
  %v1060 = vunpack.c.l.b16 %v197
  %v1061 = vunpack.c.l.b16 %v198
  %v1062 = vunpack.c.l.b16 %v199
  %v1063 = vunpack.c.l.b16 %v200
  %v1064 = vunpack.c.l.b16 %v201
  %v1065 = vunpack.c.l.b16 %v202
  %v1066 = vunpack.c.l.b16 %v203
  %v1067 = vunpack.c.l.b16 %v204
  %v1068 = vunpack.c.l.b16 %v205
  %v1069 = vunpack.c.l.b16 %v206
  %v1070 = vunpack.c.l.b16 %v207
  %v1071 = vunpack.c.l.b16 %v208
  %v1072 = vunpack.c.l.b16 %v209
  %v1073 = vunpack.c.l.b16 %v210
  %v1074 = vunpack.c.l.b16 %v211
  %v1075 = vunpack.c.l.b16 %v212
  %v1076 = vunpack.c.l.b16 %v213
  %v1077 = vunpack.c.l.b16 %v214
  %v1078 = vunpack.c.l.b16 %v215
  %v1079 = vunpack.c.l.b16 %v216
  %v1080 = vunpack.c.l.b16 %v217
  %v1081 = vunpack.c.l.b16 %v218
  %v1082 = vunpack.c.l.b16 %v219
  %v1083 = vunpack.c.l.b16 %v220
  %v1084 = vunpack.c.l.b16 %v221
  %v1085 = vunpack.c.l.b16 %v222
  %v1086 = vunpack.c.l.b16 %v223
  %v1087 = vunpack.c.l.b16 %v224
  %v1088 = vunpack.c.l.b16 %v225
  %v1089 = vunpack.c.l.b16 %v226
  %v1090 = vunpack.c.l.b16 %v227
  %v1091 = vunpack.c.l.b16 %v228
  %v1092 = vunpack.c.l.b16 %v229
  %v1093 = vunpack.c.l.b16 %v230
  %v1094 = vunpack.c.l.b16 %v231
  %v1095 = vunpack.c.l.b16 %v232
  %v1096 = vunpack.c.l.b16 %v233
  %v1097 = vunpack.c.l.b16 %v234
  %v1098 = vunpack.c.l.b16 %v235
  %v1099 = vunpack.c.l.b16 %v236
  %v1100 = vunpack.c.l.b16 %v237
  %v1101 = vunpack.c.l.b16 %v238
  %v1102 = vunpack.c.l.b16 %v239
  %v1103 = vunpack.c.l.b16 %v240
  %v1104 = vunpack.c.l.b16 %v241
  %v1105 = vunpack.c.l.b16 %v242
  %v1106 = vunpack.c.l.b16 %v243
  %v1107 = vunpack.c.l.b16 %v244
  %v1108 = vunpack.c.l.b16 %v245
  %v1109 = vunpack.c.l.b16 %v246
  %v1110 = vunpack.c.l.b16 %v247
  %v1111 = vunpack.c.l.b16 %v248
  %v1112 = vunpack.c.l.b16 %v249
  %v1113 = vunpack.c.l.b16 %v250
  %v1114 = vunpack.c.l.b16 %v251
  %v1115 = vunpack.c.l.b16 %v252
  %v1116 = vunpack.c.l.b16 %v253
  %v1117 = vunpack.c.l.b16 %v254
  %v1118 = vunpack.c.l.b16 %v255
  %v1119 = vunpack.c.l.b16 %v256
  %v1120 = vunpack.c.l.b16 %v257
  %v1121 = vunpack.c.l.b16 %v258
  %v1122 = vunpack.c.l.b16 %v259
  %v1123 = vunpack.c.l.b16 %v260
  %v1124 = vunpack.c.l.b16 %v261
  %v1125 = vunpack.c.l.b16 %v262
  %v1126 = vunpack.c.l.b16 %v263
  %v1127 = vunpack.c.l.b16 %v264
  %v1128 = vunpack.c.l.b16 %v265
  %v1129 = vunpack.c.l.b16 %v266
  %v1130 = vunpack.c.l.b16 %v267
  %v1131 = vunpack.c.l.b16 %v268
  %v1132 = vpack.c.b16 %v1005, %v1004
  %v1133 = vpack.c.b16 %v1007, %v1006
  %v1134 = vpack.c.b16 %v1009, %v1008
  %v1135 = vpack.c.b16 %v1011, %v1010
  %v1136 = vpack.c.b16 %v1013, %v1012
  %v1137 = vpack.c.b16 %v1015, %v1014
  %v1138 = vpack.c.b16 %v1017, %v1016
  %v1139 = vpack.c.b16 %v1019, %v1018
  %v1140 = vpack.c.b16 %v1021, %v1020
  %v1141 = vpack.c.b16 %v1023, %v1022
  %v1142 = vpack.c.b16 %v1025, %v1024
  %v1143 = vpack.c.b16 %v1027, %v1026
  %v1144 = vpack.c.b16 %v1029, %v1028
  %v1145 = vpack.c.b16 %v1031, %v1030
  %v1146 = vpack.c.b16 %v1033, %v1032
  %v1147 = vpack.c.b16 %v1035, %v1034
  %v1148 = vpack.c.b16 %v1037, %v1036
  %v1149 = vpack.c.b16 %v1039, %v1038
  %v1150 = vpack.c.b16 %v1041, %v1040
  %v1151 = vpack.c.b16 %v1043, %v1042
  %v1152 = vpack.c.b16 %v1045, %v1044
  %v1153 = vpack.c.b16 %v1047, %v1046
  %v1154 = vpack.c.b16 %v1049, %v1048
  %v1155 = vpack.c.b16 %v1051, %v1050
  %v1156 = vpack.c.b16 %v1053, %v1052
  %v1157 = vpack.c.b16 %v1055, %v1054
  %v1158 = vpack.c.b16 %v1057, %v1056
  %v1159 = vpack.c.b16 %v1059, %v1058
  %v1160 = vpack.c.b16 %v1061, %v1060
  %v1161 = vpack.c.b16 %v1063, %v1062
  %v1162 = vpack.c.b16 %v1065, %v1064
  %v1163 = vpack.c.b16 %v1067, %v1066
  %v1164 = vpack.c.b16 %v1069, %v1068
  %v1165 = vpack.c.b16 %v1071, %v1070
  %v1166 = vpack.c.b16 %v1073, %v1072
  %v1167 = vpack.c.b16 %v1075, %v1074
  %v1168 = vpack.c.b16 %v1077, %v1076
  %v1169 = vpack.c.b16 %v1079, %v1078
  %v1170 = vpack.c.b16 %v1081, %v1080
  %v1171 = vpack.c.b16 %v1083, %v1082
  %v1172 = vpack.c.b16 %v1085, %v1084
  %v1173 = vpack.c.b16 %v1087, %v1086
  %v1174 = vpack.c.b16 %v1089, %v1088
  %v1175 = vpack.c.b16 %v1091, %v1090
  %v1176 = vpack.c.b16 %v1093, %v1092
  %v1177 = vpack.c.b16 %v1095, %v1094
  %v1178 = vpack.c.b16 %v1097, %v1096
  %v1179 = vpack.c.b16 %v1099, %v1098
  %v1180 = vpack.c.b16 %v1101, %v1100
  %v1181 = vpack.c.b16 %v1103, %v1102
  %v1182 = vpack.c.b16 %v1105, %v1104
  %v1183 = vpack.c.b16 %v1107, %v1106
  %v1184 = vpack.c.b16 %v1109, %v1108
  %v1185 = vpack.c.b16 %v1111, %v1110
  %v1186 = vpack.c.b16 %v1113, %v1112
  %v1187 = vpack.c.b16 %v1115, %v1114
  %v1188 = vpack.c.b16 %v1117, %v1116
  %v1189 = vpack.c.b16 %v1119, %v1118
  %v1190 = vpack.c.b16 %v1121, %v1120
  %v1191 = vpack.c.b16 %v1123, %v1122
  %v1192 = vpack.c.b16 %v1125, %v1124
  %v1193 = vpack.c.b16 %v1127, %v1126
  %v1194 = vpack.c.b16 %v1129, %v1128
  %v1195 = vpack.c.b16 %v1131, %v1130
  %1260 = vmatprep.subr.bf16.mxu0 0
  %1261 = vmatpush1.bf16.msra.mxu0 %v1132
  %1262 = vmatprep.subr.bf16.mxu0 0
  %1263 = vmatpush1.bf16.msra.mxu0 %v1133
  %1264 = vmatprep.subr.bf16.mxu0 0
  %1265 = vmatpush1.bf16.msra.mxu0 %v1134
  %1266 = vmatprep.subr.bf16.mxu0 0
  %1267 = vmatpush1.bf16.msra.mxu0 %v1135
  %1268 = vmatprep.subr.bf16.mxu0 0
  %1269 = vmatpush1.bf16.msra.mxu0 %v1136
  %1270 = vmatprep.subr.bf16.mxu0 0
  %1271 = vmatpush1.bf16.msra.mxu0 %v1137
  %1272 = vmatprep.subr.bf16.mxu0 0
  %1273 = vmatpush1.bf16.msra.mxu0 %v1138
  %1274 = vmatprep.subr.bf16.mxu0 0
  %1275 = vmatpush1.bf16.msra.mxu0 %v1139
  %1276 = vmatprep.subr.bf16.mxu0 0
  %1277 = vmatpush1.bf16.msra.mxu0 %v1140
  %1278 = vmatprep.subr.bf16.mxu0 0
  %1279 = vmatpush1.bf16.msra.mxu0 %v1141
  %1280 = vmatprep.subr.bf16.mxu0 0
  %1281 = vmatpush1.bf16.msra.mxu0 %v1142
  %1282 = vmatprep.subr.bf16.mxu0 0
  %1283 = vmatpush1.bf16.msra.mxu0 %v1143
  %1284 = vmatprep.subr.bf16.mxu0 0
  %1285 = vmatpush1.bf16.msra.mxu0 %v1144
  %1286 = vmatprep.subr.bf16.mxu0 0
  %1287 = vmatpush1.bf16.msra.mxu0 %v1145
  %1288 = vmatprep.subr.bf16.mxu0 0
  %1289 = vmatpush1.bf16.msra.mxu0 %v1146
  %1290 = vmatprep.subr.bf16.mxu0 0
  %1291 = vmatpush1.bf16.msra.mxu0 %v1147
  %1292 = vmatprep.mubr.bf16.mxu0 %v637
  %1293 = vmatmul.mubr.bf16.gmra.mrb[0].mxu0 %v636
  %v1294 = vpop.f32.mrb[0].mxu0
  %v1295 = vadd.f32 %v274, %v1294
  %v1296 = vpop.f32.mrb[0].mxu0
  %v1297 = vpop.f32.mrb[0].mxu0
  %v1298 = vadd.f32 %v274, %v1297
  %v1299 = vpop.f32.mrb[0].mxu0
  %1300 = vmatprep.mubr.bf16.mxu0 %v645
  %1301 = vmatmul.mubr.bf16.gmra.mrb[0].mxu0 %v644
  %v1302 = vpop.f32.mrb[0].mxu0
  %v1303 = vadd.f32 %v274, %v1302
  %v1304 = vpop.f32.mrb[0].mxu0
  %v1305 = vpop.f32.mrb[0].mxu0
  %v1306 = vadd.f32 %v274, %v1305
  %v1307 = vpop.f32.mrb[0].mxu0
  %1308 = vmatprep.mubr.bf16.mxu0 %v653
  %1309 = vmatmul.mubr.bf16.gmra.mrb[0].mxu0 %v652
  %v1310 = vpop.f32.mrb[0].mxu0
  %v1311 = vadd.f32 %v274, %v1310
  %v1312 = vpop.f32.mrb[0].mxu0
  %v1313 = vpop.f32.mrb[0].mxu0
  %v1314 = vadd.f32 %v274, %v1313
  %v1315 = vpop.f32.mrb[0].mxu0
  %1316 = vmatprep.mubr.bf16.mxu0 %v661
  %1317 = vmatmul.mubr.bf16.gmra.mrb[0].mxu0 %v660
  %v1318 = vpop.f32.mrb[0].mxu0
  %v1319 = vadd.f32 %v274, %v1318
  %v1320 = vpop.f32.mrb[0].mxu0
  %v1321 = vpop.f32.mrb[0].mxu0
  %v1322 = vadd.f32 %v274, %v1321
  %v1323 = vpop.f32.mrb[0].mxu0
  %1324 = vmatprep.mubr.bf16.mxu0 %v669
  %1325 = vmatmul.mubr.bf16.gmra.mrb[0].mxu0 %v668
  %v1326 = vpop.f32.mrb[0].mxu0
  %v1327 = vadd.f32 %v274, %v1326
  %v1328 = vpop.f32.mrb[0].mxu0
  %v1329 = vpop.f32.mrb[0].mxu0
  %v1330 = vadd.f32 %v274, %v1329
  %v1331 = vpop.f32.mrb[0].mxu0
  %1332 = vmatprep.mubr.bf16.mxu0 %v677
  %1333 = vmatmul.mubr.bf16.gmra.mrb[0].mxu0 %v676
  %v1334 = vpop.f32.mrb[0].mxu0
  %v1335 = vadd.f32 %v274, %v1334
  %v1336 = vpop.f32.mrb[0].mxu0
  %v1337 = vpop.f32.mrb[0].mxu0
  %v1338 = vadd.f32 %v274, %v1337
  %v1339 = vpop.f32.mrb[0].mxu0
  %1340 = vmatprep.mubr.bf16.mxu0 %v685
  %1341 = vmatmul.mubr.bf16.gmra.mrb[0].mxu0 %v684
  %v1342 = vpop.f32.mrb[0].mxu0
  %v1343 = vadd.f32 %v274, %v1342
  %v1344 = vpop.f32.mrb[0].mxu0
  %v1345 = vpop.f32.mrb[0].mxu0
  %v1346 = vadd.f32 %v274, %v1345
  %v1347 = vpop.f32.mrb[0].mxu0
  %1348 = vmatprep.mubr.bf16.mxu0 %v693
  %1349 = vmatmul.mubr.bf16.gmra.mrb[0].mxu0 %v692
  %v1350 = vpop.f32.mrb[0].mxu0
  %v1351 = vadd.f32 %v274, %v1350
  %v1352 = vpop.f32.mrb[0].mxu0
  %v1353 = vpop.f32.mrb[0].mxu0
  %v1354 = vadd.f32 %v274, %v1353
  %v1355 = vpop.f32.mrb[0].mxu0
  %1356 = vmatprep.mubr.bf16.mxu0 %v701
  %1357 = vmatmul.mubr.bf16.gmra.mrb[0].mxu0 %v700
  %v1358 = vpop.f32.mrb[0].mxu0
  %v1359 = vadd.f32 %v274, %v1358
  %v1360 = vpop.f32.mrb[0].mxu0
  %v1361 = vpop.f32.mrb[0].mxu0
  %v1362 = vadd.f32 %v274, %v1361
  %v1363 = vpop.f32.mrb[0].mxu0
  %1364 = vmatprep.mubr.bf16.mxu0 %v709
  %1365 = vmatmul.mubr.bf16.gmra.mrb[0].mxu0 %v708
  %v1366 = vpop.f32.mrb[0].mxu0
  %v1367 = vadd.f32 %v274, %v1366
  %v1368 = vpop.f32.mrb[0].mxu0
  %v1369 = vpop.f32.mrb[0].mxu0
  %v1370 = vadd.f32 %v274, %v1369
  %v1371 = vpop.f32.mrb[0].mxu0
  %1372 = vmatprep.mubr.bf16.mxu0 %v717
  %1373 = vmatmul.mubr.bf16.gmra.mrb[0].mxu0 %v716
  %v1374 = vpop.f32.mrb[0].mxu0
  %v1375 = vadd.f32 %v274, %v1374
  %v1376 = vpop.f32.mrb[0].mxu0
  %v1377 = vpop.f32.mrb[0].mxu0
  %v1378 = vadd.f32 %v274, %v1377
  %v1379 = vpop.f32.mrb[0].mxu0
  %1380 = vmatprep.mubr.bf16.mxu0 %v725
  %1381 = vmatmul.mubr.bf16.gmra.mrb[0].mxu0 %v724
  %v1382 = vpop.f32.mrb[0].mxu0
  %v1383 = vadd.f32 %v274, %v1382
  %v1384 = vpop.f32.mrb[0].mxu0
  %v1385 = vpop.f32.mrb[0].mxu0
  %v1386 = vadd.f32 %v274, %v1385
  %v1387 = vpop.f32.mrb[0].mxu0
  %1388 = vmatprep.mubr.bf16.mxu0 %v733
  %1389 = vmatmul.mubr.bf16.gmra.mrb[0].mxu0 %v732
  %v1390 = vpop.f32.mrb[0].mxu0
  %v1391 = vadd.f32 %v274, %v1390
  %v1392 = vpop.f32.mrb[0].mxu0
  %v1393 = vpop.f32.mrb[0].mxu0
  %v1394 = vadd.f32 %v274, %v1393
  %v1395 = vpop.f32.mrb[0].mxu0
  %1396 = vmatprep.mubr.bf16.mxu0 %v741
  %1397 = vmatmul.mubr.bf16.gmra.mrb[0].mxu0 %v740
  %v1398 = vpop.f32.mrb[0].mxu0
  %v1399 = vadd.f32 %v274, %v1398
  %v1400 = vpop.f32.mrb[0].mxu0
  %v1401 = vpop.f32.mrb[0].mxu0
  %v1402 = vadd.f32 %v274, %v1401
  %v1403 = vpop.f32.mrb[0].mxu0
  %1404 = vmatprep.mubr.bf16.mxu0 %v749
  %1405 = vmatmul.mubr.bf16.gmra.mrb[0].mxu0 %v748
  %v1406 = vpop.f32.mrb[0].mxu0
  %v1407 = vadd.f32 %v274, %v1406
  %v1408 = vpop.f32.mrb[0].mxu0
  %v1409 = vpop.f32.mrb[0].mxu0
  %v1410 = vadd.f32 %v274, %v1409
  %v1411 = vpop.f32.mrb[0].mxu0
  %1412 = vdwg.mxu0
  %1413 = vmatprep.subr.bf16.mxu0 0
  %1414 = vmatpush1.bf16.msra.mxu0 %v1148
  %1415 = vmatprep.subr.bf16.mxu0 0
  %1416 = vmatpush1.bf16.msra.mxu0 %v1149
  %1417 = vmatprep.subr.bf16.mxu0 0
  %1418 = vmatpush1.bf16.msra.mxu0 %v1150
  %1419 = vmatprep.subr.bf16.mxu0 0
  %1420 = vmatpush1.bf16.msra.mxu0 %v1151
  %1421 = vmatprep.subr.bf16.mxu0 0
  %1422 = vmatpush1.bf16.msra.mxu0 %v1152
  %1423 = vmatprep.subr.bf16.mxu0 0
  %1424 = vmatpush1.bf16.msra.mxu0 %v1153
  %1425 = vmatprep.subr.bf16.mxu0 0
  %1426 = vmatpush1.bf16.msra.mxu0 %v1154
  %1427 = vmatprep.subr.bf16.mxu0 0
  %1428 = vmatpush1.bf16.msra.mxu0 %v1155
  %1429 = vmatprep.subr.bf16.mxu0 0
  %1430 = vmatpush1.bf16.msra.mxu0 %v1156
  %1431 = vmatprep.subr.bf16.mxu0 0
  %1432 = vmatpush1.bf16.msra.mxu0 %v1157
  %1433 = vmatprep.subr.bf16.mxu0 0
  %1434 = vmatpush1.bf16.msra.mxu0 %v1158
  %1435 = vmatprep.subr.bf16.mxu0 0
  %1436 = vmatpush1.bf16.msra.mxu0 %v1159
  %1437 = vmatprep.subr.bf16.mxu0 0
  %1438 = vmatpush1.bf16.msra.mxu0 %v1160
  %1439 = vmatprep.subr.bf16.mxu0 0
  %1440 = vmatpush1.bf16.msra.mxu0 %v1161
  %1441 = vmatprep.subr.bf16.mxu0 0
  %1442 = vmatpush1.bf16.msra.mxu0 %v1162
  %1443 = vmatprep.subr.bf16.mxu0 0
  %1444 = vmatpush1.bf16.msra.mxu0 %v1163
  %1445 = vmatprep.mubr.bf16.mxu0 %v639
  %1446 = vmatmul.mubr.bf16.gmra.mrb[0].mxu0 %v638
  %v1447 = vpop.f32.mrb[0].mxu0
  %v1448 = vadd.f32 %v1295, %v1447
  %v1449 = vpop.f32.mrb[0].mxu0
  %v1450 = vpop.f32.mrb[0].mxu0
  %v1451 = vadd.f32 %v1298, %v1450
  %v1452 = vpop.f32.mrb[0].mxu0
  %1453 = vmatprep.mubr.bf16.mxu0 %v647
  %1454 = vmatmul.mubr.bf16.gmra.mrb[0].mxu0 %v646
  %v1455 = vpop.f32.mrb[0].mxu0
  %v1456 = vadd.f32 %v1303, %v1455
  %v1457 = vpop.f32.mrb[0].mxu0
  %v1458 = vpop.f32.mrb[0].mxu0
  %v1459 = vadd.f32 %v1306, %v1458
  %v1460 = vpop.f32.mrb[0].mxu0
  %1461 = vmatprep.mubr.bf16.mxu0 %v655
  %1462 = vmatmul.mubr.bf16.gmra.mrb[0].mxu0 %v654
  %v1463 = vpop.f32.mrb[0].mxu0
  %v1464 = vadd.f32 %v1311, %v1463
  %v1465 = vpop.f32.mrb[0].mxu0
  %v1466 = vpop.f32.mrb[0].mxu0
  %v1467 = vadd.f32 %v1314, %v1466
  %v1468 = vpop.f32.mrb[0].mxu0
  %1469 = vmatprep.mubr.bf16.mxu0 %v663
  %1470 = vmatmul.mubr.bf16.gmra.mrb[0].mxu0 %v662
  %v1471 = vpop.f32.mrb[0].mxu0
  %v1472 = vadd.f32 %v1319, %v1471
  %v1473 = vpop.f32.mrb[0].mxu0
  %v1474 = vpop.f32.mrb[0].mxu0
  %v1475 = vadd.f32 %v1322, %v1474
  %v1476 = vpop.f32.mrb[0].mxu0
  %1477 = vmatprep.mubr.bf16.mxu0 %v671
  %1478 = vmatmul.mubr.bf16.gmra.mrb[0].mxu0 %v670
  %v1479 = vpop.f32.mrb[0].mxu0
  %v1480 = vadd.f32 %v1327, %v1479
  %v1481 = vpop.f32.mrb[0].mxu0
  %v1482 = vpop.f32.mrb[0].mxu0
  %v1483 = vadd.f32 %v1330, %v1482
  %v1484 = vpop.f32.mrb[0].mxu0
  %1485 = vmatprep.mubr.bf16.mxu0 %v679
  %1486 = vmatmul.mubr.bf16.gmra.mrb[0].mxu0 %v678
  %v1487 = vpop.f32.mrb[0].mxu0
  %v1488 = vadd.f32 %v1335, %v1487
  %v1489 = vpop.f32.mrb[0].mxu0
  %v1490 = vpop.f32.mrb[0].mxu0
  %v1491 = vadd.f32 %v1338, %v1490
  %v1492 = vpop.f32.mrb[0].mxu0
  %1493 = vmatprep.mubr.bf16.mxu0 %v687
  %1494 = vmatmul.mubr.bf16.gmra.mrb[0].mxu0 %v686
  %v1495 = vpop.f32.mrb[0].mxu0
  %v1496 = vadd.f32 %v1343, %v1495
  %v1497 = vpop.f32.mrb[0].mxu0
  %v1498 = vpop.f32.mrb[0].mxu0
  %v1499 = vadd.f32 %v1346, %v1498
  %v1500 = vpop.f32.mrb[0].mxu0
  %1501 = vmatprep.mubr.bf16.mxu0 %v695
  %1502 = vmatmul.mubr.bf16.gmra.mrb[0].mxu0 %v694
  %v1503 = vpop.f32.mrb[0].mxu0
  %v1504 = vadd.f32 %v1351, %v1503
  %v1505 = vpop.f32.mrb[0].mxu0
  %v1506 = vpop.f32.mrb[0].mxu0
  %v1507 = vadd.f32 %v1354, %v1506
  %v1508 = vpop.f32.mrb[0].mxu0
  %1509 = vmatprep.mubr.bf16.mxu0 %v703
  %1510 = vmatmul.mubr.bf16.gmra.mrb[0].mxu0 %v702
  %v1511 = vpop.f32.mrb[0].mxu0
  %v1512 = vadd.f32 %v1359, %v1511
  %v1513 = vpop.f32.mrb[0].mxu0
  %v1514 = vpop.f32.mrb[0].mxu0
  %v1515 = vadd.f32 %v1362, %v1514
  %v1516 = vpop.f32.mrb[0].mxu0
  %1517 = vmatprep.mubr.bf16.mxu0 %v711
  %1518 = vmatmul.mubr.bf16.gmra.mrb[0].mxu0 %v710
  %v1519 = vpop.f32.mrb[0].mxu0
  %v1520 = vadd.f32 %v1367, %v1519
  %v1521 = vpop.f32.mrb[0].mxu0
  %v1522 = vpop.f32.mrb[0].mxu0
  %v1523 = vadd.f32 %v1370, %v1522
  %v1524 = vpop.f32.mrb[0].mxu0
  %1525 = vmatprep.mubr.bf16.mxu0 %v719
  %1526 = vmatmul.mubr.bf16.gmra.mrb[0].mxu0 %v718
  %v1527 = vpop.f32.mrb[0].mxu0
  %v1528 = vadd.f32 %v1375, %v1527
  %v1529 = vpop.f32.mrb[0].mxu0
  %v1530 = vpop.f32.mrb[0].mxu0
  %v1531 = vadd.f32 %v1378, %v1530
  %v1532 = vpop.f32.mrb[0].mxu0
  %1533 = vmatprep.mubr.bf16.mxu0 %v727
  %1534 = vmatmul.mubr.bf16.gmra.mrb[0].mxu0 %v726
  %v1535 = vpop.f32.mrb[0].mxu0
  %v1536 = vadd.f32 %v1383, %v1535
  %v1537 = vpop.f32.mrb[0].mxu0
  %v1538 = vpop.f32.mrb[0].mxu0
  %v1539 = vadd.f32 %v1386, %v1538
  %v1540 = vpop.f32.mrb[0].mxu0
  %1541 = vmatprep.mubr.bf16.mxu0 %v735
  %1542 = vmatmul.mubr.bf16.gmra.mrb[0].mxu0 %v734
  %v1543 = vpop.f32.mrb[0].mxu0
  %v1544 = vadd.f32 %v1391, %v1543
  %v1545 = vpop.f32.mrb[0].mxu0
  %v1546 = vpop.f32.mrb[0].mxu0
  %v1547 = vadd.f32 %v1394, %v1546
  %v1548 = vpop.f32.mrb[0].mxu0
  %1549 = vmatprep.mubr.bf16.mxu0 %v743
  %1550 = vmatmul.mubr.bf16.gmra.mrb[0].mxu0 %v742
  %v1551 = vpop.f32.mrb[0].mxu0
  %v1552 = vadd.f32 %v1399, %v1551
  %v1553 = vpop.f32.mrb[0].mxu0
  %v1554 = vpop.f32.mrb[0].mxu0
  %v1555 = vadd.f32 %v1402, %v1554
  %v1556 = vpop.f32.mrb[0].mxu0
  %1557 = vmatprep.mubr.bf16.mxu0 %v751
  %1558 = vmatmul.mubr.bf16.gmra.mrb[0].mxu0 %v750
  %v1559 = vpop.f32.mrb[0].mxu0
  %v1560 = vadd.f32 %v1407, %v1559
  %v1561 = vpop.f32.mrb[0].mxu0
  %v1562 = vpop.f32.mrb[0].mxu0
  %v1563 = vadd.f32 %v1410, %v1562
  %v1564 = vpop.f32.mrb[0].mxu0
  %1565 = vdwg.mxu0
  %1566 = vmatprep.subr.bf16.mxu0 0
  %1567 = vmatpush1.bf16.msra.mxu0 %v1164
  %1568 = vmatprep.subr.bf16.mxu0 0
  %1569 = vmatpush1.bf16.msra.mxu0 %v1165
  %1570 = vmatprep.subr.bf16.mxu0 0
  %1571 = vmatpush1.bf16.msra.mxu0 %v1166
  %1572 = vmatprep.subr.bf16.mxu0 0
  %1573 = vmatpush1.bf16.msra.mxu0 %v1167
  %1574 = vmatprep.subr.bf16.mxu0 0
  %1575 = vmatpush1.bf16.msra.mxu0 %v1168
  %1576 = vmatprep.subr.bf16.mxu0 0
  %1577 = vmatpush1.bf16.msra.mxu0 %v1169
  %1578 = vmatprep.subr.bf16.mxu0 0
  %1579 = vmatpush1.bf16.msra.mxu0 %v1170
  %1580 = vmatprep.subr.bf16.mxu0 0
  %1581 = vmatpush1.bf16.msra.mxu0 %v1171
  %1582 = vmatprep.subr.bf16.mxu0 0
  %1583 = vmatpush1.bf16.msra.mxu0 %v1172
  %1584 = vmatprep.subr.bf16.mxu0 0
  %1585 = vmatpush1.bf16.msra.mxu0 %v1173
  %1586 = vmatprep.subr.bf16.mxu0 0
  %1587 = vmatpush1.bf16.msra.mxu0 %v1174
  %1588 = vmatprep.subr.bf16.mxu0 0
  %1589 = vmatpush1.bf16.msra.mxu0 %v1175
  %1590 = vmatprep.subr.bf16.mxu0 0
  %1591 = vmatpush1.bf16.msra.mxu0 %v1176
  %1592 = vmatprep.subr.bf16.mxu0 0
  %1593 = vmatpush1.bf16.msra.mxu0 %v1177
  %1594 = vmatprep.subr.bf16.mxu0 0
  %1595 = vmatpush1.bf16.msra.mxu0 %v1178
  %1596 = vmatprep.subr.bf16.mxu0 0
  %1597 = vmatpush1.bf16.msra.mxu0 %v1179
  %1598 = vmatprep.mubr.bf16.mxu0 %v641
  %1599 = vmatmul.mubr.bf16.gmra.mrb[0].mxu0 %v640
  %v1600 = vpop.f32.mrb[0].mxu0
  %v1601 = vadd.f32 %v1448, %v1600
  %v1602 = vpop.f32.mrb[0].mxu0
  %v1603 = vpop.f32.mrb[0].mxu0
  %v1604 = vadd.f32 %v1451, %v1603
  %v1605 = vpop.f32.mrb[0].mxu0
  %1606 = vmatprep.mubr.bf16.mxu0 %v649
  %1607 = vmatmul.mubr.bf16.gmra.mrb[0].mxu0 %v648
  %v1608 = vpop.f32.mrb[0].mxu0
  %v1609 = vadd.f32 %v1456, %v1608
  %v1610 = vpop.f32.mrb[0].mxu0
  %v1611 = vpop.f32.mrb[0].mxu0
  %v1612 = vadd.f32 %v1459, %v1611
  %v1613 = vpop.f32.mrb[0].mxu0
  %1614 = vmatprep.mubr.bf16.mxu0 %v657
  %1615 = vmatmul.mubr.bf16.gmra.mrb[0].mxu0 %v656
  %v1616 = vpop.f32.mrb[0].mxu0
  %v1617 = vadd.f32 %v1464, %v1616
  %v1618 = vpop.f32.mrb[0].mxu0
  %v1619 = vpop.f32.mrb[0].mxu0
  %v1620 = vadd.f32 %v1467, %v1619
  %v1621 = vpop.f32.mrb[0].mxu0
  %1622 = vmatprep.mubr.bf16.mxu0 %v665
  %1623 = vmatmul.mubr.bf16.gmra.mrb[0].mxu0 %v664
  %v1624 = vpop.f32.mrb[0].mxu0
  %v1625 = vadd.f32 %v1472, %v1624
  %v1626 = vpop.f32.mrb[0].mxu0
  %v1627 = vpop.f32.mrb[0].mxu0
  %v1628 = vadd.f32 %v1475, %v1627
  %v1629 = vpop.f32.mrb[0].mxu0
  %1630 = vmatprep.mubr.bf16.mxu0 %v673
  %1631 = vmatmul.mubr.bf16.gmra.mrb[0].mxu0 %v672
  %v1632 = vpop.f32.mrb[0].mxu0
  %v1633 = vadd.f32 %v1480, %v1632
  %v1634 = vpop.f32.mrb[0].mxu0
  %v1635 = vpop.f32.mrb[0].mxu0
  %v1636 = vadd.f32 %v1483, %v1635
  %v1637 = vpop.f32.mrb[0].mxu0
  %1638 = vmatprep.mubr.bf16.mxu0 %v681
  %1639 = vmatmul.mubr.bf16.gmra.mrb[0].mxu0 %v680
  %v1640 = vpop.f32.mrb[0].mxu0
  %v1641 = vadd.f32 %v1488, %v1640
  %v1642 = vpop.f32.mrb[0].mxu0
  %v1643 = vpop.f32.mrb[0].mxu0
  %v1644 = vadd.f32 %v1491, %v1643
  %v1645 = vpop.f32.mrb[0].mxu0
  %1646 = vmatprep.mubr.bf16.mxu0 %v689
  %1647 = vmatmul.mubr.bf16.gmra.mrb[0].mxu0 %v688
  %v1648 = vpop.f32.mrb[0].mxu0
  %v1649 = vadd.f32 %v1496, %v1648
  %v1650 = vpop.f32.mrb[0].mxu0
  %v1651 = vpop.f32.mrb[0].mxu0
  %v1652 = vadd.f32 %v1499, %v1651
  %v1653 = vpop.f32.mrb[0].mxu0
  %1654 = vmatprep.mubr.bf16.mxu0 %v697
  %1655 = vmatmul.mubr.bf16.gmra.mrb[0].mxu0 %v696
  %v1656 = vpop.f32.mrb[0].mxu0
  %v1657 = vadd.f32 %v1504, %v1656
  %v1658 = vpop.f32.mrb[0].mxu0
  %v1659 = vpop.f32.mrb[0].mxu0
  %v1660 = vadd.f32 %v1507, %v1659
  %v1661 = vpop.f32.mrb[0].mxu0
  %1662 = vmatprep.mubr.bf16.mxu0 %v705
  %1663 = vmatmul.mubr.bf16.gmra.mrb[0].mxu0 %v704
  %v1664 = vpop.f32.mrb[0].mxu0
  %v1665 = vadd.f32 %v1512, %v1664
  %v1666 = vpop.f32.mrb[0].mxu0
  %v1667 = vpop.f32.mrb[0].mxu0
  %v1668 = vadd.f32 %v1515, %v1667
  %v1669 = vpop.f32.mrb[0].mxu0
  %1670 = vmatprep.mubr.bf16.mxu0 %v713
  %1671 = vmatmul.mubr.bf16.gmra.mrb[0].mxu0 %v712
  %v1672 = vpop.f32.mrb[0].mxu0
  %v1673 = vadd.f32 %v1520, %v1672
  %v1674 = vpop.f32.mrb[0].mxu0
  %v1675 = vpop.f32.mrb[0].mxu0
  %v1676 = vadd.f32 %v1523, %v1675
  %v1677 = vpop.f32.mrb[0].mxu0
  %1678 = vmatprep.mubr.bf16.mxu0 %v721
  %1679 = vmatmul.mubr.bf16.gmra.mrb[0].mxu0 %v720
  %v1680 = vpop.f32.mrb[0].mxu0
  %v1681 = vadd.f32 %v1528, %v1680
  %v1682 = vpop.f32.mrb[0].mxu0
  %v1683 = vpop.f32.mrb[0].mxu0
  %v1684 = vadd.f32 %v1531, %v1683
  %v1685 = vpop.f32.mrb[0].mxu0
  %1686 = vmatprep.mubr.bf16.mxu0 %v729
  %1687 = vmatmul.mubr.bf16.gmra.mrb[0].mxu0 %v728
  %v1688 = vpop.f32.mrb[0].mxu0
  %v1689 = vadd.f32 %v1536, %v1688
  %v1690 = vpop.f32.mrb[0].mxu0
  %v1691 = vpop.f32.mrb[0].mxu0
  %v1692 = vadd.f32 %v1539, %v1691
  %v1693 = vpop.f32.mrb[0].mxu0
  %1694 = vmatprep.mubr.bf16.mxu0 %v737
  %1695 = vmatmul.mubr.bf16.gmra.mrb[0].mxu0 %v736
  %v1696 = vpop.f32.mrb[0].mxu0
  %v1697 = vadd.f32 %v1544, %v1696
  %v1698 = vpop.f32.mrb[0].mxu0
  %v1699 = vpop.f32.mrb[0].mxu0
  %v1700 = vadd.f32 %v1547, %v1699
  %v1701 = vpop.f32.mrb[0].mxu0
  %1702 = vmatprep.mubr.bf16.mxu0 %v745
  %1703 = vmatmul.mubr.bf16.gmra.mrb[0].mxu0 %v744
  %v1704 = vpop.f32.mrb[0].mxu0
  %v1705 = vadd.f32 %v1552, %v1704
  %v1706 = vpop.f32.mrb[0].mxu0
  %v1707 = vpop.f32.mrb[0].mxu0
  %v1708 = vadd.f32 %v1555, %v1707
  %v1709 = vpop.f32.mrb[0].mxu0
  %1710 = vmatprep.mubr.bf16.mxu0 %v753
  %1711 = vmatmul.mubr.bf16.gmra.mrb[0].mxu0 %v752
  %v1712 = vpop.f32.mrb[0].mxu0
  %v1713 = vadd.f32 %v1560, %v1712
  %v1714 = vpop.f32.mrb[0].mxu0
  %v1715 = vpop.f32.mrb[0].mxu0
  %v1716 = vadd.f32 %v1563, %v1715
  %v1717 = vpop.f32.mrb[0].mxu0
  %1718 = vdwg.mxu0
  %1719 = vmatprep.subr.bf16.mxu0 0
  %1720 = vmatpush1.bf16.msra.mxu0 %v1180
  %1721 = vmatprep.subr.bf16.mxu0 0
  %1722 = vmatpush1.bf16.msra.mxu0 %v1181
  %1723 = vmatprep.subr.bf16.mxu0 0
  %1724 = vmatpush1.bf16.msra.mxu0 %v1182
  %1725 = vmatprep.subr.bf16.mxu0 0
  %1726 = vmatpush1.bf16.msra.mxu0 %v1183
  %1727 = vmatprep.subr.bf16.mxu0 0
  %1728 = vmatpush1.bf16.msra.mxu0 %v1184
  %1729 = vmatprep.subr.bf16.mxu0 0
  %1730 = vmatpush1.bf16.msra.mxu0 %v1185
  %1731 = vmatprep.subr.bf16.mxu0 0
  %1732 = vmatpush1.bf16.msra.mxu0 %v1186
  %1733 = vmatprep.subr.bf16.mxu0 0
  %1734 = vmatpush1.bf16.msra.mxu0 %v1187
  %1735 = vmatprep.subr.bf16.mxu0 0
  %1736 = vmatpush1.bf16.msra.mxu0 %v1188
  %1737 = vmatprep.subr.bf16.mxu0 0
  %1738 = vmatpush1.bf16.msra.mxu0 %v1189
  %1739 = vmatprep.subr.bf16.mxu0 0
  %1740 = vmatpush1.bf16.msra.mxu0 %v1190
  %1741 = vmatprep.subr.bf16.mxu0 0
  %1742 = vmatpush1.bf16.msra.mxu0 %v1191
  %1743 = vmatprep.subr.bf16.mxu0 0
  %1744 = vmatpush1.bf16.msra.mxu0 %v1192
  %1745 = vmatprep.subr.bf16.mxu0 0
  %1746 = vmatpush1.bf16.msra.mxu0 %v1193
  %1747 = vmatprep.subr.bf16.mxu0 0
  %1748 = vmatpush1.bf16.msra.mxu0 %v1194
  %1749 = vmatprep.subr.bf16.mxu0 0
  %1750 = vmatpush1.bf16.msra.mxu0 %v1195
  %1751 = vmatprep.mubr.bf16.mxu0 %v643
  %1752 = vmatmul.mubr.bf16.gmra.mrb[0].mxu0 %v642
  %v1753 = vpop.f32.mrb[0].mxu0
  %v1754 = vadd.f32 %v1601, %v1753
  %v1755 = vpop.f32.mrb[0].mxu0
  %v1756 = vpop.f32.mrb[0].mxu0
  %v1757 = vadd.f32 %v1604, %v1756
  %v1758 = vpop.f32.mrb[0].mxu0
  %1759 = vmatprep.mubr.bf16.mxu0 %v651
  %1760 = vmatmul.mubr.bf16.gmra.mrb[0].mxu0 %v650
  %v1761 = vpop.f32.mrb[0].mxu0
  %v1762 = vadd.f32 %v1609, %v1761
  %v1763 = vpop.f32.mrb[0].mxu0
  %v1764 = vpop.f32.mrb[0].mxu0
  %v1765 = vadd.f32 %v1612, %v1764
  %v1766 = vpop.f32.mrb[0].mxu0
  %1767 = vmatprep.mubr.bf16.mxu0 %v659
  %1768 = vmatmul.mubr.bf16.gmra.mrb[0].mxu0 %v658
  %v1769 = vpop.f32.mrb[0].mxu0
  %v1770 = vadd.f32 %v1617, %v1769
  %v1771 = vpop.f32.mrb[0].mxu0
  %v1772 = vpop.f32.mrb[0].mxu0
  %v1773 = vadd.f32 %v1620, %v1772
  %v1774 = vpop.f32.mrb[0].mxu0
  %1775 = vmatprep.mubr.bf16.mxu0 %v667
  %1776 = vmatmul.mubr.bf16.gmra.mrb[0].mxu0 %v666
  %v1777 = vpop.f32.mrb[0].mxu0
  %v1778 = vadd.f32 %v1625, %v1777
  %v1779 = vpop.f32.mrb[0].mxu0
  %v1780 = vpop.f32.mrb[0].mxu0
  %v1781 = vadd.f32 %v1628, %v1780
  %v1782 = vpop.f32.mrb[0].mxu0
  %1783 = vmatprep.mubr.bf16.mxu0 %v675
  %1784 = vmatmul.mubr.bf16.gmra.mrb[0].mxu0 %v674
  %v1785 = vpop.f32.mrb[0].mxu0
  %v1786 = vadd.f32 %v1633, %v1785
  %v1787 = vpop.f32.mrb[0].mxu0
  %v1788 = vpop.f32.mrb[0].mxu0
  %v1789 = vadd.f32 %v1636, %v1788
  %v1790 = vpop.f32.mrb[0].mxu0
  %1791 = vmatprep.mubr.bf16.mxu0 %v683
  %1792 = vmatmul.mubr.bf16.gmra.mrb[0].mxu0 %v682
  %v1793 = vpop.f32.mrb[0].mxu0
  %v1794 = vadd.f32 %v1641, %v1793
  %v1795 = vpop.f32.mrb[0].mxu0
  %v1796 = vpop.f32.mrb[0].mxu0
  %v1797 = vadd.f32 %v1644, %v1796
  %v1798 = vpop.f32.mrb[0].mxu0
  %1799 = vmatprep.mubr.bf16.mxu0 %v691
  %1800 = vmatmul.mubr.bf16.gmra.mrb[0].mxu0 %v690
  %v1801 = vpop.f32.mrb[0].mxu0
  %v1802 = vadd.f32 %v1649, %v1801
  %v1803 = vpop.f32.mrb[0].mxu0
  %v1804 = vpop.f32.mrb[0].mxu0
  %v1805 = vadd.f32 %v1652, %v1804
  %v1806 = vpop.f32.mrb[0].mxu0
  %1807 = vmatprep.mubr.bf16.mxu0 %v699
  %1808 = vmatmul.mubr.bf16.gmra.mrb[0].mxu0 %v698
  %v1809 = vpop.f32.mrb[0].mxu0
  %v1810 = vadd.f32 %v1657, %v1809
  %v1811 = vpop.f32.mrb[0].mxu0
  %v1812 = vpop.f32.mrb[0].mxu0
  %v1813 = vadd.f32 %v1660, %v1812
  %v1814 = vpop.f32.mrb[0].mxu0
  %1815 = vmatprep.mubr.bf16.mxu0 %v707
  %1816 = vmatmul.mubr.bf16.gmra.mrb[0].mxu0 %v706
  %v1817 = vpop.f32.mrb[0].mxu0
  %v1818 = vadd.f32 %v1665, %v1817
  %v1819 = vpop.f32.mrb[0].mxu0
  %v1820 = vpop.f32.mrb[0].mxu0
  %v1821 = vadd.f32 %v1668, %v1820
  %v1822 = vpop.f32.mrb[0].mxu0
  %1823 = vmatprep.mubr.bf16.mxu0 %v715
  %1824 = vmatmul.mubr.bf16.gmra.mrb[0].mxu0 %v714
  %v1825 = vpop.f32.mrb[0].mxu0
  %v1826 = vadd.f32 %v1673, %v1825
  %v1827 = vpop.f32.mrb[0].mxu0
  %v1828 = vpop.f32.mrb[0].mxu0
  %v1829 = vadd.f32 %v1676, %v1828
  %v1830 = vpop.f32.mrb[0].mxu0
  %1831 = vmatprep.mubr.bf16.mxu0 %v723
  %1832 = vmatmul.mubr.bf16.gmra.mrb[0].mxu0 %v722
  %v1833 = vpop.f32.mrb[0].mxu0
  %v1834 = vadd.f32 %v1681, %v1833
  %v1835 = vpop.f32.mrb[0].mxu0
  %v1836 = vpop.f32.mrb[0].mxu0
  %v1837 = vadd.f32 %v1684, %v1836
  %v1838 = vpop.f32.mrb[0].mxu0
  %1839 = vmatprep.mubr.bf16.mxu0 %v731
  %1840 = vmatmul.mubr.bf16.gmra.mrb[0].mxu0 %v730
  %v1841 = vpop.f32.mrb[0].mxu0
  %v1842 = vadd.f32 %v1689, %v1841
  %v1843 = vpop.f32.mrb[0].mxu0
  %v1844 = vpop.f32.mrb[0].mxu0
  %v1845 = vadd.f32 %v1692, %v1844
  %v1846 = vpop.f32.mrb[0].mxu0
  %1847 = vmatprep.mubr.bf16.mxu0 %v739
  %1848 = vmatmul.mubr.bf16.gmra.mrb[0].mxu0 %v738
  %v1849 = vpop.f32.mrb[0].mxu0
  %v1850 = vadd.f32 %v1697, %v1849
  %v1851 = vpop.f32.mrb[0].mxu0
  %v1852 = vpop.f32.mrb[0].mxu0
  %v1853 = vadd.f32 %v1700, %v1852
  %v1854 = vpop.f32.mrb[0].mxu0
  %1855 = vmatprep.mubr.bf16.mxu0 %v747
  %1856 = vmatmul.mubr.bf16.gmra.mrb[0].mxu0 %v746
  %v1857 = vpop.f32.mrb[0].mxu0
  %v1858 = vadd.f32 %v1705, %v1857
  %v1859 = vpop.f32.mrb[0].mxu0
  %v1860 = vpop.f32.mrb[0].mxu0
  %v1861 = vadd.f32 %v1708, %v1860
  %v1862 = vpop.f32.mrb[0].mxu0
  %1863 = vmatprep.mubr.bf16.mxu0 %v755
  %1864 = vmatmul.mubr.bf16.gmra.mrb[0].mxu0 %v754
  %v1865 = vpop.f32.mrb[0].mxu0
  %v1866 = vadd.f32 %v1713, %v1865
  %v1867 = vpop.f32.mrb[0].mxu0
  %v1868 = vpop.f32.mrb[0].mxu0
  %v1869 = vadd.f32 %v1716, %v1868
  %v1870 = vpop.f32.mrb[0].mxu0
  %1871 = vdwg.mxu0
  %v1872 = vmax.f32 %v1754, 0.0
  %v1873 = vmax.f32 %v1757, 0.0
  %v1874 = vmax.f32 %v1762, 0.0
  %v1875 = vmax.f32 %v1765, 0.0
  %v1876 = vmax.f32 %v1770, 0.0
  %v1877 = vmax.f32 %v1773, 0.0
  %v1878 = vmax.f32 %v1778, 0.0
  %v1879 = vmax.f32 %v1781, 0.0
  %v1880 = vmax.f32 %v1786, 0.0
  %v1881 = vmax.f32 %v1789, 0.0
  %v1882 = vmax.f32 %v1794, 0.0
  %v1883 = vmax.f32 %v1797, 0.0
  %v1884 = vmax.f32 %v1802, 0.0
  %v1885 = vmax.f32 %v1805, 0.0
  %v1886 = vmax.f32 %v1810, 0.0
  %v1887 = vmax.f32 %v1813, 0.0
  %v1888 = vmax.f32 %v1818, 0.0
  %v1889 = vmax.f32 %v1821, 0.0
  %v1890 = vmax.f32 %v1826, 0.0
  %v1891 = vmax.f32 %v1829, 0.0
  %v1892 = vmax.f32 %v1834, 0.0
  %v1893 = vmax.f32 %v1837, 0.0
  %v1894 = vmax.f32 %v1842, 0.0
  %v1895 = vmax.f32 %v1845, 0.0
  %v1896 = vmax.f32 %v1850, 0.0
  %v1897 = vmax.f32 %v1853, 0.0
  %v1898 = vmax.f32 %v1858, 0.0
  %v1899 = vmax.f32 %v1861, 0.0
  %v1900 = vmax.f32 %v1866, 0.0
  %v1901 = vmax.f32 %v1869, 0.0
  %v1902 = vadd.f32 %v1872, %v1873
  %v1903 = vadd.f32 %v1902, %v1874
  %v1904 = vadd.f32 %v1903, %v1875
  %v1905 = vadd.f32 %v1904, %v1876
  %v1906 = vadd.f32 %v1905, %v1877
  %v1907 = vadd.f32 %v1906, %v1878
  %v1908 = vadd.f32 %v1907, %v1879
  %v1909 = vadd.f32 %v1908, %v1880
  %v1910 = vadd.f32 %v1909, %v1881
  %v1911 = vadd.f32 %v1910, %v1882
  %v1912 = vadd.f32 %v1911, %v1883
  %v1913 = vadd.f32 %v1912, %v1884
  %v1914 = vadd.f32 %v1913, %v1885
  %v1915 = vadd.f32 %v1914, %v1886
  %v1916 = vadd.f32 %v1915, %v1887
  %v1917 = vadd.f32 %v1916, %v1888
  %v1918 = vadd.f32 %v1917, %v1889
  %v1919 = vadd.f32 %v1918, %v1890
  %v1920 = vadd.f32 %v1919, %v1891
  %v1921 = vadd.f32 %v1920, %v1892
  %v1922 = vadd.f32 %v1921, %v1893
  %v1923 = vadd.f32 %v1922, %v1894
  %v1924 = vadd.f32 %v1923, %v1895
  %v1925 = vadd.f32 %v1924, %v1896
  %v1926 = vadd.f32 %v1925, %v1897
  %v1927 = vadd.f32 %v1926, %v1898
  %v1928 = vadd.f32 %v1927, %v1899
  %v1929 = vadd.f32 %v1928, %v1900
  %v1930 = vadd.f32 %v1929, %v1901
  %v1931 = vrot.slane %v1930, 4
  %v1932 = vadd.f32 %v1930, %v1931
  %v1933 = vrot.slane %v1932, 2
  %v1934 = vadd.f32 %v1932, %v1933
  %v1935 = vrot.slane %v1934, 1
  %v1936 = vadd.f32 %v1934, %v1935
  %v1937 = vmul.f32 %v1872, %v1872
  %v1938 = vmul.f32 %v1873, %v1873
  %v1939 = vmul.f32 %v1874, %v1874
  %v1940 = vmul.f32 %v1875, %v1875
  %v1941 = vmul.f32 %v1876, %v1876
  %v1942 = vmul.f32 %v1877, %v1877
  %v1943 = vmul.f32 %v1878, %v1878
  %v1944 = vmul.f32 %v1879, %v1879
  %v1945 = vmul.f32 %v1880, %v1880
  %v1946 = vmul.f32 %v1881, %v1881
  %v1947 = vmul.f32 %v1882, %v1882
  %v1948 = vmul.f32 %v1883, %v1883
  %v1949 = vmul.f32 %v1884, %v1884
  %v1950 = vmul.f32 %v1885, %v1885
  %v1951 = vmul.f32 %v1886, %v1886
  %v1952 = vmul.f32 %v1887, %v1887
  %v1953 = vmul.f32 %v1888, %v1888
  %v1954 = vmul.f32 %v1889, %v1889
  %v1955 = vmul.f32 %v1890, %v1890
  %v1956 = vmul.f32 %v1891, %v1891
  %v1957 = vmul.f32 %v1892, %v1892
  %v1958 = vmul.f32 %v1893, %v1893
  %v1959 = vmul.f32 %v1894, %v1894
  %v1960 = vmul.f32 %v1895, %v1895
  %v1961 = vmul.f32 %v1896, %v1896
  %v1962 = vmul.f32 %v1897, %v1897
  %v1963 = vmul.f32 %v1898, %v1898
  %v1964 = vmul.f32 %v1899, %v1899
  %v1965 = vmul.f32 %v1900, %v1900
  %v1966 = vmul.f32 %v1901, %v1901
  %v1967 = vadd.f32 %v1937, %v1938
  %v1968 = vadd.f32 %v1967, %v1939
  %v1969 = vadd.f32 %v1968, %v1940
  %v1970 = vadd.f32 %v1969, %v1941
  %v1971 = vadd.f32 %v1970, %v1942
  %v1972 = vadd.f32 %v1971, %v1943
  %v1973 = vadd.f32 %v1972, %v1944
  %v1974 = vadd.f32 %v1973, %v1945
  %v1975 = vadd.f32 %v1974, %v1946
  %v1976 = vadd.f32 %v1975, %v1947
  %v1977 = vadd.f32 %v1976, %v1948
  %v1978 = vadd.f32 %v1977, %v1949
  %v1979 = vadd.f32 %v1978, %v1950
  %v1980 = vadd.f32 %v1979, %v1951
  %v1981 = vadd.f32 %v1980, %v1952
  %v1982 = vadd.f32 %v1981, %v1953
  %v1983 = vadd.f32 %v1982, %v1954
  %v1984 = vadd.f32 %v1983, %v1955
  %v1985 = vadd.f32 %v1984, %v1956
  %v1986 = vadd.f32 %v1985, %v1957
  %v1987 = vadd.f32 %v1986, %v1958
  %v1988 = vadd.f32 %v1987, %v1959
  %v1989 = vadd.f32 %v1988, %v1960
  %v1990 = vadd.f32 %v1989, %v1961
  %v1991 = vadd.f32 %v1990, %v1962
  %v1992 = vadd.f32 %v1991, %v1963
  %v1993 = vadd.f32 %v1992, %v1964
  %v1994 = vadd.f32 %v1993, %v1965
  %v1995 = vadd.f32 %v1994, %v1966
  %v1996 = vrot.slane %v1995, 4
  %v1997 = vadd.f32 %v1995, %v1996
  %v1998 = vrot.slane %v1997, 2
  %v1999 = vadd.f32 %v1997, %v1998
  %v2000 = vrot.slane %v1999, 1
  %v2001 = vadd.f32 %v1999, %v2000
  %2003 = vrot.lane.b32.xlu0 %v1936, 96
  %v2004 = vpop.permute.xlu0 %2003
  %v2006 = vadd.f32 %v1936, %v2004
  %2007 = vrot.lane.b32.xlu0 %v1936, 64
  %v2008 = vpop.permute.xlu0 %2007
  %v2010 = vadd.f32 %v2006, %v2008
  %2011 = vrot.lane.b32.xlu0 %v1936, 32
  %v2012 = vpop.permute.xlu0 %2011
  %v2014 = vadd.f32 %v2010, %v2012
  %2016 = vrot.lane.b32.xlu0 %v2001, 96
  %v2017 = vpop.permute.xlu0 %2016
  %v2019 = vadd.f32 %v2001, %v2017
  %2020 = vrot.lane.b32.xlu0 %v2001, 64
  %v2021 = vpop.permute.xlu0 %2020
  %v2023 = vadd.f32 %v2019, %v2021
  %2024 = vrot.lane.b32.xlu0 %v2001, 32
  %v2025 = vpop.permute.xlu0 %2024
  %v2027 = vadd.f32 %v2023, %v2025
  %v2028 = vmul.f32 %v2014, 0.0010416667
  %v2029 = vmul.f32 %v2027, 0.0010416667
  %v2030 = vmul.f32 %v2028, %v2028
  %v2031 = vsub.f32 %v2029, %v2030
  %v2032 = vmax.f32 %v2031, 0.0
  %v2033 = vadd.f32 %v2032, 1e-05
  %v2034 = vrsqrt.pop %v2033
  %v2035 = vld [vmem:[%s3] sm:$0x1]
  %v2036 = vmul.f32 %v2034, %v2035
  %v2037 = vld [vmem:[%s4] sm:$0x1]
  %v2038 = vmul.f32 %v2028, %v2036
  %v2039 = vsub.f32 %v2037, %v2038
  %2070 = vrot.lane.b32.xlu0 %v1872, 96
  %v2071 = vpop.permute.xlu0 %2070
  %2072 = vrot.lane.b32.xlu0 %v1873, 96
  %v2073 = vpop.permute.xlu0 %2072
  %2074 = vrot.lane.b32.xlu0 %v1874, 96
  %v2075 = vpop.permute.xlu0 %2074
  %2076 = vrot.lane.b32.xlu0 %v1875, 96
  %v2077 = vpop.permute.xlu0 %2076
  %2078 = vrot.lane.b32.xlu0 %v1876, 96
  %v2079 = vpop.permute.xlu0 %2078
  %2080 = vrot.lane.b32.xlu0 %v1877, 96
  %v2081 = vpop.permute.xlu0 %2080
  %2082 = vrot.lane.b32.xlu0 %v1878, 96
  %v2083 = vpop.permute.xlu0 %2082
  %2084 = vrot.lane.b32.xlu0 %v1879, 96
  %v2085 = vpop.permute.xlu0 %2084
  %2086 = vrot.lane.b32.xlu0 %v1880, 96
  %v2087 = vpop.permute.xlu0 %2086
  %2088 = vrot.lane.b32.xlu0 %v1881, 96
  %v2089 = vpop.permute.xlu0 %2088
  %2090 = vrot.lane.b32.xlu0 %v1882, 96
  %v2091 = vpop.permute.xlu0 %2090
  %2092 = vrot.lane.b32.xlu0 %v1883, 96
  %v2093 = vpop.permute.xlu0 %2092
  %2094 = vrot.lane.b32.xlu0 %v1884, 96
  %v2095 = vpop.permute.xlu0 %2094
  %2096 = vrot.lane.b32.xlu0 %v1885, 96
  %v2097 = vpop.permute.xlu0 %2096
  %2098 = vrot.lane.b32.xlu0 %v1886, 96
  %v2099 = vpop.permute.xlu0 %2098
  %2100 = vrot.lane.b32.xlu0 %v1887, 96
  %v2101 = vpop.permute.xlu0 %2100
  %2102 = vrot.lane.b32.xlu0 %v1888, 96
  %v2103 = vpop.permute.xlu0 %2102
  %2104 = vrot.lane.b32.xlu0 %v1889, 96
  %v2105 = vpop.permute.xlu0 %2104
  %2106 = vrot.lane.b32.xlu0 %v1890, 96
  %v2107 = vpop.permute.xlu0 %2106
  %2108 = vrot.lane.b32.xlu0 %v1891, 96
  %v2109 = vpop.permute.xlu0 %2108
  %2110 = vrot.lane.b32.xlu0 %v1892, 96
  %v2111 = vpop.permute.xlu0 %2110
  %2112 = vrot.lane.b32.xlu0 %v1893, 96
  %v2113 = vpop.permute.xlu0 %2112
  %2114 = vrot.lane.b32.xlu0 %v1894, 96
  %v2115 = vpop.permute.xlu0 %2114
  %2116 = vrot.lane.b32.xlu0 %v1895, 96
  %v2117 = vpop.permute.xlu0 %2116
  %2118 = vrot.lane.b32.xlu0 %v1896, 96
  %v2119 = vpop.permute.xlu0 %2118
  %2120 = vrot.lane.b32.xlu0 %v1897, 96
  %v2121 = vpop.permute.xlu0 %2120
  %2122 = vrot.lane.b32.xlu0 %v1898, 96
  %v2123 = vpop.permute.xlu0 %2122
  %2124 = vrot.lane.b32.xlu0 %v1899, 96
  %v2125 = vpop.permute.xlu0 %2124
  %2126 = vrot.lane.b32.xlu0 %v1900, 96
  %v2127 = vpop.permute.xlu0 %2126
  %2128 = vrot.lane.b32.xlu0 %v1901, 96
  %v2129 = vpop.permute.xlu0 %2128
  %v2160 = vmax.f32 %v1872, %v2071
  %v2161 = vmax.f32 %v1873, %v2073
  %v2162 = vmax.f32 %v1874, %v2075
  %v2163 = vmax.f32 %v1875, %v2077
  %v2164 = vmax.f32 %v1876, %v2079
  %v2165 = vmax.f32 %v1877, %v2081
  %v2166 = vmax.f32 %v1878, %v2083
  %v2167 = vmax.f32 %v1879, %v2085
  %v2168 = vmax.f32 %v1880, %v2087
  %v2169 = vmax.f32 %v1881, %v2089
  %v2170 = vmax.f32 %v1882, %v2091
  %v2171 = vmax.f32 %v1883, %v2093
  %v2172 = vmax.f32 %v1884, %v2095
  %v2173 = vmax.f32 %v1885, %v2097
  %v2174 = vmax.f32 %v1886, %v2099
  %v2175 = vmax.f32 %v1887, %v2101
  %v2176 = vmax.f32 %v1888, %v2103
  %v2177 = vmax.f32 %v1889, %v2105
  %v2178 = vmax.f32 %v1890, %v2107
  %v2179 = vmax.f32 %v1891, %v2109
  %v2180 = vmax.f32 %v1892, %v2111
  %v2181 = vmax.f32 %v1893, %v2113
  %v2182 = vmax.f32 %v1894, %v2115
  %v2183 = vmax.f32 %v1895, %v2117
  %v2184 = vmax.f32 %v1896, %v2119
  %v2185 = vmax.f32 %v1897, %v2121
  %v2186 = vmax.f32 %v1898, %v2123
  %v2187 = vmax.f32 %v1899, %v2125
  %v2188 = vmax.f32 %v1900, %v2127
  %v2189 = vmax.f32 %v1901, %v2129
  %2220 = vrot.lane.b32.xlu0 %v2160, 64
  %v2221 = vpop.permute.xlu0 %2220
  %2222 = vrot.lane.b32.xlu0 %v2161, 64
  %v2223 = vpop.permute.xlu0 %2222
  %2224 = vrot.lane.b32.xlu0 %v2162, 64
  %v2225 = vpop.permute.xlu0 %2224
  %2226 = vrot.lane.b32.xlu0 %v2163, 64
  %v2227 = vpop.permute.xlu0 %2226
  %2228 = vrot.lane.b32.xlu0 %v2164, 64
  %v2229 = vpop.permute.xlu0 %2228
  %2230 = vrot.lane.b32.xlu0 %v2165, 64
  %v2231 = vpop.permute.xlu0 %2230
  %2232 = vrot.lane.b32.xlu0 %v2166, 64
  %v2233 = vpop.permute.xlu0 %2232
  %2234 = vrot.lane.b32.xlu0 %v2167, 64
  %v2235 = vpop.permute.xlu0 %2234
  %2236 = vrot.lane.b32.xlu0 %v2168, 64
  %v2237 = vpop.permute.xlu0 %2236
  %2238 = vrot.lane.b32.xlu0 %v2169, 64
  %v2239 = vpop.permute.xlu0 %2238
  %2240 = vrot.lane.b32.xlu0 %v2170, 64
  %v2241 = vpop.permute.xlu0 %2240
  %2242 = vrot.lane.b32.xlu0 %v2171, 64
  %v2243 = vpop.permute.xlu0 %2242
  %2244 = vrot.lane.b32.xlu0 %v2172, 64
  %v2245 = vpop.permute.xlu0 %2244
  %2246 = vrot.lane.b32.xlu0 %v2173, 64
  %v2247 = vpop.permute.xlu0 %2246
  %2248 = vrot.lane.b32.xlu0 %v2174, 64
  %v2249 = vpop.permute.xlu0 %2248
  %2250 = vrot.lane.b32.xlu0 %v2175, 64
  %v2251 = vpop.permute.xlu0 %2250
  %2252 = vrot.lane.b32.xlu0 %v2176, 64
  %v2253 = vpop.permute.xlu0 %2252
  %2254 = vrot.lane.b32.xlu0 %v2177, 64
  %v2255 = vpop.permute.xlu0 %2254
  %2256 = vrot.lane.b32.xlu0 %v2178, 64
  %v2257 = vpop.permute.xlu0 %2256
  %2258 = vrot.lane.b32.xlu0 %v2179, 64
  %v2259 = vpop.permute.xlu0 %2258
  %2260 = vrot.lane.b32.xlu0 %v2180, 64
  %v2261 = vpop.permute.xlu0 %2260
  %2262 = vrot.lane.b32.xlu0 %v2181, 64
  %v2263 = vpop.permute.xlu0 %2262
  %2264 = vrot.lane.b32.xlu0 %v2182, 64
  %v2265 = vpop.permute.xlu0 %2264
  %2266 = vrot.lane.b32.xlu0 %v2183, 64
  %v2267 = vpop.permute.xlu0 %2266
  %2268 = vrot.lane.b32.xlu0 %v2184, 64
  %v2269 = vpop.permute.xlu0 %2268
  %2270 = vrot.lane.b32.xlu0 %v2185, 64
  %v2271 = vpop.permute.xlu0 %2270
  %2272 = vrot.lane.b32.xlu0 %v2186, 64
  %v2273 = vpop.permute.xlu0 %2272
  %2274 = vrot.lane.b32.xlu0 %v2187, 64
  %v2275 = vpop.permute.xlu0 %2274
  %2276 = vrot.lane.b32.xlu0 %v2188, 64
  %v2277 = vpop.permute.xlu0 %2276
  %2278 = vrot.lane.b32.xlu0 %v2189, 64
  %v2279 = vpop.permute.xlu0 %2278
  %v2310 = vmax.f32 %v2160, %v2221
  %v2311 = vmax.f32 %v2161, %v2223
  %v2312 = vmax.f32 %v2162, %v2225
  %v2313 = vmax.f32 %v2163, %v2227
  %v2314 = vmax.f32 %v2164, %v2229
  %v2315 = vmax.f32 %v2165, %v2231
  %v2316 = vmax.f32 %v2166, %v2233
  %v2317 = vmax.f32 %v2167, %v2235
  %v2318 = vmax.f32 %v2168, %v2237
  %v2319 = vmax.f32 %v2169, %v2239
  %v2320 = vmax.f32 %v2170, %v2241
  %v2321 = vmax.f32 %v2171, %v2243
  %v2322 = vmax.f32 %v2172, %v2245
  %v2323 = vmax.f32 %v2173, %v2247
  %v2324 = vmax.f32 %v2174, %v2249
  %v2325 = vmax.f32 %v2175, %v2251
  %v2326 = vmax.f32 %v2176, %v2253
  %v2327 = vmax.f32 %v2177, %v2255
  %v2328 = vmax.f32 %v2178, %v2257
  %v2329 = vmax.f32 %v2179, %v2259
  %v2330 = vmax.f32 %v2180, %v2261
  %v2331 = vmax.f32 %v2181, %v2263
  %v2332 = vmax.f32 %v2182, %v2265
  %v2333 = vmax.f32 %v2183, %v2267
  %v2334 = vmax.f32 %v2184, %v2269
  %v2335 = vmax.f32 %v2185, %v2271
  %v2336 = vmax.f32 %v2186, %v2273
  %v2337 = vmax.f32 %v2187, %v2275
  %v2338 = vmax.f32 %v2188, %v2277
  %v2339 = vmax.f32 %v2189, %v2279
  %v2340 = vmin.f32 %v1872, %v2071
  %v2341 = vmin.f32 %v1873, %v2073
  %v2342 = vmin.f32 %v1874, %v2075
  %v2343 = vmin.f32 %v1875, %v2077
  %v2344 = vmin.f32 %v1876, %v2079
  %v2345 = vmin.f32 %v1877, %v2081
  %v2346 = vmin.f32 %v1878, %v2083
  %v2347 = vmin.f32 %v1879, %v2085
  %v2348 = vmin.f32 %v1880, %v2087
  %v2349 = vmin.f32 %v1881, %v2089
  %v2350 = vmin.f32 %v1882, %v2091
  %v2351 = vmin.f32 %v1883, %v2093
  %v2352 = vmin.f32 %v1884, %v2095
  %v2353 = vmin.f32 %v1885, %v2097
  %v2354 = vmin.f32 %v1886, %v2099
  %v2355 = vmin.f32 %v1887, %v2101
  %v2356 = vmin.f32 %v1888, %v2103
  %v2357 = vmin.f32 %v1889, %v2105
  %v2358 = vmin.f32 %v1890, %v2107
  %v2359 = vmin.f32 %v1891, %v2109
  %v2360 = vmin.f32 %v1892, %v2111
  %v2361 = vmin.f32 %v1893, %v2113
  %v2362 = vmin.f32 %v1894, %v2115
  %v2363 = vmin.f32 %v1895, %v2117
  %v2364 = vmin.f32 %v1896, %v2119
  %v2365 = vmin.f32 %v1897, %v2121
  %v2366 = vmin.f32 %v1898, %v2123
  %v2367 = vmin.f32 %v1899, %v2125
  %v2368 = vmin.f32 %v1900, %v2127
  %v2369 = vmin.f32 %v1901, %v2129
  %2400 = vrot.lane.b32.xlu0 %v2340, 64
  %v2401 = vpop.permute.xlu0 %2400
  %2402 = vrot.lane.b32.xlu0 %v2341, 64
  %v2403 = vpop.permute.xlu0 %2402
  %2404 = vrot.lane.b32.xlu0 %v2342, 64
  %v2405 = vpop.permute.xlu0 %2404
  %2406 = vrot.lane.b32.xlu0 %v2343, 64
  %v2407 = vpop.permute.xlu0 %2406
  %2408 = vrot.lane.b32.xlu0 %v2344, 64
  %v2409 = vpop.permute.xlu0 %2408
  %2410 = vrot.lane.b32.xlu0 %v2345, 64
  %v2411 = vpop.permute.xlu0 %2410
  %2412 = vrot.lane.b32.xlu0 %v2346, 64
  %v2413 = vpop.permute.xlu0 %2412
  %2414 = vrot.lane.b32.xlu0 %v2347, 64
  %v2415 = vpop.permute.xlu0 %2414
  %2416 = vrot.lane.b32.xlu0 %v2348, 64
  %v2417 = vpop.permute.xlu0 %2416
  %2418 = vrot.lane.b32.xlu0 %v2349, 64
  %v2419 = vpop.permute.xlu0 %2418
  %2420 = vrot.lane.b32.xlu0 %v2350, 64
  %v2421 = vpop.permute.xlu0 %2420
  %2422 = vrot.lane.b32.xlu0 %v2351, 64
  %v2423 = vpop.permute.xlu0 %2422
  %2424 = vrot.lane.b32.xlu0 %v2352, 64
  %v2425 = vpop.permute.xlu0 %2424
  %2426 = vrot.lane.b32.xlu0 %v2353, 64
  %v2427 = vpop.permute.xlu0 %2426
  %2428 = vrot.lane.b32.xlu0 %v2354, 64
  %v2429 = vpop.permute.xlu0 %2428
  %2430 = vrot.lane.b32.xlu0 %v2355, 64
  %v2431 = vpop.permute.xlu0 %2430
  %2432 = vrot.lane.b32.xlu0 %v2356, 64
  %v2433 = vpop.permute.xlu0 %2432
  %2434 = vrot.lane.b32.xlu0 %v2357, 64
  %v2435 = vpop.permute.xlu0 %2434
  %2436 = vrot.lane.b32.xlu0 %v2358, 64
  %v2437 = vpop.permute.xlu0 %2436
  %2438 = vrot.lane.b32.xlu0 %v2359, 64
  %v2439 = vpop.permute.xlu0 %2438
  %2440 = vrot.lane.b32.xlu0 %v2360, 64
  %v2441 = vpop.permute.xlu0 %2440
  %2442 = vrot.lane.b32.xlu0 %v2361, 64
  %v2443 = vpop.permute.xlu0 %2442
  %2444 = vrot.lane.b32.xlu0 %v2362, 64
  %v2445 = vpop.permute.xlu0 %2444
  %2446 = vrot.lane.b32.xlu0 %v2363, 64
  %v2447 = vpop.permute.xlu0 %2446
  %2448 = vrot.lane.b32.xlu0 %v2364, 64
  %v2449 = vpop.permute.xlu0 %2448
  %2450 = vrot.lane.b32.xlu0 %v2365, 64
  %v2451 = vpop.permute.xlu0 %2450
  %2452 = vrot.lane.b32.xlu0 %v2366, 64
  %v2453 = vpop.permute.xlu0 %2452
  %2454 = vrot.lane.b32.xlu0 %v2367, 64
  %v2455 = vpop.permute.xlu0 %2454
  %2456 = vrot.lane.b32.xlu0 %v2368, 64
  %v2457 = vpop.permute.xlu0 %2456
  %2458 = vrot.lane.b32.xlu0 %v2369, 64
  %v2459 = vpop.permute.xlu0 %2458
  %v2490 = vmin.f32 %v2340, %v2401
  %v2491 = vmin.f32 %v2341, %v2403
  %v2492 = vmin.f32 %v2342, %v2405
  %v2493 = vmin.f32 %v2343, %v2407
  %v2494 = vmin.f32 %v2344, %v2409
  %v2495 = vmin.f32 %v2345, %v2411
  %v2496 = vmin.f32 %v2346, %v2413
  %v2497 = vmin.f32 %v2347, %v2415
  %v2498 = vmin.f32 %v2348, %v2417
  %v2499 = vmin.f32 %v2349, %v2419
  %v2500 = vmin.f32 %v2350, %v2421
  %v2501 = vmin.f32 %v2351, %v2423
  %v2502 = vmin.f32 %v2352, %v2425
  %v2503 = vmin.f32 %v2353, %v2427
  %v2504 = vmin.f32 %v2354, %v2429
  %v2505 = vmin.f32 %v2355, %v2431
  %v2506 = vmin.f32 %v2356, %v2433
  %v2507 = vmin.f32 %v2357, %v2435
  %v2508 = vmin.f32 %v2358, %v2437
  %v2509 = vmin.f32 %v2359, %v2439
  %v2510 = vmin.f32 %v2360, %v2441
  %v2511 = vmin.f32 %v2361, %v2443
  %v2512 = vmin.f32 %v2362, %v2445
  %v2513 = vmin.f32 %v2363, %v2447
  %v2514 = vmin.f32 %v2364, %v2449
  %v2515 = vmin.f32 %v2365, %v2451
  %v2516 = vmin.f32 %v2366, %v2453
  %v2517 = vmin.f32 %v2367, %v2455
  %v2518 = vmin.f32 %v2368, %v2457
  %v2519 = vmin.f32 %v2369, %v2459
  %vm2520 = vcmp.ge.f32.partialorder %v2036, 0.0
  %v2521 = vsel %vm2520, 1, 0
  %v2522 = vlaneseq
  %v2523 = vshrl.u32 %v2522, 7
  %v2524 = vsub.s32 0, %v2523
  %v2525 = vrot.slane %v2521, %v2524
  %vm2526 = vcmp.eq.s32.totalorder %v2525, 1
  %v2527 = vsel %vm2526, %v2310, %v2490
  %v2528 = vsel %vm2526, %v2311, %v2491
  %v2529 = vsel %vm2526, %v2312, %v2492
  %v2530 = vsel %vm2526, %v2313, %v2493
  %v2531 = vsel %vm2526, %v2314, %v2494
  %v2532 = vsel %vm2526, %v2315, %v2495
  %v2533 = vsel %vm2526, %v2316, %v2496
  %v2534 = vsel %vm2526, %v2317, %v2497
  %v2535 = vsel %vm2526, %v2318, %v2498
  %v2536 = vsel %vm2526, %v2319, %v2499
  %v2537 = vsel %vm2526, %v2320, %v2500
  %v2538 = vsel %vm2526, %v2321, %v2501
  %v2539 = vsel %vm2526, %v2322, %v2502
  %v2540 = vsel %vm2526, %v2323, %v2503
  %v2541 = vsel %vm2526, %v2324, %v2504
  %v2542 = vsel %vm2526, %v2325, %v2505
  %v2543 = vsel %vm2526, %v2326, %v2506
  %v2544 = vsel %vm2526, %v2327, %v2507
  %v2545 = vsel %vm2526, %v2328, %v2508
  %v2546 = vsel %vm2526, %v2329, %v2509
  %v2547 = vsel %vm2526, %v2330, %v2510
  %v2548 = vsel %vm2526, %v2331, %v2511
  %v2549 = vsel %vm2526, %v2332, %v2512
  %v2550 = vsel %vm2526, %v2333, %v2513
  %v2551 = vsel %vm2526, %v2334, %v2514
  %v2552 = vsel %vm2526, %v2335, %v2515
  %v2553 = vsel %vm2526, %v2336, %v2516
  %v2554 = vsel %vm2526, %v2337, %v2517
  %v2555 = vsel %vm2526, %v2338, %v2518
  %v2556 = vsel %vm2526, %v2339, %v2519
  %v2557 = vlaneseq
  %v2558 = vshrl.u32 %v2557, 7
  %v2559 = vsub.s32 0, %v2558
  %v2560 = vrot.slane %v2036, %v2559
  %v2561 = vmul.f32 %v2527, %v2560
  %v2562 = vmul.f32 %v2528, %v2560
  %v2563 = vmul.f32 %v2529, %v2560
  %v2564 = vmul.f32 %v2530, %v2560
  %v2565 = vmul.f32 %v2531, %v2560
  %v2566 = vmul.f32 %v2532, %v2560
  %v2567 = vmul.f32 %v2533, %v2560
  %v2568 = vmul.f32 %v2534, %v2560
  %v2569 = vmul.f32 %v2535, %v2560
  %v2570 = vmul.f32 %v2536, %v2560
  %v2571 = vmul.f32 %v2537, %v2560
  %v2572 = vmul.f32 %v2538, %v2560
  %v2573 = vmul.f32 %v2539, %v2560
  %v2574 = vmul.f32 %v2540, %v2560
  %v2575 = vmul.f32 %v2541, %v2560
  %v2576 = vmul.f32 %v2542, %v2560
  %v2577 = vmul.f32 %v2543, %v2560
  %v2578 = vmul.f32 %v2544, %v2560
  %v2579 = vmul.f32 %v2545, %v2560
  %v2580 = vmul.f32 %v2546, %v2560
  %v2581 = vmul.f32 %v2547, %v2560
  %v2582 = vmul.f32 %v2548, %v2560
  %v2583 = vmul.f32 %v2549, %v2560
  %v2584 = vmul.f32 %v2550, %v2560
  %v2585 = vmul.f32 %v2551, %v2560
  %v2586 = vmul.f32 %v2552, %v2560
  %v2587 = vmul.f32 %v2553, %v2560
  %v2588 = vmul.f32 %v2554, %v2560
  %v2589 = vmul.f32 %v2555, %v2560
  %v2590 = vmul.f32 %v2556, %v2560
  %v2592 = vlaneseq
  %v2593 = vshrl.u32 %v2592, 7
  %v2594 = vsub.s32 0, %v2593
  %v2595 = vrot.slane %v2039, %v2594
  %v2597 = vadd.f32 %v2561, %v2595
  %v2598 = vadd.f32 %v2562, %v2595
  %v2599 = vadd.f32 %v2563, %v2595
  %v2600 = vadd.f32 %v2564, %v2595
  %v2601 = vadd.f32 %v2565, %v2595
  %v2602 = vadd.f32 %v2566, %v2595
  %v2603 = vadd.f32 %v2567, %v2595
  %v2604 = vadd.f32 %v2568, %v2595
  %v2605 = vadd.f32 %v2569, %v2595
  %v2606 = vadd.f32 %v2570, %v2595
  %v2607 = vadd.f32 %v2571, %v2595
  %v2608 = vadd.f32 %v2572, %v2595
  %v2609 = vadd.f32 %v2573, %v2595
  %v2610 = vadd.f32 %v2574, %v2595
  %v2611 = vadd.f32 %v2575, %v2595
  %v2612 = vadd.f32 %v2576, %v2595
  %v2613 = vadd.f32 %v2577, %v2595
  %v2614 = vadd.f32 %v2578, %v2595
  %v2615 = vadd.f32 %v2579, %v2595
  %v2616 = vadd.f32 %v2580, %v2595
  %v2617 = vadd.f32 %v2581, %v2595
  %v2618 = vadd.f32 %v2582, %v2595
  %v2619 = vadd.f32 %v2583, %v2595
  %v2620 = vadd.f32 %v2584, %v2595
  %v2621 = vadd.f32 %v2585, %v2595
  %v2622 = vadd.f32 %v2586, %v2595
  %v2623 = vadd.f32 %v2587, %v2595
  %v2624 = vadd.f32 %v2588, %v2595
  %v2625 = vadd.f32 %v2589, %v2595
  %v2626 = vadd.f32 %v2590, %v2595
  %v2627 = vpack.c.bf16 %v2598, %v2597
  %v2628 = vpack.c.bf16 %v2600, %v2599
  %v2629 = vpack.c.bf16 %v2602, %v2601
  %v2630 = vpack.c.bf16 %v2604, %v2603
  %v2631 = vpack.c.bf16 %v2606, %v2605
  %v2632 = vpack.c.bf16 %v2608, %v2607
  %v2633 = vpack.c.bf16 %v2610, %v2609
  %v2634 = vpack.c.bf16 %v2612, %v2611
  %v2635 = vpack.c.bf16 %v2614, %v2613
  %v2636 = vpack.c.bf16 %v2616, %v2615
  %v2637 = vpack.c.bf16 %v2618, %v2617
  %v2638 = vpack.c.bf16 %v2620, %v2619
  %v2639 = vpack.c.bf16 %v2622, %v2621
  %v2640 = vpack.c.bf16 %v2624, %v2623
  %v2641 = vpack.c.bf16 %v2626, %v2625
  %v2657 = vunpack.c.l.b16 %v2627
  %v2658 = vunpack.c.h.b16 %v2627
  %v2659 = vunpack.c.l.b16 %v2628
  %v2660 = vunpack.c.h.b16 %v2628
  %v2661 = vunpack.c.l.b16 %v2629
  %v2662 = vunpack.c.h.b16 %v2629
  %v2663 = vunpack.c.l.b16 %v2630
  %v2664 = vunpack.c.h.b16 %v2630
  %v2665 = vunpack.c.l.b16 %v2631
  %v2666 = vunpack.c.h.b16 %v2631
  %v2667 = vunpack.c.l.b16 %v2632
  %v2668 = vunpack.c.h.b16 %v2632
  %v2669 = vunpack.c.l.b16 %v2633
  %v2670 = vunpack.c.h.b16 %v2633
  %v2671 = vunpack.c.l.b16 %v2634
  %v2672 = vunpack.c.h.b16 %v2634
  %v2673 = vunpack.c.l.b16 %v2635
  %v2674 = vunpack.c.h.b16 %v2635
  %v2675 = vunpack.c.l.b16 %v2636
  %v2676 = vunpack.c.h.b16 %v2636
  %v2677 = vunpack.c.l.b16 %v2637
  %v2678 = vunpack.c.h.b16 %v2637
  %v2679 = vunpack.c.l.b16 %v2638
  %v2680 = vunpack.c.h.b16 %v2638
  %v2681 = vunpack.c.l.b16 %v2639
  %v2682 = vunpack.c.h.b16 %v2639
  %v2683 = vunpack.c.l.b16 %v2640
  %v2684 = vunpack.c.h.b16 %v2640
  %v2685 = vunpack.c.l.b16 %v2641
  %v2686 = vunpack.c.h.b16 %v2641
  %v2687 = vpack.c.b16 %v2657, %v2657
  %v2688 = vpack.c.b16 %v2658, %v2658
  %v2689 = vpack.c.b16 %v2659, %v2659
  %v2690 = vpack.c.b16 %v2660, %v2660
  %v2691 = vpack.c.b16 %v2661, %v2661
  %v2692 = vpack.c.b16 %v2662, %v2662
  %v2693 = vpack.c.b16 %v2663, %v2663
  %v2694 = vpack.c.b16 %v2664, %v2664
  %v2695 = vpack.c.b16 %v2665, %v2665
  %v2696 = vpack.c.b16 %v2666, %v2666
  %v2697 = vpack.c.b16 %v2667, %v2667
  %v2698 = vpack.c.b16 %v2668, %v2668
  %v2699 = vpack.c.b16 %v2669, %v2669
  %v2700 = vpack.c.b16 %v2670, %v2670
  %v2701 = vpack.c.b16 %v2671, %v2671
  %v2702 = vpack.c.b16 %v2672, %v2672
  %v2703 = vpack.c.b16 %v2673, %v2673
  %v2704 = vpack.c.b16 %v2674, %v2674
  %v2705 = vpack.c.b16 %v2675, %v2675
  %v2706 = vpack.c.b16 %v2676, %v2676
  %v2707 = vpack.c.b16 %v2677, %v2677
  %v2708 = vpack.c.b16 %v2678, %v2678
  %v2709 = vpack.c.b16 %v2679, %v2679
  %v2710 = vpack.c.b16 %v2680, %v2680
  %v2711 = vpack.c.b16 %v2681, %v2681
  %v2712 = vpack.c.b16 %v2682, %v2682
  %v2713 = vpack.c.b16 %v2683, %v2683
  %v2714 = vpack.c.b16 %v2684, %v2684
  %v2715 = vpack.c.b16 %v2685, %v2685
  %v2716 = vpack.c.b16 %v2686, %v2686
  %vm2747 = vcmask 257024
  %2748 = vst.msk [vmem:[%s5] sm:$0xf] %vm2747, %v2687
  %2749 = vst.msk [vmem:[%s5 + $0x4] sm:$0xf] %vm2747, %v2688
  %2750 = vst.msk [vmem:[%s5 + $0x8] sm:$0xf] %vm2747, %v2689
  %2751 = vst.msk [vmem:[%s5 + $0xc] sm:$0xf] %vm2747, %v2690
  %2752 = vst.msk [vmem:[%s5 + $0x10] sm:$0xf] %vm2747, %v2691
  %2753 = vst.msk [vmem:[%s5 + $0x14] sm:$0xf] %vm2747, %v2692
  %2754 = vst.msk [vmem:[%s5 + $0x18] sm:$0xf] %vm2747, %v2693
  %2755 = vst.msk [vmem:[%s5 + $0x1c] sm:$0xf] %vm2747, %v2694
  %2756 = vst.msk [vmem:[%s5 + $0x20] sm:$0xf] %vm2747, %v2695
  %2757 = vst.msk [vmem:[%s5 + $0x24] sm:$0xf] %vm2747, %v2696
  %2758 = vst.msk [vmem:[%s5 + $0x28] sm:$0xf] %vm2747, %v2697
  %2759 = vst.msk [vmem:[%s5 + $0x2c] sm:$0xf] %vm2747, %v2698
  %2760 = vst.msk [vmem:[%s5 + $0x30] sm:$0xf] %vm2747, %v2699
  %2761 = vst.msk [vmem:[%s5 + $0x34] sm:$0xf] %vm2747, %v2700
  %2762 = vst.msk [vmem:[%s5 + $0x38] sm:$0xf] %vm2747, %v2701
  %2763 = vst.msk [vmem:[%s5 + $0x3c] sm:$0xf] %vm2747, %v2702
  %2764 = vst.msk [vmem:[%s5 + $0x40] sm:$0xf] %vm2747, %v2703
  %2765 = vst.msk [vmem:[%s5 + $0x44] sm:$0xf] %vm2747, %v2704
  %2766 = vst.msk [vmem:[%s5 + $0x48] sm:$0xf] %vm2747, %v2705
  %2767 = vst.msk [vmem:[%s5 + $0x4c] sm:$0xf] %vm2747, %v2706
  %2768 = vst.msk [vmem:[%s5 + $0x50] sm:$0xf] %vm2747, %v2707
  %2769 = vst.msk [vmem:[%s5 + $0x54] sm:$0xf] %vm2747, %v2708
  %2770 = vst.msk [vmem:[%s5 + $0x58] sm:$0xf] %vm2747, %v2709
  %2771 = vst.msk [vmem:[%s5 + $0x5c] sm:$0xf] %vm2747, %v2710
  %2772 = vst.msk [vmem:[%s5 + $0x60] sm:$0xf] %vm2747, %v2711
  %2773 = vst.msk [vmem:[%s5 + $0x64] sm:$0xf] %vm2747, %v2712
  %2774 = vst.msk [vmem:[%s5 + $0x68] sm:$0xf] %vm2747, %v2713
  %2775 = vst.msk [vmem:[%s5 + $0x6c] sm:$0xf] %vm2747, %v2714
  %2776 = vst.msk [vmem:[%s5 + $0x70] sm:$0xf] %vm2747, %v2715
  %2777 = vst.msk [vmem:[%s5 + $0x74] sm:$0xf] %vm2747, %v2716
  // Predicated region
  $region22: #{forward.5} parent=0 // pred_check
    _
  $region23: #{forward.5} parent=0 // pred_check_branch
    %2779 = sbr.rel (0) target = $region25
  $region24: #{forward.5} parent=0 // pred_region
    _
  $region25: #{forward.5} parent=0 // pred_fallthru
    _
  // Predicated region
  $region26: #{forward.5} parent=0 // pred_check
    _
  $region27: #{forward.5} parent=0 // pred_check_branch
    %2781 = sbr.rel (0) target = $region29
  $region28: #{forward.5} parent=0 // pred_region
    _
  $region29: #{forward.5} parent=0 // pred_fallthru
    _

// kernel: forward.6
$region0: #{forward.6}
  #allocation0 [shape = 'u32[]', space=smem, size = 0x4, offset = 0x4, fixed_abs, tag = 'smem constant byte address 0x4 - core index']
  #allocation1 [shape = 'u32[144,128]{1,0:T(1,128)}', space=vmem, size = 0x12000, scoped, tag = 'internal scratch']
  %s0 = inlined_call_operand.vmem [shape: bf16[60,512], index: 0, kind: input, shape index: {}]
  %s1 = inlined_call_operand.vmem [shape: bf16[512,256], index: 1, kind: input, shape index: {}]
  %s2 = inlined_call_operand.vmem [shape: f32[1,256], index: 2, kind: input, shape index: {}]
  %s3 = inlined_call_operand.vmem [shape: f32[1,64], index: 3, kind: input, shape index: {}]
  %s4 = inlined_call_operand.vmem [shape: f32[1,64], index: 4, kind: input, shape index: {}]
  %s5 = inlined_call_operand.vmem [shape: bf16[60,64], index: 5, kind: output, shape index: {}]
  %s6 = sld [smem:[#allocation0]]
  $region30: #{forward.6} parent=0
    _
  %s8 = ssub.s32 1, %s6
  %s9 = scalar_select 0, %s8, %s6
  // Predicated region
  $region2: #{forward.6} parent=0 // pred_check
    _
  $region3: #{forward.6} parent=0 // pred_check_branch
    %11 = sbr.rel (0) target = $region5
  $region4: #{forward.6} parent=0 // pred_region
    _
  $region5: #{forward.6} parent=0 // pred_fallthru
    _
  // Predicated region
  $region6: #{forward.6} parent=0 // pred_check
    _
  $region7: #{forward.6} parent=0 // pred_check_branch
    %13 = sbr.rel (0) target = $region9
  $region8: #{forward.6} parent=0 // pred_region
    _
  $region9: #{forward.6} parent=0 // pred_fallthru
    _
  // Predicated region
  $region10: #{forward.6} parent=0 // pred_check
    _
  $region11: #{forward.6} parent=0 // pred_check_branch
    %15 = sbr.rel (0) target = $region13
  $region12: #{forward.6} parent=0 // pred_region
    _
  $region13: #{forward.6} parent=0 // pred_fallthru
    _
  // Predicated region
  $region14: #{forward.6} parent=0 // pred_check
    _
  $region15: #{forward.6} parent=0 // pred_check_branch
    %17 = sbr.rel (0) target = $region17
  $region16: #{forward.6} parent=0 // pred_region
    _
  $region17: #{forward.6} parent=0 // pred_fallthru
    _
  // Predicated region
  $region18: #{forward.6} parent=0 // pred_check
    _
  $region19: #{forward.6} parent=0 // pred_check_branch
    %19 = sbr.rel (0) target = $region21
  $region20: #{forward.6} parent=0 // pred_region
    _
  $region21: #{forward.6} parent=0 // pred_fallthru
    _
  %v20 = vld [vmem:[%s0] sm:$0xff]
  %v21 = vld [vmem:[%s0 + $0x8] sm:$0xff]
  %v22 = vld [vmem:[%s0 + $0x10] sm:$0xff]
  %v23 = vld [vmem:[%s0 + $0x18] sm:$0xff]
  %v24 = vld [vmem:[%s0 + $0x20] sm:$0xff]
  %v25 = vld [vmem:[%s0 + $0x28] sm:$0xff]
  %v26 = vld [vmem:[%s0 + $0x30] sm:$0xff]
  %v27 = vld [vmem:[%s0 + $0x38] sm:$0xff]
  %v28 = vld [vmem:[%s0 + $0x40] sm:$0xff]
  %v29 = vld [vmem:[%s0 + $0x48] sm:$0xff]
  %v30 = vld [vmem:[%s0 + $0x50] sm:$0xff]
  %v31 = vld [vmem:[%s0 + $0x58] sm:$0xff]
  %v32 = vld [vmem:[%s0 + $0x60] sm:$0xff]
  %v33 = vld [vmem:[%s0 + $0x68] sm:$0xff]
  %v34 = vld [vmem:[%s0 + $0x70] sm:$0x33]
  %v35 = vld [vmem:[%s0 + $0x78] sm:$0x33]
  %v36 = vld [vmem:[%s1] sm:$0xff]
  %v37 = vld [vmem:[%s1 + $0x8] sm:$0xff]
  %v38 = vld [vmem:[%s1 + $0x10] sm:$0xff]
  %v39 = vld [vmem:[%s1 + $0x18] sm:$0xff]
  %v40 = vld [vmem:[%s1 + $0x20] sm:$0xff]
  %v41 = vld [vmem:[%s1 + $0x28] sm:$0xff]
  %v42 = vld [vmem:[%s1 + $0x30] sm:$0xff]
  %v43 = vld [vmem:[%s1 + $0x38] sm:$0xff]
  %v44 = vld [vmem:[%s1 + $0x40] sm:$0xff]
  %v45 = vld [vmem:[%s1 + $0x48] sm:$0xff]
  %v46 = vld [vmem:[%s1 + $0x50] sm:$0xff]
  %v47 = vld [vmem:[%s1 + $0x58] sm:$0xff]
  %v48 = vld [vmem:[%s1 + $0x60] sm:$0xff]
  %v49 = vld [vmem:[%s1 + $0x68] sm:$0xff]
  %v50 = vld [vmem:[%s1 + $0x70] sm:$0xff]
  %v51 = vld [vmem:[%s1 + $0x78] sm:$0xff]
  %v52 = vld [vmem:[%s1 + $0x80] sm:$0xff]
  %v53 = vld [vmem:[%s1 + $0x88] sm:$0xff]
  %v54 = vld [vmem:[%s1 + $0x90] sm:$0xff]
  %v55 = vld [vmem:[%s1 + $0x98] sm:$0xff]
  %v56 = vld [vmem:[%s1 + $0xa0] sm:$0xff]
  %v57 = vld [vmem:[%s1 + $0xa8] sm:$0xff]
  %v58 = vld [vmem:[%s1 + $0xb0] sm:$0xff]
  %v59 = vld [vmem:[%s1 + $0xb8] sm:$0xff]
  %v60 = vld [vmem:[%s1 + $0xc0] sm:$0xff]
  %v61 = vld [vmem:[%s1 + $0xc8] sm:$0xff]
  %v62 = vld [vmem:[%s1 + $0xd0] sm:$0xff]
  %v63 = vld [vmem:[%s1 + $0xd8] sm:$0xff]
  %v64 = vld [vmem:[%s1 + $0xe0] sm:$0xff]
  %v65 = vld [vmem:[%s1 + $0xe8] sm:$0xff]
  %v66 = vld [vmem:[%s1 + $0xf0] sm:$0xff]
  %v67 = vld [vmem:[%s1 + $0xf8] sm:$0xff]
  %v68 = vld [vmem:[%s1 + $0x100] sm:$0xff]
  %v69 = vld [vmem:[%s1 + $0x108] sm:$0xff]
  %v70 = vld [vmem:[%s1 + $0x110] sm:$0xff]
  %v71 = vld [vmem:[%s1 + $0x118] sm:$0xff]
  %v72 = vld [vmem:[%s1 + $0x120] sm:$0xff]
  %v73 = vld [vmem:[%s1 + $0x128] sm:$0xff]
  %v74 = vld [vmem:[%s1 + $0x130] sm:$0xff]
  %v75 = vld [vmem:[%s1 + $0x138] sm:$0xff]
  %v76 = vld [vmem:[%s1 + $0x140] sm:$0xff]
  %v77 = vld [vmem:[%s1 + $0x148] sm:$0xff]
  %v78 = vld [vmem:[%s1 + $0x150] sm:$0xff]
  %v79 = vld [vmem:[%s1 + $0x158] sm:$0xff]
  %v80 = vld [vmem:[%s1 + $0x160] sm:$0xff]
  %v81 = vld [vmem:[%s1 + $0x168] sm:$0xff]
  %v82 = vld [vmem:[%s1 + $0x170] sm:$0xff]
  %v83 = vld [vmem:[%s1 + $0x178] sm:$0xff]
  %v84 = vld [vmem:[%s1 + $0x180] sm:$0xff]
  %v85 = vld [vmem:[%s1 + $0x188] sm:$0xff]
  %v86 = vld [vmem:[%s1 + $0x190] sm:$0xff]
  %v87 = vld [vmem:[%s1 + $0x198] sm:$0xff]
  %v88 = vld [vmem:[%s1 + $0x1a0] sm:$0xff]
  %v89 = vld [vmem:[%s1 + $0x1a8] sm:$0xff]
  %v90 = vld [vmem:[%s1 + $0x1b0] sm:$0xff]
  %v91 = vld [vmem:[%s1 + $0x1b8] sm:$0xff]
  %v92 = vld [vmem:[%s1 + $0x1c0] sm:$0xff]
  %v93 = vld [vmem:[%s1 + $0x1c8] sm:$0xff]
  %v94 = vld [vmem:[%s1 + $0x1d0] sm:$0xff]
  %v95 = vld [vmem:[%s1 + $0x1d8] sm:$0xff]
  %v96 = vld [vmem:[%s1 + $0x1e0] sm:$0xff]
  %v97 = vld [vmem:[%s1 + $0x1e8] sm:$0xff]
  %v98 = vld [vmem:[%s1 + $0x1f0] sm:$0xff]
  %v99 = vld [vmem:[%s1 + $0x1f8] sm:$0xff]
  %v100 = vld [vmem:[%s2] sm:$0x3]
  %v102 = vlaneseq
  %v103 = vshrl.u32 %v102, 7
  %v104 = vsub.s32 0, %v103
  %v105 = vrot.slane %v100, %v104
  %v106 = vlaneseq
  %v107 = vshrl.u32 %v106, 7
  %v108 = vsub.s32 1, %v107
  %v109 = vrot.slane %v100, %v108
  %v128 = vunpack.c.l.b16 %v20
  %v129 = vunpack.c.h.b16 %v20
  %v130 = vunpack.c.l.b16 %v21
  %v131 = vunpack.c.h.b16 %v21
  %v132 = vunpack.c.l.b16 %v22
  %v133 = vunpack.c.h.b16 %v22
  %v134 = vunpack.c.l.b16 %v23
  %v135 = vunpack.c.h.b16 %v23
  %v136 = vunpack.c.l.b16 %v24
  %v137 = vunpack.c.h.b16 %v24
  %v138 = vunpack.c.l.b16 %v25
  %v139 = vunpack.c.h.b16 %v25
  %v140 = vunpack.c.l.b16 %v26
  %v141 = vunpack.c.h.b16 %v26
  %v142 = vunpack.c.l.b16 %v27
  %v143 = vunpack.c.h.b16 %v27
  %v144 = vunpack.c.l.b16 %v28
  %v145 = vunpack.c.h.b16 %v28
  %v146 = vunpack.c.l.b16 %v29
  %v147 = vunpack.c.h.b16 %v29
  %v148 = vunpack.c.l.b16 %v30
  %v149 = vunpack.c.h.b16 %v30
  %v150 = vunpack.c.l.b16 %v31
  %v151 = vunpack.c.h.b16 %v31
  %v152 = vunpack.c.l.b16 %v32
  %v153 = vunpack.c.h.b16 %v32
  %v154 = vunpack.c.l.b16 %v33
  %v155 = vunpack.c.h.b16 %v33
  %v156 = vunpack.c.l.b16 %v34
  %v157 = vunpack.c.h.b16 %v34
  %v158 = vunpack.c.l.b16 %v35
  %v159 = vunpack.c.h.b16 %v35
  %v160 = vpack.c.b16 %v132, %v128
  %v161 = vpack.c.b16 %v133, %v129
  %v162 = vpack.c.b16 %v134, %v130
  %v163 = vpack.c.b16 %v135, %v131
  %v164 = vpack.c.b16 %v140, %v136
  %v165 = vpack.c.b16 %v141, %v137
  %v166 = vpack.c.b16 %v142, %v138
  %v167 = vpack.c.b16 %v143, %v139
  %v168 = vpack.c.b16 %v148, %v144
  %v169 = vpack.c.b16 %v149, %v145
  %v170 = vpack.c.b16 %v150, %v146
  %v171 = vpack.c.b16 %v151, %v147
  %v172 = vpack.c.b16 %v156, %v152
  %v173 = vpack.c.b16 %v157, %v153
  %v174 = vpack.c.b16 %v158, %v154
  %v175 = vpack.c.b16 %v159, %v155
  %v256 = vunpack.c.l.b16 %v36
  %v257 = vunpack.c.h.b16 %v36
  %v258 = vunpack.c.l.b16 %v37
  %v259 = vunpack.c.h.b16 %v37
  %v260 = vunpack.c.l.b16 %v38
  %v261 = vunpack.c.h.b16 %v38
  %v262 = vunpack.c.l.b16 %v39
  %v263 = vunpack.c.h.b16 %v39
  %v264 = vunpack.c.l.b16 %v40
  %v265 = vunpack.c.h.b16 %v40
  %v266 = vunpack.c.l.b16 %v41
  %v267 = vunpack.c.h.b16 %v41
  %v268 = vunpack.c.l.b16 %v42
  %v269 = vunpack.c.h.b16 %v42
  %v270 = vunpack.c.l.b16 %v43
  %v271 = vunpack.c.h.b16 %v43
  %v272 = vunpack.c.l.b16 %v44
  %v273 = vunpack.c.h.b16 %v44
  %v274 = vunpack.c.l.b16 %v45
  %v275 = vunpack.c.h.b16 %v45
  %v276 = vunpack.c.l.b16 %v46
  %v277 = vunpack.c.h.b16 %v46
  %v278 = vunpack.c.l.b16 %v47
  %v279 = vunpack.c.h.b16 %v47
  %v280 = vunpack.c.l.b16 %v48
  %v281 = vunpack.c.h.b16 %v48
  %v282 = vunpack.c.l.b16 %v49
  %v283 = vunpack.c.h.b16 %v49
  %v284 = vunpack.c.l.b16 %v50
  %v285 = vunpack.c.h.b16 %v50
  %v286 = vunpack.c.l.b16 %v51
  %v287 = vunpack.c.h.b16 %v51
  %v288 = vunpack.c.l.b16 %v52
  %v289 = vunpack.c.h.b16 %v52
  %v290 = vunpack.c.l.b16 %v53
  %v291 = vunpack.c.h.b16 %v53
  %v292 = vunpack.c.l.b16 %v54
  %v293 = vunpack.c.h.b16 %v54
  %v294 = vunpack.c.l.b16 %v55
  %v295 = vunpack.c.h.b16 %v55
  %v296 = vunpack.c.l.b16 %v56
  %v297 = vunpack.c.h.b16 %v56
  %v298 = vunpack.c.l.b16 %v57
  %v299 = vunpack.c.h.b16 %v57
  %v300 = vunpack.c.l.b16 %v58
  %v301 = vunpack.c.h.b16 %v58
  %v302 = vunpack.c.l.b16 %v59
  %v303 = vunpack.c.h.b16 %v59
  %v304 = vunpack.c.l.b16 %v60
  %v305 = vunpack.c.h.b16 %v60
  %v306 = vunpack.c.l.b16 %v61
  %v307 = vunpack.c.h.b16 %v61
  %v308 = vunpack.c.l.b16 %v62
  %v309 = vunpack.c.h.b16 %v62
  %v310 = vunpack.c.l.b16 %v63
  %v311 = vunpack.c.h.b16 %v63
  %v312 = vunpack.c.l.b16 %v64
  %v313 = vunpack.c.h.b16 %v64
  %v314 = vunpack.c.l.b16 %v65
  %v315 = vunpack.c.h.b16 %v65
  %v316 = vunpack.c.l.b16 %v66
  %v317 = vunpack.c.h.b16 %v66
  %v318 = vunpack.c.l.b16 %v67
  %v319 = vunpack.c.h.b16 %v67
  %v320 = vunpack.c.l.b16 %v68
  %v321 = vunpack.c.h.b16 %v68
  %v322 = vunpack.c.l.b16 %v69
  %v323 = vunpack.c.h.b16 %v69
  %v324 = vunpack.c.l.b16 %v70
  %v325 = vunpack.c.h.b16 %v70
  %v326 = vunpack.c.l.b16 %v71
  %v327 = vunpack.c.h.b16 %v71
  %v328 = vunpack.c.l.b16 %v72
  %v329 = vunpack.c.h.b16 %v72
  %v330 = vunpack.c.l.b16 %v73
  %v331 = vunpack.c.h.b16 %v73
  %v332 = vunpack.c.l.b16 %v74
  %v333 = vunpack.c.h.b16 %v74
  %v334 = vunpack.c.l.b16 %v75
  %v335 = vunpack.c.h.b16 %v75
  %v336 = vunpack.c.l.b16 %v76
  %v337 = vunpack.c.h.b16 %v76
  %v338 = vunpack.c.l.b16 %v77
  %v339 = vunpack.c.h.b16 %v77
  %v340 = vunpack.c.l.b16 %v78
  %v341 = vunpack.c.h.b16 %v78
  %v342 = vunpack.c.l.b16 %v79
  %v343 = vunpack.c.h.b16 %v79
  %v344 = vunpack.c.l.b16 %v80
  %v345 = vunpack.c.h.b16 %v80
  %v346 = vunpack.c.l.b16 %v81
  %v347 = vunpack.c.h.b16 %v81
  %v348 = vunpack.c.l.b16 %v82
  %v349 = vunpack.c.h.b16 %v82
  %v350 = vunpack.c.l.b16 %v83
  %v351 = vunpack.c.h.b16 %v83
  %v352 = vunpack.c.l.b16 %v84
  %v353 = vunpack.c.h.b16 %v84
  %v354 = vunpack.c.l.b16 %v85
  %v355 = vunpack.c.h.b16 %v85
  %v356 = vunpack.c.l.b16 %v86
  %v357 = vunpack.c.h.b16 %v86
  %v358 = vunpack.c.l.b16 %v87
  %v359 = vunpack.c.h.b16 %v87
  %v360 = vunpack.c.l.b16 %v88
  %v361 = vunpack.c.h.b16 %v88
  %v362 = vunpack.c.l.b16 %v89
  %v363 = vunpack.c.h.b16 %v89
  %v364 = vunpack.c.l.b16 %v90
  %v365 = vunpack.c.h.b16 %v90
  %v366 = vunpack.c.l.b16 %v91
  %v367 = vunpack.c.h.b16 %v91
  %v368 = vunpack.c.l.b16 %v92
  %v369 = vunpack.c.h.b16 %v92
  %v370 = vunpack.c.l.b16 %v93
  %v371 = vunpack.c.h.b16 %v93
  %v372 = vunpack.c.l.b16 %v94
  %v373 = vunpack.c.h.b16 %v94
  %v374 = vunpack.c.l.b16 %v95
  %v375 = vunpack.c.h.b16 %v95
  %v376 = vunpack.c.l.b16 %v96
  %v377 = vunpack.c.h.b16 %v96
  %v378 = vunpack.c.l.b16 %v97
  %v379 = vunpack.c.h.b16 %v97
  %v380 = vunpack.c.l.b16 %v98
  %v381 = vunpack.c.h.b16 %v98
  %v382 = vunpack.c.l.b16 %v99
  %v383 = vunpack.c.h.b16 %v99
  %v384 = vpack.c.b16 %v258, %v256
  %v385 = vpack.c.b16 %v259, %v257
  %v386 = vpack.c.b16 %v262, %v260
  %v387 = vpack.c.b16 %v263, %v261
  %v388 = vpack.c.b16 %v266, %v264
  %v389 = vpack.c.b16 %v267, %v265
  %v390 = vpack.c.b16 %v270, %v268
  %v391 = vpack.c.b16 %v271, %v269
  %v392 = vpack.c.b16 %v274, %v272
  %v393 = vpack.c.b16 %v275, %v273
  %v394 = vpack.c.b16 %v278, %v276
  %v395 = vpack.c.b16 %v279, %v277
  %v396 = vpack.c.b16 %v282, %v280
  %v397 = vpack.c.b16 %v283, %v281
  %v398 = vpack.c.b16 %v286, %v284
  %v399 = vpack.c.b16 %v287, %v285
  %v400 = vpack.c.b16 %v290, %v288
  %v401 = vpack.c.b16 %v291, %v289
  %v402 = vpack.c.b16 %v294, %v292
  %v403 = vpack.c.b16 %v295, %v293
  %v404 = vpack.c.b16 %v298, %v296
  %v405 = vpack.c.b16 %v299, %v297
  %v406 = vpack.c.b16 %v302, %v300
  %v407 = vpack.c.b16 %v303, %v301
  %v408 = vpack.c.b16 %v306, %v304
  %v409 = vpack.c.b16 %v307, %v305
  %v410 = vpack.c.b16 %v310, %v308
  %v411 = vpack.c.b16 %v311, %v309
  %v412 = vpack.c.b16 %v314, %v312
  %v413 = vpack.c.b16 %v315, %v313
  %v414 = vpack.c.b16 %v318, %v316
  %v415 = vpack.c.b16 %v319, %v317
  %v416 = vpack.c.b16 %v322, %v320
  %v417 = vpack.c.b16 %v323, %v321
  %v418 = vpack.c.b16 %v326, %v324
  %v419 = vpack.c.b16 %v327, %v325
  %v420 = vpack.c.b16 %v330, %v328
  %v421 = vpack.c.b16 %v331, %v329
  %v422 = vpack.c.b16 %v334, %v332
  %v423 = vpack.c.b16 %v335, %v333
  %v424 = vpack.c.b16 %v338, %v336
  %v425 = vpack.c.b16 %v339, %v337
  %v426 = vpack.c.b16 %v342, %v340
  %v427 = vpack.c.b16 %v343, %v341
  %v428 = vpack.c.b16 %v346, %v344
  %v429 = vpack.c.b16 %v347, %v345
  %v430 = vpack.c.b16 %v350, %v348
  %v431 = vpack.c.b16 %v351, %v349
  %v432 = vpack.c.b16 %v354, %v352
  %v433 = vpack.c.b16 %v355, %v353
  %v434 = vpack.c.b16 %v358, %v356
  %v435 = vpack.c.b16 %v359, %v357
  %v436 = vpack.c.b16 %v362, %v360
  %v437 = vpack.c.b16 %v363, %v361
  %v438 = vpack.c.b16 %v366, %v364
  %v439 = vpack.c.b16 %v367, %v365
  %v440 = vpack.c.b16 %v370, %v368
  %v441 = vpack.c.b16 %v371, %v369
  %v442 = vpack.c.b16 %v374, %v372
  %v443 = vpack.c.b16 %v375, %v373
  %v444 = vpack.c.b16 %v378, %v376
  %v445 = vpack.c.b16 %v379, %v377
  %v446 = vpack.c.b16 %v382, %v380
  %v447 = vpack.c.b16 %v383, %v381
  %512 = vmatprep.subr.bf16.mxu0 %v385
  %513 = vmatpush1.bf16.msra.mxu0 %v384
  %514 = vmatprep.subr.bf16.mxu0 %v387
  %515 = vmatpush1.bf16.msra.mxu0 %v386
  %516 = vmatprep.subr.bf16.mxu0 %v389
  %517 = vmatpush1.bf16.msra.mxu0 %v388
  %518 = vmatprep.subr.bf16.mxu0 %v391
  %519 = vmatpush1.bf16.msra.mxu0 %v390
  %520 = vmatprep.subr.bf16.mxu0 %v393
  %521 = vmatpush1.bf16.msra.mxu0 %v392
  %522 = vmatprep.subr.bf16.mxu0 %v395
  %523 = vmatpush1.bf16.msra.mxu0 %v394
  %524 = vmatprep.subr.bf16.mxu0 %v397
  %525 = vmatpush1.bf16.msra.mxu0 %v396
  %526 = vmatprep.subr.bf16.mxu0 %v399
  %527 = vmatpush1.bf16.msra.mxu0 %v398
  %528 = vmatprep.subr.bf16.mxu0 %v401
  %529 = vmatpush1.bf16.msra.mxu0 %v400
  %530 = vmatprep.subr.bf16.mxu0 %v403
  %531 = vmatpush1.bf16.msra.mxu0 %v402
  %532 = vmatprep.subr.bf16.mxu0 %v405
  %533 = vmatpush1.bf16.msra.mxu0 %v404
  %534 = vmatprep.subr.bf16.mxu0 %v407
  %535 = vmatpush1.bf16.msra.mxu0 %v406
  %536 = vmatprep.subr.bf16.mxu0 %v409
  %537 = vmatpush1.bf16.msra.mxu0 %v408
  %538 = vmatprep.subr.bf16.mxu0 %v411
  %539 = vmatpush1.bf16.msra.mxu0 %v410
  %540 = vmatprep.subr.bf16.mxu0 %v413
  %541 = vmatpush1.bf16.msra.mxu0 %v412
  %542 = vmatprep.subr.bf16.mxu0 %v415
  %543 = vmatpush1.bf16.msra.mxu0 %v414
  %544 = vmatprep.mubr.bf16.mxu0 %v161
  %545 = vmatmul.mubr.bf16.gmra.mrb[0].mxu0 %v160
  %v546 = vpop.f32.mrb[0].mxu0
  %v547 = vadd.f32 %v105, %v546
  %v548 = vpop.f32.mrb[0].mxu0
  %v549 = vadd.f32 %v109, %v548
  %v550 = vpop.f32.mrb[0].mxu0
  %v551 = vadd.f32 %v105, %v550
  %v552 = vpop.f32.mrb[0].mxu0
  %v553 = vadd.f32 %v109, %v552
  %554 = vmatprep.mubr.bf16.mxu0 %v165
  %555 = vmatmul.mubr.bf16.gmra.mrb[0].mxu0 %v164
  %v556 = vpop.f32.mrb[0].mxu0
  %v557 = vadd.f32 %v105, %v556
  %v558 = vpop.f32.mrb[0].mxu0
  %v559 = vadd.f32 %v109, %v558
  %v560 = vpop.f32.mrb[0].mxu0
  %v561 = vadd.f32 %v105, %v560
  %v562 = vpop.f32.mrb[0].mxu0
  %v563 = vadd.f32 %v109, %v562
  %564 = vmatprep.mubr.bf16.mxu0 %v169
  %565 = vmatmul.mubr.bf16.gmra.mrb[0].mxu0 %v168
  %v566 = vpop.f32.mrb[0].mxu0
  %v567 = vadd.f32 %v105, %v566
  %v568 = vpop.f32.mrb[0].mxu0
  %v569 = vadd.f32 %v109, %v568
  %v570 = vpop.f32.mrb[0].mxu0
  %v571 = vadd.f32 %v105, %v570
  %v572 = vpop.f32.mrb[0].mxu0
  %v573 = vadd.f32 %v109, %v572
  %574 = vmatprep.mubr.bf16.mxu0 %v173
  %575 = vmatmul.mubr.bf16.gmra.mrb[0].mxu0 %v172
  %v576 = vpop.f32.mrb[0].mxu0
  %v577 = vadd.f32 %v105, %v576
  %v578 = vpop.f32.mrb[0].mxu0
  %v579 = vadd.f32 %v109, %v578
  %v580 = vpop.f32.mrb[0].mxu0
  %v581 = vadd.f32 %v105, %v580
  %v582 = vpop.f32.mrb[0].mxu0
  %v583 = vadd.f32 %v109, %v582
  %584 = vdwg.mxu0
  %585 = vmatprep.subr.bf16.mxu0 %v417
  %586 = vmatpush1.bf16.msra.mxu0 %v416
  %587 = vmatprep.subr.bf16.mxu0 %v419
  %588 = vmatpush1.bf16.msra.mxu0 %v418
  %589 = vmatprep.subr.bf16.mxu0 %v421
  %590 = vmatpush1.bf16.msra.mxu0 %v420
  %591 = vmatprep.subr.bf16.mxu0 %v423
  %592 = vmatpush1.bf16.msra.mxu0 %v422
  %593 = vmatprep.subr.bf16.mxu0 %v425
  %594 = vmatpush1.bf16.msra.mxu0 %v424
  %595 = vmatprep.subr.bf16.mxu0 %v427
  %596 = vmatpush1.bf16.msra.mxu0 %v426
  %597 = vmatprep.subr.bf16.mxu0 %v429
  %598 = vmatpush1.bf16.msra.mxu0 %v428
  %599 = vmatprep.subr.bf16.mxu0 %v431
  %600 = vmatpush1.bf16.msra.mxu0 %v430
  %601 = vmatprep.subr.bf16.mxu0 %v433
  %602 = vmatpush1.bf16.msra.mxu0 %v432
  %603 = vmatprep.subr.bf16.mxu0 %v435
  %604 = vmatpush1.bf16.msra.mxu0 %v434
  %605 = vmatprep.subr.bf16.mxu0 %v437
  %606 = vmatpush1.bf16.msra.mxu0 %v436
  %607 = vmatprep.subr.bf16.mxu0 %v439
  %608 = vmatpush1.bf16.msra.mxu0 %v438
  %609 = vmatprep.subr.bf16.mxu0 %v441
  %610 = vmatpush1.bf16.msra.mxu0 %v440
  %611 = vmatprep.subr.bf16.mxu0 %v443
  %612 = vmatpush1.bf16.msra.mxu0 %v442
  %613 = vmatprep.subr.bf16.mxu0 %v445
  %614 = vmatpush1.bf16.msra.mxu0 %v444
  %615 = vmatprep.subr.bf16.mxu0 %v447
  %616 = vmatpush1.bf16.msra.mxu0 %v446
  %617 = vmatprep.mubr.bf16.mxu0 %v163
  %618 = vmatmul.mubr.bf16.gmra.mrb[0].mxu0 %v162
  %v619 = vpop.f32.mrb[0].mxu0
  %v620 = vadd.f32 %v547, %v619
  %v621 = vpop.f32.mrb[0].mxu0
  %v622 = vadd.f32 %v549, %v621
  %v623 = vpop.f32.mrb[0].mxu0
  %v624 = vadd.f32 %v551, %v623
  %v625 = vpop.f32.mrb[0].mxu0
  %v626 = vadd.f32 %v553, %v625
  %627 = vmatprep.mubr.bf16.mxu0 %v167
  %628 = vmatmul.mubr.bf16.gmra.mrb[0].mxu0 %v166
  %v629 = vpop.f32.mrb[0].mxu0
  %v630 = vadd.f32 %v557, %v629
  %v631 = vpop.f32.mrb[0].mxu0
  %v632 = vadd.f32 %v559, %v631
  %v633 = vpop.f32.mrb[0].mxu0
  %v634 = vadd.f32 %v561, %v633
  %v635 = vpop.f32.mrb[0].mxu0
  %v636 = vadd.f32 %v563, %v635
  %637 = vmatprep.mubr.bf16.mxu0 %v171
  %638 = vmatmul.mubr.bf16.gmra.mrb[0].mxu0 %v170
  %v639 = vpop.f32.mrb[0].mxu0
  %v640 = vadd.f32 %v567, %v639
  %v641 = vpop.f32.mrb[0].mxu0
  %v642 = vadd.f32 %v569, %v641
  %v643 = vpop.f32.mrb[0].mxu0
  %v644 = vadd.f32 %v571, %v643
  %v645 = vpop.f32.mrb[0].mxu0
  %v646 = vadd.f32 %v573, %v645
  %647 = vmatprep.mubr.bf16.mxu0 %v175
  %648 = vmatmul.mubr.bf16.gmra.mrb[0].mxu0 %v174
  %v649 = vpop.f32.mrb[0].mxu0
  %v650 = vadd.f32 %v577, %v649
  %v651 = vpop.f32.mrb[0].mxu0
  %v652 = vadd.f32 %v579, %v651
  %v653 = vpop.f32.mrb[0].mxu0
  %v654 = vadd.f32 %v581, %v653
  %v655 = vpop.f32.mrb[0].mxu0
  %v656 = vadd.f32 %v583, %v655
  %657 = vdwg.mxu0
  %v658 = vmax.f32 %v620, 0.0
  %v659 = vmax.f32 %v622, 0.0
  %v660 = vmax.f32 %v624, 0.0
  %v661 = vmax.f32 %v626, 0.0
  %v662 = vmax.f32 %v630, 0.0
  %v663 = vmax.f32 %v632, 0.0
  %v664 = vmax.f32 %v634, 0.0
  %v665 = vmax.f32 %v636, 0.0
  %v666 = vmax.f32 %v640, 0.0
  %v667 = vmax.f32 %v642, 0.0
  %v668 = vmax.f32 %v644, 0.0
  %v669 = vmax.f32 %v646, 0.0
  %v670 = vmax.f32 %v650, 0.0
  %v671 = vmax.f32 %v652, 0.0
  %v672 = vmax.f32 %v654, 0.0
  %v673 = vmax.f32 %v656, 0.0
  %v674 = vadd.f32 %v658, %v660
  %v675 = vadd.f32 %v674, %v662
  %v676 = vadd.f32 %v675, %v664
  %v677 = vadd.f32 %v676, %v666
  %v678 = vadd.f32 %v677, %v668
  %v679 = vadd.f32 %v678, %v670
  %vm680 = vcmask 1043456
  %v681 = vsel %vm680, %v672, 0.0
  %v682 = vadd.f32 %v679, %v681
  %v683 = vrot.slane %v682, 4
  %v684 = vadd.f32 %v682, %v683
  %v685 = vrot.slane %v684, 2
  %v686 = vadd.f32 %v684, %v685
  %v687 = vrot.slane %v686, 1
  %v688 = vadd.f32 %v686, %v687
  %v689 = vadd.f32 %v659, %v661
  %v690 = vadd.f32 %v689, %v663
  %v691 = vadd.f32 %v690, %v665
  %v692 = vadd.f32 %v691, %v667
  %v693 = vadd.f32 %v692, %v669
  %v694 = vadd.f32 %v693, %v671
  %v695 = vsel %vm680, %v673, 0.0
  %v696 = vadd.f32 %v694, %v695
  %v697 = vrot.slane %v696, 4
  %v698 = vadd.f32 %v696, %v697
  %v699 = vrot.slane %v698, 2
  %v700 = vadd.f32 %v698, %v699
  %v701 = vrot.slane %v700, 1
  %v702 = vadd.f32 %v700, %v701
  %v703 = vmul.f32 %v658, %v658
  %v704 = vmul.f32 %v659, %v659
  %v705 = vmul.f32 %v660, %v660
  %v706 = vmul.f32 %v661, %v661
  %v707 = vmul.f32 %v662, %v662
  %v708 = vmul.f32 %v663, %v663
  %v709 = vmul.f32 %v664, %v664
  %v710 = vmul.f32 %v665, %v665
  %v711 = vmul.f32 %v666, %v666
  %v712 = vmul.f32 %v667, %v667
  %v713 = vmul.f32 %v668, %v668
  %v714 = vmul.f32 %v669, %v669
  %v715 = vmul.f32 %v670, %v670
  %v716 = vmul.f32 %v671, %v671
  %v717 = vmul.f32 %v672, %v672
  %v718 = vmul.f32 %v673, %v673
  %v719 = vadd.f32 %v703, %v705
  %v720 = vadd.f32 %v719, %v707
  %v721 = vadd.f32 %v720, %v709
  %v722 = vadd.f32 %v721, %v711
  %v723 = vadd.f32 %v722, %v713
  %v724 = vadd.f32 %v723, %v715
  %v725 = vsel %vm680, %v717, 0.0
  %v726 = vadd.f32 %v724, %v725
  %v727 = vrot.slane %v726, 4
  %v728 = vadd.f32 %v726, %v727
  %v729 = vrot.slane %v728, 2
  %v730 = vadd.f32 %v728, %v729
  %v731 = vrot.slane %v730, 1
  %v732 = vadd.f32 %v730, %v731
  %v733 = vadd.f32 %v704, %v706
  %v734 = vadd.f32 %v733, %v708
  %v735 = vadd.f32 %v734, %v710
  %v736 = vadd.f32 %v735, %v712
  %v737 = vadd.f32 %v736, %v714
  %v738 = vadd.f32 %v737, %v716
  %v739 = vsel %vm680, %v718, 0.0
  %v740 = vadd.f32 %v738, %v739
  %v741 = vrot.slane %v740, 4
  %v742 = vadd.f32 %v740, %v741
  %v743 = vrot.slane %v742, 2
  %v744 = vadd.f32 %v742, %v743
  %v745 = vrot.slane %v744, 1
  %v746 = vadd.f32 %v744, %v745
  %748 = vrot.lane.b32.xlu0 %v688, 64
  %v749 = vpop.permute.xlu0 %748
  %v751 = vadd.f32 %v688, %v749
  %v752 = vadd.f32 %v751, %v702
  %754 = vrot.lane.b32.xlu0 %v702, 64
  %v755 = vpop.permute.xlu0 %754
  %v757 = vadd.f32 %v752, %v755
  %759 = vrot.lane.b32.xlu0 %v732, 64
  %v760 = vpop.permute.xlu0 %759
  %v762 = vadd.f32 %v732, %v760
  %v763 = vadd.f32 %v762, %v746
  %765 = vrot.lane.b32.xlu0 %v746, 64
  %v766 = vpop.permute.xlu0 %765
  %v768 = vadd.f32 %v763, %v766
  %v769 = vmul.f32 %v757, 0.004166667
  %v770 = vmul.f32 %v768, 0.004166667
  %v771 = vmul.f32 %v769, %v769
  %v772 = vsub.f32 %v770, %v771
  %v773 = vmax.f32 %v772, 0.0
  %v774 = vadd.f32 %v773, 1e-05
  %v775 = vrsqrt.pop %v774
  %v776 = vld [vmem:[%s3] sm:$0x1]
  %v777 = vmul.f32 %v775, %v776
  %v778 = vld [vmem:[%s4] sm:$0x1]
  %v779 = vmul.f32 %v769, %v777
  %v780 = vsub.f32 %v778, %v779
  %789 = vrot.lane.b32.xlu0 %v658, 64
  %v790 = vpop.permute.xlu0 %789
  %791 = vrot.lane.b32.xlu0 %v660, 64
  %v792 = vpop.permute.xlu0 %791
  %793 = vrot.lane.b32.xlu0 %v662, 64
  %v794 = vpop.permute.xlu0 %793
  %795 = vrot.lane.b32.xlu0 %v664, 64
  %v796 = vpop.permute.xlu0 %795
  %797 = vrot.lane.b32.xlu0 %v666, 64
  %v798 = vpop.permute.xlu0 %797
  %799 = vrot.lane.b32.xlu0 %v668, 64
  %v800 = vpop.permute.xlu0 %799
  %801 = vrot.lane.b32.xlu0 %v670, 64
  %v802 = vpop.permute.xlu0 %801
  %803 = vrot.lane.b32.xlu0 %v672, 64
  %v804 = vpop.permute.xlu0 %803
  %v813 = vmax.f32 %v658, %v790
  %v814 = vmax.f32 %v660, %v792
  %v815 = vmax.f32 %v662, %v794
  %v816 = vmax.f32 %v664, %v796
  %v817 = vmax.f32 %v666, %v798
  %v818 = vmax.f32 %v668, %v800
  %v819 = vmax.f32 %v670, %v802
  %v820 = vmax.f32 %v672, %v804
  %829 = vrot.lane.b32.xlu0 %v659, 64
  %v830 = vpop.permute.xlu0 %829
  %831 = vrot.lane.b32.xlu0 %v661, 64
  %v832 = vpop.permute.xlu0 %831
  %833 = vrot.lane.b32.xlu0 %v663, 64
  %v834 = vpop.permute.xlu0 %833
  %835 = vrot.lane.b32.xlu0 %v665, 64
  %v836 = vpop.permute.xlu0 %835
  %837 = vrot.lane.b32.xlu0 %v667, 64
  %v838 = vpop.permute.xlu0 %837
  %839 = vrot.lane.b32.xlu0 %v669, 64
  %v840 = vpop.permute.xlu0 %839
  %841 = vrot.lane.b32.xlu0 %v671, 64
  %v842 = vpop.permute.xlu0 %841
  %843 = vrot.lane.b32.xlu0 %v673, 64
  %v844 = vpop.permute.xlu0 %843
  %v853 = vmax.f32 %v659, %v830
  %v854 = vmax.f32 %v661, %v832
  %v855 = vmax.f32 %v663, %v834
  %v856 = vmax.f32 %v665, %v836
  %v857 = vmax.f32 %v667, %v838
  %v858 = vmax.f32 %v669, %v840
  %v859 = vmax.f32 %v671, %v842
  %v860 = vmax.f32 %v673, %v844
  %v861 = vmax.f32 %v813, %v853
  %v862 = vmax.f32 %v814, %v854
  %v863 = vmax.f32 %v815, %v855
  %v864 = vmax.f32 %v816, %v856
  %v865 = vmax.f32 %v817, %v857
  %v866 = vmax.f32 %v818, %v858
  %v867 = vmax.f32 %v819, %v859
  %v868 = vmax.f32 %v820, %v860
  %v869 = vmin.f32 %v658, %v790
  %v870 = vmin.f32 %v660, %v792
  %v871 = vmin.f32 %v662, %v794
  %v872 = vmin.f32 %v664, %v796
  %v873 = vmin.f32 %v666, %v798
  %v874 = vmin.f32 %v668, %v800
  %v875 = vmin.f32 %v670, %v802
  %v876 = vmin.f32 %v672, %v804
  %v877 = vmin.f32 %v659, %v830
  %v878 = vmin.f32 %v661, %v832
  %v879 = vmin.f32 %v663, %v834
  %v880 = vmin.f32 %v665, %v836
  %v881 = vmin.f32 %v667, %v838
  %v882 = vmin.f32 %v669, %v840
  %v883 = vmin.f32 %v671, %v842
  %v884 = vmin.f32 %v673, %v844
  %v885 = vmin.f32 %v869, %v877
  %v886 = vmin.f32 %v870, %v878
  %v887 = vmin.f32 %v871, %v879
  %v888 = vmin.f32 %v872, %v880
  %v889 = vmin.f32 %v873, %v881
  %v890 = vmin.f32 %v874, %v882
  %v891 = vmin.f32 %v875, %v883
  %v892 = vmin.f32 %v876, %v884
  %vm893 = vcmp.ge.f32.partialorder %v777, 0.0
  %v894 = vsel %vm893, 1, 0
  %v895 = vlaneseq
  %v896 = vshrl.u32 %v895, 7
  %v897 = vsub.s32 0, %v896
  %v898 = vrot.slane %v894, %v897
  %vm899 = vcmp.eq.s32.totalorder %v898, 1
  %v900 = vsel %vm899, %v861, %v885
  %v901 = vsel %vm899, %v862, %v886
  %v902 = vsel %vm899, %v863, %v887
  %v903 = vsel %vm899, %v864, %v888
  %v904 = vsel %vm899, %v865, %v889
  %v905 = vsel %vm899, %v866, %v890
  %v906 = vsel %vm899, %v867, %v891
  %v907 = vsel %vm899, %v868, %v892
  %v908 = vlaneseq
  %v909 = vshrl.u32 %v908, 7
  %v910 = vsub.s32 0, %v909
  %v911 = vrot.slane %v777, %v910
  %v912 = vmul.f32 %v900, %v911
  %v913 = vmul.f32 %v901, %v911
  %v914 = vmul.f32 %v902, %v911
  %v915 = vmul.f32 %v903, %v911
  %v916 = vmul.f32 %v904, %v911
  %v917 = vmul.f32 %v905, %v911
  %v918 = vmul.f32 %v906, %v911
  %v919 = vmul.f32 %v907, %v911
  %v921 = vlaneseq
  %v922 = vshrl.u32 %v921, 7
  %v923 = vsub.s32 0, %v922
  %v924 = vrot.slane %v780, %v923
  %v926 = vadd.f32 %v912, %v924
  %v927 = vadd.f32 %v913, %v924
  %v928 = vadd.f32 %v914, %v924
  %v929 = vadd.f32 %v915, %v924
  %v930 = vadd.f32 %v916, %v924
  %v931 = vadd.f32 %v917, %v924
  %v932 = vadd.f32 %v918, %v924
  %v933 = vadd.f32 %v919, %v924
  %v934 = vpack.c.bf16 %v927, %v926
  %v935 = vpack.c.bf16 %v929, %v928
  %v936 = vpack.c.bf16 %v931, %v930
  %v937 = vpack.c.bf16 %v933, %v932
  %v942 = vunpack.c.l.b16 %v934
  %v943 = vunpack.c.h.b16 %v934
  %v944 = vunpack.c.l.b16 %v935
  %v945 = vunpack.c.h.b16 %v935
  %v946 = vunpack.c.l.b16 %v936
  %v947 = vunpack.c.h.b16 %v936
  %v948 = vunpack.c.l.b16 %v937
  %v949 = vunpack.c.h.b16 %v937
  %v950 = vpack.c.b16 %v942, %v942
  %v951 = vpack.c.b16 %v943, %v943
  %v952 = vpack.c.b16 %v944, %v944
  %v953 = vpack.c.b16 %v945, %v945
  %v954 = vpack.c.b16 %v946, %v946
  %v955 = vpack.c.b16 %v947, %v947
  %v956 = vpack.c.b16 %v948, %v948
  %v957 = vpack.c.b16 %v949, %v949
  %vm966 = vcmask 519168
  %967 = vst.msk [vmem:[%s5] sm:$0xf] %vm966, %v950
  %968 = vst.msk [vmem:[%s5 + $0x4] sm:$0xf] %vm966, %v951
  %969 = vst.msk [vmem:[%s5 + $0x8] sm:$0xf] %vm966, %v952
  %970 = vst.msk [vmem:[%s5 + $0xc] sm:$0xf] %vm966, %v953
  %971 = vst.msk [vmem:[%s5 + $0x10] sm:$0xf] %vm966, %v954
  %972 = vst.msk [vmem:[%s5 + $0x14] sm:$0xf] %vm966, %v955
  %973 = vst.msk [vmem:[%s5 + $0x18] sm:$0xf] %vm966, %v956
  %vm974 = vcmask 517120
  %975 = vst.msk [vmem:[%s5 + $0x1c] sm:$0x3] %vm974, %v957
  // Predicated region
  $region22: #{forward.6} parent=0 // pred_check
    _
  $region23: #{forward.6} parent=0 // pred_check_branch
    %977 = sbr.rel (0) target = $region25
  $region24: #{forward.6} parent=0 // pred_region
    _
  $region25: #{forward.6} parent=0 // pred_fallthru
    _
  // Predicated region
  $region26: #{forward.6} parent=0 // pred_check
    _
  $region27: #{forward.6} parent=0 // pred_check_branch
    %979 = sbr.rel (0) target = $region29
  $region28: #{forward.6} parent=0 // pred_region
    _
  $region29: #{forward.6} parent=0 // pred_fallthru
    _

// kernel: forward.7
$region0: #{forward.7}
  #allocation0 [shape = 'u32[]', space=smem, size = 0x4, offset = 0x4, fixed_abs, tag = 'smem constant byte address 0x4 - core index']
  #allocation1 [shape = 'u32[144,128]{1,0:T(1,128)}', space=vmem, size = 0x12000, scoped, tag = 'internal scratch']
  %s0 = inlined_call_operand.vmem [shape: bf16[2,1920], index: 0, kind: input, shape index: {}]
  %s1 = inlined_call_operand.vmem [shape: bf16[1920,32], index: 1, kind: input, shape index: {}]
  %s2 = inlined_call_operand.vmem [shape: f32[1,32], index: 2, kind: input, shape index: {}]
  %s3 = inlined_call_operand.vmem [shape: bf16[32,1920], index: 3, kind: input, shape index: {}]
  %s4 = inlined_call_operand.vmem [shape: f32[1,1920], index: 4, kind: input, shape index: {}]
  %s5 = inlined_call_operand.vmem [shape: bf16[2,1920], index: 5, kind: output, shape index: {}]
  %s6 = sld [smem:[#allocation0]]
  $region30: #{forward.7} parent=0
    _
  %s8 = ssub.s32 1, %s6
  %s9 = scalar_select 0, %s8, %s6
  // Predicated region
  $region2: #{forward.7} parent=0 // pred_check
    _
  $region3: #{forward.7} parent=0 // pred_check_branch
    %11 = sbr.rel (0) target = $region5
  $region4: #{forward.7} parent=0 // pred_region
    _
  $region5: #{forward.7} parent=0 // pred_fallthru
    _
  // Predicated region
  $region6: #{forward.7} parent=0 // pred_check
    _
  $region7: #{forward.7} parent=0 // pred_check_branch
    %13 = sbr.rel (0) target = $region9
  $region8: #{forward.7} parent=0 // pred_region
    _
  $region9: #{forward.7} parent=0 // pred_fallthru
    _
  // Predicated region
  $region10: #{forward.7} parent=0 // pred_check
    _
  $region11: #{forward.7} parent=0 // pred_check_branch
    %15 = sbr.rel (0) target = $region13
  $region12: #{forward.7} parent=0 // pred_region
    _
  $region13: #{forward.7} parent=0 // pred_fallthru
    _
  // Predicated region
  $region14: #{forward.7} parent=0 // pred_check
    _
  $region15: #{forward.7} parent=0 // pred_check_branch
    %17 = sbr.rel (0) target = $region17
  $region16: #{forward.7} parent=0 // pred_region
    _
  $region17: #{forward.7} parent=0 // pred_fallthru
    _
  // Predicated region
  $region18: #{forward.7} parent=0 // pred_check
    _
  $region19: #{forward.7} parent=0 // pred_check_branch
    %19 = sbr.rel (0) target = $region21
  $region20: #{forward.7} parent=0 // pred_region
    _
  $region21: #{forward.7} parent=0 // pred_fallthru
    _
  %v21 = vld [vmem:[%s0] sm:$0xff]
  %v22 = vld [vmem:[%s0 + $0x8] sm:$0x7f]
  %v23 = vld [vmem:[%s1] sm:$0xf]
  %v24 = vld [vmem:[%s1 + $0x4] sm:$0xf]
  %v25 = vld [vmem:[%s1 + $0x8] sm:$0xf]
  %v26 = vld [vmem:[%s1 + $0xc] sm:$0xf]
  %v27 = vld [vmem:[%s1 + $0x10] sm:$0xf]
  %v28 = vld [vmem:[%s1 + $0x14] sm:$0xf]
  %v29 = vld [vmem:[%s1 + $0x18] sm:$0xf]
  %v30 = vld [vmem:[%s1 + $0x1c] sm:$0xf]
  %v31 = vld [vmem:[%s1 + $0x20] sm:$0xf]
  %v32 = vld [vmem:[%s1 + $0x24] sm:$0xf]
  %v33 = vld [vmem:[%s1 + $0x28] sm:$0xf]
  %v34 = vld [vmem:[%s1 + $0x2c] sm:$0xf]
  %v35 = vld [vmem:[%s1 + $0x30] sm:$0xf]
  %v36 = vld [vmem:[%s1 + $0x34] sm:$0xf]
  %v37 = vld [vmem:[%s1 + $0x38] sm:$0xf]
  %v38 = vld [vmem:[%s1 + $0x3c] sm:$0xf]
  %v39 = vld [vmem:[%s1 + $0x40] sm:$0xf]
  %v40 = vld [vmem:[%s1 + $0x44] sm:$0xf]
  %v41 = vld [vmem:[%s1 + $0x48] sm:$0xf]
  %v42 = vld [vmem:[%s1 + $0x4c] sm:$0xf]
  %v43 = vld [vmem:[%s1 + $0x50] sm:$0xf]
  %v44 = vld [vmem:[%s1 + $0x54] sm:$0xf]
  %v45 = vld [vmem:[%s1 + $0x58] sm:$0xf]
  %v46 = vld [vmem:[%s1 + $0x5c] sm:$0xf]
  %v47 = vld [vmem:[%s1 + $0x60] sm:$0xf]
  %v48 = vld [vmem:[%s1 + $0x64] sm:$0xf]
  %v49 = vld [vmem:[%s1 + $0x68] sm:$0xf]
  %v50 = vld [vmem:[%s1 + $0x6c] sm:$0xf]
  %v51 = vld [vmem:[%s1 + $0x70] sm:$0xf]
  %v52 = vld [vmem:[%s1 + $0x74] sm:$0xf]
  %v53 = vld [vmem:[%s1 + $0x78] sm:$0xf]
  %v54 = vld [vmem:[%s1 + $0x7c] sm:$0xf]
  %v55 = vld [vmem:[%s1 + $0x80] sm:$0xf]
  %v56 = vld [vmem:[%s1 + $0x84] sm:$0xf]
  %v57 = vld [vmem:[%s1 + $0x88] sm:$0xf]
  %v58 = vld [vmem:[%s1 + $0x8c] sm:$0xf]
  %v59 = vld [vmem:[%s1 + $0x90] sm:$0xf]
  %v60 = vld [vmem:[%s1 + $0x94] sm:$0xf]
  %v61 = vld [vmem:[%s1 + $0x98] sm:$0xf]
  %v62 = vld [vmem:[%s1 + $0x9c] sm:$0xf]
  %v63 = vld [vmem:[%s1 + $0xa0] sm:$0xf]
  %v64 = vld [vmem:[%s1 + $0xa4] sm:$0xf]
  %v65 = vld [vmem:[%s1 + $0xa8] sm:$0xf]
  %v66 = vld [vmem:[%s1 + $0xac] sm:$0xf]
  %v67 = vld [vmem:[%s1 + $0xb0] sm:$0xf]
  %v68 = vld [vmem:[%s1 + $0xb4] sm:$0xf]
  %v69 = vld [vmem:[%s1 + $0xb8] sm:$0xf]
  %v70 = vld [vmem:[%s1 + $0xbc] sm:$0xf]
  %v71 = vld [vmem:[%s1 + $0xc0] sm:$0xf]
  %v72 = vld [vmem:[%s1 + $0xc4] sm:$0xf]
  %v73 = vld [vmem:[%s1 + $0xc8] sm:$0xf]
  %v74 = vld [vmem:[%s1 + $0xcc] sm:$0xf]
  %v75 = vld [vmem:[%s1 + $0xd0] sm:$0xf]
  %v76 = vld [vmem:[%s1 + $0xd4] sm:$0xf]
  %v77 = vld [vmem:[%s1 + $0xd8] sm:$0xf]
  %v78 = vld [vmem:[%s1 + $0xdc] sm:$0xf]
  %v79 = vld [vmem:[%s1 + $0xe0] sm:$0xf]
  %v80 = vld [vmem:[%s1 + $0xe4] sm:$0xf]
  %v81 = vld [vmem:[%s1 + $0xe8] sm:$0xf]
  %v82 = vld [vmem:[%s1 + $0xec] sm:$0xf]
  %v83 = vld [vmem:[%s1 + $0xf0] sm:$0xf]
  %v84 = vld [vmem:[%s1 + $0xf4] sm:$0xf]
  %v85 = vld [vmem:[%s1 + $0xf8] sm:$0xf]
  %v86 = vld [vmem:[%s1 + $0xfc] sm:$0xf]
  %v87 = vld [vmem:[%s1 + $0x100] sm:$0xf]
  %v88 = vld [vmem:[%s1 + $0x104] sm:$0xf]
  %v89 = vld [vmem:[%s1 + $0x108] sm:$0xf]
  %v90 = vld [vmem:[%s1 + $0x10c] sm:$0xf]
  %v91 = vld [vmem:[%s1 + $0x110] sm:$0xf]
  %v92 = vld [vmem:[%s1 + $0x114] sm:$0xf]
  %v93 = vld [vmem:[%s1 + $0x118] sm:$0xf]
  %v94 = vld [vmem:[%s1 + $0x11c] sm:$0xf]
  %v95 = vld [vmem:[%s1 + $0x120] sm:$0xf]
  %v96 = vld [vmem:[%s1 + $0x124] sm:$0xf]
  %v97 = vld [vmem:[%s1 + $0x128] sm:$0xf]
  %v98 = vld [vmem:[%s1 + $0x12c] sm:$0xf]
  %v99 = vld [vmem:[%s1 + $0x130] sm:$0xf]
  %v100 = vld [vmem:[%s1 + $0x134] sm:$0xf]
  %v101 = vld [vmem:[%s1 + $0x138] sm:$0xf]
  %v102 = vld [vmem:[%s1 + $0x13c] sm:$0xf]
  %v103 = vld [vmem:[%s1 + $0x140] sm:$0xf]
  %v104 = vld [vmem:[%s1 + $0x144] sm:$0xf]
  %v105 = vld [vmem:[%s1 + $0x148] sm:$0xf]
  %v106 = vld [vmem:[%s1 + $0x14c] sm:$0xf]
  %v107 = vld [vmem:[%s1 + $0x150] sm:$0xf]
  %v108 = vld [vmem:[%s1 + $0x154] sm:$0xf]
  %v109 = vld [vmem:[%s1 + $0x158] sm:$0xf]
  %v110 = vld [vmem:[%s1 + $0x15c] sm:$0xf]
  %v111 = vld [vmem:[%s1 + $0x160] sm:$0xf]
  %v112 = vld [vmem:[%s1 + $0x164] sm:$0xf]
  %v113 = vld [vmem:[%s1 + $0x168] sm:$0xf]
  %v114 = vld [vmem:[%s1 + $0x16c] sm:$0xf]
  %v115 = vld [vmem:[%s1 + $0x170] sm:$0xf]
  %v116 = vld [vmem:[%s1 + $0x174] sm:$0xf]
  %v117 = vld [vmem:[%s1 + $0x178] sm:$0xf]
  %v118 = vld [vmem:[%s1 + $0x17c] sm:$0xf]
  %v119 = vld [vmem:[%s1 + $0x180] sm:$0xf]
  %v120 = vld [vmem:[%s1 + $0x184] sm:$0xf]
  %v121 = vld [vmem:[%s1 + $0x188] sm:$0xf]
  %v122 = vld [vmem:[%s1 + $0x18c] sm:$0xf]
  %v123 = vld [vmem:[%s1 + $0x190] sm:$0xf]
  %v124 = vld [vmem:[%s1 + $0x194] sm:$0xf]
  %v125 = vld [vmem:[%s1 + $0x198] sm:$0xf]
  %v126 = vld [vmem:[%s1 + $0x19c] sm:$0xf]
  %v127 = vld [vmem:[%s1 + $0x1a0] sm:$0xf]
  %v128 = vld [vmem:[%s1 + $0x1a4] sm:$0xf]
  %v129 = vld [vmem:[%s1 + $0x1a8] sm:$0xf]
  %v130 = vld [vmem:[%s1 + $0x1ac] sm:$0xf]
  %v131 = vld [vmem:[%s1 + $0x1b0] sm:$0xf]
  %v132 = vld [vmem:[%s1 + $0x1b4] sm:$0xf]
  %v133 = vld [vmem:[%s1 + $0x1b8] sm:$0xf]
  %v134 = vld [vmem:[%s1 + $0x1bc] sm:$0xf]
  %v135 = vld [vmem:[%s1 + $0x1c0] sm:$0xf]
  %v136 = vld [vmem:[%s1 + $0x1c4] sm:$0xf]
  %v137 = vld [vmem:[%s1 + $0x1c8] sm:$0xf]
  %v138 = vld [vmem:[%s1 + $0x1cc] sm:$0xf]
  %v139 = vld [vmem:[%s1 + $0x1d0] sm:$0xf]
  %v140 = vld [vmem:[%s1 + $0x1d4] sm:$0xf]
  %v141 = vld [vmem:[%s1 + $0x1d8] sm:$0xf]
  %v142 = vld [vmem:[%s1 + $0x1dc] sm:$0xf]
  %v143 = vld [vmem:[%s1 + $0x1e0] sm:$0xf]
  %v144 = vld [vmem:[%s1 + $0x1e4] sm:$0xf]
  %v145 = vld [vmem:[%s1 + $0x1e8] sm:$0xf]
  %v146 = vld [vmem:[%s1 + $0x1ec] sm:$0xf]
  %v147 = vld [vmem:[%s1 + $0x1f0] sm:$0xf]
  %v148 = vld [vmem:[%s1 + $0x1f4] sm:$0xf]
  %v149 = vld [vmem:[%s1 + $0x1f8] sm:$0xf]
  %v150 = vld [vmem:[%s1 + $0x1fc] sm:$0xf]
  %v151 = vld [vmem:[%s1 + $0x200] sm:$0xf]
  %v152 = vld [vmem:[%s1 + $0x204] sm:$0xf]
  %v153 = vld [vmem:[%s1 + $0x208] sm:$0xf]
  %v154 = vld [vmem:[%s1 + $0x20c] sm:$0xf]
  %v155 = vld [vmem:[%s1 + $0x210] sm:$0xf]
  %v156 = vld [vmem:[%s1 + $0x214] sm:$0xf]
  %v157 = vld [vmem:[%s1 + $0x218] sm:$0xf]
  %v158 = vld [vmem:[%s1 + $0x21c] sm:$0xf]
  %v159 = vld [vmem:[%s1 + $0x220] sm:$0xf]
  %v160 = vld [vmem:[%s1 + $0x224] sm:$0xf]
  %v161 = vld [vmem:[%s1 + $0x228] sm:$0xf]
  %v162 = vld [vmem:[%s1 + $0x22c] sm:$0xf]
  %v163 = vld [vmem:[%s1 + $0x230] sm:$0xf]
  %v164 = vld [vmem:[%s1 + $0x234] sm:$0xf]
  %v165 = vld [vmem:[%s1 + $0x238] sm:$0xf]
  %v166 = vld [vmem:[%s1 + $0x23c] sm:$0xf]
  %v167 = vld [vmem:[%s1 + $0x240] sm:$0xf]
  %v168 = vld [vmem:[%s1 + $0x244] sm:$0xf]
  %v169 = vld [vmem:[%s1 + $0x248] sm:$0xf]
  %v170 = vld [vmem:[%s1 + $0x24c] sm:$0xf]
  %v171 = vld [vmem:[%s1 + $0x250] sm:$0xf]
  %v172 = vld [vmem:[%s1 + $0x254] sm:$0xf]
  %v173 = vld [vmem:[%s1 + $0x258] sm:$0xf]
  %v174 = vld [vmem:[%s1 + $0x25c] sm:$0xf]
  %v175 = vld [vmem:[%s1 + $0x260] sm:$0xf]
  %v176 = vld [vmem:[%s1 + $0x264] sm:$0xf]
  %v177 = vld [vmem:[%s1 + $0x268] sm:$0xf]
  %v178 = vld [vmem:[%s1 + $0x26c] sm:$0xf]
  %v179 = vld [vmem:[%s1 + $0x270] sm:$0xf]
  %v180 = vld [vmem:[%s1 + $0x274] sm:$0xf]
  %v181 = vld [vmem:[%s1 + $0x278] sm:$0xf]
  %v182 = vld [vmem:[%s1 + $0x27c] sm:$0xf]
  %v183 = vld [vmem:[%s1 + $0x280] sm:$0xf]
  %v184 = vld [vmem:[%s1 + $0x284] sm:$0xf]
  %v185 = vld [vmem:[%s1 + $0x288] sm:$0xf]
  %v186 = vld [vmem:[%s1 + $0x28c] sm:$0xf]
  %v187 = vld [vmem:[%s1 + $0x290] sm:$0xf]
  %v188 = vld [vmem:[%s1 + $0x294] sm:$0xf]
  %v189 = vld [vmem:[%s1 + $0x298] sm:$0xf]
  %v190 = vld [vmem:[%s1 + $0x29c] sm:$0xf]
  %v191 = vld [vmem:[%s1 + $0x2a0] sm:$0xf]
  %v192 = vld [vmem:[%s1 + $0x2a4] sm:$0xf]
  %v193 = vld [vmem:[%s1 + $0x2a8] sm:$0xf]
  %v194 = vld [vmem:[%s1 + $0x2ac] sm:$0xf]
  %v195 = vld [vmem:[%s1 + $0x2b0] sm:$0xf]
  %v196 = vld [vmem:[%s1 + $0x2b4] sm:$0xf]
  %v197 = vld [vmem:[%s1 + $0x2b8] sm:$0xf]
  %v198 = vld [vmem:[%s1 + $0x2bc] sm:$0xf]
  %v199 = vld [vmem:[%s1 + $0x2c0] sm:$0xf]
  %v200 = vld [vmem:[%s1 + $0x2c4] sm:$0xf]
  %v201 = vld [vmem:[%s1 + $0x2c8] sm:$0xf]
  %v202 = vld [vmem:[%s1 + $0x2cc] sm:$0xf]
  %v203 = vld [vmem:[%s1 + $0x2d0] sm:$0xf]
  %v204 = vld [vmem:[%s1 + $0x2d4] sm:$0xf]
  %v205 = vld [vmem:[%s1 + $0x2d8] sm:$0xf]
  %v206 = vld [vmem:[%s1 + $0x2dc] sm:$0xf]
  %v207 = vld [vmem:[%s1 + $0x2e0] sm:$0xf]
  %v208 = vld [vmem:[%s1 + $0x2e4] sm:$0xf]
  %v209 = vld [vmem:[%s1 + $0x2e8] sm:$0xf]
  %v210 = vld [vmem:[%s1 + $0x2ec] sm:$0xf]
  %v211 = vld [vmem:[%s1 + $0x2f0] sm:$0xf]
  %v212 = vld [vmem:[%s1 + $0x2f4] sm:$0xf]
  %v213 = vld [vmem:[%s1 + $0x2f8] sm:$0xf]
  %v214 = vld [vmem:[%s1 + $0x2fc] sm:$0xf]
  %v215 = vld [vmem:[%s1 + $0x300] sm:$0xf]
  %v216 = vld [vmem:[%s1 + $0x304] sm:$0xf]
  %v217 = vld [vmem:[%s1 + $0x308] sm:$0xf]
  %v218 = vld [vmem:[%s1 + $0x30c] sm:$0xf]
  %v219 = vld [vmem:[%s1 + $0x310] sm:$0xf]
  %v220 = vld [vmem:[%s1 + $0x314] sm:$0xf]
  %v221 = vld [vmem:[%s1 + $0x318] sm:$0xf]
  %v222 = vld [vmem:[%s1 + $0x31c] sm:$0xf]
  %v223 = vld [vmem:[%s1 + $0x320] sm:$0xf]
  %v224 = vld [vmem:[%s1 + $0x324] sm:$0xf]
  %v225 = vld [vmem:[%s1 + $0x328] sm:$0xf]
  %v226 = vld [vmem:[%s1 + $0x32c] sm:$0xf]
  %v227 = vld [vmem:[%s1 + $0x330] sm:$0xf]
  %v228 = vld [vmem:[%s1 + $0x334] sm:$0xf]
  %v229 = vld [vmem:[%s1 + $0x338] sm:$0xf]
  %v230 = vld [vmem:[%s1 + $0x33c] sm:$0xf]
  %v231 = vld [vmem:[%s1 + $0x340] sm:$0xf]
  %v232 = vld [vmem:[%s1 + $0x344] sm:$0xf]
  %v233 = vld [vmem:[%s1 + $0x348] sm:$0xf]
  %v234 = vld [vmem:[%s1 + $0x34c] sm:$0xf]
  %v235 = vld [vmem:[%s1 + $0x350] sm:$0xf]
  %v236 = vld [vmem:[%s1 + $0x354] sm:$0xf]
  %v237 = vld [vmem:[%s1 + $0x358] sm:$0xf]
  %v238 = vld [vmem:[%s1 + $0x35c] sm:$0xf]
  %v239 = vld [vmem:[%s1 + $0x360] sm:$0xf]
  %v240 = vld [vmem:[%s1 + $0x364] sm:$0xf]
  %v241 = vld [vmem:[%s1 + $0x368] sm:$0xf]
  %v242 = vld [vmem:[%s1 + $0x36c] sm:$0xf]
  %v243 = vld [vmem:[%s1 + $0x370] sm:$0xf]
  %v244 = vld [vmem:[%s1 + $0x374] sm:$0xf]
  %v245 = vld [vmem:[%s1 + $0x378] sm:$0xf]
  %v246 = vld [vmem:[%s1 + $0x37c] sm:$0xf]
  %v247 = vld [vmem:[%s1 + $0x380] sm:$0xf]
  %v248 = vld [vmem:[%s1 + $0x384] sm:$0xf]
  %v249 = vld [vmem:[%s1 + $0x388] sm:$0xf]
  %v250 = vld [vmem:[%s1 + $0x38c] sm:$0xf]
  %v251 = vld [vmem:[%s1 + $0x390] sm:$0xf]
  %v252 = vld [vmem:[%s1 + $0x394] sm:$0xf]
  %v253 = vld [vmem:[%s1 + $0x398] sm:$0xf]
  %v254 = vld [vmem:[%s1 + $0x39c] sm:$0xf]
  %v255 = vld [vmem:[%s1 + $0x3a0] sm:$0xf]
  %v256 = vld [vmem:[%s1 + $0x3a4] sm:$0xf]
  %v257 = vld [vmem:[%s1 + $0x3a8] sm:$0xf]
  %v258 = vld [vmem:[%s1 + $0x3ac] sm:$0xf]
  %v259 = vld [vmem:[%s1 + $0x3b0] sm:$0xf]
  %v260 = vld [vmem:[%s1 + $0x3b4] sm:$0xf]
  %v261 = vld [vmem:[%s1 + $0x3b8] sm:$0xf]
  %v262 = vld [vmem:[%s1 + $0x3bc] sm:$0xf]
  %v263 = vld [vmem:[%s2] sm:$0x1]
  %v265 = vlaneseq
  %v266 = vshrl.u32 %v265, 7
  %v267 = vsub.s32 0, %v266
  %v268 = vrot.slane %v263, %v267
  %v272 = vcombine.high %v21, %v21
  %v274 = vunpack.c.l.s4 1966171168
  %v275 = vunpack.c.0.s8 %v274
  %v276 = vlaneseq
  %v277 = vshrl.u32 %v276, 7
  %v278 = vsub.s32 %v275, %v277
  %v279 = vrot.slane %v21, %v278
  %v281 = vunpack.c.l.s4 1966171168
  %v282 = vunpack.c.0.s8 %v281
  %v283 = vlaneseq
  %v284 = vshrl.u32 %v283, 7
  %v285 = vsub.s32 %v282, %v284
  %v286 = vrot.slane %v272, %v285
  %v287 = vcombine.high %v279, %v279
  %v288 = vcombine.high %v286, %v286
  %v290 = vunpack.c.l.s4 1966171168
  %v291 = vunpack.c.0.s8 %v290
  %v292 = vlaneseq
  %v293 = vshrl.u32 %v292, 7
  %v294 = vsub.s32 %v291, %v293
  %v295 = vrot.slane %v279, %v294
  %v297 = vunpack.c.l.s4 1966171168
  %v298 = vunpack.c.0.s8 %v297
  %v299 = vlaneseq
  %v300 = vshrl.u32 %v299, 7
  %v301 = vsub.s32 %v298, %v300
  %v302 = vrot.slane %v286, %v301
  %v304 = vunpack.c.l.s4 1966171168
  %v305 = vunpack.c.0.s8 %v304
  %v306 = vlaneseq
  %v307 = vshrl.u32 %v306, 7
  %v308 = vsub.s32 %v305, %v307
  %v309 = vrot.slane %v287, %v308
  %v311 = vunpack.c.l.s4 1966171168
  %v312 = vunpack.c.0.s8 %v311
  %v313 = vlaneseq
  %v314 = vshrl.u32 %v313, 7
  %v315 = vsub.s32 %v312, %v314
  %v316 = vrot.slane %v288, %v315
  %v317 = vcombine.high %v295, %v295
  %v318 = vcombine.high %v302, %v302
  %v319 = vcombine.high %v309, %v309
  %v320 = vcombine.high %v316, %v316
  %v321 = vcombine.high %v22, %v22
  %v323 = vunpack.c.l.s4 1966171168
  %v324 = vunpack.c.0.s8 %v323
  %v325 = vlaneseq
  %v326 = vshrl.u32 %v325, 7
  %v327 = vsub.s32 %v324, %v326
  %v328 = vrot.slane %v22, %v327
  %v330 = vunpack.c.l.s4 1966171168
  %v331 = vunpack.c.0.s8 %v330
  %v332 = vlaneseq
  %v333 = vshrl.u32 %v332, 7
  %v334 = vsub.s32 %v331, %v333
  %v335 = vrot.slane %v321, %v334
  %v336 = vcombine.high %v328, %v328
  %v337 = vcombine.high %v335, %v335
  %v339 = vunpack.c.l.s4 1966171168
  %v340 = vunpack.c.0.s8 %v339
  %v341 = vlaneseq
  %v342 = vshrl.u32 %v341, 7
  %v343 = vsub.s32 %v340, %v342
  %v344 = vrot.slane %v328, %v343
  %v346 = vunpack.c.l.s4 1966171168
  %v347 = vunpack.c.0.s8 %v346
  %v348 = vlaneseq
  %v349 = vshrl.u32 %v348, 7
  %v350 = vsub.s32 %v347, %v349
  %v351 = vrot.slane %v335, %v350
  %v353 = vunpack.c.l.s4 1966171168
  %v354 = vunpack.c.0.s8 %v353
  %v355 = vlaneseq
  %v356 = vshrl.u32 %v355, 7
  %v357 = vsub.s32 %v354, %v356
  %v358 = vrot.slane %v336, %v357
  %v360 = vunpack.c.l.s4 1966171168
  %v361 = vunpack.c.0.s8 %v360
  %v362 = vlaneseq
  %v363 = vshrl.u32 %v362, 7
  %v364 = vsub.s32 %v361, %v363
  %v365 = vrot.slane %v337, %v364
  %v366 = vcombine.high %v344, %v344
  %v367 = vcombine.high %v351, %v351
  %v368 = vcombine.high %v358, %v358
  %v624 = vunpack.c.l.b16 %v23
  %v625 = vunpack.c.l.b16 %v24
  %v626 = vunpack.c.l.b16 %v25
  %v627 = vunpack.c.l.b16 %v26
  %v628 = vunpack.c.l.b16 %v27
  %v629 = vunpack.c.l.b16 %v28
  %v630 = vunpack.c.l.b16 %v29
  %v631 = vunpack.c.l.b16 %v30
  %v632 = vunpack.c.l.b16 %v31
  %v633 = vunpack.c.l.b16 %v32
  %v634 = vunpack.c.l.b16 %v33
  %v635 = vunpack.c.l.b16 %v34
  %v636 = vunpack.c.l.b16 %v35
  %v637 = vunpack.c.l.b16 %v36
  %v638 = vunpack.c.l.b16 %v37
  %v639 = vunpack.c.l.b16 %v38
  %v640 = vunpack.c.l.b16 %v39
  %v641 = vunpack.c.l.b16 %v40
  %v642 = vunpack.c.l.b16 %v41
  %v643 = vunpack.c.l.b16 %v42
  %v644 = vunpack.c.l.b16 %v43
  %v645 = vunpack.c.l.b16 %v44
  %v646 = vunpack.c.l.b16 %v45
  %v647 = vunpack.c.l.b16 %v46
  %v648 = vunpack.c.l.b16 %v47
  %v649 = vunpack.c.l.b16 %v48
  %v650 = vunpack.c.l.b16 %v49
  %v651 = vunpack.c.l.b16 %v50
  %v652 = vunpack.c.l.b16 %v51
  %v653 = vunpack.c.l.b16 %v52
  %v654 = vunpack.c.l.b16 %v53
  %v655 = vunpack.c.l.b16 %v54
  %v656 = vunpack.c.l.b16 %v55
  %v657 = vunpack.c.l.b16 %v56
  %v658 = vunpack.c.l.b16 %v57
  %v659 = vunpack.c.l.b16 %v58
  %v660 = vunpack.c.l.b16 %v59
  %v661 = vunpack.c.l.b16 %v60
  %v662 = vunpack.c.l.b16 %v61
  %v663 = vunpack.c.l.b16 %v62
  %v664 = vunpack.c.l.b16 %v63
  %v665 = vunpack.c.l.b16 %v64
  %v666 = vunpack.c.l.b16 %v65
  %v667 = vunpack.c.l.b16 %v66
  %v668 = vunpack.c.l.b16 %v67
  %v669 = vunpack.c.l.b16 %v68
  %v670 = vunpack.c.l.b16 %v69
  %v671 = vunpack.c.l.b16 %v70
  %v672 = vunpack.c.l.b16 %v71
  %v673 = vunpack.c.l.b16 %v72
  %v674 = vunpack.c.l.b16 %v73
  %v675 = vunpack.c.l.b16 %v74
  %v676 = vunpack.c.l.b16 %v75
  %v677 = vunpack.c.l.b16 %v76
  %v678 = vunpack.c.l.b16 %v77
  %v679 = vunpack.c.l.b16 %v78
  %v680 = vunpack.c.l.b16 %v79
  %v681 = vunpack.c.l.b16 %v80
  %v682 = vunpack.c.l.b16 %v81
  %v683 = vunpack.c.l.b16 %v82
  %v684 = vunpack.c.l.b16 %v83
  %v685 = vunpack.c.l.b16 %v84
  %v686 = vunpack.c.l.b16 %v85
  %v687 = vunpack.c.l.b16 %v86
  %v688 = vunpack.c.l.b16 %v87
  %v689 = vunpack.c.l.b16 %v88
  %v690 = vunpack.c.l.b16 %v89
  %v691 = vunpack.c.l.b16 %v90
  %v692 = vunpack.c.l.b16 %v91
  %v693 = vunpack.c.l.b16 %v92
  %v694 = vunpack.c.l.b16 %v93
  %v695 = vunpack.c.l.b16 %v94
  %v696 = vunpack.c.l.b16 %v95
  %v697 = vunpack.c.l.b16 %v96
  %v698 = vunpack.c.l.b16 %v97
  %v699 = vunpack.c.l.b16 %v98
  %v700 = vunpack.c.l.b16 %v99
  %v701 = vunpack.c.l.b16 %v100
  %v702 = vunpack.c.l.b16 %v101
  %v703 = vunpack.c.l.b16 %v102
  %v704 = vunpack.c.l.b16 %v103
  %v705 = vunpack.c.l.b16 %v104
  %v706 = vunpack.c.l.b16 %v105
  %v707 = vunpack.c.l.b16 %v106
  %v708 = vunpack.c.l.b16 %v107
  %v709 = vunpack.c.l.b16 %v108
  %v710 = vunpack.c.l.b16 %v109
  %v711 = vunpack.c.l.b16 %v110
  %v712 = vunpack.c.l.b16 %v111
  %v713 = vunpack.c.l.b16 %v112
  %v714 = vunpack.c.l.b16 %v113
  %v715 = vunpack.c.l.b16 %v114
  %v716 = vunpack.c.l.b16 %v115
  %v717 = vunpack.c.l.b16 %v116
  %v718 = vunpack.c.l.b16 %v117
  %v719 = vunpack.c.l.b16 %v118
  %v720 = vunpack.c.l.b16 %v119
  %v721 = vunpack.c.l.b16 %v120
  %v722 = vunpack.c.l.b16 %v121
  %v723 = vunpack.c.l.b16 %v122
  %v724 = vunpack.c.l.b16 %v123
  %v725 = vunpack.c.l.b16 %v124
  %v726 = vunpack.c.l.b16 %v125
  %v727 = vunpack.c.l.b16 %v126
  %v728 = vunpack.c.l.b16 %v127
  %v729 = vunpack.c.l.b16 %v128
  %v730 = vunpack.c.l.b16 %v129
  %v731 = vunpack.c.l.b16 %v130
  %v732 = vunpack.c.l.b16 %v131
  %v733 = vunpack.c.l.b16 %v132
  %v734 = vunpack.c.l.b16 %v133
  %v735 = vunpack.c.l.b16 %v134
  %v736 = vunpack.c.l.b16 %v135
  %v737 = vunpack.c.l.b16 %v136
  %v738 = vunpack.c.l.b16 %v137
  %v739 = vunpack.c.l.b16 %v138
  %v740 = vunpack.c.l.b16 %v139
  %v741 = vunpack.c.l.b16 %v140
  %v742 = vunpack.c.l.b16 %v141
  %v743 = vunpack.c.l.b16 %v142
  %v744 = vunpack.c.l.b16 %v143
  %v745 = vunpack.c.l.b16 %v144
  %v746 = vunpack.c.l.b16 %v145
  %v747 = vunpack.c.l.b16 %v146
  %v748 = vunpack.c.l.b16 %v147
  %v749 = vunpack.c.l.b16 %v148
  %v750 = vunpack.c.l.b16 %v149
  %v751 = vunpack.c.l.b16 %v150
  %v752 = vunpack.c.l.b16 %v151
  %v753 = vunpack.c.l.b16 %v152
  %v754 = vunpack.c.l.b16 %v153
  %v755 = vunpack.c.l.b16 %v154
  %v756 = vunpack.c.l.b16 %v155
  %v757 = vunpack.c.l.b16 %v156
  %v758 = vunpack.c.l.b16 %v157
  %v759 = vunpack.c.l.b16 %v158
  %v760 = vunpack.c.l.b16 %v159
  %v761 = vunpack.c.l.b16 %v160
  %v762 = vunpack.c.l.b16 %v161
  %v763 = vunpack.c.l.b16 %v162
  %v764 = vunpack.c.l.b16 %v163
  %v765 = vunpack.c.l.b16 %v164
  %v766 = vunpack.c.l.b16 %v165
  %v767 = vunpack.c.l.b16 %v166
  %v768 = vunpack.c.l.b16 %v167
  %v769 = vunpack.c.l.b16 %v168
  %v770 = vunpack.c.l.b16 %v169
  %v771 = vunpack.c.l.b16 %v170
  %v772 = vunpack.c.l.b16 %v171
  %v773 = vunpack.c.l.b16 %v172
  %v774 = vunpack.c.l.b16 %v173
  %v775 = vunpack.c.l.b16 %v174
  %v776 = vunpack.c.l.b16 %v175
  %v777 = vunpack.c.l.b16 %v176
  %v778 = vunpack.c.l.b16 %v177
  %v779 = vunpack.c.l.b16 %v178
  %v780 = vunpack.c.l.b16 %v179
  %v781 = vunpack.c.l.b16 %v180
  %v782 = vunpack.c.l.b16 %v181
  %v783 = vunpack.c.l.b16 %v182
  %v784 = vunpack.c.l.b16 %v183
  %v785 = vunpack.c.l.b16 %v184
  %v786 = vunpack.c.l.b16 %v185
  %v787 = vunpack.c.l.b16 %v186
  %v788 = vunpack.c.l.b16 %v187
  %v789 = vunpack.c.l.b16 %v188
  %v790 = vunpack.c.l.b16 %v189
  %v791 = vunpack.c.l.b16 %v190
  %v792 = vunpack.c.l.b16 %v191
  %v793 = vunpack.c.l.b16 %v192
  %v794 = vunpack.c.l.b16 %v193
  %v795 = vunpack.c.l.b16 %v194
  %v796 = vunpack.c.l.b16 %v195
  %v797 = vunpack.c.l.b16 %v196
  %v798 = vunpack.c.l.b16 %v197
  %v799 = vunpack.c.l.b16 %v198
  %v800 = vunpack.c.l.b16 %v199
  %v801 = vunpack.c.l.b16 %v200
  %v802 = vunpack.c.l.b16 %v201
  %v803 = vunpack.c.l.b16 %v202
  %v804 = vunpack.c.l.b16 %v203
  %v805 = vunpack.c.l.b16 %v204
  %v806 = vunpack.c.l.b16 %v205
  %v807 = vunpack.c.l.b16 %v206
  %v808 = vunpack.c.l.b16 %v207
  %v809 = vunpack.c.l.b16 %v208
  %v810 = vunpack.c.l.b16 %v209
  %v811 = vunpack.c.l.b16 %v210
  %v812 = vunpack.c.l.b16 %v211
  %v813 = vunpack.c.l.b16 %v212
  %v814 = vunpack.c.l.b16 %v213
  %v815 = vunpack.c.l.b16 %v214
  %v816 = vunpack.c.l.b16 %v215
  %v817 = vunpack.c.l.b16 %v216
  %v818 = vunpack.c.l.b16 %v217
  %v819 = vunpack.c.l.b16 %v218
  %v820 = vunpack.c.l.b16 %v219
  %v821 = vunpack.c.l.b16 %v220
  %v822 = vunpack.c.l.b16 %v221
  %v823 = vunpack.c.l.b16 %v222
  %v824 = vunpack.c.l.b16 %v223
  %v825 = vunpack.c.l.b16 %v224
  %v826 = vunpack.c.l.b16 %v225
  %v827 = vunpack.c.l.b16 %v226
  %v828 = vunpack.c.l.b16 %v227
  %v829 = vunpack.c.l.b16 %v228
  %v830 = vunpack.c.l.b16 %v229
  %v831 = vunpack.c.l.b16 %v230
  %v832 = vunpack.c.l.b16 %v231
  %v833 = vunpack.c.l.b16 %v232
  %v834 = vunpack.c.l.b16 %v233
  %v835 = vunpack.c.l.b16 %v234
  %v836 = vunpack.c.l.b16 %v235
  %v837 = vunpack.c.l.b16 %v236
  %v838 = vunpack.c.l.b16 %v237
  %v839 = vunpack.c.l.b16 %v238
  %v840 = vunpack.c.l.b16 %v239
  %v841 = vunpack.c.l.b16 %v240
  %v842 = vunpack.c.l.b16 %v241
  %v843 = vunpack.c.l.b16 %v242
  %v844 = vunpack.c.l.b16 %v243
  %v845 = vunpack.c.l.b16 %v244
  %v846 = vunpack.c.l.b16 %v245
  %v847 = vunpack.c.l.b16 %v246
  %v848 = vunpack.c.l.b16 %v247
  %v849 = vunpack.c.l.b16 %v248
  %v850 = vunpack.c.l.b16 %v249
  %v851 = vunpack.c.l.b16 %v250
  %v852 = vunpack.c.l.b16 %v251
  %v853 = vunpack.c.l.b16 %v252
  %v854 = vunpack.c.l.b16 %v253
  %v855 = vunpack.c.l.b16 %v254
  %v856 = vunpack.c.l.b16 %v255
  %v857 = vunpack.c.l.b16 %v256
  %v858 = vunpack.c.l.b16 %v257
  %v859 = vunpack.c.l.b16 %v258
  %v860 = vunpack.c.l.b16 %v259
  %v861 = vunpack.c.l.b16 %v260
  %v862 = vunpack.c.l.b16 %v261
  %v863 = vunpack.c.l.b16 %v262
  %v864 = vpack.c.b16 %v625, %v624
  %v865 = vpack.c.b16 %v627, %v626
  %v866 = vpack.c.b16 %v629, %v628
  %v867 = vpack.c.b16 %v631, %v630
  %v868 = vpack.c.b16 %v633, %v632
  %v869 = vpack.c.b16 %v635, %v634
  %v870 = vpack.c.b16 %v637, %v636
  %v871 = vpack.c.b16 %v639, %v638
  %v872 = vpack.c.b16 %v641, %v640
  %v873 = vpack.c.b16 %v643, %v642
  %v874 = vpack.c.b16 %v645, %v644
  %v875 = vpack.c.b16 %v647, %v646
  %v876 = vpack.c.b16 %v649, %v648
  %v877 = vpack.c.b16 %v651, %v650
  %v878 = vpack.c.b16 %v653, %v652
  %v879 = vpack.c.b16 %v655, %v654
  %v880 = vpack.c.b16 %v657, %v656
  %v881 = vpack.c.b16 %v659, %v658
  %v882 = vpack.c.b16 %v661, %v660
  %v883 = vpack.c.b16 %v663, %v662
  %v884 = vpack.c.b16 %v665, %v664
  %v885 = vpack.c.b16 %v667, %v666
  %v886 = vpack.c.b16 %v669, %v668
  %v887 = vpack.c.b16 %v671, %v670
  %v888 = vpack.c.b16 %v673, %v672
  %v889 = vpack.c.b16 %v675, %v674
  %v890 = vpack.c.b16 %v677, %v676
  %v891 = vpack.c.b16 %v679, %v678
  %v892 = vpack.c.b16 %v681, %v680
  %v893 = vpack.c.b16 %v683, %v682
  %v894 = vpack.c.b16 %v685, %v684
  %v895 = vpack.c.b16 %v687, %v686
  %v896 = vpack.c.b16 %v689, %v688
  %v897 = vpack.c.b16 %v691, %v690
  %v898 = vpack.c.b16 %v693, %v692
  %v899 = vpack.c.b16 %v695, %v694
  %v900 = vpack.c.b16 %v697, %v696
  %v901 = vpack.c.b16 %v699, %v698
  %v902 = vpack.c.b16 %v701, %v700
  %v903 = vpack.c.b16 %v703, %v702
  %v904 = vpack.c.b16 %v705, %v704
  %v905 = vpack.c.b16 %v707, %v706
  %v906 = vpack.c.b16 %v709, %v708
  %v907 = vpack.c.b16 %v711, %v710
  %v908 = vpack.c.b16 %v713, %v712
  %v909 = vpack.c.b16 %v715, %v714
  %v910 = vpack.c.b16 %v717, %v716
  %v911 = vpack.c.b16 %v719, %v718
  %v912 = vpack.c.b16 %v721, %v720
  %v913 = vpack.c.b16 %v723, %v722
  %v914 = vpack.c.b16 %v725, %v724
  %v915 = vpack.c.b16 %v727, %v726
  %v916 = vpack.c.b16 %v729, %v728
  %v917 = vpack.c.b16 %v731, %v730
  %v918 = vpack.c.b16 %v733, %v732
  %v919 = vpack.c.b16 %v735, %v734
  %v920 = vpack.c.b16 %v737, %v736
  %v921 = vpack.c.b16 %v739, %v738
  %v922 = vpack.c.b16 %v741, %v740
  %v923 = vpack.c.b16 %v743, %v742
  %v924 = vpack.c.b16 %v745, %v744
  %v925 = vpack.c.b16 %v747, %v746
  %v926 = vpack.c.b16 %v749, %v748
  %v927 = vpack.c.b16 %v751, %v750
  %v928 = vpack.c.b16 %v753, %v752
  %v929 = vpack.c.b16 %v755, %v754
  %v930 = vpack.c.b16 %v757, %v756
  %v931 = vpack.c.b16 %v759, %v758
  %v932 = vpack.c.b16 %v761, %v760
  %v933 = vpack.c.b16 %v763, %v762
  %v934 = vpack.c.b16 %v765, %v764
  %v935 = vpack.c.b16 %v767, %v766
  %v936 = vpack.c.b16 %v769, %v768
  %v937 = vpack.c.b16 %v771, %v770
  %v938 = vpack.c.b16 %v773, %v772
  %v939 = vpack.c.b16 %v775, %v774
  %v940 = vpack.c.b16 %v777, %v776
  %v941 = vpack.c.b16 %v779, %v778
  %v942 = vpack.c.b16 %v781, %v780
  %v943 = vpack.c.b16 %v783, %v782
  %v944 = vpack.c.b16 %v785, %v784
  %v945 = vpack.c.b16 %v787, %v786
  %v946 = vpack.c.b16 %v789, %v788
  %v947 = vpack.c.b16 %v791, %v790
  %v948 = vpack.c.b16 %v793, %v792
  %v949 = vpack.c.b16 %v795, %v794
  %v950 = vpack.c.b16 %v797, %v796
  %v951 = vpack.c.b16 %v799, %v798
  %v952 = vpack.c.b16 %v801, %v800
  %v953 = vpack.c.b16 %v803, %v802
  %v954 = vpack.c.b16 %v805, %v804
  %v955 = vpack.c.b16 %v807, %v806
  %v956 = vpack.c.b16 %v809, %v808
  %v957 = vpack.c.b16 %v811, %v810
  %v958 = vpack.c.b16 %v813, %v812
  %v959 = vpack.c.b16 %v815, %v814
  %v960 = vpack.c.b16 %v817, %v816
  %v961 = vpack.c.b16 %v819, %v818
  %v962 = vpack.c.b16 %v821, %v820
  %v963 = vpack.c.b16 %v823, %v822
  %v964 = vpack.c.b16 %v825, %v824
  %v965 = vpack.c.b16 %v827, %v826
  %v966 = vpack.c.b16 %v829, %v828
  %v967 = vpack.c.b16 %v831, %v830
  %v968 = vpack.c.b16 %v833, %v832
  %v969 = vpack.c.b16 %v835, %v834
  %v970 = vpack.c.b16 %v837, %v836
  %v971 = vpack.c.b16 %v839, %v838
  %v972 = vpack.c.b16 %v841, %v840
  %v973 = vpack.c.b16 %v843, %v842
  %v974 = vpack.c.b16 %v845, %v844
  %v975 = vpack.c.b16 %v847, %v846
  %v976 = vpack.c.b16 %v849, %v848
  %v977 = vpack.c.b16 %v851, %v850
  %v978 = vpack.c.b16 %v853, %v852
  %v979 = vpack.c.b16 %v855, %v854
  %v980 = vpack.c.b16 %v857, %v856
  %v981 = vpack.c.b16 %v859, %v858
  %v982 = vpack.c.b16 %v861, %v860
  %v983 = vpack.c.b16 %v863, %v862
  %1104 = vmatprep.subr.bf16.mxu0 0
  %1105 = vmatpush1.bf16.msra.mxu0 %v864
  %1106 = vmatprep.subr.bf16.mxu0 0
  %1107 = vmatpush1.bf16.msra.mxu0 %v865
  %1108 = vmatprep.subr.bf16.mxu0 0
  %1109 = vmatpush1.bf16.msra.mxu0 %v866
  %1110 = vmatprep.subr.bf16.mxu0 0
  %1111 = vmatpush1.bf16.msra.mxu0 %v867
  %1112 = vmatprep.subr.bf16.mxu0 0
  %1113 = vmatpush1.bf16.msra.mxu0 %v868
  %1114 = vmatprep.subr.bf16.mxu0 0
  %1115 = vmatpush1.bf16.msra.mxu0 %v869
  %1116 = vmatprep.subr.bf16.mxu0 0
  %1117 = vmatpush1.bf16.msra.mxu0 %v870
  %1118 = vmatprep.subr.bf16.mxu0 0
  %1119 = vmatpush1.bf16.msra.mxu0 %v871
  %1120 = vmatprep.subr.bf16.mxu0 0
  %1121 = vmatpush1.bf16.msra.mxu0 %v872
  %1122 = vmatprep.subr.bf16.mxu0 0
  %1123 = vmatpush1.bf16.msra.mxu0 %v873
  %1124 = vmatprep.subr.bf16.mxu0 0
  %1125 = vmatpush1.bf16.msra.mxu0 %v874
  %1126 = vmatprep.subr.bf16.mxu0 0
  %1127 = vmatpush1.bf16.msra.mxu0 %v875
  %1128 = vmatprep.subr.bf16.mxu0 0
  %1129 = vmatpush1.bf16.msra.mxu0 %v876
  %1130 = vmatprep.subr.bf16.mxu0 0
  %1131 = vmatpush1.bf16.msra.mxu0 %v877
  %1132 = vmatprep.subr.bf16.mxu0 0
  %1133 = vmatpush1.bf16.msra.mxu0 %v878
  %1134 = vmatprep.subr.bf16.mxu0 0
  %1135 = vmatpush1.bf16.msra.mxu0 %v879
  %1136 = vmatprep.mubr.bf16.mxu0 %v309
  %1137 = vmatmul.mubr.bf16.gmra.mrb[0].mxu0 %v295
  %v1138 = vpop.f32.mrb[0].mxu0
  %v1139 = vadd.f32 %v268, %v1138
  %v1140 = vpop.f32.mrb[0].mxu0
  %v1141 = vpop.f32.mrb[0].mxu0
  %v1142 = vpop.f32.mrb[0].mxu0
  %1143 = vdwg.mxu0
  %1144 = vmatprep.subr.bf16.mxu0 0
  %1145 = vmatpush1.bf16.msra.mxu0 %v880
  %1146 = vmatprep.subr.bf16.mxu0 0
  %1147 = vmatpush1.bf16.msra.mxu0 %v881
  %1148 = vmatprep.subr.bf16.mxu0 0
  %1149 = vmatpush1.bf16.msra.mxu0 %v882
  %1150 = vmatprep.subr.bf16.mxu0 0
  %1151 = vmatpush1.bf16.msra.mxu0 %v883
  %1152 = vmatprep.subr.bf16.mxu0 0
  %1153 = vmatpush1.bf16.msra.mxu0 %v884
  %1154 = vmatprep.subr.bf16.mxu0 0
  %1155 = vmatpush1.bf16.msra.mxu0 %v885
  %1156 = vmatprep.subr.bf16.mxu0 0
  %1157 = vmatpush1.bf16.msra.mxu0 %v886
  %1158 = vmatprep.subr.bf16.mxu0 0
  %1159 = vmatpush1.bf16.msra.mxu0 %v887
  %1160 = vmatprep.subr.bf16.mxu0 0
  %1161 = vmatpush1.bf16.msra.mxu0 %v888
  %1162 = vmatprep.subr.bf16.mxu0 0
  %1163 = vmatpush1.bf16.msra.mxu0 %v889
  %1164 = vmatprep.subr.bf16.mxu0 0
  %1165 = vmatpush1.bf16.msra.mxu0 %v890
  %1166 = vmatprep.subr.bf16.mxu0 0
  %1167 = vmatpush1.bf16.msra.mxu0 %v891
  %1168 = vmatprep.subr.bf16.mxu0 0
  %1169 = vmatpush1.bf16.msra.mxu0 %v892
  %1170 = vmatprep.subr.bf16.mxu0 0
  %1171 = vmatpush1.bf16.msra.mxu0 %v893
  %1172 = vmatprep.subr.bf16.mxu0 0
  %1173 = vmatpush1.bf16.msra.mxu0 %v894
  %1174 = vmatprep.subr.bf16.mxu0 0
  %1175 = vmatpush1.bf16.msra.mxu0 %v895
  %1176 = vmatprep.mubr.bf16.mxu0 %v319
  %1177 = vmatmul.mubr.bf16.gmra.mrb[0].mxu0 %v317
  %v1178 = vpop.f32.mrb[0].mxu0
  %v1179 = vadd.f32 %v1139, %v1178
  %v1180 = vpop.f32.mrb[0].mxu0
  %v1181 = vpop.f32.mrb[0].mxu0
  %v1182 = vpop.f32.mrb[0].mxu0
  %1183 = vdwg.mxu0
  %1184 = vmatprep.subr.bf16.mxu0 0
  %1185 = vmatpush1.bf16.msra.mxu0 %v896
  %1186 = vmatprep.subr.bf16.mxu0 0
  %1187 = vmatpush1.bf16.msra.mxu0 %v897
  %1188 = vmatprep.subr.bf16.mxu0 0
  %1189 = vmatpush1.bf16.msra.mxu0 %v898
  %1190 = vmatprep.subr.bf16.mxu0 0
  %1191 = vmatpush1.bf16.msra.mxu0 %v899
  %1192 = vmatprep.subr.bf16.mxu0 0
  %1193 = vmatpush1.bf16.msra.mxu0 %v900
  %1194 = vmatprep.subr.bf16.mxu0 0
  %1195 = vmatpush1.bf16.msra.mxu0 %v901
  %1196 = vmatprep.subr.bf16.mxu0 0
  %1197 = vmatpush1.bf16.msra.mxu0 %v902
  %1198 = vmatprep.subr.bf16.mxu0 0
  %1199 = vmatpush1.bf16.msra.mxu0 %v903
  %1200 = vmatprep.subr.bf16.mxu0 0
  %1201 = vmatpush1.bf16.msra.mxu0 %v904
  %1202 = vmatprep.subr.bf16.mxu0 0
  %1203 = vmatpush1.bf16.msra.mxu0 %v905
  %1204 = vmatprep.subr.bf16.mxu0 0
  %1205 = vmatpush1.bf16.msra.mxu0 %v906
  %1206 = vmatprep.subr.bf16.mxu0 0
  %1207 = vmatpush1.bf16.msra.mxu0 %v907
  %1208 = vmatprep.subr.bf16.mxu0 0
  %1209 = vmatpush1.bf16.msra.mxu0 %v908
  %1210 = vmatprep.subr.bf16.mxu0 0
  %1211 = vmatpush1.bf16.msra.mxu0 %v909
  %1212 = vmatprep.subr.bf16.mxu0 0
  %1213 = vmatpush1.bf16.msra.mxu0 %v910
  %1214 = vmatprep.subr.bf16.mxu0 0
  %1215 = vmatpush1.bf16.msra.mxu0 %v911
  %1216 = vmatprep.mubr.bf16.mxu0 %v316
  %1217 = vmatmul.mubr.bf16.gmra.mrb[0].mxu0 %v302
  %v1218 = vpop.f32.mrb[0].mxu0
  %v1219 = vadd.f32 %v1179, %v1218
  %v1220 = vpop.f32.mrb[0].mxu0
  %v1221 = vpop.f32.mrb[0].mxu0
  %v1222 = vpop.f32.mrb[0].mxu0
  %1223 = vdwg.mxu0
  %1224 = vmatprep.subr.bf16.mxu0 0
  %1225 = vmatpush1.bf16.msra.mxu0 %v912
  %1226 = vmatprep.subr.bf16.mxu0 0
  %1227 = vmatpush1.bf16.msra.mxu0 %v913
  %1228 = vmatprep.subr.bf16.mxu0 0
  %1229 = vmatpush1.bf16.msra.mxu0 %v914
  %1230 = vmatprep.subr.bf16.mxu0 0
  %1231 = vmatpush1.bf16.msra.mxu0 %v915
  %1232 = vmatprep.subr.bf16.mxu0 0
  %1233 = vmatpush1.bf16.msra.mxu0 %v916
  %1234 = vmatprep.subr.bf16.mxu0 0
  %1235 = vmatpush1.bf16.msra.mxu0 %v917
  %1236 = vmatprep.subr.bf16.mxu0 0
  %1237 = vmatpush1.bf16.msra.mxu0 %v918
  %1238 = vmatprep.subr.bf16.mxu0 0
  %1239 = vmatpush1.bf16.msra.mxu0 %v919
  %1240 = vmatprep.subr.bf16.mxu0 0
  %1241 = vmatpush1.bf16.msra.mxu0 %v920
  %1242 = vmatprep.subr.bf16.mxu0 0
  %1243 = vmatpush1.bf16.msra.mxu0 %v921
  %1244 = vmatprep.subr.bf16.mxu0 0
  %1245 = vmatpush1.bf16.msra.mxu0 %v922
  %1246 = vmatprep.subr.bf16.mxu0 0
  %1247 = vmatpush1.bf16.msra.mxu0 %v923
  %1248 = vmatprep.subr.bf16.mxu0 0
  %1249 = vmatpush1.bf16.msra.mxu0 %v924
  %1250 = vmatprep.subr.bf16.mxu0 0
  %1251 = vmatpush1.bf16.msra.mxu0 %v925
  %1252 = vmatprep.subr.bf16.mxu0 0
  %1253 = vmatpush1.bf16.msra.mxu0 %v926
  %1254 = vmatprep.subr.bf16.mxu0 0
  %1255 = vmatpush1.bf16.msra.mxu0 %v927
  %1256 = vmatprep.mubr.bf16.mxu0 %v320
  %1257 = vmatmul.mubr.bf16.gmra.mrb[0].mxu0 %v318
  %v1258 = vpop.f32.mrb[0].mxu0
  %v1259 = vadd.f32 %v1219, %v1258
  %v1260 = vpop.f32.mrb[0].mxu0
  %v1261 = vpop.f32.mrb[0].mxu0
  %v1262 = vpop.f32.mrb[0].mxu0
  %1263 = vdwg.mxu0
  %1264 = vmatprep.subr.bf16.mxu0 0
  %1265 = vmatpush1.bf16.msra.mxu0 %v928
  %1266 = vmatprep.subr.bf16.mxu0 0
  %1267 = vmatpush1.bf16.msra.mxu0 %v929
  %1268 = vmatprep.subr.bf16.mxu0 0
  %1269 = vmatpush1.bf16.msra.mxu0 %v930
  %1270 = vmatprep.subr.bf16.mxu0 0
  %1271 = vmatpush1.bf16.msra.mxu0 %v931
  %1272 = vmatprep.subr.bf16.mxu0 0
  %1273 = vmatpush1.bf16.msra.mxu0 %v932
  %1274 = vmatprep.subr.bf16.mxu0 0
  %1275 = vmatpush1.bf16.msra.mxu0 %v933
  %1276 = vmatprep.subr.bf16.mxu0 0
  %1277 = vmatpush1.bf16.msra.mxu0 %v934
  %1278 = vmatprep.subr.bf16.mxu0 0
  %1279 = vmatpush1.bf16.msra.mxu0 %v935
  %1280 = vmatprep.subr.bf16.mxu0 0
  %1281 = vmatpush1.bf16.msra.mxu0 %v936
  %1282 = vmatprep.subr.bf16.mxu0 0
  %1283 = vmatpush1.bf16.msra.mxu0 %v937
  %1284 = vmatprep.subr.bf16.mxu0 0
  %1285 = vmatpush1.bf16.msra.mxu0 %v938
  %1286 = vmatprep.subr.bf16.mxu0 0
  %1287 = vmatpush1.bf16.msra.mxu0 %v939
  %1288 = vmatprep.subr.bf16.mxu0 0
  %1289 = vmatpush1.bf16.msra.mxu0 %v940
  %1290 = vmatprep.subr.bf16.mxu0 0
  %1291 = vmatpush1.bf16.msra.mxu0 %v941
  %1292 = vmatprep.subr.bf16.mxu0 0
  %1293 = vmatpush1.bf16.msra.mxu0 %v942
  %1294 = vmatprep.subr.bf16.mxu0 0
  %1295 = vmatpush1.bf16.msra.mxu0 %v943
  %1296 = vmatprep.mubr.bf16.mxu0 %v358
  %1297 = vmatmul.mubr.bf16.gmra.mrb[0].mxu0 %v344
  %v1298 = vpop.f32.mrb[0].mxu0
  %v1299 = vadd.f32 %v1259, %v1298
  %v1300 = vpop.f32.mrb[0].mxu0
  %v1301 = vpop.f32.mrb[0].mxu0
  %v1302 = vpop.f32.mrb[0].mxu0
  %1303 = vdwg.mxu0
  %1304 = vmatprep.subr.bf16.mxu0 0
  %1305 = vmatpush1.bf16.msra.mxu0 %v944
  %1306 = vmatprep.subr.bf16.mxu0 0
  %1307 = vmatpush1.bf16.msra.mxu0 %v945
  %1308 = vmatprep.subr.bf16.mxu0 0
  %1309 = vmatpush1.bf16.msra.mxu0 %v946
  %1310 = vmatprep.subr.bf16.mxu0 0
  %1311 = vmatpush1.bf16.msra.mxu0 %v947
  %1312 = vmatprep.subr.bf16.mxu0 0
  %1313 = vmatpush1.bf16.msra.mxu0 %v948
  %1314 = vmatprep.subr.bf16.mxu0 0
  %1315 = vmatpush1.bf16.msra.mxu0 %v949
  %1316 = vmatprep.subr.bf16.mxu0 0
  %1317 = vmatpush1.bf16.msra.mxu0 %v950
  %1318 = vmatprep.subr.bf16.mxu0 0
  %1319 = vmatpush1.bf16.msra.mxu0 %v951
  %1320 = vmatprep.subr.bf16.mxu0 0
  %1321 = vmatpush1.bf16.msra.mxu0 %v952
  %1322 = vmatprep.subr.bf16.mxu0 0
  %1323 = vmatpush1.bf16.msra.mxu0 %v953
  %1324 = vmatprep.subr.bf16.mxu0 0
  %1325 = vmatpush1.bf16.msra.mxu0 %v954
  %1326 = vmatprep.subr.bf16.mxu0 0
  %1327 = vmatpush1.bf16.msra.mxu0 %v955
  %1328 = vmatprep.subr.bf16.mxu0 0
  %1329 = vmatpush1.bf16.msra.mxu0 %v956
  %1330 = vmatprep.subr.bf16.mxu0 0
  %1331 = vmatpush1.bf16.msra.mxu0 %v957
  %1332 = vmatprep.subr.bf16.mxu0 0
  %1333 = vmatpush1.bf16.msra.mxu0 %v958
  %1334 = vmatprep.subr.bf16.mxu0 0
  %1335 = vmatpush1.bf16.msra.mxu0 %v959
  %1336 = vmatprep.mubr.bf16.mxu0 %v368
  %1337 = vmatmul.mubr.bf16.gmra.mrb[0].mxu0 %v366
  %v1338 = vpop.f32.mrb[0].mxu0
  %v1339 = vadd.f32 %v1299, %v1338
  %v1340 = vpop.f32.mrb[0].mxu0
  %v1341 = vpop.f32.mrb[0].mxu0
  %v1342 = vpop.f32.mrb[0].mxu0
  %1343 = vdwg.mxu0
  %1344 = vmatprep.subr.bf16.mxu0 0
  %1345 = vmatpush1.bf16.msra.mxu0 %v960
  %1346 = vmatprep.subr.bf16.mxu0 0
  %1347 = vmatpush1.bf16.msra.mxu0 %v961
  %1348 = vmatprep.subr.bf16.mxu0 0
  %1349 = vmatpush1.bf16.msra.mxu0 %v962
  %1350 = vmatprep.subr.bf16.mxu0 0
  %1351 = vmatpush1.bf16.msra.mxu0 %v963
  %1352 = vmatprep.subr.bf16.mxu0 0
  %1353 = vmatpush1.bf16.msra.mxu0 %v964
  %1354 = vmatprep.subr.bf16.mxu0 0
  %1355 = vmatpush1.bf16.msra.mxu0 %v965
  %1356 = vmatprep.subr.bf16.mxu0 0
  %1357 = vmatpush1.bf16.msra.mxu0 %v966
  %1358 = vmatprep.subr.bf16.mxu0 0
  %1359 = vmatpush1.bf16.msra.mxu0 %v967
  %1360 = vmatprep.subr.bf16.mxu0 0
  %1361 = vmatpush1.bf16.msra.mxu0 %v968
  %1362 = vmatprep.subr.bf16.mxu0 0
  %1363 = vmatpush1.bf16.msra.mxu0 %v969
  %1364 = vmatprep.subr.bf16.mxu0 0
  %1365 = vmatpush1.bf16.msra.mxu0 %v970
  %1366 = vmatprep.subr.bf16.mxu0 0
  %1367 = vmatpush1.bf16.msra.mxu0 %v971
  %1368 = vmatprep.subr.bf16.mxu0 0
  %1369 = vmatpush1.bf16.msra.mxu0 %v972
  %1370 = vmatprep.subr.bf16.mxu0 0
  %1371 = vmatpush1.bf16.msra.mxu0 %v973
  %1372 = vmatprep.subr.bf16.mxu0 0
  %1373 = vmatpush1.bf16.msra.mxu0 %v974
  %1374 = vmatprep.subr.bf16.mxu0 0
  %1375 = vmatpush1.bf16.msra.mxu0 %v975
  %1376 = vmatprep.mubr.bf16.mxu0 %v365
  %1377 = vmatmul.mubr.bf16.gmra.mrb[0].mxu0 %v351
  %v1378 = vpop.f32.mrb[0].mxu0
  %v1379 = vadd.f32 %v1339, %v1378
  %v1380 = vpop.f32.mrb[0].mxu0
  %v1381 = vpop.f32.mrb[0].mxu0
  %v1382 = vpop.f32.mrb[0].mxu0
  %1383 = vdwg.mxu0
  %1384 = vmatprep.subr.bf16.mxu0 0
  %1385 = vmatpush1.bf16.msra.mxu0 %v976
  %1386 = vmatprep.subr.bf16.mxu0 0
  %1387 = vmatpush1.bf16.msra.mxu0 %v977
  %1388 = vmatprep.subr.bf16.mxu0 0
  %1389 = vmatpush1.bf16.msra.mxu0 %v978
  %1390 = vmatprep.subr.bf16.mxu0 0
  %1391 = vmatpush1.bf16.msra.mxu0 %v979
  %1392 = vmatprep.subr.bf16.mxu0 0
  %1393 = vmatpush1.bf16.msra.mxu0 %v980
  %1394 = vmatprep.subr.bf16.mxu0 0
  %1395 = vmatpush1.bf16.msra.mxu0 %v981
  %1396 = vmatprep.subr.bf16.mxu0 0
  %1397 = vmatpush1.bf16.msra.mxu0 %v982
  %1398 = vmatprep.subr.bf16.mxu0 0
  %1399 = vmatpush1.bf16.msra.mxu0 %v983
  %1400 = vmatprep.subr.bf16.mxu0 0
  %1401 = vmatpush1.bf16.msra.mxu0 0
  %1402 = vmatprep.subr.bf16.mxu0 0
  %1403 = vmatpush1.bf16.msra.mxu0 0
  %1404 = vmatprep.subr.bf16.mxu0 0
  %1405 = vmatpush1.bf16.msra.mxu0 0
  %1406 = vmatprep.subr.bf16.mxu0 0
  %1407 = vmatpush1.bf16.msra.mxu0 0
  %1408 = vmatprep.subr.bf16.mxu0 0
  %1409 = vmatpush1.bf16.msra.mxu0 0
  %1410 = vmatprep.subr.bf16.mxu0 0
  %1411 = vmatpush1.bf16.msra.mxu0 0
  %1412 = vmatprep.subr.bf16.mxu0 0
  %1413 = vmatpush1.bf16.msra.mxu0 0
  %1414 = vmatprep.subr.bf16.mxu0 0
  %1415 = vmatpush1.bf16.msra.mxu0 0
  %1416 = vmatprep.mubr.bf16.mxu0 0
  %1417 = vmatmul.mubr.bf16.gmra.mrb[0].mxu0 %v367
  %v1418 = vpop.f32.mrb[0].mxu0
  %v1419 = vadd.f32 %v1379, %v1418
  %v1420 = vpop.f32.mrb[0].mxu0
  %v1421 = vpop.f32.mrb[0].mxu0
  %v1422 = vpop.f32.mrb[0].mxu0
  %1423 = vdwg.mxu0
  %v1424 = vmax.f32 %v1419, 0.0
  %v1425 = vpack.c.bf16 %v1424, %v1424
  %v1426 = vld [vmem:[%s3] sm:$0xff]
  %v1427 = vld [vmem:[%s3 + $0x8] sm:$0xff]
  %v1428 = vld [vmem:[%s3 + $0x10] sm:$0xff]
  %v1429 = vld [vmem:[%s3 + $0x18] sm:$0xff]
  %v1430 = vld [vmem:[%s3 + $0x20] sm:$0xff]
  %v1431 = vld [vmem:[%s3 + $0x28] sm:$0xff]
  %v1432 = vld [vmem:[%s3 + $0x30] sm:$0xff]
  %v1433 = vld [vmem:[%s3 + $0x38] sm:$0xf]
  %v1434 = vld [vmem:[%s3 + $0x3c] sm:$0xff]
  %v1435 = vld [vmem:[%s3 + $0x44] sm:$0xff]
  %v1436 = vld [vmem:[%s3 + $0x4c] sm:$0xff]
  %v1437 = vld [vmem:[%s3 + $0x54] sm:$0xff]
  %v1438 = vld [vmem:[%s3 + $0x5c] sm:$0xff]
  %v1439 = vld [vmem:[%s3 + $0x64] sm:$0xff]
  %v1440 = vld [vmem:[%s3 + $0x6c] sm:$0xff]
  %v1441 = vld [vmem:[%s3 + $0x74] sm:$0xf]
  %v1442 = vld [vmem:[%s3 + $0x78] sm:$0xff]
  %v1443 = vld [vmem:[%s3 + $0x80] sm:$0xff]
  %v1444 = vld [vmem:[%s3 + $0x88] sm:$0xff]
  %v1445 = vld [vmem:[%s3 + $0x90] sm:$0xff]
  %v1446 = vld [vmem:[%s3 + $0x98] sm:$0xff]
  %v1447 = vld [vmem:[%s3 + $0xa0] sm:$0xff]
  %v1448 = vld [vmem:[%s3 + $0xa8] sm:$0xff]
  %v1449 = vld [vmem:[%s3 + $0xb0] sm:$0xf]
  %v1450 = vld [vmem:[%s3 + $0xb4] sm:$0xff]
  %v1451 = vld [vmem:[%s3 + $0xbc] sm:$0xff]
  %v1452 = vld [vmem:[%s3 + $0xc4] sm:$0xff]
  %v1453 = vld [vmem:[%s3 + $0xcc] sm:$0xff]
  %v1454 = vld [vmem:[%s3 + $0xd4] sm:$0xff]
  %v1455 = vld [vmem:[%s3 + $0xdc] sm:$0xff]
  %v1456 = vld [vmem:[%s3 + $0xe4] sm:$0xff]
  %v1457 = vld [vmem:[%s3 + $0xec] sm:$0xf]
  %v1458 = vld [vmem:[%s4] sm:$0xff]
  %v1459 = vld [vmem:[%s4 + $0x8] sm:$0xff]
  %v1462 = vlaneseq
  %v1463 = vshrl.u32 %v1462, 7
  %v1464 = vsub.s32 0, %v1463
  %v1465 = vrot.slane %v1458, %v1464
  %v1466 = vlaneseq
  %v1467 = vshrl.u32 %v1466, 7
  %v1468 = vsub.s32 1, %v1467
  %v1469 = vrot.slane %v1458, %v1468
  %v1470 = vlaneseq
  %v1471 = vshrl.u32 %v1470, 7
  %v1472 = vsub.s32 2, %v1471
  %v1473 = vrot.slane %v1458, %v1472
  %v1474 = vlaneseq
  %v1475 = vshrl.u32 %v1474, 7
  %v1476 = vsub.s32 3, %v1475
  %v1477 = vrot.slane %v1458, %v1476
  %v1478 = vlaneseq
  %v1479 = vshrl.u32 %v1478, 7
  %v1480 = vsub.s32 4, %v1479
  %v1481 = vrot.slane %v1458, %v1480
  %v1482 = vlaneseq
  %v1483 = vshrl.u32 %v1482, 7
  %v1484 = vsub.s32 5, %v1483
  %v1485 = vrot.slane %v1458, %v1484
  %v1486 = vlaneseq
  %v1487 = vshrl.u32 %v1486, 7
  %v1488 = vsub.s32 6, %v1487
  %v1489 = vrot.slane %v1458, %v1488
  %v1490 = vlaneseq
  %v1491 = vshrl.u32 %v1490, 7
  %v1492 = vsub.s32 7, %v1491
  %v1493 = vrot.slane %v1458, %v1492
  %v1494 = vlaneseq
  %v1495 = vshrl.u32 %v1494, 7
  %v1496 = vsub.s32 0, %v1495
  %v1497 = vrot.slane %v1459, %v1496
  %v1498 = vlaneseq
  %v1499 = vshrl.u32 %v1498, 7
  %v1500 = vsub.s32 1, %v1499
  %v1501 = vrot.slane %v1459, %v1500
  %v1502 = vlaneseq
  %v1503 = vshrl.u32 %v1502, 7
  %v1504 = vsub.s32 2, %v1503
  %v1505 = vrot.slane %v1459, %v1504
  %v1506 = vlaneseq
  %v1507 = vshrl.u32 %v1506, 7
  %v1508 = vsub.s32 3, %v1507
  %v1509 = vrot.slane %v1459, %v1508
  %v1510 = vlaneseq
  %v1511 = vshrl.u32 %v1510, 7
  %v1512 = vsub.s32 4, %v1511
  %v1513 = vrot.slane %v1459, %v1512
  %v1514 = vlaneseq
  %v1515 = vshrl.u32 %v1514, 7
  %v1516 = vsub.s32 5, %v1515
  %v1517 = vrot.slane %v1459, %v1516
  %v1518 = vlaneseq
  %v1519 = vshrl.u32 %v1518, 7
  %v1520 = vsub.s32 6, %v1519
  %v1521 = vrot.slane %v1459, %v1520
  %v1569 = vunpack.c.l.b16 %v1426
  %v1570 = vunpack.c.h.b16 %v1426
  %v1571 = vunpack.c.l.b16 %v1427
  %v1572 = vunpack.c.h.b16 %v1427
  %v1573 = vunpack.c.l.b16 %v1428
  %v1574 = vunpack.c.h.b16 %v1428
  %v1575 = vunpack.c.l.b16 %v1429
  %v1576 = vunpack.c.h.b16 %v1429
  %v1577 = vunpack.c.l.b16 %v1430
  %v1578 = vunpack.c.h.b16 %v1430
  %v1579 = vunpack.c.l.b16 %v1431
  %v1580 = vunpack.c.h.b16 %v1431
  %v1581 = vunpack.c.l.b16 %v1432
  %v1582 = vunpack.c.h.b16 %v1432
  %v1583 = vunpack.c.l.b16 %v1433
  %v1584 = vunpack.c.l.b16 %v1434
  %v1585 = vunpack.c.h.b16 %v1434
  %v1586 = vunpack.c.l.b16 %v1435
  %v1587 = vunpack.c.h.b16 %v1435
  %v1588 = vunpack.c.l.b16 %v1436
  %v1589 = vunpack.c.h.b16 %v1436
  %v1590 = vunpack.c.l.b16 %v1437
  %v1591 = vunpack.c.h.b16 %v1437
  %v1592 = vunpack.c.l.b16 %v1438
  %v1593 = vunpack.c.h.b16 %v1438
  %v1594 = vunpack.c.l.b16 %v1439
  %v1595 = vunpack.c.h.b16 %v1439
  %v1596 = vunpack.c.l.b16 %v1440
  %v1597 = vunpack.c.h.b16 %v1440
  %v1598 = vunpack.c.l.b16 %v1441
  %v1599 = vunpack.c.l.b16 %v1442
  %v1600 = vunpack.c.h.b16 %v1442
  %v1601 = vunpack.c.l.b16 %v1443
  %v1602 = vunpack.c.h.b16 %v1443
  %v1603 = vunpack.c.l.b16 %v1444
  %v1604 = vunpack.c.h.b16 %v1444
  %v1605 = vunpack.c.l.b16 %v1445
  %v1606 = vunpack.c.h.b16 %v1445
  %v1607 = vunpack.c.l.b16 %v1446
  %v1608 = vunpack.c.h.b16 %v1446
  %v1609 = vunpack.c.l.b16 %v1447
  %v1610 = vunpack.c.h.b16 %v1447
  %v1611 = vunpack.c.l.b16 %v1448
  %v1612 = vunpack.c.h.b16 %v1448
  %v1613 = vunpack.c.l.b16 %v1449
  %v1614 = vunpack.c.l.b16 %v1450
  %v1615 = vunpack.c.h.b16 %v1450
  %v1616 = vunpack.c.l.b16 %v1451
  %v1617 = vunpack.c.h.b16 %v1451
  %v1618 = vunpack.c.l.b16 %v1452
  %v1619 = vunpack.c.h.b16 %v1452
  %v1620 = vunpack.c.l.b16 %v1453
  %v1621 = vunpack.c.h.b16 %v1453
  %v1622 = vunpack.c.l.b16 %v1454
  %v1623 = vunpack.c.h.b16 %v1454
  %v1624 = vunpack.c.l.b16 %v1455
  %v1625 = vunpack.c.h.b16 %v1455
  %v1626 = vunpack.c.l.b16 %v1456
  %v1627 = vunpack.c.h.b16 %v1456
  %v1628 = vunpack.c.l.b16 %v1457
  %v1629 = vpack.c.b16 %v1584, %v1569
  %v1630 = vpack.c.b16 %v1585, %v1570
  %v1631 = vpack.c.b16 %v1586, %v1571
  %v1632 = vpack.c.b16 %v1587, %v1572
  %v1633 = vpack.c.b16 %v1588, %v1573
  %v1634 = vpack.c.b16 %v1589, %v1574
  %v1635 = vpack.c.b16 %v1590, %v1575
  %v1636 = vpack.c.b16 %v1591, %v1576
  %v1637 = vpack.c.b16 %v1592, %v1577
  %v1638 = vpack.c.b16 %v1593, %v1578
  %v1639 = vpack.c.b16 %v1594, %v1579
  %v1640 = vpack.c.b16 %v1595, %v1580
  %v1641 = vpack.c.b16 %v1596, %v1581
  %v1642 = vpack.c.b16 %v1597, %v1582
  %v1643 = vpack.c.b16 %v1598, %v1583
  %v1644 = vpack.c.b16 %v1614, %v1599
  %v1645 = vpack.c.b16 %v1615, %v1600
  %v1646 = vpack.c.b16 %v1616, %v1601
  %v1647 = vpack.c.b16 %v1617, %v1602
  %v1648 = vpack.c.b16 %v1618, %v1603
  %v1649 = vpack.c.b16 %v1619, %v1604
  %v1650 = vpack.c.b16 %v1620, %v1605
  %v1651 = vpack.c.b16 %v1621, %v1606
  %v1652 = vpack.c.b16 %v1622, %v1607
  %v1653 = vpack.c.b16 %v1623, %v1608
  %v1654 = vpack.c.b16 %v1624, %v1609
  %v1655 = vpack.c.b16 %v1625, %v1610
  %v1656 = vpack.c.b16 %v1626, %v1611
  %v1657 = vpack.c.b16 %v1627, %v1612
  %v1658 = vpack.c.b16 %v1628, %v1613
  %vm1689 = vcmask 261120
  %v1691 = vsel %vm1689, %v1425, 0
  %1693 = vmatprep.subr.bf16.mxu0 %v1630
  %1694 = vmatpush1.bf16.msra.mxu0 %v1629
  %1695 = vmatprep.subr.bf16.mxu0 %v1645
  %1696 = vmatpush1.bf16.msra.mxu0 %v1644
  %1697 = vmatprep.subr.bf16.mxu0 0
  %1698 = vmatpush1.bf16.msra.mxu0 0
  %1699 = vmatprep.subr.bf16.mxu0 0
  %1700 = vmatpush1.bf16.msra.mxu0 0
  %1701 = vmatprep.subr.bf16.mxu0 0
  %1702 = vmatpush1.bf16.msra.mxu0 0
  %1703 = vmatprep.subr.bf16.mxu0 0
  %1704 = vmatpush1.bf16.msra.mxu0 0
  %1705 = vmatprep.subr.bf16.mxu0 0
  %1706 = vmatpush1.bf16.msra.mxu0 0
  %1707 = vmatprep.subr.bf16.mxu0 0
  %1708 = vmatpush1.bf16.msra.mxu0 0
  %1709 = vmatprep.subr.bf16.mxu0 0
  %1710 = vmatpush1.bf16.msra.mxu0 0
  %1711 = vmatprep.subr.bf16.mxu0 0
  %1712 = vmatpush1.bf16.msra.mxu0 0
  %1713 = vmatprep.subr.bf16.mxu0 0
  %1714 = vmatpush1.bf16.msra.mxu0 0
  %1715 = vmatprep.subr.bf16.mxu0 0
  %1716 = vmatpush1.bf16.msra.mxu0 0
  %1717 = vmatprep.subr.bf16.mxu0 0
  %1718 = vmatpush1.bf16.msra.mxu0 0
  %1719 = vmatprep.subr.bf16.mxu0 0
  %1720 = vmatpush1.bf16.msra.mxu0 0
  %1721 = vmatprep.subr.bf16.mxu0 0
  %1722 = vmatpush1.bf16.msra.mxu0 0
  %1723 = vmatprep.subr.bf16.mxu0 0
  %1724 = vmatpush1.bf16.msra.mxu0 0
  %1725 = vmatprep.mubr.bf16.mxu0 0
  %1726 = vmatmul.mubr.bf16.gmra.mrb[0].mxu0 %v1691
  %v1727 = vpop.f32.mrb[0].mxu0
  %v1728 = vadd.f32 %v1465, %v1727
  %v1729 = vpop.f32.mrb[0].mxu0
  %v1730 = vadd.f32 %v1469, %v1729
  %v1731 = vpop.f32.mrb[0].mxu0
  %v1732 = vpop.f32.mrb[0].mxu0
  %1733 = vdwg.mxu0
  %1734 = vmatprep.subr.bf16.mxu0 %v1632
  %1735 = vmatpush1.bf16.msra.mxu0 %v1631
  %1736 = vmatprep.subr.bf16.mxu0 %v1647
  %1737 = vmatpush1.bf16.msra.mxu0 %v1646
  %1738 = vmatprep.subr.bf16.mxu0 0
  %1739 = vmatpush1.bf16.msra.mxu0 0
  %1740 = vmatprep.subr.bf16.mxu0 0
  %1741 = vmatpush1.bf16.msra.mxu0 0
  %1742 = vmatprep.subr.bf16.mxu0 0
  %1743 = vmatpush1.bf16.msra.mxu0 0
  %1744 = vmatprep.subr.bf16.mxu0 0
  %1745 = vmatpush1.bf16.msra.mxu0 0
  %1746 = vmatprep.subr.bf16.mxu0 0
  %1747 = vmatpush1.bf16.msra.mxu0 0
  %1748 = vmatprep.subr.bf16.mxu0 0
  %1749 = vmatpush1.bf16.msra.mxu0 0
  %1750 = vmatprep.subr.bf16.mxu0 0
  %1751 = vmatpush1.bf16.msra.mxu0 0
  %1752 = vmatprep.subr.bf16.mxu0 0
  %1753 = vmatpush1.bf16.msra.mxu0 0
  %1754 = vmatprep.subr.bf16.mxu0 0
  %1755 = vmatpush1.bf16.msra.mxu0 0
  %1756 = vmatprep.subr.bf16.mxu0 0
  %1757 = vmatpush1.bf16.msra.mxu0 0
  %1758 = vmatprep.subr.bf16.mxu0 0
  %1759 = vmatpush1.bf16.msra.mxu0 0
  %1760 = vmatprep.subr.bf16.mxu0 0
  %1761 = vmatpush1.bf16.msra.mxu0 0
  %1762 = vmatprep.subr.bf16.mxu0 0
  %1763 = vmatpush1.bf16.msra.mxu0 0
  %1764 = vmatprep.subr.bf16.mxu0 0
  %1765 = vmatpush1.bf16.msra.mxu0 0
  %1766 = vmatprep.mubr.bf16.mxu0 0
  %1767 = vmatmul.mubr.bf16.gmra.mrb[0].mxu0 %v1691
  %v1768 = vpop.f32.mrb[0].mxu0
  %v1769 = vadd.f32 %v1473, %v1768
  %v1770 = vpop.f32.mrb[0].mxu0
  %v1771 = vadd.f32 %v1477, %v1770
  %v1772 = vpop.f32.mrb[0].mxu0
  %v1773 = vpop.f32.mrb[0].mxu0
  %1774 = vdwg.mxu0
  %1775 = vmatprep.subr.bf16.mxu0 %v1634
  %1776 = vmatpush1.bf16.msra.mxu0 %v1633
  %1777 = vmatprep.subr.bf16.mxu0 %v1649
  %1778 = vmatpush1.bf16.msra.mxu0 %v1648
  %1779 = vmatprep.subr.bf16.mxu0 0
  %1780 = vmatpush1.bf16.msra.mxu0 0
  %1781 = vmatprep.subr.bf16.mxu0 0
  %1782 = vmatpush1.bf16.msra.mxu0 0
  %1783 = vmatprep.subr.bf16.mxu0 0
  %1784 = vmatpush1.bf16.msra.mxu0 0
  %1785 = vmatprep.subr.bf16.mxu0 0
  %1786 = vmatpush1.bf16.msra.mxu0 0
  %1787 = vmatprep.subr.bf16.mxu0 0
  %1788 = vmatpush1.bf16.msra.mxu0 0
  %1789 = vmatprep.subr.bf16.mxu0 0
  %1790 = vmatpush1.bf16.msra.mxu0 0
  %1791 = vmatprep.subr.bf16.mxu0 0
  %1792 = vmatpush1.bf16.msra.mxu0 0
  %1793 = vmatprep.subr.bf16.mxu0 0
  %1794 = vmatpush1.bf16.msra.mxu0 0
  %1795 = vmatprep.subr.bf16.mxu0 0
  %1796 = vmatpush1.bf16.msra.mxu0 0
  %1797 = vmatprep.subr.bf16.mxu0 0
  %1798 = vmatpush1.bf16.msra.mxu0 0
  %1799 = vmatprep.subr.bf16.mxu0 0
  %1800 = vmatpush1.bf16.msra.mxu0 0
  %1801 = vmatprep.subr.bf16.mxu0 0
  %1802 = vmatpush1.bf16.msra.mxu0 0
  %1803 = vmatprep.subr.bf16.mxu0 0
  %1804 = vmatpush1.bf16.msra.mxu0 0
  %1805 = vmatprep.subr.bf16.mxu0 0
  %1806 = vmatpush1.bf16.msra.mxu0 0
  %1807 = vmatprep.mubr.bf16.mxu0 0
  %1808 = vmatmul.mubr.bf16.gmra.mrb[0].mxu0 %v1691
  %v1809 = vpop.f32.mrb[0].mxu0
  %v1810 = vadd.f32 %v1481, %v1809
  %v1811 = vpop.f32.mrb[0].mxu0
  %v1812 = vadd.f32 %v1485, %v1811
  %v1813 = vpop.f32.mrb[0].mxu0
  %v1814 = vpop.f32.mrb[0].mxu0
  %1815 = vdwg.mxu0
  %1816 = vmatprep.subr.bf16.mxu0 %v1636
  %1817 = vmatpush1.bf16.msra.mxu0 %v1635
  %1818 = vmatprep.subr.bf16.mxu0 %v1651
  %1819 = vmatpush1.bf16.msra.mxu0 %v1650
  %1820 = vmatprep.subr.bf16.mxu0 0
  %1821 = vmatpush1.bf16.msra.mxu0 0
  %1822 = vmatprep.subr.bf16.mxu0 0
  %1823 = vmatpush1.bf16.msra.mxu0 0
  %1824 = vmatprep.subr.bf16.mxu0 0
  %1825 = vmatpush1.bf16.msra.mxu0 0
  %1826 = vmatprep.subr.bf16.mxu0 0
  %1827 = vmatpush1.bf16.msra.mxu0 0
  %1828 = vmatprep.subr.bf16.mxu0 0
  %1829 = vmatpush1.bf16.msra.mxu0 0
  %1830 = vmatprep.subr.bf16.mxu0 0
  %1831 = vmatpush1.bf16.msra.mxu0 0
  %1832 = vmatprep.subr.bf16.mxu0 0
  %1833 = vmatpush1.bf16.msra.mxu0 0
  %1834 = vmatprep.subr.bf16.mxu0 0
  %1835 = vmatpush1.bf16.msra.mxu0 0
  %1836 = vmatprep.subr.bf16.mxu0 0
  %1837 = vmatpush1.bf16.msra.mxu0 0
  %1838 = vmatprep.subr.bf16.mxu0 0
  %1839 = vmatpush1.bf16.msra.mxu0 0
  %1840 = vmatprep.subr.bf16.mxu0 0
  %1841 = vmatpush1.bf16.msra.mxu0 0
  %1842 = vmatprep.subr.bf16.mxu0 0
  %1843 = vmatpush1.bf16.msra.mxu0 0
  %1844 = vmatprep.subr.bf16.mxu0 0
  %1845 = vmatpush1.bf16.msra.mxu0 0
  %1846 = vmatprep.subr.bf16.mxu0 0
  %1847 = vmatpush1.bf16.msra.mxu0 0
  %1848 = vmatprep.mubr.bf16.mxu0 0
  %1849 = vmatmul.mubr.bf16.gmra.mrb[0].mxu0 %v1691
  %v1850 = vpop.f32.mrb[0].mxu0
  %v1851 = vadd.f32 %v1489, %v1850
  %v1852 = vpop.f32.mrb[0].mxu0
  %v1853 = vadd.f32 %v1493, %v1852
  %v1854 = vpop.f32.mrb[0].mxu0
  %v1855 = vpop.f32.mrb[0].mxu0
  %1856 = vdwg.mxu0
  %1857 = vmatprep.subr.bf16.mxu0 %v1638
  %1858 = vmatpush1.bf16.msra.mxu0 %v1637
  %1859 = vmatprep.subr.bf16.mxu0 %v1653
  %1860 = vmatpush1.bf16.msra.mxu0 %v1652
  %1861 = vmatprep.subr.bf16.mxu0 0
  %1862 = vmatpush1.bf16.msra.mxu0 0
  %1863 = vmatprep.subr.bf16.mxu0 0
  %1864 = vmatpush1.bf16.msra.mxu0 0
  %1865 = vmatprep.subr.bf16.mxu0 0
  %1866 = vmatpush1.bf16.msra.mxu0 0
  %1867 = vmatprep.subr.bf16.mxu0 0
  %1868 = vmatpush1.bf16.msra.mxu0 0
  %1869 = vmatprep.subr.bf16.mxu0 0
  %1870 = vmatpush1.bf16.msra.mxu0 0
  %1871 = vmatprep.subr.bf16.mxu0 0
  %1872 = vmatpush1.bf16.msra.mxu0 0
  %1873 = vmatprep.subr.bf16.mxu0 0
  %1874 = vmatpush1.bf16.msra.mxu0 0
  %1875 = vmatprep.subr.bf16.mxu0 0
  %1876 = vmatpush1.bf16.msra.mxu0 0
  %1877 = vmatprep.subr.bf16.mxu0 0
  %1878 = vmatpush1.bf16.msra.mxu0 0
  %1879 = vmatprep.subr.bf16.mxu0 0
  %1880 = vmatpush1.bf16.msra.mxu0 0
  %1881 = vmatprep.subr.bf16.mxu0 0
  %1882 = vmatpush1.bf16.msra.mxu0 0
  %1883 = vmatprep.subr.bf16.mxu0 0
  %1884 = vmatpush1.bf16.msra.mxu0 0
  %1885 = vmatprep.subr.bf16.mxu0 0
  %1886 = vmatpush1.bf16.msra.mxu0 0
  %1887 = vmatprep.subr.bf16.mxu0 0
  %1888 = vmatpush1.bf16.msra.mxu0 0
  %1889 = vmatprep.mubr.bf16.mxu0 0
  %1890 = vmatmul.mubr.bf16.gmra.mrb[0].mxu0 %v1691
  %v1891 = vpop.f32.mrb[0].mxu0
  %v1892 = vadd.f32 %v1497, %v1891
  %v1893 = vpop.f32.mrb[0].mxu0
  %v1894 = vadd.f32 %v1501, %v1893
  %v1895 = vpop.f32.mrb[0].mxu0
  %v1896 = vpop.f32.mrb[0].mxu0
  %1897 = vdwg.mxu0
  %1898 = vmatprep.subr.bf16.mxu0 %v1640
  %1899 = vmatpush1.bf16.msra.mxu0 %v1639
  %1900 = vmatprep.subr.bf16.mxu0 %v1655
  %1901 = vmatpush1.bf16.msra.mxu0 %v1654
  %1902 = vmatprep.subr.bf16.mxu0 0
  %1903 = vmatpush1.bf16.msra.mxu0 0
  %1904 = vmatprep.subr.bf16.mxu0 0
  %1905 = vmatpush1.bf16.msra.mxu0 0
  %1906 = vmatprep.subr.bf16.mxu0 0
  %1907 = vmatpush1.bf16.msra.mxu0 0
  %1908 = vmatprep.subr.bf16.mxu0 0
  %1909 = vmatpush1.bf16.msra.mxu0 0
  %1910 = vmatprep.subr.bf16.mxu0 0
  %1911 = vmatpush1.bf16.msra.mxu0 0
  %1912 = vmatprep.subr.bf16.mxu0 0
  %1913 = vmatpush1.bf16.msra.mxu0 0
  %1914 = vmatprep.subr.bf16.mxu0 0
  %1915 = vmatpush1.bf16.msra.mxu0 0
  %1916 = vmatprep.subr.bf16.mxu0 0
  %1917 = vmatpush1.bf16.msra.mxu0 0
  %1918 = vmatprep.subr.bf16.mxu0 0
  %1919 = vmatpush1.bf16.msra.mxu0 0
  %1920 = vmatprep.subr.bf16.mxu0 0
  %1921 = vmatpush1.bf16.msra.mxu0 0
  %1922 = vmatprep.subr.bf16.mxu0 0
  %1923 = vmatpush1.bf16.msra.mxu0 0
  %1924 = vmatprep.subr.bf16.mxu0 0
  %1925 = vmatpush1.bf16.msra.mxu0 0
  %1926 = vmatprep.subr.bf16.mxu0 0
  %1927 = vmatpush1.bf16.msra.mxu0 0
  %1928 = vmatprep.subr.bf16.mxu0 0
  %1929 = vmatpush1.bf16.msra.mxu0 0
  %1930 = vmatprep.mubr.bf16.mxu0 0
  %1931 = vmatmul.mubr.bf16.gmra.mrb[0].mxu0 %v1691
  %v1932 = vpop.f32.mrb[0].mxu0
  %v1933 = vadd.f32 %v1505, %v1932
  %v1934 = vpop.f32.mrb[0].mxu0
  %v1935 = vadd.f32 %v1509, %v1934
  %v1936 = vpop.f32.mrb[0].mxu0
  %v1937 = vpop.f32.mrb[0].mxu0
  %1938 = vdwg.mxu0
  %1939 = vmatprep.subr.bf16.mxu0 %v1642
  %1940 = vmatpush1.bf16.msra.mxu0 %v1641
  %1941 = vmatprep.subr.bf16.mxu0 %v1657
  %1942 = vmatpush1.bf16.msra.mxu0 %v1656
  %1943 = vmatprep.subr.bf16.mxu0 0
  %1944 = vmatpush1.bf16.msra.mxu0 0
  %1945 = vmatprep.subr.bf16.mxu0 0
  %1946 = vmatpush1.bf16.msra.mxu0 0
  %1947 = vmatprep.subr.bf16.mxu0 0
  %1948 = vmatpush1.bf16.msra.mxu0 0
  %1949 = vmatprep.subr.bf16.mxu0 0
  %1950 = vmatpush1.bf16.msra.mxu0 0
  %1951 = vmatprep.subr.bf16.mxu0 0
  %1952 = vmatpush1.bf16.msra.mxu0 0
  %1953 = vmatprep.subr.bf16.mxu0 0
  %1954 = vmatpush1.bf16.msra.mxu0 0
  %1955 = vmatprep.subr.bf16.mxu0 0
  %1956 = vmatpush1.bf16.msra.mxu0 0
  %1957 = vmatprep.subr.bf16.mxu0 0
  %1958 = vmatpush1.bf16.msra.mxu0 0
  %1959 = vmatprep.subr.bf16.mxu0 0
  %1960 = vmatpush1.bf16.msra.mxu0 0
  %1961 = vmatprep.subr.bf16.mxu0 0
  %1962 = vmatpush1.bf16.msra.mxu0 0
  %1963 = vmatprep.subr.bf16.mxu0 0
  %1964 = vmatpush1.bf16.msra.mxu0 0
  %1965 = vmatprep.subr.bf16.mxu0 0
  %1966 = vmatpush1.bf16.msra.mxu0 0
  %1967 = vmatprep.subr.bf16.mxu0 0
  %1968 = vmatpush1.bf16.msra.mxu0 0
  %1969 = vmatprep.subr.bf16.mxu0 0
  %1970 = vmatpush1.bf16.msra.mxu0 0
  %1971 = vmatprep.mubr.bf16.mxu0 0
  %1972 = vmatmul.mubr.bf16.gmra.mrb[0].mxu0 %v1691
  %v1973 = vpop.f32.mrb[0].mxu0
  %v1974 = vadd.f32 %v1513, %v1973
  %v1975 = vpop.f32.mrb[0].mxu0
  %v1976 = vadd.f32 %v1517, %v1975
  %v1977 = vpop.f32.mrb[0].mxu0
  %v1978 = vpop.f32.mrb[0].mxu0
  %1979 = vdwg.mxu0
  %1980 = vmatprep.subr.bf16.mxu0 0
  %1981 = vmatpush1.bf16.msra.mxu0 %v1643
  %1982 = vmatprep.subr.bf16.mxu0 0
  %1983 = vmatpush1.bf16.msra.mxu0 %v1658
  %1984 = vmatprep.subr.bf16.mxu0 0
  %1985 = vmatpush1.bf16.msra.mxu0 0
  %1986 = vmatprep.subr.bf16.mxu0 0
  %1987 = vmatpush1.bf16.msra.mxu0 0
  %1988 = vmatprep.subr.bf16.mxu0 0
  %1989 = vmatpush1.bf16.msra.mxu0 0
  %1990 = vmatprep.subr.bf16.mxu0 0
  %1991 = vmatpush1.bf16.msra.mxu0 0
  %1992 = vmatprep.subr.bf16.mxu0 0
  %1993 = vmatpush1.bf16.msra.mxu0 0
  %1994 = vmatprep.subr.bf16.mxu0 0
  %1995 = vmatpush1.bf16.msra.mxu0 0
  %1996 = vmatprep.subr.bf16.mxu0 0
  %1997 = vmatpush1.bf16.msra.mxu0 0
  %1998 = vmatprep.subr.bf16.mxu0 0
  %1999 = vmatpush1.bf16.msra.mxu0 0
  %2000 = vmatprep.subr.bf16.mxu0 0
  %2001 = vmatpush1.bf16.msra.mxu0 0
  %2002 = vmatprep.subr.bf16.mxu0 0
  %2003 = vmatpush1.bf16.msra.mxu0 0
  %2004 = vmatprep.subr.bf16.mxu0 0
  %2005 = vmatpush1.bf16.msra.mxu0 0
  %2006 = vmatprep.subr.bf16.mxu0 0
  %2007 = vmatpush1.bf16.msra.mxu0 0
  %2008 = vmatprep.subr.bf16.mxu0 0
  %2009 = vmatpush1.bf16.msra.mxu0 0
  %2010 = vmatprep.subr.bf16.mxu0 0
  %2011 = vmatpush1.bf16.msra.mxu0 0
  %2012 = vmatprep.mubr.bf16.mxu0 0
  %2013 = vmatmul.mubr.bf16.gmra.mrb[0].mxu0 %v1691
  %v2014 = vpop.f32.mrb[0].mxu0
  %v2015 = vadd.f32 %v1521, %v2014
  %v2016 = vpop.f32.mrb[0].mxu0
  %v2017 = vpop.f32.mrb[0].mxu0
  %v2018 = vpop.f32.mrb[0].mxu0
  %2019 = vdwg.mxu0
  %v2020 = vmax.f32 %v1728, 0.0
  %v2021 = vmax.f32 %v1730, 0.0
  %v2022 = vmax.f32 %v1769, 0.0
  %v2023 = vmax.f32 %v1771, 0.0
  %v2024 = vmax.f32 %v1810, 0.0
  %v2025 = vmax.f32 %v1812, 0.0
  %v2026 = vmax.f32 %v1851, 0.0
  %v2027 = vmax.f32 %v1853, 0.0
  %v2028 = vmax.f32 %v1892, 0.0
  %v2029 = vmax.f32 %v1894, 0.0
  %v2030 = vmax.f32 %v1933, 0.0
  %v2031 = vmax.f32 %v1935, 0.0
  %v2032 = vmax.f32 %v1974, 0.0
  %v2033 = vmax.f32 %v1976, 0.0
  %v2034 = vmax.f32 %v2015, 0.0
  %v2035 = vpack.c.bf16 %v2020, %v2020
  %v2036 = vpack.c.bf16 %v2021, %v2021
  %v2037 = vpack.c.bf16 %v2022, %v2022
  %v2038 = vpack.c.bf16 %v2023, %v2023
  %v2039 = vpack.c.bf16 %v2024, %v2024
  %v2040 = vpack.c.bf16 %v2025, %v2025
  %v2041 = vpack.c.bf16 %v2026, %v2026
  %v2042 = vpack.c.bf16 %v2027, %v2027
  %v2043 = vpack.c.bf16 %v2028, %v2028
  %v2044 = vpack.c.bf16 %v2029, %v2029
  %v2045 = vpack.c.bf16 %v2030, %v2030
  %v2046 = vpack.c.bf16 %v2031, %v2031
  %v2047 = vpack.c.bf16 %v2032, %v2032
  %v2048 = vpack.c.bf16 %v2033, %v2033
  %v2049 = vpack.c.bf16 %v2034, %v2034
  %v2065 = vcombine.low %v2035, %v2036
  %v2066 = vcombine.low %v2037, %v2038
  %v2067 = vcombine.low %v2039, %v2040
  %v2068 = vcombine.low %v2041, %v2042
  %v2070 = vunpack.c.l.s4 1966171168
  %v2071 = vunpack.c.0.s8 %v2070
  %v2072 = vlaneseq
  %v2073 = vshrl.u32 %v2072, 7
  %v2074 = vsub.s32 %v2071, %v2073
  %v2075 = vrot.slane %v2065, %v2074
  %v2077 = vunpack.c.l.s4 1966171168
  %v2078 = vunpack.c.0.s8 %v2077
  %v2079 = vlaneseq
  %v2080 = vshrl.u32 %v2079, 7
  %v2081 = vsub.s32 %v2078, %v2080
  %v2082 = vrot.slane %v2066, %v2081
  %v2084 = vunpack.c.l.s4 1966171168
  %v2085 = vunpack.c.0.s8 %v2084
  %v2086 = vlaneseq
  %v2087 = vshrl.u32 %v2086, 7
  %v2088 = vsub.s32 %v2085, %v2087
  %v2089 = vrot.slane %v2067, %v2088
  %v2091 = vunpack.c.l.s4 1966171168
  %v2092 = vunpack.c.0.s8 %v2091
  %v2093 = vlaneseq
  %v2094 = vshrl.u32 %v2093, 7
  %v2095 = vsub.s32 %v2092, %v2094
  %v2096 = vrot.slane %v2068, %v2095
  %v2097 = vcombine.low %v2075, %v2082
  %v2098 = vcombine.low %v2089, %v2096
  %v2100 = vunpack.c.l.s4 1966171168
  %v2101 = vunpack.c.0.s8 %v2100
  %v2102 = vlaneseq
  %v2103 = vshrl.u32 %v2102, 7
  %v2104 = vsub.s32 %v2101, %v2103
  %v2105 = vrot.slane %v2097, %v2104
  %v2107 = vunpack.c.l.s4 1966171168
  %v2108 = vunpack.c.0.s8 %v2107
  %v2109 = vlaneseq
  %v2110 = vshrl.u32 %v2109, 7
  %v2111 = vsub.s32 %v2108, %v2110
  %v2112 = vrot.slane %v2098, %v2111
  %v2113 = vcombine.low %v2105, %v2112
  %v2114 = vcombine.low %v2043, %v2044
  %v2115 = vcombine.low %v2045, %v2046
  %v2116 = vcombine.low %v2047, %v2048
  %v2118 = vunpack.c.l.s4 1966171168
  %v2119 = vunpack.c.0.s8 %v2118
  %v2120 = vlaneseq
  %v2121 = vshrl.u32 %v2120, 7
  %v2122 = vsub.s32 %v2119, %v2121
  %v2123 = vrot.slane %v2114, %v2122
  %v2125 = vunpack.c.l.s4 1966171168
  %v2126 = vunpack.c.0.s8 %v2125
  %v2127 = vlaneseq
  %v2128 = vshrl.u32 %v2127, 7
  %v2129 = vsub.s32 %v2126, %v2128
  %v2130 = vrot.slane %v2115, %v2129
  %v2132 = vunpack.c.l.s4 1966171168
  %v2133 = vunpack.c.0.s8 %v2132
  %v2134 = vlaneseq
  %v2135 = vshrl.u32 %v2134, 7
  %v2136 = vsub.s32 %v2133, %v2135
  %v2137 = vrot.slane %v2116, %v2136
  %v2139 = vunpack.c.l.s4 1966171168
  %v2140 = vunpack.c.0.s8 %v2139
  %v2141 = vlaneseq
  %v2142 = vshrl.u32 %v2141, 7
  %v2143 = vsub.s32 %v2140, %v2142
  %v2144 = vrot.slane %v2049, %v2143
  %v2145 = vcombine.low %v2123, %v2130
  %v2146 = vcombine.low %v2137, %v2144
  %v2148 = vunpack.c.l.s4 1966171168
  %v2149 = vunpack.c.0.s8 %v2148
  %v2150 = vlaneseq
  %v2151 = vshrl.u32 %v2150, 7
  %v2152 = vsub.s32 %v2149, %v2151
  %v2153 = vrot.slane %v2145, %v2152
  %v2155 = vunpack.c.l.s4 1966171168
  %v2156 = vunpack.c.0.s8 %v2155
  %v2157 = vlaneseq
  %v2158 = vshrl.u32 %v2157, 7
  %v2159 = vsub.s32 %v2156, %v2158
  %v2160 = vrot.slane %v2146, %v2159
  %v2161 = vcombine.low %v2153, %v2160
  %2164 = vst [vmem:[%s5] sm:$0xff] %v2113
  %2165 = vst [vmem:[%s5 + $0x8] sm:$0x7f] %v2161
  // Predicated region
  $region22: #{forward.7} parent=0 // pred_check
    _
  $region23: #{forward.7} parent=0 // pred_check_branch
    %2167 = sbr.rel (0) target = $region25
  $region24: #{forward.7} parent=0 // pred_region
    _
  $region25: #{forward.7} parent=0 // pred_fallthru
    _
  // Predicated region
  $region26: #{forward.7} parent=0 // pred_check
    _
  $region27: #{forward.7} parent=0 // pred_check_branch
    %2169 = sbr.rel (0) target = $region29
  $region28: #{forward.7} parent=0 // pred_region
    _
  $region29: #{forward.7} parent=0 // pred_fallthru
    _

// kernel: forward.8
$region0: #{forward.8}
  #allocation0 [shape = 'u32[]', space=smem, size = 0x4, offset = 0x4, fixed_abs, tag = 'smem constant byte address 0x4 - core index']
  #allocation1 [shape = 'u32[144,128]{1,0:T(1,128)}', space=vmem, size = 0x12000, scoped, tag = 'internal scratch']
  %s0 = inlined_call_operand.vmem [shape: bf16[60,256], index: 0, kind: input, shape index: {}]
  %s1 = inlined_call_operand.vmem [shape: bf16[256,128], index: 1, kind: input, shape index: {}]
  %s2 = inlined_call_operand.vmem [shape: f32[1,128], index: 2, kind: input, shape index: {}]
  %s3 = inlined_call_operand.vmem [shape: f32[1,32], index: 3, kind: input, shape index: {}]
  %s4 = inlined_call_operand.vmem [shape: f32[1,32], index: 4, kind: input, shape index: {}]
  %s5 = inlined_call_operand.vmem [shape: f32[60,1], index: 5, kind: input, shape index: {}]
  %s6 = inlined_call_operand.vmem [shape: bf16[60,128], index: 6, kind: output, shape index: {}]
  %s7 = sld [smem:[#allocation0]]
  $region34: #{forward.8} parent=0
    _
  %s9 = ssub.s32 1, %s7
  %s10 = scalar_select 0, %s9, %s7
  // Predicated region
  $region2: #{forward.8} parent=0 // pred_check
    _
  $region3: #{forward.8} parent=0 // pred_check_branch
    %12 = sbr.rel (0) target = $region5
  $region4: #{forward.8} parent=0 // pred_region
    _
  $region5: #{forward.8} parent=0 // pred_fallthru
    _
  // Predicated region
  $region6: #{forward.8} parent=0 // pred_check
    _
  $region7: #{forward.8} parent=0 // pred_check_branch
    %14 = sbr.rel (0) target = $region9
  $region8: #{forward.8} parent=0 // pred_region
    _
  $region9: #{forward.8} parent=0 // pred_fallthru
    _
  // Predicated region
  $region10: #{forward.8} parent=0 // pred_check
    _
  $region11: #{forward.8} parent=0 // pred_check_branch
    %16 = sbr.rel (0) target = $region13
  $region12: #{forward.8} parent=0 // pred_region
    _
  $region13: #{forward.8} parent=0 // pred_fallthru
    _
  // Predicated region
  $region14: #{forward.8} parent=0 // pred_check
    _
  $region15: #{forward.8} parent=0 // pred_check_branch
    %18 = sbr.rel (0) target = $region17
  $region16: #{forward.8} parent=0 // pred_region
    _
  $region17: #{forward.8} parent=0 // pred_fallthru
    _
  // Predicated region
  $region18: #{forward.8} parent=0 // pred_check
    _
  $region19: #{forward.8} parent=0 // pred_check_branch
    %20 = sbr.rel (0) target = $region21
  $region20: #{forward.8} parent=0 // pred_region
    _
  $region21: #{forward.8} parent=0 // pred_fallthru
    _
  // Predicated region
  $region22: #{forward.8} parent=0 // pred_check
    _
  $region23: #{forward.8} parent=0 // pred_check_branch
    %22 = sbr.rel (0) target = $region25
  $region24: #{forward.8} parent=0 // pred_region
    _
  $region25: #{forward.8} parent=0 // pred_fallthru
    _
  %v24 = vld [vmem:[%s0] sm:$0xff]
  %v25 = vld [vmem:[%s0 + $0x8] sm:$0xff]
  %v26 = vld [vmem:[%s0 + $0x10] sm:$0xff]
  %v27 = vld [vmem:[%s0 + $0x18] sm:$0xff]
  %v28 = vld [vmem:[%s0 + $0x20] sm:$0xff]
  %v29 = vld [vmem:[%s0 + $0x28] sm:$0xff]
  %v30 = vld [vmem:[%s0 + $0x30] sm:$0xff]
  %v31 = vld [vmem:[%s0 + $0x38] sm:$0x33]
  %v32 = vld [vmem:[%s1] sm:$0xf]
  %v33 = vld [vmem:[%s1 + $0x4] sm:$0xf]
  %v34 = vld [vmem:[%s1 + $0x8] sm:$0xf]
  %v35 = vld [vmem:[%s1 + $0xc] sm:$0xf]
  %v36 = vld [vmem:[%s1 + $0x10] sm:$0xf]
  %v37 = vld [vmem:[%s1 + $0x14] sm:$0xf]
  %v38 = vld [vmem:[%s1 + $0x18] sm:$0xf]
  %v39 = vld [vmem:[%s1 + $0x1c] sm:$0xf]
  %v40 = vld [vmem:[%s1 + $0x20] sm:$0xf]
  %v41 = vld [vmem:[%s1 + $0x24] sm:$0xf]
  %v42 = vld [vmem:[%s1 + $0x28] sm:$0xf]
  %v43 = vld [vmem:[%s1 + $0x2c] sm:$0xf]
  %v44 = vld [vmem:[%s1 + $0x30] sm:$0xf]
  %v45 = vld [vmem:[%s1 + $0x34] sm:$0xf]
  %v46 = vld [vmem:[%s1 + $0x38] sm:$0xf]
  %v47 = vld [vmem:[%s1 + $0x3c] sm:$0xf]
  %v48 = vld [vmem:[%s1 + $0x40] sm:$0xf]
  %v49 = vld [vmem:[%s1 + $0x44] sm:$0xf]
  %v50 = vld [vmem:[%s1 + $0x48] sm:$0xf]
  %v51 = vld [vmem:[%s1 + $0x4c] sm:$0xf]
  %v52 = vld [vmem:[%s1 + $0x50] sm:$0xf]
  %v53 = vld [vmem:[%s1 + $0x54] sm:$0xf]
  %v54 = vld [vmem:[%s1 + $0x58] sm:$0xf]
  %v55 = vld [vmem:[%s1 + $0x5c] sm:$0xf]
  %v56 = vld [vmem:[%s1 + $0x60] sm:$0xf]
  %v57 = vld [vmem:[%s1 + $0x64] sm:$0xf]
  %v58 = vld [vmem:[%s1 + $0x68] sm:$0xf]
  %v59 = vld [vmem:[%s1 + $0x6c] sm:$0xf]
  %v60 = vld [vmem:[%s1 + $0x70] sm:$0xf]
  %v61 = vld [vmem:[%s1 + $0x74] sm:$0xf]
  %v62 = vld [vmem:[%s1 + $0x78] sm:$0xf]
  %v63 = vld [vmem:[%s1 + $0x7c] sm:$0xf]
  %v64 = vld [vmem:[%s2] sm:$0x1]
  %v66 = vlaneseq
  %v67 = vshrl.u32 %v66, 7
  %v68 = vsub.s32 0, %v67
  %v69 = vrot.slane %v64, %v68
  %v79 = vunpack.c.l.b16 %v24
  %v80 = vunpack.c.h.b16 %v24
  %v81 = vunpack.c.l.b16 %v25
  %v82 = vunpack.c.h.b16 %v25
  %v83 = vunpack.c.l.b16 %v26
  %v84 = vunpack.c.h.b16 %v26
  %v85 = vunpack.c.l.b16 %v27
  %v86 = vunpack.c.h.b16 %v27
  %v87 = vunpack.c.l.b16 %v28
  %v88 = vunpack.c.h.b16 %v28
  %v89 = vunpack.c.l.b16 %v29
  %v90 = vunpack.c.h.b16 %v29
  %v91 = vunpack.c.l.b16 %v30
  %v92 = vunpack.c.h.b16 %v30
  %v93 = vunpack.c.l.b16 %v31
  %v94 = vunpack.c.h.b16 %v31
  %v95 = vpack.c.b16 %v81, %v79
  %v96 = vpack.c.b16 %v82, %v80
  %v97 = vpack.c.b16 %v85, %v83
  %v98 = vpack.c.b16 %v86, %v84
  %v99 = vpack.c.b16 %v89, %v87
  %v100 = vpack.c.b16 %v90, %v88
  %v101 = vpack.c.b16 %v93, %v91
  %v102 = vpack.c.b16 %v94, %v92
  %v143 = vunpack.c.l.b16 %v32
  %v144 = vunpack.c.l.b16 %v33
  %v145 = vunpack.c.l.b16 %v34
  %v146 = vunpack.c.l.b16 %v35
  %v147 = vunpack.c.l.b16 %v36
  %v148 = vunpack.c.l.b16 %v37
  %v149 = vunpack.c.l.b16 %v38
  %v150 = vunpack.c.l.b16 %v39
  %v151 = vunpack.c.l.b16 %v40
  %v152 = vunpack.c.l.b16 %v41
  %v153 = vunpack.c.l.b16 %v42
  %v154 = vunpack.c.l.b16 %v43
  %v155 = vunpack.c.l.b16 %v44
  %v156 = vunpack.c.l.b16 %v45
  %v157 = vunpack.c.l.b16 %v46
  %v158 = vunpack.c.l.b16 %v47
  %v159 = vunpack.c.l.b16 %v48
  %v160 = vunpack.c.l.b16 %v49
  %v161 = vunpack.c.l.b16 %v50
  %v162 = vunpack.c.l.b16 %v51
  %v163 = vunpack.c.l.b16 %v52
  %v164 = vunpack.c.l.b16 %v53
  %v165 = vunpack.c.l.b16 %v54
  %v166 = vunpack.c.l.b16 %v55
  %v167 = vunpack.c.l.b16 %v56
  %v168 = vunpack.c.l.b16 %v57
  %v169 = vunpack.c.l.b16 %v58
  %v170 = vunpack.c.l.b16 %v59
  %v171 = vunpack.c.l.b16 %v60
  %v172 = vunpack.c.l.b16 %v61
  %v173 = vunpack.c.l.b16 %v62
  %v174 = vunpack.c.l.b16 %v63
  %v175 = vpack.c.b16 %v144, %v143
  %v176 = vpack.c.b16 %v146, %v145
  %v177 = vpack.c.b16 %v148, %v147
  %v178 = vpack.c.b16 %v150, %v149
  %v179 = vpack.c.b16 %v152, %v151
  %v180 = vpack.c.b16 %v154, %v153
  %v181 = vpack.c.b16 %v156, %v155
  %v182 = vpack.c.b16 %v158, %v157
  %v183 = vpack.c.b16 %v160, %v159
  %v184 = vpack.c.b16 %v162, %v161
  %v185 = vpack.c.b16 %v164, %v163
  %v186 = vpack.c.b16 %v166, %v165
  %v187 = vpack.c.b16 %v168, %v167
  %v188 = vpack.c.b16 %v170, %v169
  %v189 = vpack.c.b16 %v172, %v171
  %v190 = vpack.c.b16 %v174, %v173
  %207 = vmatprep.subr.bf16.mxu0 0
  %208 = vmatpush1.bf16.msra.mxu0 %v175
  %209 = vmatprep.subr.bf16.mxu0 0
  %210 = vmatpush1.bf16.msra.mxu0 %v176
  %211 = vmatprep.subr.bf16.mxu0 0
  %212 = vmatpush1.bf16.msra.mxu0 %v177
  %213 = vmatprep.subr.bf16.mxu0 0
  %214 = vmatpush1.bf16.msra.mxu0 %v178
  %215 = vmatprep.subr.bf16.mxu0 0
  %216 = vmatpush1.bf16.msra.mxu0 %v179
  %217 = vmatprep.subr.bf16.mxu0 0
  %218 = vmatpush1.bf16.msra.mxu0 %v180
  %219 = vmatprep.subr.bf16.mxu0 0
  %220 = vmatpush1.bf16.msra.mxu0 %v181
  %221 = vmatprep.subr.bf16.mxu0 0
  %222 = vmatpush1.bf16.msra.mxu0 %v182
  %223 = vmatprep.subr.bf16.mxu0 0
  %224 = vmatpush1.bf16.msra.mxu0 %v183
  %225 = vmatprep.subr.bf16.mxu0 0
  %226 = vmatpush1.bf16.msra.mxu0 %v184
  %227 = vmatprep.subr.bf16.mxu0 0
  %228 = vmatpush1.bf16.msra.mxu0 %v185
  %229 = vmatprep.subr.bf16.mxu0 0
  %230 = vmatpush1.bf16.msra.mxu0 %v186
  %231 = vmatprep.subr.bf16.mxu0 0
  %232 = vmatpush1.bf16.msra.mxu0 %v187
  %233 = vmatprep.subr.bf16.mxu0 0
  %234 = vmatpush1.bf16.msra.mxu0 %v188
  %235 = vmatprep.subr.bf16.mxu0 0
  %236 = vmatpush1.bf16.msra.mxu0 %v189
  %237 = vmatprep.subr.bf16.mxu0 0
  %238 = vmatpush1.bf16.msra.mxu0 %v190
  %239 = vmatprep.mubr.bf16.mxu0 %v96
  %240 = vmatmul.mubr.bf16.gmra.mrb[0].mxu0 %v95
  %v241 = vpop.f32.mrb[0].mxu0
  %v242 = vadd.f32 %v69, %v241
  %v243 = vpop.f32.mrb[0].mxu0
  %v244 = vpop.f32.mrb[0].mxu0
  %v245 = vadd.f32 %v69, %v244
  %v246 = vpop.f32.mrb[0].mxu0
  %247 = vmatprep.mubr.bf16.mxu0 %v98
  %248 = vmatmul.mubr.bf16.gmra.mrb[0].mxu0 %v97
  %v249 = vpop.f32.mrb[0].mxu0
  %v250 = vadd.f32 %v69, %v249
  %v251 = vpop.f32.mrb[0].mxu0
  %v252 = vpop.f32.mrb[0].mxu0
  %v253 = vadd.f32 %v69, %v252
  %v254 = vpop.f32.mrb[0].mxu0
  %255 = vmatprep.mubr.bf16.mxu0 %v100
  %256 = vmatmul.mubr.bf16.gmra.mrb[0].mxu0 %v99
  %v257 = vpop.f32.mrb[0].mxu0
  %v258 = vadd.f32 %v69, %v257
  %v259 = vpop.f32.mrb[0].mxu0
  %v260 = vpop.f32.mrb[0].mxu0
  %v261 = vadd.f32 %v69, %v260
  %v262 = vpop.f32.mrb[0].mxu0
  %263 = vmatprep.mubr.bf16.mxu0 %v102
  %264 = vmatmul.mubr.bf16.gmra.mrb[0].mxu0 %v101
  %v265 = vpop.f32.mrb[0].mxu0
  %v266 = vadd.f32 %v69, %v265
  %v267 = vpop.f32.mrb[0].mxu0
  %v268 = vpop.f32.mrb[0].mxu0
  %v269 = vadd.f32 %v69, %v268
  %v270 = vpop.f32.mrb[0].mxu0
  %271 = vdwg.mxu0
  %v272 = vmax.f32 %v242, 0.0
  %v273 = vmax.f32 %v245, 0.0
  %v274 = vmax.f32 %v250, 0.0
  %v275 = vmax.f32 %v253, 0.0
  %v276 = vmax.f32 %v258, 0.0
  %v277 = vmax.f32 %v261, 0.0
  %v278 = vmax.f32 %v266, 0.0
  %v279 = vmax.f32 %v269, 0.0
  %v280 = vld [vmem:[%s5] sm:$0xff]
  %v281 = vld [vmem:[%s5 + $0x8] sm:$0xff]
  %v282 = vld [vmem:[%s5 + $0x10] sm:$0xff]
  %v283 = vld [vmem:[%s5 + $0x18] sm:$0xff]
  %v284 = vld [vmem:[%s5 + $0x20] sm:$0xff]
  %v285 = vld [vmem:[%s5 + $0x28] sm:$0xff]
  %v286 = vld [vmem:[%s5 + $0x30] sm:$0xff]
  %v287 = vld [vmem:[%s5 + $0x38] sm:$0xf]
  %v288 = vmul.f32 %v272, %v272
  %v289 = vmul.f32 %v273, %v273
  %v290 = vmul.f32 %v274, %v274
  %v291 = vmul.f32 %v275, %v275
  %v292 = vmul.f32 %v276, %v276
  %v293 = vmul.f32 %v277, %v277
  %v294 = vmul.f32 %v278, %v278
  %v295 = vmul.f32 %v279, %v279
  %v296 = vadd.f32 %v272, %v273
  %v297 = vadd.f32 %v296, %v274
  %v298 = vadd.f32 %v297, %v275
  %v299 = vadd.f32 %v298, %v276
  %v300 = vadd.f32 %v299, %v277
  %v301 = vadd.f32 %v300, %v278
  %vm302 = vcmask 1043456
  %v303 = vsel %vm302, %v279, 0.0
  %v304 = vadd.f32 %v301, %v303
  %v305 = vrot.slane %v304, 4
  %v306 = vadd.f32 %v304, %v305
  %v307 = vrot.slane %v306, 2
  %v308 = vadd.f32 %v306, %v307
  %v309 = vrot.slane %v308, 1
  %v310 = vadd.f32 %v308, %v309
  %v311 = vadd.f32 %v288, %v289
  %v312 = vadd.f32 %v311, %v290
  %v313 = vadd.f32 %v312, %v291
  %v314 = vadd.f32 %v313, %v292
  %v315 = vadd.f32 %v314, %v293
  %v316 = vadd.f32 %v315, %v294
  %v317 = vsel %vm302, %v295, 0.0
  %v318 = vadd.f32 %v316, %v317
  %v319 = vrot.slane %v318, 4
  %v320 = vadd.f32 %v318, %v319
  %v321 = vrot.slane %v320, 2
  %v322 = vadd.f32 %v320, %v321
  %v323 = vrot.slane %v322, 1
  %v324 = vadd.f32 %v322, %v323
  %326 = vset.pattern.permute.xlu0 0
  %327 = vperm.xlu0 %326, %v280
  %v328 = vpop.permute.xlu0 %327
  %331 = vset.pattern.permute.xlu0 0
  %332 = vperm.xlu0 %331, %v281
  %v333 = vpop.permute.xlu0 %332
  %336 = vset.pattern.permute.xlu0 0
  %337 = vperm.xlu0 %336, %v282
  %v338 = vpop.permute.xlu0 %337
  %341 = vset.pattern.permute.xlu0 0
  %342 = vperm.xlu0 %341, %v283
  %v343 = vpop.permute.xlu0 %342
  %346 = vset.pattern.permute.xlu0 0
  %347 = vperm.xlu0 %346, %v284
  %v348 = vpop.permute.xlu0 %347
  %351 = vset.pattern.permute.xlu0 0
  %352 = vperm.xlu0 %351, %v285
  %v353 = vpop.permute.xlu0 %352
  %356 = vset.pattern.permute.xlu0 0
  %357 = vperm.xlu0 %356, %v286
  %v358 = vpop.permute.xlu0 %357
  %361 = vset.pattern.permute.xlu0 0
  %362 = vperm.xlu0 %361, %v287
  %v363 = vpop.permute.xlu0 %362
  %v365 = vmul.f32 %v272, %v328
  %v366 = vmul.f32 %v273, %v333
  %v367 = vmul.f32 %v274, %v338
  %v368 = vmul.f32 %v275, %v343
  %v369 = vmul.f32 %v276, %v348
  %v370 = vmul.f32 %v277, %v353
  %v371 = vmul.f32 %v278, %v358
  %v372 = vmul.f32 %v279, %v363
  %v373 = vadd.f32 %v365, %v366
  %v374 = vadd.f32 %v373, %v367
  %v375 = vadd.f32 %v374, %v368
  %v376 = vadd.f32 %v375, %v369
  %v377 = vadd.f32 %v376, %v370
  %v378 = vadd.f32 %v377, %v371
  %v379 = vsel %vm302, %v372, 0.0
  %v380 = vadd.f32 %v378, %v379
  %v381 = vrot.slane %v380, 4
  %v382 = vadd.f32 %v380, %v381
  %v383 = vrot.slane %v382, 2
  %v384 = vadd.f32 %v382, %v383
  %v385 = vrot.slane %v384, 1
  %v386 = vadd.f32 %v384, %v385
  %v387 = vmul.f32 %v288, %v328
  %v388 = vmul.f32 %v289, %v333
  %v389 = vmul.f32 %v290, %v338
  %v390 = vmul.f32 %v291, %v343
  %v391 = vmul.f32 %v292, %v348
  %v392 = vmul.f32 %v293, %v353
  %v393 = vmul.f32 %v294, %v358
  %v394 = vmul.f32 %v295, %v363
  %v395 = vadd.f32 %v387, %v388
  %v396 = vadd.f32 %v395, %v389
  %v397 = vadd.f32 %v396, %v390
  %v398 = vadd.f32 %v397, %v391
  %v399 = vadd.f32 %v398, %v392
  %v400 = vadd.f32 %v399, %v393
  %v401 = vsel %vm302, %v394, 0.0
  %v402 = vadd.f32 %v400, %v401
  %v403 = vrot.slane %v402, 4
  %v404 = vadd.f32 %v402, %v403
  %v405 = vrot.slane %v404, 2
  %v406 = vadd.f32 %v404, %v405
  %v407 = vrot.slane %v406, 1
  %v408 = vadd.f32 %v406, %v407
  %410 = vrot.lane.b32.xlu0 %v386, 96
  %v411 = vpop.permute.xlu0 %410
  %v413 = vadd.f32 %v310, %v411
  %415 = vrot.lane.b32.xlu0 %v310, 64
  %v416 = vpop.permute.xlu0 %415
  %v418 = vadd.f32 %v413, %v416
  %419 = vrot.lane.b32.xlu0 %v386, 32
  %v420 = vpop.permute.xlu0 %419
  %v422 = vadd.f32 %v418, %v420
  %424 = vrot.lane.b32.xlu0 %v408, 96
  %v425 = vpop.permute.xlu0 %424
  %v427 = vadd.f32 %v324, %v425
  %429 = vrot.lane.b32.xlu0 %v324, 64
  %v430 = vpop.permute.xlu0 %429
  %v432 = vadd.f32 %v427, %v430
  %433 = vrot.lane.b32.xlu0 %v408, 32
  %v434 = vpop.permute.xlu0 %433
  %v436 = vadd.f32 %v432, %v434
  %v437 = vmul.f32 %v422, 0.004310345
  %v438 = vmul.f32 %v436, 0.004310345
  %v439 = vmul.f32 %v437, %v437
  %v440 = vsub.f32 %v438, %v439
  %v441 = vmax.f32 %v440, 0.0
  %v442 = vadd.f32 %v441, 1e-05
  %v443 = vrsqrt.pop %v442
  %v444 = vld [vmem:[%s3] sm:$0x1]
  %v445 = vmul.f32 %v443, %v444
  %v446 = vld [vmem:[%s4] sm:$0x1]
  %v447 = vmul.f32 %v437, %v445
  %v448 = vsub.f32 %v446, %v447
  %450 = vrot.lane.b32.xlu0 %v445, 32
  %v451 = vpop.permute.xlu0 %450
  %453 = vrot.lane.b32.xlu0 %v445, 64
  %v454 = vpop.permute.xlu0 %453
  %456 = vrot.lane.b32.xlu0 %v445, 96
  %v457 = vpop.permute.xlu0 %456
  %vm459 = vcmask 261120
  %v460 = vsel %vm459, %v445, %v451
  %vm461 = vcmask 523264
  %v462 = vsel %vm461, %v460, %v454
  %vm463 = vcmask 785408
  %v464 = vsel %vm463, %v462, %v457
  %v466 = vlaneseq
  %v467 = vshrl.u32 %v466, 7
  %v468 = vsub.s32 0, %v467
  %v469 = vrot.slane %v448, %v468
  %470 = vrot.lane.b32.xlu0 %v469, 32
  %v471 = vpop.permute.xlu0 %470
  %473 = vrot.lane.b32.xlu0 %v469, 64
  %v474 = vpop.permute.xlu0 %473
  %476 = vrot.lane.b32.xlu0 %v469, 96
  %v477 = vpop.permute.xlu0 %476
  %v479 = vsel %vm459, %v448, %v471
  %v480 = vsel %vm461, %v479, %v474
  %v481 = vsel %vm463, %v480, %v477
  %v482 = vlaneseq
  %v483 = vshrl.u32 %v482, 7
  %v484 = vsub.s32 0, %v483
  %v485 = vrot.slane %v464, %v484
  %v486 = vmul.f32 %v272, %v485
  %v487 = vmul.f32 %v273, %v485
  %v488 = vmul.f32 %v274, %v485
  %v489 = vmul.f32 %v275, %v485
  %v490 = vmul.f32 %v276, %v485
  %v491 = vmul.f32 %v277, %v485
  %v492 = vmul.f32 %v278, %v485
  %v493 = vmul.f32 %v279, %v485
  %v494 = vlaneseq
  %v495 = vshrl.u32 %v494, 7
  %v496 = vsub.s32 0, %v495
  %v497 = vrot.slane %v481, %v496
  %v498 = vadd.f32 %v486, %v497
  %v499 = vadd.f32 %v487, %v497
  %v500 = vadd.f32 %v488, %v497
  %v501 = vadd.f32 %v489, %v497
  %v502 = vadd.f32 %v490, %v497
  %v503 = vadd.f32 %v491, %v497
  %v504 = vadd.f32 %v492, %v497
  %v505 = vadd.f32 %v493, %v497
  %v506 = vpack.c.bf16 %v499, %v498
  %v507 = vpack.c.bf16 %v501, %v500
  %v508 = vpack.c.bf16 %v503, %v502
  %v509 = vpack.c.bf16 %v505, %v504
  %v514 = vunpack.c.l.b16 %v506
  %v515 = vunpack.c.h.b16 %v506
  %v516 = vunpack.c.l.b16 %v507
  %v517 = vunpack.c.h.b16 %v507
  %v518 = vunpack.c.l.b16 %v508
  %v519 = vunpack.c.h.b16 %v508
  %v520 = vunpack.c.l.b16 %v509
  %v521 = vunpack.c.h.b16 %v509
  %v522 = vpack.c.b16 %v514, %v514
  %v523 = vpack.c.b16 %v515, %v515
  %v524 = vpack.c.b16 %v516, %v516
  %v525 = vpack.c.b16 %v517, %v517
  %v526 = vpack.c.b16 %v518, %v518
  %v527 = vpack.c.b16 %v519, %v519
  %v528 = vpack.c.b16 %v520, %v520
  %v529 = vpack.c.b16 %v521, %v521
  %538 = vst [vmem:[%s6] sm:$0xf] %v522
  %539 = vst [vmem:[%s6 + $0x4] sm:$0xf] %v523
  %540 = vst [vmem:[%s6 + $0x8] sm:$0xf] %v524
  %541 = vst [vmem:[%s6 + $0xc] sm:$0xf] %v525
  %542 = vst [vmem:[%s6 + $0x10] sm:$0xf] %v526
  %543 = vst [vmem:[%s6 + $0x14] sm:$0xf] %v527
  %544 = vst [vmem:[%s6 + $0x18] sm:$0xf] %v528
  %545 = vst [vmem:[%s6 + $0x1c] sm:$0x3] %v529
  // Predicated region
  $region26: #{forward.8} parent=0 // pred_check
    _
  $region27: #{forward.8} parent=0 // pred_check_branch
    %547 = sbr.rel (0) target = $region29
  $region28: #{forward.8} parent=0 // pred_region
    _
  $region29: #{forward.8} parent=0 // pred_fallthru
    _
  // Predicated region
  $region30: #{forward.8} parent=0 // pred_check
    _
  $region31: #{forward.8} parent=0 // pred_check_branch
    %549 = sbr.rel (0) target = $region33
  $region32: #{forward.8} parent=0 // pred_region
    _
  $region33: #{forward.8} parent=0 // pred_fallthru
    _

// kernel: forward.9
$region0: #{forward.9}
  #allocation0 [shape = 'u32[]', space=smem, size = 0x4, offset = 0x4, fixed_abs, tag = 'smem constant byte address 0x4 - core index']
  #allocation1 [shape = 'u32[144,128]{1,0:T(1,128)}', space=vmem, size = 0x12000, scoped, tag = 'internal scratch']
  %s0 = inlined_call_operand.vmem [shape: bf16[232,128], index: 0, kind: input, shape index: {}]
  %s1 = inlined_call_operand.vmem [shape: bf16[128,256], index: 1, kind: input, shape index: {}]
  %s2 = inlined_call_operand.vmem [shape: f32[1,256], index: 2, kind: input, shape index: {}]
  %s3 = inlined_call_operand.vmem [shape: f32[232,256], index: 3, kind: output, shape index: {}]
  %s4 = sld [smem:[#allocation0]]
  $region22: #{forward.9} parent=0
    _
  %s6 = ssub.s32 1, %s4
  %s7 = scalar_select 0, %s6, %s4
  // Predicated region
  $region2: #{forward.9} parent=0 // pred_check
    _
  $region3: #{forward.9} parent=0 // pred_check_branch
    %9 = sbr.rel (0) target = $region5
  $region4: #{forward.9} parent=0 // pred_region
    _
  $region5: #{forward.9} parent=0 // pred_fallthru
    _
  // Predicated region
  $region6: #{forward.9} parent=0 // pred_check
    _
  $region7: #{forward.9} parent=0 // pred_check_branch
    %11 = sbr.rel (0) target = $region9
  $region8: #{forward.9} parent=0 // pred_region
    _
  $region9: #{forward.9} parent=0 // pred_fallthru
    _
  // Predicated region
  $region10: #{forward.9} parent=0 // pred_check
    _
  $region11: #{forward.9} parent=0 // pred_check_branch
    %13 = sbr.rel (0) target = $region13
  $region12: #{forward.9} parent=0 // pred_region
    _
  $region13: #{forward.9} parent=0 // pred_fallthru
    _
  %v15 = vld [vmem:[%s0] sm:$0xf]
  %v16 = vld [vmem:[%s0 + $0x4] sm:$0xf]
  %v17 = vld [vmem:[%s0 + $0x8] sm:$0xf]
  %v18 = vld [vmem:[%s0 + $0xc] sm:$0xf]
  %v19 = vld [vmem:[%s0 + $0x10] sm:$0xf]
  %v20 = vld [vmem:[%s0 + $0x14] sm:$0xf]
  %v21 = vld [vmem:[%s0 + $0x18] sm:$0xf]
  %v22 = vld [vmem:[%s0 + $0x1c] sm:$0xf]
  %v23 = vld [vmem:[%s0 + $0x20] sm:$0xf]
  %v24 = vld [vmem:[%s0 + $0x24] sm:$0xf]
  %v25 = vld [vmem:[%s0 + $0x28] sm:$0xf]
  %v26 = vld [vmem:[%s0 + $0x2c] sm:$0xf]
  %v27 = vld [vmem:[%s0 + $0x30] sm:$0xf]
  %v28 = vld [vmem:[%s0 + $0x34] sm:$0xf]
  %v29 = vld [vmem:[%s0 + $0x38] sm:$0xf]
  %v30 = vld [vmem:[%s0 + $0x3c] sm:$0xf]
  %v31 = vld [vmem:[%s0 + $0x40] sm:$0xf]
  %v32 = vld [vmem:[%s0 + $0x44] sm:$0xf]
  %v33 = vld [vmem:[%s0 + $0x48] sm:$0xf]
  %v34 = vld [vmem:[%s0 + $0x4c] sm:$0xf]
  %v35 = vld [vmem:[%s0 + $0x50] sm:$0xf]
  %v36 = vld [vmem:[%s0 + $0x54] sm:$0xf]
  %v37 = vld [vmem:[%s0 + $0x58] sm:$0xf]
  %v38 = vld [vmem:[%s0 + $0x5c] sm:$0xf]
  %v39 = vld [vmem:[%s0 + $0x60] sm:$0xf]
  %v40 = vld [vmem:[%s0 + $0x64] sm:$0xf]
  %v41 = vld [vmem:[%s0 + $0x68] sm:$0xf]
  %v42 = vld [vmem:[%s0 + $0x6c] sm:$0xf]
  %v43 = vld [vmem:[%s0 + $0x70] sm:$0xf]
  %v44 = vld [vmem:[%s1] sm:$0xff]
  %v45 = vld [vmem:[%s1 + $0x8] sm:$0xff]
  %v46 = vld [vmem:[%s1 + $0x10] sm:$0xff]
  %v47 = vld [vmem:[%s1 + $0x18] sm:$0xff]
  %v48 = vld [vmem:[%s1 + $0x20] sm:$0xff]
  %v49 = vld [vmem:[%s1 + $0x28] sm:$0xff]
  %v50 = vld [vmem:[%s1 + $0x30] sm:$0xff]
  %v51 = vld [vmem:[%s1 + $0x38] sm:$0xff]
  %v52 = vld [vmem:[%s1 + $0x40] sm:$0xff]
  %v53 = vld [vmem:[%s1 + $0x48] sm:$0xff]
  %v54 = vld [vmem:[%s1 + $0x50] sm:$0xff]
  %v55 = vld [vmem:[%s1 + $0x58] sm:$0xff]
  %v56 = vld [vmem:[%s1 + $0x60] sm:$0xff]
  %v57 = vld [vmem:[%s1 + $0x68] sm:$0xff]
  %v58 = vld [vmem:[%s1 + $0x70] sm:$0xff]
  %v59 = vld [vmem:[%s1 + $0x78] sm:$0xff]
  %v60 = vld [vmem:[%s2] sm:$0x3]
  %v62 = vlaneseq
  %v63 = vshrl.u32 %v62, 7
  %v64 = vsub.s32 0, %v63
  %v65 = vrot.slane %v60, %v64
  %v66 = vlaneseq
  %v67 = vshrl.u32 %v66, 7
  %v68 = vsub.s32 1, %v67
  %v69 = vrot.slane %v60, %v68
  %v101 = vunpack.c.l.b16 %v15
  %v102 = vunpack.c.l.b16 %v16
  %v103 = vunpack.c.l.b16 %v17
  %v104 = vunpack.c.l.b16 %v18
  %v105 = vunpack.c.l.b16 %v19
  %v106 = vunpack.c.l.b16 %v20
  %v107 = vunpack.c.l.b16 %v21
  %v108 = vunpack.c.l.b16 %v22
  %v109 = vunpack.c.l.b16 %v23
  %v110 = vunpack.c.l.b16 %v24
  %v111 = vunpack.c.l.b16 %v25
  %v112 = vunpack.c.l.b16 %v26
  %v113 = vunpack.c.l.b16 %v27
  %v114 = vunpack.c.l.b16 %v28
  %v115 = vunpack.c.l.b16 %v29
  %v116 = vunpack.c.l.b16 %v30
  %v117 = vunpack.c.l.b16 %v31
  %v118 = vunpack.c.l.b16 %v32
  %v119 = vunpack.c.l.b16 %v33
  %v120 = vunpack.c.l.b16 %v34
  %v121 = vunpack.c.l.b16 %v35
  %v122 = vunpack.c.l.b16 %v36
  %v123 = vunpack.c.l.b16 %v37
  %v124 = vunpack.c.l.b16 %v38
  %v125 = vunpack.c.l.b16 %v39
  %v126 = vunpack.c.l.b16 %v40
  %v127 = vunpack.c.l.b16 %v41
  %v128 = vunpack.c.l.b16 %v42
  %v129 = vunpack.c.l.b16 %v43
  %v130 = vpack.c.b16 %v102, %v101
  %v131 = vpack.c.b16 %v104, %v103
  %v132 = vpack.c.b16 %v106, %v105
  %v133 = vpack.c.b16 %v108, %v107
  %v134 = vpack.c.b16 %v110, %v109
  %v135 = vpack.c.b16 %v112, %v111
  %v136 = vpack.c.b16 %v114, %v113
  %v137 = vpack.c.b16 %v116, %v115
  %v138 = vpack.c.b16 %v118, %v117
  %v139 = vpack.c.b16 %v120, %v119
  %v140 = vpack.c.b16 %v122, %v121
  %v141 = vpack.c.b16 %v124, %v123
  %v142 = vpack.c.b16 %v126, %v125
  %v143 = vpack.c.b16 %v128, %v127
  %v144 = vpack.c.b16 %v129, %v129
  %v176 = vunpack.c.l.b16 %v44
  %v177 = vunpack.c.h.b16 %v44
  %v178 = vunpack.c.l.b16 %v45
  %v179 = vunpack.c.h.b16 %v45
  %v180 = vunpack.c.l.b16 %v46
  %v181 = vunpack.c.h.b16 %v46
  %v182 = vunpack.c.l.b16 %v47
  %v183 = vunpack.c.h.b16 %v47
  %v184 = vunpack.c.l.b16 %v48
  %v185 = vunpack.c.h.b16 %v48
  %v186 = vunpack.c.l.b16 %v49
  %v187 = vunpack.c.h.b16 %v49
  %v188 = vunpack.c.l.b16 %v50
  %v189 = vunpack.c.h.b16 %v50
  %v190 = vunpack.c.l.b16 %v51
  %v191 = vunpack.c.h.b16 %v51
  %v192 = vunpack.c.l.b16 %v52
  %v193 = vunpack.c.h.b16 %v52
  %v194 = vunpack.c.l.b16 %v53
  %v195 = vunpack.c.h.b16 %v53
  %v196 = vunpack.c.l.b16 %v54
  %v197 = vunpack.c.h.b16 %v54
  %v198 = vunpack.c.l.b16 %v55
  %v199 = vunpack.c.h.b16 %v55
  %v200 = vunpack.c.l.b16 %v56
  %v201 = vunpack.c.h.b16 %v56
  %v202 = vunpack.c.l.b16 %v57
  %v203 = vunpack.c.h.b16 %v57
  %v204 = vunpack.c.l.b16 %v58
  %v205 = vunpack.c.h.b16 %v58
  %v206 = vunpack.c.l.b16 %v59
  %v207 = vunpack.c.h.b16 %v59
  %v208 = vpack.c.b16 %v178, %v176
  %v209 = vpack.c.b16 %v179, %v177
  %v210 = vpack.c.b16 %v182, %v180
  %v211 = vpack.c.b16 %v183, %v181
  %v212 = vpack.c.b16 %v186, %v184
  %v213 = vpack.c.b16 %v187, %v185
  %v214 = vpack.c.b16 %v190, %v188
  %v215 = vpack.c.b16 %v191, %v189
  %v216 = vpack.c.b16 %v194, %v192
  %v217 = vpack.c.b16 %v195, %v193
  %v218 = vpack.c.b16 %v198, %v196
  %v219 = vpack.c.b16 %v199, %v197
  %v220 = vpack.c.b16 %v202, %v200
  %v221 = vpack.c.b16 %v203, %v201
  %v222 = vpack.c.b16 %v206, %v204
  %v223 = vpack.c.b16 %v207, %v205
  %240 = vmatprep.subr.bf16.mxu0 %v209
  %241 = vmatpush1.bf16.msra.mxu0 %v208
  %242 = vmatprep.subr.bf16.mxu0 %v211
  %243 = vmatpush1.bf16.msra.mxu0 %v210
  %244 = vmatprep.subr.bf16.mxu0 %v213
  %245 = vmatpush1.bf16.msra.mxu0 %v212
  %246 = vmatprep.subr.bf16.mxu0 %v215
  %247 = vmatpush1.bf16.msra.mxu0 %v214
  %248 = vmatprep.subr.bf16.mxu0 %v217
  %249 = vmatpush1.bf16.msra.mxu0 %v216
  %250 = vmatprep.subr.bf16.mxu0 %v219
  %251 = vmatpush1.bf16.msra.mxu0 %v218
  %252 = vmatprep.subr.bf16.mxu0 %v221
  %253 = vmatpush1.bf16.msra.mxu0 %v220
  %254 = vmatprep.subr.bf16.mxu0 %v223
  %255 = vmatpush1.bf16.msra.mxu0 %v222
  %256 = vmatprep.subr.bf16.mxu0 0
  %257 = vmatpush1.bf16.msra.mxu0 0
  %258 = vmatprep.subr.bf16.mxu0 0
  %259 = vmatpush1.bf16.msra.mxu0 0
  %260 = vmatprep.subr.bf16.mxu0 0
  %261 = vmatpush1.bf16.msra.mxu0 0
  %262 = vmatprep.subr.bf16.mxu0 0
  %263 = vmatpush1.bf16.msra.mxu0 0
  %264 = vmatprep.subr.bf16.mxu0 0
  %265 = vmatpush1.bf16.msra.mxu0 0
  %266 = vmatprep.subr.bf16.mxu0 0
  %267 = vmatpush1.bf16.msra.mxu0 0
  %268 = vmatprep.subr.bf16.mxu0 0
  %269 = vmatpush1.bf16.msra.mxu0 0
  %270 = vmatprep.subr.bf16.mxu0 0
  %271 = vmatpush1.bf16.msra.mxu0 0
  %272 = vmatprep.mubr.bf16.mxu0 0
  %273 = vmatmul.mubr.bf16.gmra.mrb[0].mxu0 %v130
  %v274 = vpop.f32.mrb[0].mxu0
  %v275 = vadd.f32 %v65, %v274
  %v276 = vpop.f32.mrb[0].mxu0
  %v277 = vadd.f32 %v69, %v276
  %v278 = vpop.f32.mrb[0].mxu0
  %v279 = vadd.f32 %v65, %v278
  %v280 = vpop.f32.mrb[0].mxu0
  %v281 = vadd.f32 %v69, %v280
  %282 = vmatprep.mubr.bf16.mxu0 0
  %283 = vmatmul.mubr.bf16.gmra.mrb[0].mxu0 %v131
  %v284 = vpop.f32.mrb[0].mxu0
  %v285 = vadd.f32 %v65, %v284
  %v286 = vpop.f32.mrb[0].mxu0
  %v287 = vadd.f32 %v69, %v286
  %v288 = vpop.f32.mrb[0].mxu0
  %v289 = vadd.f32 %v65, %v288
  %v290 = vpop.f32.mrb[0].mxu0
  %v291 = vadd.f32 %v69, %v290
  %292 = vmatprep.mubr.bf16.mxu0 0
  %293 = vmatmul.mubr.bf16.gmra.mrb[0].mxu0 %v132
  %v294 = vpop.f32.mrb[0].mxu0
  %v295 = vadd.f32 %v65, %v294
  %v296 = vpop.f32.mrb[0].mxu0
  %v297 = vadd.f32 %v69, %v296
  %v298 = vpop.f32.mrb[0].mxu0
  %v299 = vadd.f32 %v65, %v298
  %v300 = vpop.f32.mrb[0].mxu0
  %v301 = vadd.f32 %v69, %v300
  %302 = vmatprep.mubr.bf16.mxu0 0
  %303 = vmatmul.mubr.bf16.gmra.mrb[0].mxu0 %v133
  %v304 = vpop.f32.mrb[0].mxu0
  %v305 = vadd.f32 %v65, %v304
  %v306 = vpop.f32.mrb[0].mxu0
  %v307 = vadd.f32 %v69, %v306
  %v308 = vpop.f32.mrb[0].mxu0
  %v309 = vadd.f32 %v65, %v308
  %v310 = vpop.f32.mrb[0].mxu0
  %v311 = vadd.f32 %v69, %v310
  %312 = vmatprep.mubr.bf16.mxu0 0
  %313 = vmatmul.mubr.bf16.gmra.mrb[0].mxu0 %v134
  %v314 = vpop.f32.mrb[0].mxu0
  %v315 = vadd.f32 %v65, %v314
  %v316 = vpop.f32.mrb[0].mxu0
  %v317 = vadd.f32 %v69, %v316
  %v318 = vpop.f32.mrb[0].mxu0
  %v319 = vadd.f32 %v65, %v318
  %v320 = vpop.f32.mrb[0].mxu0
  %v321 = vadd.f32 %v69, %v320
  %322 = vmatprep.mubr.bf16.mxu0 0
  %323 = vmatmul.mubr.bf16.gmra.mrb[0].mxu0 %v135
  %v324 = vpop.f32.mrb[0].mxu0
  %v325 = vadd.f32 %v65, %v324
  %v326 = vpop.f32.mrb[0].mxu0
  %v327 = vadd.f32 %v69, %v326
  %v328 = vpop.f32.mrb[0].mxu0
  %v329 = vadd.f32 %v65, %v328
  %v330 = vpop.f32.mrb[0].mxu0
  %v331 = vadd.f32 %v69, %v330
  %332 = vmatprep.mubr.bf16.mxu0 0
  %333 = vmatmul.mubr.bf16.gmra.mrb[0].mxu0 %v136
  %v334 = vpop.f32.mrb[0].mxu0
  %v335 = vadd.f32 %v65, %v334
  %v336 = vpop.f32.mrb[0].mxu0
  %v337 = vadd.f32 %v69, %v336
  %v338 = vpop.f32.mrb[0].mxu0
  %v339 = vadd.f32 %v65, %v338
  %v340 = vpop.f32.mrb[0].mxu0
  %v341 = vadd.f32 %v69, %v340
  %342 = vmatprep.mubr.bf16.mxu0 0
  %343 = vmatmul.mubr.bf16.gmra.mrb[0].mxu0 %v137
  %v344 = vpop.f32.mrb[0].mxu0
  %v345 = vadd.f32 %v65, %v344
  %v346 = vpop.f32.mrb[0].mxu0
  %v347 = vadd.f32 %v69, %v346
  %v348 = vpop.f32.mrb[0].mxu0
  %v349 = vadd.f32 %v65, %v348
  %v350 = vpop.f32.mrb[0].mxu0
  %v351 = vadd.f32 %v69, %v350
  %352 = vmatprep.mubr.bf16.mxu0 0
  %353 = vmatmul.mubr.bf16.gmra.mrb[0].mxu0 %v138
  %v354 = vpop.f32.mrb[0].mxu0
  %v355 = vadd.f32 %v65, %v354
  %v356 = vpop.f32.mrb[0].mxu0
  %v357 = vadd.f32 %v69, %v356
  %v358 = vpop.f32.mrb[0].mxu0
  %v359 = vadd.f32 %v65, %v358
  %v360 = vpop.f32.mrb[0].mxu0
  %v361 = vadd.f32 %v69, %v360
  %362 = vmatprep.mubr.bf16.mxu0 0
  %363 = vmatmul.mubr.bf16.gmra.mrb[0].mxu0 %v139
  %v364 = vpop.f32.mrb[0].mxu0
  %v365 = vadd.f32 %v65, %v364
  %v366 = vpop.f32.mrb[0].mxu0
  %v367 = vadd.f32 %v69, %v366
  %v368 = vpop.f32.mrb[0].mxu0
  %v369 = vadd.f32 %v65, %v368
  %v370 = vpop.f32.mrb[0].mxu0
  %v371 = vadd.f32 %v69, %v370
  %372 = vmatprep.mubr.bf16.mxu0 0
  %373 = vmatmul.mubr.bf16.gmra.mrb[0].mxu0 %v140
  %v374 = vpop.f32.mrb[0].mxu0
  %v375 = vadd.f32 %v65, %v374
  %v376 = vpop.f32.mrb[0].mxu0
  %v377 = vadd.f32 %v69, %v376
  %v378 = vpop.f32.mrb[0].mxu0
  %v379 = vadd.f32 %v65, %v378
  %v380 = vpop.f32.mrb[0].mxu0
  %v381 = vadd.f32 %v69, %v380
  %382 = vmatprep.mubr.bf16.mxu0 0
  %383 = vmatmul.mubr.bf16.gmra.mrb[0].mxu0 %v141
  %v384 = vpop.f32.mrb[0].mxu0
  %v385 = vadd.f32 %v65, %v384
  %v386 = vpop.f32.mrb[0].mxu0
  %v387 = vadd.f32 %v69, %v386
  %v388 = vpop.f32.mrb[0].mxu0
  %v389 = vadd.f32 %v65, %v388
  %v390 = vpop.f32.mrb[0].mxu0
  %v391 = vadd.f32 %v69, %v390
  %392 = vmatprep.mubr.bf16.mxu0 0
  %393 = vmatmul.mubr.bf16.gmra.mrb[0].mxu0 %v142
  %v394 = vpop.f32.mrb[0].mxu0
  %v395 = vadd.f32 %v65, %v394
  %v396 = vpop.f32.mrb[0].mxu0
  %v397 = vadd.f32 %v69, %v396
  %v398 = vpop.f32.mrb[0].mxu0
  %v399 = vadd.f32 %v65, %v398
  %v400 = vpop.f32.mrb[0].mxu0
  %v401 = vadd.f32 %v69, %v400
  %402 = vmatprep.mubr.bf16.mxu0 0
  %403 = vmatmul.mubr.bf16.gmra.mrb[0].mxu0 %v143
  %v404 = vpop.f32.mrb[0].mxu0
  %v405 = vadd.f32 %v65, %v404
  %v406 = vpop.f32.mrb[0].mxu0
  %v407 = vadd.f32 %v69, %v406
  %v408 = vpop.f32.mrb[0].mxu0
  %v409 = vadd.f32 %v65, %v408
  %v410 = vpop.f32.mrb[0].mxu0
  %v411 = vadd.f32 %v69, %v410
  %412 = vmatprep.mubr.bf16.mxu0 0
  %413 = vmatmul.mubr.bf16.gmra.mrb[0].mxu0 %v144
  %v414 = vpop.f32.mrb[0].mxu0
  %v415 = vadd.f32 %v65, %v414
  %v416 = vpop.f32.mrb[0].mxu0
  %v417 = vadd.f32 %v69, %v416
  %v418 = vpop.f32.mrb[0].mxu0
  %v419 = vpop.f32.mrb[0].mxu0
  %420 = vdwg.mxu0
  %v421 = vmul.f32 %v275, 0.5
  %v422 = vmul.f32 %v277, 0.5
  %v423 = vmul.f32 %v279, 0.5
  %v424 = vmul.f32 %v281, 0.5
  %v425 = vmul.f32 %v285, 0.5
  %v426 = vmul.f32 %v287, 0.5
  %v427 = vmul.f32 %v289, 0.5
  %v428 = vmul.f32 %v291, 0.5
  %v429 = vmul.f32 %v295, 0.5
  %v430 = vmul.f32 %v297, 0.5
  %v431 = vmul.f32 %v299, 0.5
  %v432 = vmul.f32 %v301, 0.5
  %v433 = vmul.f32 %v305, 0.5
  %v434 = vmul.f32 %v307, 0.5
  %v435 = vmul.f32 %v309, 0.5
  %v436 = vmul.f32 %v311, 0.5
  %v437 = vmul.f32 %v315, 0.5
  %v438 = vmul.f32 %v317, 0.5
  %v439 = vmul.f32 %v319, 0.5
  %v440 = vmul.f32 %v321, 0.5
  %v441 = vmul.f32 %v325, 0.5
  %v442 = vmul.f32 %v327, 0.5
  %v443 = vmul.f32 %v329, 0.5
  %v444 = vmul.f32 %v331, 0.5
  %v445 = vmul.f32 %v335, 0.5
  %v446 = vmul.f32 %v337, 0.5
  %v447 = vmul.f32 %v339, 0.5
  %v448 = vmul.f32 %v341, 0.5
  %v449 = vmul.f32 %v345, 0.5
  %v450 = vmul.f32 %v347, 0.5
  %v451 = vmul.f32 %v349, 0.5
  %v452 = vmul.f32 %v351, 0.5
  %v453 = vmul.f32 %v355, 0.5
  %v454 = vmul.f32 %v357, 0.5
  %v455 = vmul.f32 %v359, 0.5
  %v456 = vmul.f32 %v361, 0.5
  %v457 = vmul.f32 %v365, 0.5
  %v458 = vmul.f32 %v367, 0.5
  %v459 = vmul.f32 %v369, 0.5
  %v460 = vmul.f32 %v371, 0.5
  %v461 = vmul.f32 %v375, 0.5
  %v462 = vmul.f32 %v377, 0.5
  %v463 = vmul.f32 %v379, 0.5
  %v464 = vmul.f32 %v381, 0.5
  %v465 = vmul.f32 %v385, 0.5
  %v466 = vmul.f32 %v387, 0.5
  %v467 = vmul.f32 %v389, 0.5
  %v468 = vmul.f32 %v391, 0.5
  %v469 = vmul.f32 %v395, 0.5
  %v470 = vmul.f32 %v397, 0.5
  %v471 = vmul.f32 %v399, 0.5
  %v472 = vmul.f32 %v401, 0.5
  %v473 = vmul.f32 %v405, 0.5
  %v474 = vmul.f32 %v407, 0.5
  %v475 = vmul.f32 %v409, 0.5
  %v476 = vmul.f32 %v411, 0.5
  %v477 = vmul.f32 %v415, 0.5
  %v478 = vmul.f32 %v417, 0.5
  %v479 = vtanh.pop %v421
  %v480 = vtanh.pop %v422
  %v481 = vtanh.pop %v423
  %v482 = vtanh.pop %v424
  %v483 = vtanh.pop %v425
  %v484 = vtanh.pop %v426
  %v485 = vtanh.pop %v427
  %v486 = vtanh.pop %v428
  %v487 = vtanh.pop %v429
  %v488 = vtanh.pop %v430
  %v489 = vtanh.pop %v431
  %v490 = vtanh.pop %v432
  %v491 = vtanh.pop %v433
  %v492 = vtanh.pop %v434
  %v493 = vtanh.pop %v435
  %v494 = vtanh.pop %v436
  %v495 = vtanh.pop %v437
  %v496 = vtanh.pop %v438
  %v497 = vtanh.pop %v439
  %v498 = vtanh.pop %v440
  %v499 = vtanh.pop %v441
  %v500 = vtanh.pop %v442
  %v501 = vtanh.pop %v443
  %v502 = vtanh.pop %v444
  %v503 = vtanh.pop %v445
  %v504 = vtanh.pop %v446
  %v505 = vtanh.pop %v447
  %v506 = vtanh.pop %v448
  %v507 = vtanh.pop %v449
  %v508 = vtanh.pop %v450
  %v509 = vtanh.pop %v451
  %v510 = vtanh.pop %v452
  %v511 = vtanh.pop %v453
  %v512 = vtanh.pop %v454
  %v513 = vtanh.pop %v455
  %v514 = vtanh.pop %v456
  %v515 = vtanh.pop %v457
  %v516 = vtanh.pop %v458
  %v517 = vtanh.pop %v459
  %v518 = vtanh.pop %v460
  %v519 = vtanh.pop %v461
  %v520 = vtanh.pop %v462
  %v521 = vtanh.pop %v463
  %v522 = vtanh.pop %v464
  %v523 = vtanh.pop %v465
  %v524 = vtanh.pop %v466
  %v525 = vtanh.pop %v467
  %v526 = vtanh.pop %v468
  %v527 = vtanh.pop %v469
  %v528 = vtanh.pop %v470
  %v529 = vtanh.pop %v471
  %v530 = vtanh.pop %v472
  %v531 = vtanh.pop %v473
  %v532 = vtanh.pop %v474
  %v533 = vtanh.pop %v475
  %v534 = vtanh.pop %v476
  %v535 = vtanh.pop %v477
  %v536 = vtanh.pop %v478
  %v537 = vadd.f32 %v479, 1.0
  %v538 = vadd.f32 %v480, 1.0
  %v539 = vadd.f32 %v481, 1.0
  %v540 = vadd.f32 %v482, 1.0
  %v541 = vadd.f32 %v483, 1.0
  %v542 = vadd.f32 %v484, 1.0
  %v543 = vadd.f32 %v485, 1.0
  %v544 = vadd.f32 %v486, 1.0
  %v545 = vadd.f32 %v487, 1.0
  %v546 = vadd.f32 %v488, 1.0
  %v547 = vadd.f32 %v489, 1.0
  %v548 = vadd.f32 %v490, 1.0
  %v549 = vadd.f32 %v491, 1.0
  %v550 = vadd.f32 %v492, 1.0
  %v551 = vadd.f32 %v493, 1.0
  %v552 = vadd.f32 %v494, 1.0
  %v553 = vadd.f32 %v495, 1.0
  %v554 = vadd.f32 %v496, 1.0
  %v555 = vadd.f32 %v497, 1.0
  %v556 = vadd.f32 %v498, 1.0
  %v557 = vadd.f32 %v499, 1.0
  %v558 = vadd.f32 %v500, 1.0
  %v559 = vadd.f32 %v501, 1.0
  %v560 = vadd.f32 %v502, 1.0
  %v561 = vadd.f32 %v503, 1.0
  %v562 = vadd.f32 %v504, 1.0
  %v563 = vadd.f32 %v505, 1.0
  %v564 = vadd.f32 %v506, 1.0
  %v565 = vadd.f32 %v507, 1.0
  %v566 = vadd.f32 %v508, 1.0
  %v567 = vadd.f32 %v509, 1.0
  %v568 = vadd.f32 %v510, 1.0
  %v569 = vadd.f32 %v511, 1.0
  %v570 = vadd.f32 %v512, 1.0
  %v571 = vadd.f32 %v513, 1.0
  %v572 = vadd.f32 %v514, 1.0
  %v573 = vadd.f32 %v515, 1.0
  %v574 = vadd.f32 %v516, 1.0
  %v575 = vadd.f32 %v517, 1.0
  %v576 = vadd.f32 %v518, 1.0
  %v577 = vadd.f32 %v519, 1.0
  %v578 = vadd.f32 %v520, 1.0
  %v579 = vadd.f32 %v521, 1.0
  %v580 = vadd.f32 %v522, 1.0
  %v581 = vadd.f32 %v523, 1.0
  %v582 = vadd.f32 %v524, 1.0
  %v583 = vadd.f32 %v525, 1.0
  %v584 = vadd.f32 %v526, 1.0
  %v585 = vadd.f32 %v527, 1.0
  %v586 = vadd.f32 %v528, 1.0
  %v587 = vadd.f32 %v529, 1.0
  %v588 = vadd.f32 %v530, 1.0
  %v589 = vadd.f32 %v531, 1.0
  %v590 = vadd.f32 %v532, 1.0
  %v591 = vadd.f32 %v533, 1.0
  %v592 = vadd.f32 %v534, 1.0
  %v593 = vadd.f32 %v535, 1.0
  %v594 = vadd.f32 %v536, 1.0
  %v595 = vmul.f32 %v537, 0.5
  %v596 = vmul.f32 %v538, 0.5
  %v597 = vmul.f32 %v539, 0.5
  %v598 = vmul.f32 %v540, 0.5
  %v599 = vmul.f32 %v541, 0.5
  %v600 = vmul.f32 %v542, 0.5
  %v601 = vmul.f32 %v543, 0.5
  %v602 = vmul.f32 %v544, 0.5
  %v603 = vmul.f32 %v545, 0.5
  %v604 = vmul.f32 %v546, 0.5
  %v605 = vmul.f32 %v547, 0.5
  %v606 = vmul.f32 %v548, 0.5
  %v607 = vmul.f32 %v549, 0.5
  %v608 = vmul.f32 %v550, 0.5
  %v609 = vmul.f32 %v551, 0.5
  %v610 = vmul.f32 %v552, 0.5
  %v611 = vmul.f32 %v553, 0.5
  %v612 = vmul.f32 %v554, 0.5
  %v613 = vmul.f32 %v555, 0.5
  %v614 = vmul.f32 %v556, 0.5
  %v615 = vmul.f32 %v557, 0.5
  %v616 = vmul.f32 %v558, 0.5
  %v617 = vmul.f32 %v559, 0.5
  %v618 = vmul.f32 %v560, 0.5
  %v619 = vmul.f32 %v561, 0.5
  %v620 = vmul.f32 %v562, 0.5
  %v621 = vmul.f32 %v563, 0.5
  %v622 = vmul.f32 %v564, 0.5
  %v623 = vmul.f32 %v565, 0.5
  %v624 = vmul.f32 %v566, 0.5
  %v625 = vmul.f32 %v567, 0.5
  %v626 = vmul.f32 %v568, 0.5
  %v627 = vmul.f32 %v569, 0.5
  %v628 = vmul.f32 %v570, 0.5
  %v629 = vmul.f32 %v571, 0.5
  %v630 = vmul.f32 %v572, 0.5
  %v631 = vmul.f32 %v573, 0.5
  %v632 = vmul.f32 %v574, 0.5
  %v633 = vmul.f32 %v575, 0.5
  %v634 = vmul.f32 %v576, 0.5
  %v635 = vmul.f32 %v577, 0.5
  %v636 = vmul.f32 %v578, 0.5
  %v637 = vmul.f32 %v579, 0.5
  %v638 = vmul.f32 %v580, 0.5
  %v639 = vmul.f32 %v581, 0.5
  %v640 = vmul.f32 %v582, 0.5
  %v641 = vmul.f32 %v583, 0.5
  %v642 = vmul.f32 %v584, 0.5
  %v643 = vmul.f32 %v585, 0.5
  %v644 = vmul.f32 %v586, 0.5
  %v645 = vmul.f32 %v587, 0.5
  %v646 = vmul.f32 %v588, 0.5
  %v647 = vmul.f32 %v589, 0.5
  %v648 = vmul.f32 %v590, 0.5
  %v649 = vmul.f32 %v591, 0.5
  %v650 = vmul.f32 %v592, 0.5
  %v651 = vmul.f32 %v593, 0.5
  %v652 = vmul.f32 %v594, 0.5
  %653 = vst [vmem:[%s3] sm:$0xff] %v595
  %654 = vst [vmem:[%s3 + $0x8] sm:$0xff] %v596
  %655 = vst [vmem:[%s3 + $0x10] sm:$0xff] %v597
  %656 = vst [vmem:[%s3 + $0x18] sm:$0xff] %v598
  %657 = vst [vmem:[%s3 + $0x20] sm:$0xff] %v599
  %658 = vst [vmem:[%s3 + $0x28] sm:$0xff] %v600
  %659 = vst [vmem:[%s3 + $0x30] sm:$0xff] %v601
  %660 = vst [vmem:[%s3 + $0x38] sm:$0xff] %v602
  %661 = vst [vmem:[%s3 + $0x40] sm:$0xff] %v603
  %662 = vst [vmem:[%s3 + $0x48] sm:$0xff] %v604
  %663 = vst [vmem:[%s3 + $0x50] sm:$0xff] %v605
  %664 = vst [vmem:[%s3 + $0x58] sm:$0xff] %v606
  %665 = vst [vmem:[%s3 + $0x60] sm:$0xff] %v607
  %666 = vst [vmem:[%s3 + $0x68] sm:$0xff] %v608
  %667 = vst [vmem:[%s3 + $0x70] sm:$0xff] %v609
  %668 = vst [vmem:[%s3 + $0x78] sm:$0xff] %v610
  %669 = vst [vmem:[%s3 + $0x80] sm:$0xff] %v611
  %670 = vst [vmem:[%s3 + $0x88] sm:$0xff] %v612
  %671 = vst [vmem:[%s3 + $0x90] sm:$0xff] %v613
  %672 = vst [vmem:[%s3 + $0x98] sm:$0xff] %v614
  %673 = vst [vmem:[%s3 + $0xa0] sm:$0xff] %v615
  %674 = vst [vmem:[%s3 + $0xa8] sm:$0xff] %v616
  %675 = vst [vmem:[%s3 + $0xb0] sm:$0xff] %v617
  %676 = vst [vmem:[%s3 + $0xb8] sm:$0xff] %v618
  %677 = vst [vmem:[%s3 + $0xc0] sm:$0xff] %v619
  %678 = vst [vmem:[%s3 + $0xc8] sm:$0xff] %v620
  %679 = vst [vmem:[%s3 + $0xd0] sm:$0xff] %v621
  %680 = vst [vmem:[%s3 + $0xd8] sm:$0xff] %v622
  %681 = vst [vmem:[%s3 + $0xe0] sm:$0xff] %v623
  %682 = vst [vmem:[%s3 + $0xe8] sm:$0xff] %v624
  %683 = vst [vmem:[%s3 + $0xf0] sm:$0xff] %v625
  %684 = vst [vmem:[%s3 + $0xf8] sm:$0xff] %v626
  %685 = vst [vmem:[%s3 + $0x100] sm:$0xff] %v627
  %686 = vst [vmem:[%s3 + $0x108] sm:$0xff] %v628
  %687 = vst [vmem:[%s3 + $0x110] sm:$0xff] %v629
  %688 = vst [vmem:[%s3 + $0x118] sm:$0xff] %v630
  %689 = vst [vmem:[%s3 + $0x120] sm:$0xff] %v631
  %690 = vst [vmem:[%s3 + $0x128] sm:$0xff] %v632
  %691 = vst [vmem:[%s3 + $0x130] sm:$0xff] %v633
  %692 = vst [vmem:[%s3 + $0x138] sm:$0xff] %v634
  %693 = vst [vmem:[%s3 + $0x140] sm:$0xff] %v635
  %694 = vst [vmem:[%s3 + $0x148] sm:$0xff] %v636
  %695 = vst [vmem:[%s3 + $0x150] sm:$0xff] %v637
  %696 = vst [vmem:[%s3 + $0x158] sm:$0xff] %v638
  %697 = vst [vmem:[%s3 + $0x160] sm:$0xff] %v639
  %698 = vst [vmem:[%s3 + $0x168] sm:$0xff] %v640
  %699 = vst [vmem:[%s3 + $0x170] sm:$0xff] %v641
  %700 = vst [vmem:[%s3 + $0x178] sm:$0xff] %v642
  %701 = vst [vmem:[%s3 + $0x180] sm:$0xff] %v643
  %702 = vst [vmem:[%s3 + $0x188] sm:$0xff] %v644
  %703 = vst [vmem:[%s3 + $0x190] sm:$0xff] %v645
  %704 = vst [vmem:[%s3 + $0x198] sm:$0xff] %v646
  %705 = vst [vmem:[%s3 + $0x1a0] sm:$0xff] %v647
  %706 = vst [vmem:[%s3 + $0x1a8] sm:$0xff] %v648
  %707 = vst [vmem:[%s3 + $0x1b0] sm:$0xff] %v649
  %708 = vst [vmem:[%s3 + $0x1b8] sm:$0xff] %v650
  %709 = vst [vmem:[%s3 + $0x1c0] sm:$0xff] %v651
  %710 = vst [vmem:[%s3 + $0x1c8] sm:$0xff] %v652
  // Predicated region
  $region14: #{forward.9} parent=0 // pred_check
    _
  $region15: #{forward.9} parent=0 // pred_check_branch
    %712 = sbr.rel (0) target = $region17
  $region16: #{forward.9} parent=0 // pred_region
    _
  $region17: #{forward.9} parent=0 // pred_fallthru
    _
  // Predicated region
  $region18: #{forward.9} parent=0 // pred_check
    _
  $region19: #{forward.9} parent=0 // pred_check_branch
    %714 = sbr.rel (0) target = $region21
  $region20: #{forward.9} parent=0 // pred_region
    _
  $region21: #{forward.9} parent=0 // pred_fallthru
    _

</llo_original>
